<compile_context>
chip_gen: v5e
topology: v5e:2x2
jax: 0.10.0
libtpu: 0.0.40
codegen_flags: <defaults>
</compile_context>

<pallas_src>
import jax
import jax.numpy as jnp
from jax.experimental import pallas as pl
from jax.experimental.pallas import tpu as pltpu


# -----------------------------------------------------------------------------
# Fused kernel: one grid step = one batch block (Bn, C*P) @ (C*P, E) on the MXU
# -----------------------------------------------------------------------------
def _gdc_matmul_kernel(x_ref, w_ref, b_ref, o_ref):
    acc = jnp.dot(x_ref[...], w_ref[...], preferred_element_type=jnp.float32)
    o_ref[...] = (acc + b_ref[...]).astype(o_ref.dtype)


def _choose_block_n(n):
    # Multiple of 8 (full-sublane stores); prefer >= 2 grid steps so the v7x
    # megacore can split the batch; cap at 32 so 2x(Bn x C*P) activation buffers
    # + the resident 12.25 MiB fused weight stay well inside VMEM on all chips.
    if n <= 8:
        return 8
    bn = max(8, ((n // 2) // 8) * 8)
    return min(bn, 32)


def gdc_forward(x_nchw, params, *, eps=1e-5, block_n=None):
    """GDC forward (eval-mode BN).  x_nchw: (N, C, K, K) f32 -> (N, E) f32."""
    N, C, H, W = x_nchw.shape
    E, C_lin = params["w_lin"].shape
    K = params["w_dw"].shape[-1]
    assert H == K and W == K, "GDC expects spatial dims equal to the 7x7 DW kernel"
    assert C_lin == C
    P = K * K
    CP = C * P

    # ---- fold BatchNorm2d / BatchNorm1d (eval mode) into the weights ----------
    s1 = params["gamma1"] * jax.lax.rsqrt(params["var1"] + eps)       # (C,)
    b1 = params["beta1"] - params["mean1"] * s1                       # (C,)
    s2 = params["gamma2"] * jax.lax.rsqrt(params["var2"] + eps)       # (E,)
    b2 = params["beta2"] - params["mean2"] * s2                       # (E,)

    wdw_eff = params["w_dw"].reshape(C, P) * s1[:, None]              # (C, P)
    wlin_eff = params["w_lin"].T * s2[None, :]                        # (C, E)
    # Fold DW weights into the linear weights -> one big matmul weight (C*P, E).
    w_big = (wdw_eff[:, :, None] * wlin_eff[:, None, :]).reshape(CP, E)
    bias_eff = ((b1 @ params["w_lin"].T) * s2 + b2).reshape(1, E)     # (1, E)

    # NCHW -> (N, C*P): a free reshape (no transpose, no pad), fully lane-dense.
    x_flat = x_nchw.reshape(N, CP).astype(jnp.float32)

    bn = _choose_block_n(N) if block_n is None else block_n
    n_pad = pl.cdiv(N, bn) * bn
    if n_pad != N:
        x_flat = jnp.pad(x_flat, ((0, n_pad - N), (0, 0)))

    out = pl.pallas_call(
        _gdc_matmul_kernel,
        out_shape=jax.ShapeDtypeStruct((n_pad, E), jnp.float32),
        grid_spec=pltpu.PrefetchScalarGridSpec(
            num_scalar_prefetch=0,
            grid=(n_pad // bn,),
            in_specs=[
                pl.BlockSpec((bn, CP), lambda i: (i, 0)),   # activations (streamed)
                pl.BlockSpec((CP, E), lambda i: (0, 0)),    # fused weight (resident)
                pl.BlockSpec((1, E), lambda i: (0, 0)),     # folded bias (resident)
            ],
            out_specs=pl.BlockSpec((bn, E), lambda i: (i, 0)),
        ),
        compiler_params=pltpu.CompilerParams(
            dimension_semantics=("parallel",),      # megacore split over batch blocks
            vmem_limit_bytes=48 * 1024 * 1024,      # headroom for larger Bn blocks
        ),
        cost_estimate=pl.CostEstimate(
            flops=2 * n_pad * CP * E,
            transcendentals=0,
            bytes_accessed=(n_pad * CP + CP * E + n_pad * E + E) * 4,
        ),
    )(x_flat, w_big, bias_eff)
    return out[:N]


# -----------------------------------------------------------------------------
# Pure-JAX reference (literal conv -> BN2d -> flatten -> linear -> BN1d)
# -----------------------------------------------------------------------------
def _ref_gdc(x_nchw, params, *, eps=1e-5):
    y = jnp.einsum("nchw,chw->nc", x_nchw, params["w_dw"])            # DW conv, pad 0
    s1 = params["gamma1"] / jnp.sqrt(params["var1"] + eps)
    y = (y - params["mean1"]) * s1 + params["beta1"]                  # BN2d (eval)
    z = y @ params["w_lin"].T                                         # Linear, no bias
    s2 = params["gamma2"] / jnp.sqrt(params["var2"] + eps)
    z = (z - params["mean2"]) * s2 + params["beta2"]                  # BN1d (eval)
    return z


# -----------------------------------------------------------------------------
# Deterministic parameter init (eval-mode BN: running stats + affine)
# -----------------------------------------------------------------------------
def init_gdc_params(key, c=512, kernel=7, embedding_size=128):
    ks = jax.random.split(key, 10)
    f32 = jnp.float32
    return {
        # Linear_block: depthwise Conv2d(C, C, groups=C, kernel=(7,7), bias=False)
        "w_dw": 0.1 * jax.random.normal(ks[0], (c, kernel, kernel), f32),
        # BatchNorm2d(C)
        "gamma1": 1.0 + 0.1 * jax.random.normal(ks[1], (c,), f32),
        "beta1": 0.1 * jax.random.normal(ks[2], (c,), f32),
        "mean1": 0.1 * jax.random.normal(ks[3], (c,), f32),
        "var1": jnp.abs(1.0 + 0.1 * jax.random.normal(ks[4], (c,), f32)),
        # Linear(C -> E, bias=False); PyTorch weight layout (E, C)
        "w_lin": 0.1 * jax.random.normal(ks[5], (embedding_size, c), f32),
        # BatchNorm1d(E)
        "gamma2": 1.0 + 0.1 * jax.random.normal(ks[6], (embedding_size,), f32),
        "beta2": 0.1 * jax.random.normal(ks[7], (embedding_size,), f32),
        "mean2": 0.1 * jax.random.normal(ks[8], (embedding_size,), f32),
        "var2": jnp.abs(1.0 + 0.1 * jax.random.normal(ks[9], (embedding_size,), f32)),
    }


if __name__ == "__main__":
    # GDC(embedding_size=128) as used in MobileFaceNet: input (N, 512, 7, 7).
    # N=16 -> block_n=8, grid=(2,): batch-blocked, >=2 steps for megacore.
    N, C, K, E = 16, 512, 7, 128

    key = jax.random.PRNGKey(0)
    key, xkey, pkey = jax.random.split(key, 3)
    x = jax.random.normal(xkey, (N, C, K, K), jnp.float32)
    params = init_gdc_params(pkey, c=C, kernel=K, embedding_size=E)

    out = jax.block_until_ready(gdc_forward(x, params))
    ref = jax.block_until_ready(_ref_gdc(x, params))

    assert out.shape == (N, E)
    assert jnp.allclose(out, ref, atol=1e-3, rtol=1e-3), "mismatch vs reference"

    # TODO(synk): BatchNorm is implemented with eval-mode running statistics
    # (inference semantics); training-mode batch statistics are not modeled.
    print("KERNEL_OK")
</pallas_src>

<mosaic_0001>
module attributes {stable_mosaic.version = 11 : i64} {
  func.func @_gdc_matmul_kernel(%arg0: i32, %arg1: memref<8x25088xf32, #tpu.memory_space<vmem>>, %arg2: memref<25088x128xf32, #tpu.memory_space<vmem>>, %arg3: memref<1x128xf32, #tpu.memory_space<vmem>>, %arg4: memref<8x128xf32, #tpu.memory_space<vmem>>) attributes {dimension_semantics = [#tpu.dimension_semantics<parallel>], iteration_bounds = array<i64: 2>, scalar_prefetch = 0 : i64, scratch_operands = 0 : i64, tpu.core_type = #tpu.core_type<tc>, window_params = [{transform_indices = @transform_0, window_bounds = array<i64: 8, 25088>}, {pipeline_mode = #tpu.pipeline_mode<synchronous>, transform_indices = @transform_1, window_bounds = array<i64: 25088, 128>}, {pipeline_mode = #tpu.pipeline_mode<synchronous>, transform_indices = @transform_2, window_bounds = array<i64: 1, 128>}, {transform_indices = @transform_3, window_bounds = array<i64: 8, 128>}]} {
    %c0 = arith.constant 0 : index
    %c0_0 = arith.constant 0 : index
    %0 = vector.load %arg1[%c0, %c0_0] : memref<8x25088xf32, #tpu.memory_space<vmem>>, vector<8x25088xf32>
    %c0_1 = arith.constant 0 : index
    %c0_2 = arith.constant 0 : index
    %1 = vector.load %arg2[%c0_1, %c0_2] : memref<25088x128xf32, #tpu.memory_space<vmem>>, vector<25088x128xf32>
    %cst = arith.constant dense<0.000000e+00> : vector<8x128xf32>
    %2 = tpu.matmul %0, %1, %cst {dimension_numbers = #tpu.dot_dimension_numbers<[1], [0], [0], [1], [0, 0, 1, 1], [], []>} : vector<8x25088xf32>, vector<25088x128xf32>, vector<8x128xf32> -> vector<8x128xf32>
    %c0_3 = arith.constant 0 : index
    %c0_4 = arith.constant 0 : index
    %3 = vector.load %arg3[%c0_3, %c0_4] : memref<1x128xf32, #tpu.memory_space<vmem>>, vector<1x128xf32>
    %4 = vector.broadcast %3 : vector<1x128xf32> to vector<8x128xf32>
    %5 = arith.addf %2, %4 : vector<8x128xf32>
    %c0_5 = arith.constant 0 : index
    %c0_6 = arith.constant 0 : index
    %6 = vector.load %arg4[%c0_5, %c0_6] : memref<8x128xf32, #tpu.memory_space<vmem>>, vector<8x128xf32>
    tpu.vector_store %arg4[%c0_5, %c0_6], %5 {strides = array<i32>} : memref<8x128xf32, #tpu.memory_space<vmem>>, vector<8x128xf32>,
    return
  }
  func.func @transform_0(%arg0: i32) -> (i32, i32) {
    %c0_i32 = arith.constant 0 : i32
    %c0_i32_0 = arith.constant 0 : i32
    return %arg0, %c0_i32 : i32, i32
  }
  func.func @transform_1(%arg0: i32) -> (i32, i32) {
    %c0_i32 = arith.constant 0 : i32
    %c0_i32_0 = arith.constant 0 : i32
    %c0_i32_1 = arith.constant 0 : i32
    return %c0_i32, %c0_i32_0 : i32, i32
  }
  func.func @transform_2(%arg0: i32) -> (i32, i32) {
    %c0_i32 = arith.constant 0 : i32
    %c0_i32_0 = arith.constant 0 : i32
    %c0_i32_1 = arith.constant 0 : i32
    return %c0_i32, %c0_i32_0 : i32, i32
  }
  func.func @transform_3(%arg0: i32) -> (i32, i32) {
    %c0_i32 = arith.constant 0 : i32
    %c0_i32_0 = arith.constant 0 : i32
    return %arg0, %c0_i32 : i32, i32
  }
}

</mosaic_0001>

<llo_original>
// kernel: tpu_custom_call.1
$region0: #{tpu_custom_call.1}
  #allocation0 [shape = 'u32[]', space=smem, size = 0x4, offset = 0x4, fixed_abs, tag = 'smem constant byte address 0x4 - core index']
  #allocation1 [shape = 'u32[72,128]{1,0:T(1,128)}', space=vmem, size = 0x9000, scoped, tag = 'internal scratch']
  %s0 = inlined_call_operand.hbm [shape: f32[16,25088], index: 0, kind: input, shape index: {}]
  %s1 = inlined_call_operand.hbm [shape: f32[25088,128], index: 1, kind: input, shape index: {}]
  %s2 = inlined_call_operand.hbm [shape: f32[1,128], index: 2, kind: input, shape index: {}]
  %s3 = inlined_call_operand.hbm [shape: f32[16,128], index: 3, kind: output, shape index: {}]
  %s4 = sld [smem:[#allocation0]]
  $region57: #{tpu_custom_call.1} parent=0
    _
  %s6 = ssub.s32 1, %s4
  %s7 = scalar_select 0, %s6, %s4
  $region1: #{tpu_custom_call.1} parent=0
    #allocation2 [shape = 'u8[1605632]{0}', space=vmem, size = 0x188000, scoped, tag = 'input window, operand 0']
    #allocation3 [shape = 's32[2]{0}', space=sflag, size = 0x8, scoped, tag = 'scoped memory for tpu_custom_call.1']
    #allocation4 [shape = 's32[2]{0}', space=sflag, size = 0x8, scoped, tag = 'scoped memory for tpu_custom_call.1']
    #allocation5 [shape = 'u8[12845056]{0}', space=vmem, size = 0xc40000, scoped, tag = 'input window, operand 1, single buffered']
    #allocation6 [shape = 's32[1]{0}', space=sflag, size = 0x4, scoped, tag = 'scoped memory for tpu_custom_call.1']
    #allocation7 [shape = 'u8[512]{0}', space=vmem, size = 0x400, scoped, tag = 'input window, operand 2, single buffered']
    #allocation8 [shape = 'u8[8192]{0}', space=vmem, size = 0x2000, scoped, tag = 'output window, operand 0']
    %8 = vsyncpa [#allocation3], 0
    %s9 = scalar_lea.sflag [#allocation3], 1
    %10 = vsyncpa %s9, 0
    %11 = vsyncpa [#allocation6], 0
    %12 = vsyncpa [#allocation4], 0
    %s13 = scalar_lea.sflag [#allocation4], 1
    %14 = vsyncpa %s13, 0
    loop: start=0, step=1, limit=4
    $region2: #{tpu_custom_call.1} parent=1 // loop_pre_header
      _
    $region3: #{tpu_custom_call.1} parent=1 // loop_header
      %s16 = sphi 0, %s20
      %p17 = scmp.ge.s32.totalorder %s16, 4
      %s26 = sphi 0, %s28
      %s29 = sphi 0, %s26
      %s30 = sphi 0, %s29
      %s46 = sphi 0, %s30
      %s50 = sphi 0, %s50
      %s52 = sphi 0, %s50
      %s53 = sphi 0, %s52
      %s67 = sphi 0, %s53
      %s71 = sphi 0, %s71
      %s73 = sphi 0, %s71
      %s74 = sphi 0, %s73
      %s88 = sphi 0, %s74
      %s94 = sphi 0, %s96
      %s97 = sphi 0, %s94
      %s98 = sphi 0, %s97
      %s114 = sphi 0, %s98
    $region4: #{tpu_custom_call.1} parent=1 // loop_header_branch
      %19 = sbr.rel (%p17) target = $region8
    $region5: #{tpu_custom_call.1} parent=1 // loop_body
      %s21 = ssub.s32 %s16, 1
      %s22 = ssub.s32 %s16, 2
      %s23 = sadd.s32 %s16, 1
      %s24 = ssub.s32 %s16, %s23
      %p25 = scmp.eq.s32.totalorder %s24, 0
      %s27 = sadd.s32 %s26, 1
      %s28 = scalar_select %p25, %s26, %s27
      %p31 = pneg %p25
      %p32 = scmp.eq.s32.totalorder %s16, 1
      %p33 = por %p31, %p32
      %p34 = scmp.ne.s32.totalorder %s26, %s29
      %p35 = scmp.eq.s32.totalorder %s16, 0
      %p36 = por %p34, %p35
      %p37 = scmp.ne.s32.totalorder %s26, %s29
      %p38 = scmp.eq.s32.totalorder %s21, 1
      %p39 = por %p37, %p38
      %p40 = scmp.ne.s32.totalorder %s29, %s30
      %p41 = scmp.eq.s32.totalorder %s21, 0
      %p42 = por %p40, %p41
      %p43 = scmp.ne.s32.totalorder %s29, %s30
      %p44 = scmp.eq.s32.totalorder %s22, 1
      %p45 = por %p43, %p44
      %p47 = scmp.ne.s32.totalorder %s30, %s46
      %p48 = scmp.eq.s32.totalorder %s22, 0
      %p49 = por %p47, %p48
      %s51 = sadd.s32 %s50, 1
      %p54 = scmp.eq.s32.totalorder %s16, 1
      %p55 = scmp.ne.s32.totalorder %s50, %s52
      %p56 = scmp.eq.s32.totalorder %s16, 0
      %p57 = por %p55, %p56
      %p58 = scmp.ne.s32.totalorder %s50, %s52
      %p59 = scmp.eq.s32.totalorder %s21, 1
      %p60 = por %p58, %p59
      %p61 = scmp.ne.s32.totalorder %s52, %s53
      %p62 = scmp.eq.s32.totalorder %s21, 0
      %p63 = por %p61, %p62
      %p64 = scmp.ne.s32.totalorder %s52, %s53
      %p65 = scmp.eq.s32.totalorder %s22, 1
      %p66 = por %p64, %p65
      %p68 = scmp.ne.s32.totalorder %s53, %s67
      %p69 = scmp.eq.s32.totalorder %s22, 0
      %p70 = por %p68, %p69
      %s72 = sadd.s32 %s71, 1
      %p75 = scmp.eq.s32.totalorder %s16, 1
      %p76 = scmp.ne.s32.totalorder %s71, %s73
      %p77 = scmp.eq.s32.totalorder %s16, 0
      %p78 = por %p76, %p77
      %p79 = scmp.ne.s32.totalorder %s71, %s73
      %p80 = scmp.eq.s32.totalorder %s21, 1
      %p81 = por %p79, %p80
      %p82 = scmp.ne.s32.totalorder %s73, %s74
      %p83 = scmp.eq.s32.totalorder %s21, 0
      %p84 = por %p82, %p83
      %p85 = scmp.ne.s32.totalorder %s73, %s74
      %p86 = scmp.eq.s32.totalorder %s22, 1
      %p87 = por %p85, %p86
      %p89 = scmp.ne.s32.totalorder %s74, %s88
      %p90 = scmp.eq.s32.totalorder %s22, 0
      %p91 = por %p89, %p90
      %s92 = ssub.s32 %s16, %s23
      %p93 = scmp.eq.s32.totalorder %s92, 0
      %s95 = sadd.s32 %s94, 1
      %s96 = scalar_select %p93, %s94, %s95
      %p99 = pneg %p93
      %p100 = scmp.eq.s32.totalorder %s16, 1
      %p101 = por %p99, %p100
      %p102 = scmp.ne.s32.totalorder %s94, %s97
      %p103 = scmp.eq.s32.totalorder %s16, 0
      %p104 = por %p102, %p103
      %p105 = scmp.ne.s32.totalorder %s94, %s97
      %p106 = scmp.eq.s32.totalorder %s21, 1
      %p107 = por %p105, %p106
      %p108 = scmp.ne.s32.totalorder %s97, %s98
      %p109 = scmp.eq.s32.totalorder %s21, 0
      %p110 = por %p108, %p109
      %p111 = scmp.ne.s32.totalorder %s97, %s98
      %p112 = scmp.eq.s32.totalorder %s22, 1
      %p113 = por %p111, %p112
      %p115 = scmp.ne.s32.totalorder %s98, %s114
      %p116 = scmp.eq.s32.totalorder %s22, 0
      %p117 = por %p115, %p116
      %p118 = scmp.le.s32.totalorder 1, %s16
      %p119 = scmp.lt.s32.totalorder %s16, 3
      %p120 = pnand %p118, %p119
      %p121 = pneg %p120
      // Predicated region
      $region9: #{tpu_custom_call.1} parent=5 // pred_check
        _
      $region10: #{tpu_custom_call.1} parent=5 // pred_check_branch
        %123 = sbr.rel (%p120) target = $region12
      $region11: #{tpu_custom_call.1} parent=5 // pred_region
        %s124 = ssub.s32 %s16, 1
        // Predicated region
        $region13: #{tpu_custom_call.1} parent=11 // pred_check
          %p125 = pneg %p63
        $region14: #{tpu_custom_call.1} parent=11 // pred_check_branch
          %127 = sbr.rel (%p125) target = $region16
        $region15: #{tpu_custom_call.1} parent=11 // pred_region
          %129 = vsyncadd [#allocation6], 0
          %s130 = sshll.u32 %s1, 4
          %s131 = int_to_ptr.hbm [resolvable:$true] %s130
          %s132 = sshll.u32 [#allocation5], 4
          %s133 = int_to_ptr.vmem [resolvable:$true] %s132
          %138 = dma.hbm_to_vmem [thread:$0]  %s131, 401408, %s133, [#allocation6], 128, 128, 8
        $region16: #{tpu_custom_call.1} parent=11 // pred_fallthru
          _
        // Predicated region
        $region17: #{tpu_custom_call.1} parent=11 // pred_check
          %p139 = pneg %p84
        $region18: #{tpu_custom_call.1} parent=11 // pred_check_branch
          %141 = sbr.rel (%p139) target = $region20
        $region19: #{tpu_custom_call.1} parent=11 // pred_region
          %143 = vsyncadd [#allocation6], 0
          %s145 = sshll.u32 %s2, 4
          %s146 = int_to_ptr.hbm [resolvable:$true] %s145
          %s147 = sshll.u32 [#allocation7], 4
          %s148 = int_to_ptr.vmem [resolvable:$true] %s147
          %150 = dma.hbm_to_vmem [thread:$0]  %s146, 16, %s148, [#allocation6]
        $region20: #{tpu_custom_call.1} parent=11 // pred_fallthru
          _
      $region12: #{tpu_custom_call.1} parent=5 // pred_fallthru
        _
      %p151 = scmp.lt.s32.totalorder %s16, 2
      // Predicated region
      $region21: #{tpu_custom_call.1} parent=5 // pred_check
        %p152 = pneg %p151
      $region22: #{tpu_custom_call.1} parent=5 // pred_check_branch
        %154 = sbr.rel (%p152) target = $region24
      $region23: #{tpu_custom_call.1} parent=5 // pred_region
        // Predicated region
        $region25: #{tpu_custom_call.1} parent=23 // pred_check
          %p155 = pneg %p36
        $region26: #{tpu_custom_call.1} parent=23 // pred_check_branch
          %157 = sbr.rel (%p155) target = $region28
        $region27: #{tpu_custom_call.1} parent=23 // pred_region
          %s158 = sand.u32 %s26, 1
          %s159 = scalar_lea.sflag [#allocation3], %s158
          %s160 = sand.u32 %s26, 1
          %s161 = smul.addr %s160, 1568
          %s162 = scalar_lea.vmem [#allocation2], %s161
          %164 = vsyncadd %s159, 0
          %s165 = smul.addr %s16, 196
          %s166 = smul.addr %s165, 8
          %s167 = scalar_lea.hbm %s0, %s166
          %s169 = sshll.u32 %s167, 4
          %s170 = int_to_ptr.hbm [resolvable:$true] %s169
          %s171 = sshll.u32 %s162, 4
          %s172 = int_to_ptr.vmem [resolvable:$true] %s171
          %174 = dma.hbm_to_vmem [thread:$0]  %s170, 25088, %s172, %s159
        $region28: #{tpu_custom_call.1} parent=23 // pred_fallthru
          _
      $region24: #{tpu_custom_call.1} parent=5 // pred_fallthru
        _
      %p175 = scmp.le.s32.totalorder 1, %s16
      %p176 = scmp.lt.s32.totalorder %s16, 3
      %p177 = pnand %p175, %p176
      %p178 = pneg %p177
      // Predicated region
      $region29: #{tpu_custom_call.1} parent=5 // pred_check
        _
      $region30: #{tpu_custom_call.1} parent=5 // pred_check_branch
        %180 = sbr.rel (%p177) target = $region32
      $region31: #{tpu_custom_call.1} parent=5 // pred_region
        %s181 = ssub.s32 %s16, 1
        %s182 = sand.u32 %s29, 1
        %s183 = scalar_lea.sflag [#allocation3], %s182
        %s184 = sand.u32 %s29, 1
        %s185 = smul.addr %s184, 1568
        %s186 = scalar_lea.vmem [#allocation2], %s185
        // Predicated region
        $region33: #{tpu_custom_call.1} parent=31 // pred_check
          %p187 = pneg %p42
        $region34: #{tpu_custom_call.1} parent=31 // pred_check_branch
          %189 = sbr.rel (%p187) target = $region36
        $region35: #{tpu_custom_call.1} parent=31 // pred_region
          %191 = dma.done %s183, 25088
        $region36: #{tpu_custom_call.1} parent=31 // pred_fallthru
          _
        // Predicated region
        $region37: #{tpu_custom_call.1} parent=31 // pred_check
          %p192 = pneg %p63
        $region38: #{tpu_custom_call.1} parent=31 // pred_check_branch
          %194 = sbr.rel (%p192) target = $region40
        $region39: #{tpu_custom_call.1} parent=31 // pred_region
          %196 = dma.done [#allocation6], 401408
        $region40: #{tpu_custom_call.1} parent=31 // pred_fallthru
          _
        // Predicated region
        $region41: #{tpu_custom_call.1} parent=31 // pred_check
          %p197 = pneg %p84
        $region42: #{tpu_custom_call.1} parent=31 // pred_check_branch
          %199 = sbr.rel (%p197) target = $region44
        $region43: #{tpu_custom_call.1} parent=31 // pred_region
          %201 = dma.done [#allocation6], 16
        $region44: #{tpu_custom_call.1} parent=31 // pred_fallthru
          _
        %s202 = sand.u32 %s29, 1
        %s203 = scalar_lea.sflag [#allocation3], %s202
        %s204 = sand.u32 %s29, 1
        %s205 = smul.addr %s204, 1568
        %s206 = scalar_lea.vmem [#allocation2], %s205
        %p207 = pneg %p42
        %p208 = pneg %p39
        %p209 = pneg %p63
        %p210 = pneg %p60
        %p211 = pneg %p84
        %p212 = pneg %p81
        %p213 = pneg %p110
        %p214 = pneg %p107
        %s215 = sand.u32 %s97, 1
        %s216 = scalar_lea.sflag [#allocation4], %s215
        %s217 = sand.u32 %s97, 1
        %s218 = smul.addr %s217, 8
        %s219 = scalar_lea.vmem [#allocation8], %s218
        %v220 = vld [vmem:[%s186] sm:$0xff]
        %v221 = vld [vmem:[%s186 + $0x8] sm:$0xff]
        %v222 = vld [vmem:[%s186 + $0x10] sm:$0xff]
        %v223 = vld [vmem:[%s186 + $0x18] sm:$0xff]
        %v224 = vld [vmem:[%s186 + $0x20] sm:$0xff]
        %v225 = vld [vmem:[%s186 + $0x28] sm:$0xff]
        %v226 = vld [vmem:[%s186 + $0x30] sm:$0xff]
        %v227 = vld [vmem:[%s186 + $0x38] sm:$0xff]
        %v228 = vld [vmem:[%s186 + $0x40] sm:$0xff]
        %v229 = vld [vmem:[%s186 + $0x48] sm:$0xff]
        %v230 = vld [vmem:[%s186 + $0x50] sm:$0xff]
        %v231 = vld [vmem:[%s186 + $0x58] sm:$0xff]
        %v232 = vld [vmem:[%s186 + $0x60] sm:$0xff]
        %v233 = vld [vmem:[%s186 + $0x68] sm:$0xff]
        %v234 = vld [vmem:[%s186 + $0x70] sm:$0xff]
        %v235 = vld [vmem:[%s186 + $0x78] sm:$0xff]
        %v236 = vld [vmem:[%s186 + $0x80] sm:$0xff]
        %v237 = vld [vmem:[%s186 + $0x88] sm:$0xff]
        %v238 = vld [vmem:[%s186 + $0x90] sm:$0xff]
        %v239 = vld [vmem:[%s186 + $0x98] sm:$0xff]
        %v240 = vld [vmem:[%s186 + $0xa0] sm:$0xff]
        %v241 = vld [vmem:[%s186 + $0xa8] sm:$0xff]
        %v242 = vld [vmem:[%s186 + $0xb0] sm:$0xff]
        %v243 = vld [vmem:[%s186 + $0xb8] sm:$0xff]
        %v244 = vld [vmem:[%s186 + $0xc0] sm:$0xff]
        %v245 = vld [vmem:[%s186 + $0xc8] sm:$0xff]
        %v246 = vld [vmem:[%s186 + $0xd0] sm:$0xff]
        %v247 = vld [vmem:[%s186 + $0xd8] sm:$0xff]
        %v248 = vld [vmem:[%s186 + $0xe0] sm:$0xff]
        %v249 = vld [vmem:[%s186 + $0xe8] sm:$0xff]
        %v250 = vld [vmem:[%s186 + $0xf0] sm:$0xff]
        %v251 = vld [vmem:[%s186 + $0xf8] sm:$0xff]
        %v252 = vld [vmem:[%s186 + $0x100] sm:$0xff]
        %v253 = vld [vmem:[%s186 + $0x108] sm:$0xff]
        %v254 = vld [vmem:[%s186 + $0x110] sm:$0xff]
        %v255 = vld [vmem:[%s186 + $0x118] sm:$0xff]
        %v256 = vld [vmem:[%s186 + $0x120] sm:$0xff]
        %v257 = vld [vmem:[%s186 + $0x128] sm:$0xff]
        %v258 = vld [vmem:[%s186 + $0x130] sm:$0xff]
        %v259 = vld [vmem:[%s186 + $0x138] sm:$0xff]
        %v260 = vld [vmem:[%s186 + $0x140] sm:$0xff]
        %v261 = vld [vmem:[%s186 + $0x148] sm:$0xff]
        %v262 = vld [vmem:[%s186 + $0x150] sm:$0xff]
        %v263 = vld [vmem:[%s186 + $0x158] sm:$0xff]
        %v264 = vld [vmem:[%s186 + $0x160] sm:$0xff]
        %v265 = vld [vmem:[%s186 + $0x168] sm:$0xff]
        %v266 = vld [vmem:[%s186 + $0x170] sm:$0xff]
        %v267 = vld [vmem:[%s186 + $0x178] sm:$0xff]
        %v268 = vld [vmem:[%s186 + $0x180] sm:$0xff]
        %v269 = vld [vmem:[%s186 + $0x188] sm:$0xff]
        %v270 = vld [vmem:[%s186 + $0x190] sm:$0xff]
        %v271 = vld [vmem:[%s186 + $0x198] sm:$0xff]
        %v272 = vld [vmem:[%s186 + $0x1a0] sm:$0xff]
        %v273 = vld [vmem:[%s186 + $0x1a8] sm:$0xff]
        %v274 = vld [vmem:[%s186 + $0x1b0] sm:$0xff]
        %v275 = vld [vmem:[%s186 + $0x1b8] sm:$0xff]
        %v276 = vld [vmem:[%s186 + $0x1c0] sm:$0xff]
        %v277 = vld [vmem:[%s186 + $0x1c8] sm:$0xff]
        %v278 = vld [vmem:[%s186 + $0x1d0] sm:$0xff]
        %v279 = vld [vmem:[%s186 + $0x1d8] sm:$0xff]
        %v280 = vld [vmem:[%s186 + $0x1e0] sm:$0xff]
        %v281 = vld [vmem:[%s186 + $0x1e8] sm:$0xff]
        %v282 = vld [vmem:[%s186 + $0x1f0] sm:$0xff]
        %v283 = vld [vmem:[%s186 + $0x1f8] sm:$0xff]
        %v284 = vld [vmem:[%s186 + $0x200] sm:$0xff]
        %v285 = vld [vmem:[%s186 + $0x208] sm:$0xff]
        %v286 = vld [vmem:[%s186 + $0x210] sm:$0xff]
        %v287 = vld [vmem:[%s186 + $0x218] sm:$0xff]
        %v288 = vld [vmem:[%s186 + $0x220] sm:$0xff]
        %v289 = vld [vmem:[%s186 + $0x228] sm:$0xff]
        %v290 = vld [vmem:[%s186 + $0x230] sm:$0xff]
        %v291 = vld [vmem:[%s186 + $0x238] sm:$0xff]
        %v292 = vld [vmem:[%s186 + $0x240] sm:$0xff]
        %v293 = vld [vmem:[%s186 + $0x248] sm:$0xff]
        %v294 = vld [vmem:[%s186 + $0x250] sm:$0xff]
        %v295 = vld [vmem:[%s186 + $0x258] sm:$0xff]
        %v296 = vld [vmem:[%s186 + $0x260] sm:$0xff]
        %v297 = vld [vmem:[%s186 + $0x268] sm:$0xff]
        %v298 = vld [vmem:[%s186 + $0x270] sm:$0xff]
        %v299 = vld [vmem:[%s186 + $0x278] sm:$0xff]
        %v300 = vld [vmem:[%s186 + $0x280] sm:$0xff]
        %v301 = vld [vmem:[%s186 + $0x288] sm:$0xff]
        %v302 = vld [vmem:[%s186 + $0x290] sm:$0xff]
        %v303 = vld [vmem:[%s186 + $0x298] sm:$0xff]
        %v304 = vld [vmem:[%s186 + $0x2a0] sm:$0xff]
        %v305 = vld [vmem:[%s186 + $0x2a8] sm:$0xff]
        %v306 = vld [vmem:[%s186 + $0x2b0] sm:$0xff]
        %v307 = vld [vmem:[%s186 + $0x2b8] sm:$0xff]
        %v308 = vld [vmem:[%s186 + $0x2c0] sm:$0xff]
        %v309 = vld [vmem:[%s186 + $0x2c8] sm:$0xff]
        %v310 = vld [vmem:[%s186 + $0x2d0] sm:$0xff]
        %v311 = vld [vmem:[%s186 + $0x2d8] sm:$0xff]
        %v312 = vld [vmem:[%s186 + $0x2e0] sm:$0xff]
        %v313 = vld [vmem:[%s186 + $0x2e8] sm:$0xff]
        %v314 = vld [vmem:[%s186 + $0x2f0] sm:$0xff]
        %v315 = vld [vmem:[%s186 + $0x2f8] sm:$0xff]
        %v316 = vld [vmem:[%s186 + $0x300] sm:$0xff]
        %v317 = vld [vmem:[%s186 + $0x308] sm:$0xff]
        %v318 = vld [vmem:[%s186 + $0x310] sm:$0xff]
        %v319 = vld [vmem:[%s186 + $0x318] sm:$0xff]
        %v320 = vld [vmem:[%s186 + $0x320] sm:$0xff]
        %v321 = vld [vmem:[%s186 + $0x328] sm:$0xff]
        %v322 = vld [vmem:[%s186 + $0x330] sm:$0xff]
        %v323 = vld [vmem:[%s186 + $0x338] sm:$0xff]
        %v324 = vld [vmem:[%s186 + $0x340] sm:$0xff]
        %v325 = vld [vmem:[%s186 + $0x348] sm:$0xff]
        %v326 = vld [vmem:[%s186 + $0x350] sm:$0xff]
        %v327 = vld [vmem:[%s186 + $0x358] sm:$0xff]
        %v328 = vld [vmem:[%s186 + $0x360] sm:$0xff]
        %v329 = vld [vmem:[%s186 + $0x368] sm:$0xff]
        %v330 = vld [vmem:[%s186 + $0x370] sm:$0xff]
        %v331 = vld [vmem:[%s186 + $0x378] sm:$0xff]
        %v332 = vld [vmem:[%s186 + $0x380] sm:$0xff]
        %v333 = vld [vmem:[%s186 + $0x388] sm:$0xff]
        %v334 = vld [vmem:[%s186 + $0x390] sm:$0xff]
        %v335 = vld [vmem:[%s186 + $0x398] sm:$0xff]
        %v336 = vld [vmem:[%s186 + $0x3a0] sm:$0xff]
        %v337 = vld [vmem:[%s186 + $0x3a8] sm:$0xff]
        %v338 = vld [vmem:[%s186 + $0x3b0] sm:$0xff]
        %v339 = vld [vmem:[%s186 + $0x3b8] sm:$0xff]
        %v340 = vld [vmem:[%s186 + $0x3c0] sm:$0xff]
        %v341 = vld [vmem:[%s186 + $0x3c8] sm:$0xff]
        %v342 = vld [vmem:[%s186 + $0x3d0] sm:$0xff]
        %v343 = vld [vmem:[%s186 + $0x3d8] sm:$0xff]
        %v344 = vld [vmem:[%s186 + $0x3e0] sm:$0xff]
        %v345 = vld [vmem:[%s186 + $0x3e8] sm:$0xff]
        %v346 = vld [vmem:[%s186 + $0x3f0] sm:$0xff]
        %v347 = vld [vmem:[%s186 + $0x3f8] sm:$0xff]
        %v348 = vld [vmem:[%s186 + $0x400] sm:$0xff]
        %v349 = vld [vmem:[%s186 + $0x408] sm:$0xff]
        %v350 = vld [vmem:[%s186 + $0x410] sm:$0xff]
        %v351 = vld [vmem:[%s186 + $0x418] sm:$0xff]
        %v352 = vld [vmem:[%s186 + $0x420] sm:$0xff]
        %v353 = vld [vmem:[%s186 + $0x428] sm:$0xff]
        %v354 = vld [vmem:[%s186 + $0x430] sm:$0xff]
        %v355 = vld [vmem:[%s186 + $0x438] sm:$0xff]
        %v356 = vld [vmem:[%s186 + $0x440] sm:$0xff]
        %v357 = vld [vmem:[%s186 + $0x448] sm:$0xff]
        %v358 = vld [vmem:[%s186 + $0x450] sm:$0xff]
        %v359 = vld [vmem:[%s186 + $0x458] sm:$0xff]
        %v360 = vld [vmem:[%s186 + $0x460] sm:$0xff]
        %v361 = vld [vmem:[%s186 + $0x468] sm:$0xff]
        %v362 = vld [vmem:[%s186 + $0x470] sm:$0xff]
        %v363 = vld [vmem:[%s186 + $0x478] sm:$0xff]
        %v364 = vld [vmem:[%s186 + $0x480] sm:$0xff]
        %v365 = vld [vmem:[%s186 + $0x488] sm:$0xff]
        %v366 = vld [vmem:[%s186 + $0x490] sm:$0xff]
        %v367 = vld [vmem:[%s186 + $0x498] sm:$0xff]
        %v368 = vld [vmem:[%s186 + $0x4a0] sm:$0xff]
        %v369 = vld [vmem:[%s186 + $0x4a8] sm:$0xff]
        %v370 = vld [vmem:[%s186 + $0x4b0] sm:$0xff]
        %v371 = vld [vmem:[%s186 + $0x4b8] sm:$0xff]
        %v372 = vld [vmem:[%s186 + $0x4c0] sm:$0xff]
        %v373 = vld [vmem:[%s186 + $0x4c8] sm:$0xff]
        %v374 = vld [vmem:[%s186 + $0x4d0] sm:$0xff]
        %v375 = vld [vmem:[%s186 + $0x4d8] sm:$0xff]
        %v376 = vld [vmem:[%s186 + $0x4e0] sm:$0xff]
        %v377 = vld [vmem:[%s186 + $0x4e8] sm:$0xff]
        %v378 = vld [vmem:[%s186 + $0x4f0] sm:$0xff]
        %v379 = vld [vmem:[%s186 + $0x4f8] sm:$0xff]
        %v380 = vld [vmem:[%s186 + $0x500] sm:$0xff]
        %v381 = vld [vmem:[%s186 + $0x508] sm:$0xff]
        %v382 = vld [vmem:[%s186 + $0x510] sm:$0xff]
        %v383 = vld [vmem:[%s186 + $0x518] sm:$0xff]
        %v384 = vld [vmem:[%s186 + $0x520] sm:$0xff]
        %v385 = vld [vmem:[%s186 + $0x528] sm:$0xff]
        %v386 = vld [vmem:[%s186 + $0x530] sm:$0xff]
        %v387 = vld [vmem:[%s186 + $0x538] sm:$0xff]
        %v388 = vld [vmem:[%s186 + $0x540] sm:$0xff]
        %v389 = vld [vmem:[%s186 + $0x548] sm:$0xff]
        %v390 = vld [vmem:[%s186 + $0x550] sm:$0xff]
        %v391 = vld [vmem:[%s186 + $0x558] sm:$0xff]
        %v392 = vld [vmem:[%s186 + $0x560] sm:$0xff]
        %v393 = vld [vmem:[%s186 + $0x568] sm:$0xff]
        %v394 = vld [vmem:[%s186 + $0x570] sm:$0xff]
        %v395 = vld [vmem:[%s186 + $0x578] sm:$0xff]
        %v396 = vld [vmem:[%s186 + $0x580] sm:$0xff]
        %v397 = vld [vmem:[%s186 + $0x588] sm:$0xff]
        %v398 = vld [vmem:[%s186 + $0x590] sm:$0xff]
        %v399 = vld [vmem:[%s186 + $0x598] sm:$0xff]
        %v400 = vld [vmem:[%s186 + $0x5a0] sm:$0xff]
        %v401 = vld [vmem:[%s186 + $0x5a8] sm:$0xff]
        %v402 = vld [vmem:[%s186 + $0x5b0] sm:$0xff]
        %v403 = vld [vmem:[%s186 + $0x5b8] sm:$0xff]
        %v404 = vld [vmem:[%s186 + $0x5c0] sm:$0xff]
        %v405 = vld [vmem:[%s186 + $0x5c8] sm:$0xff]
        %v406 = vld [vmem:[%s186 + $0x5d0] sm:$0xff]
        %v407 = vld [vmem:[%s186 + $0x5d8] sm:$0xff]
        %v408 = vld [vmem:[%s186 + $0x5e0] sm:$0xff]
        %v409 = vld [vmem:[%s186 + $0x5e8] sm:$0xff]
        %v410 = vld [vmem:[%s186 + $0x5f0] sm:$0xff]
        %v411 = vld [vmem:[%s186 + $0x5f8] sm:$0xff]
        %v412 = vld [vmem:[%s186 + $0x600] sm:$0xff]
        %v413 = vld [vmem:[%s186 + $0x608] sm:$0xff]
        %v414 = vld [vmem:[%s186 + $0x610] sm:$0xff]
        %v415 = vld [vmem:[%s186 + $0x618] sm:$0xff]
        %v416 = vld [vmem:[#allocation5] sm:$0xff]
        %v417 = vld [vmem:[#allocation5 + $0x8] sm:$0xff]
        %v418 = vld [vmem:[#allocation5 + $0x10] sm:$0xff]
        %v419 = vld [vmem:[#allocation5 + $0x18] sm:$0xff]
        %v420 = vld [vmem:[#allocation5 + $0x20] sm:$0xff]
        %v421 = vld [vmem:[#allocation5 + $0x28] sm:$0xff]
        %v422 = vld [vmem:[#allocation5 + $0x30] sm:$0xff]
        %v423 = vld [vmem:[#allocation5 + $0x38] sm:$0xff]
        %v424 = vld [vmem:[#allocation5 + $0x40] sm:$0xff]
        %v425 = vld [vmem:[#allocation5 + $0x48] sm:$0xff]
        %v426 = vld [vmem:[#allocation5 + $0x50] sm:$0xff]
        %v427 = vld [vmem:[#allocation5 + $0x58] sm:$0xff]
        %v428 = vld [vmem:[#allocation5 + $0x60] sm:$0xff]
        %v429 = vld [vmem:[#allocation5 + $0x68] sm:$0xff]
        %v430 = vld [vmem:[#allocation5 + $0x70] sm:$0xff]
        %v431 = vld [vmem:[#allocation5 + $0x78] sm:$0xff]
        %v432 = vld [vmem:[#allocation5 + $0x80] sm:$0xff]
        %v433 = vld [vmem:[#allocation5 + $0x88] sm:$0xff]
        %v434 = vld [vmem:[#allocation5 + $0x90] sm:$0xff]
        %v435 = vld [vmem:[#allocation5 + $0x98] sm:$0xff]
        %v436 = vld [vmem:[#allocation5 + $0xa0] sm:$0xff]
        %v437 = vld [vmem:[#allocation5 + $0xa8] sm:$0xff]
        %v438 = vld [vmem:[#allocation5 + $0xb0] sm:$0xff]
        %v439 = vld [vmem:[#allocation5 + $0xb8] sm:$0xff]
        %v440 = vld [vmem:[#allocation5 + $0xc0] sm:$0xff]
        %v441 = vld [vmem:[#allocation5 + $0xc8] sm:$0xff]
        %v442 = vld [vmem:[#allocation5 + $0xd0] sm:$0xff]
        %v443 = vld [vmem:[#allocation5 + $0xd8] sm:$0xff]
        %v444 = vld [vmem:[#allocation5 + $0xe0] sm:$0xff]
        %v445 = vld [vmem:[#allocation5 + $0xe8] sm:$0xff]
        %v446 = vld [vmem:[#allocation5 + $0xf0] sm:$0xff]
        %v447 = vld [vmem:[#allocation5 + $0xf8] sm:$0xff]
        %v448 = vld [vmem:[#allocation5 + $0x100] sm:$0xff]
        %v449 = vld [vmem:[#allocation5 + $0x108] sm:$0xff]
        %v450 = vld [vmem:[#allocation5 + $0x110] sm:$0xff]
        %v451 = vld [vmem:[#allocation5 + $0x118] sm:$0xff]
        %v452 = vld [vmem:[#allocation5 + $0x120] sm:$0xff]
        %v453 = vld [vmem:[#allocation5 + $0x128] sm:$0xff]
        %v454 = vld [vmem:[#allocation5 + $0x130] sm:$0xff]
        %v455 = vld [vmem:[#allocation5 + $0x138] sm:$0xff]
        %v456 = vld [vmem:[#allocation5 + $0x140] sm:$0xff]
        %v457 = vld [vmem:[#allocation5 + $0x148] sm:$0xff]
        %v458 = vld [vmem:[#allocation5 + $0x150] sm:$0xff]
        %v459 = vld [vmem:[#allocation5 + $0x158] sm:$0xff]
        %v460 = vld [vmem:[#allocation5 + $0x160] sm:$0xff]
        %v461 = vld [vmem:[#allocation5 + $0x168] sm:$0xff]
        %v462 = vld [vmem:[#allocation5 + $0x170] sm:$0xff]
        %v463 = vld [vmem:[#allocation5 + $0x178] sm:$0xff]
        %v464 = vld [vmem:[#allocation5 + $0x180] sm:$0xff]
        %v465 = vld [vmem:[#allocation5 + $0x188] sm:$0xff]
        %v466 = vld [vmem:[#allocation5 + $0x190] sm:$0xff]
        %v467 = vld [vmem:[#allocation5 + $0x198] sm:$0xff]
        %v468 = vld [vmem:[#allocation5 + $0x1a0] sm:$0xff]
        %v469 = vld [vmem:[#allocation5 + $0x1a8] sm:$0xff]
        %v470 = vld [vmem:[#allocation5 + $0x1b0] sm:$0xff]
        %v471 = vld [vmem:[#allocation5 + $0x1b8] sm:$0xff]
        %v472 = vld [vmem:[#allocation5 + $0x1c0] sm:$0xff]
        %v473 = vld [vmem:[#allocation5 + $0x1c8] sm:$0xff]
        %v474 = vld [vmem:[#allocation5 + $0x1d0] sm:$0xff]
        %v475 = vld [vmem:[#allocation5 + $0x1d8] sm:$0xff]
        %v476 = vld [vmem:[#allocation5 + $0x1e0] sm:$0xff]
        %v477 = vld [vmem:[#allocation5 + $0x1e8] sm:$0xff]
        %v478 = vld [vmem:[#allocation5 + $0x1f0] sm:$0xff]
        %v479 = vld [vmem:[#allocation5 + $0x1f8] sm:$0xff]
        %v480 = vld [vmem:[#allocation5 + $0x200] sm:$0xff]
        %v481 = vld [vmem:[#allocation5 + $0x208] sm:$0xff]
        %v482 = vld [vmem:[#allocation5 + $0x210] sm:$0xff]
        %v483 = vld [vmem:[#allocation5 + $0x218] sm:$0xff]
        %v484 = vld [vmem:[#allocation5 + $0x220] sm:$0xff]
        %v485 = vld [vmem:[#allocation5 + $0x228] sm:$0xff]
        %v486 = vld [vmem:[#allocation5 + $0x230] sm:$0xff]
        %v487 = vld [vmem:[#allocation5 + $0x238] sm:$0xff]
        %v488 = vld [vmem:[#allocation5 + $0x240] sm:$0xff]
        %v489 = vld [vmem:[#allocation5 + $0x248] sm:$0xff]
        %v490 = vld [vmem:[#allocation5 + $0x250] sm:$0xff]
        %v491 = vld [vmem:[#allocation5 + $0x258] sm:$0xff]
        %v492 = vld [vmem:[#allocation5 + $0x260] sm:$0xff]
        %v493 = vld [vmem:[#allocation5 + $0x268] sm:$0xff]
        %v494 = vld [vmem:[#allocation5 + $0x270] sm:$0xff]
        %v495 = vld [vmem:[#allocation5 + $0x278] sm:$0xff]
        %v496 = vld [vmem:[#allocation5 + $0x280] sm:$0xff]
        %v497 = vld [vmem:[#allocation5 + $0x288] sm:$0xff]
        %v498 = vld [vmem:[#allocation5 + $0x290] sm:$0xff]
        %v499 = vld [vmem:[#allocation5 + $0x298] sm:$0xff]
        %v500 = vld [vmem:[#allocation5 + $0x2a0] sm:$0xff]
        %v501 = vld [vmem:[#allocation5 + $0x2a8] sm:$0xff]
        %v502 = vld [vmem:[#allocation5 + $0x2b0] sm:$0xff]
        %v503 = vld [vmem:[#allocation5 + $0x2b8] sm:$0xff]
        %v504 = vld [vmem:[#allocation5 + $0x2c0] sm:$0xff]
        %v505 = vld [vmem:[#allocation5 + $0x2c8] sm:$0xff]
        %v506 = vld [vmem:[#allocation5 + $0x2d0] sm:$0xff]
        %v507 = vld [vmem:[#allocation5 + $0x2d8] sm:$0xff]
        %v508 = vld [vmem:[#allocation5 + $0x2e0] sm:$0xff]
        %v509 = vld [vmem:[#allocation5 + $0x2e8] sm:$0xff]
        %v510 = vld [vmem:[#allocation5 + $0x2f0] sm:$0xff]
        %v511 = vld [vmem:[#allocation5 + $0x2f8] sm:$0xff]
        %v512 = vld [vmem:[#allocation5 + $0x300] sm:$0xff]
        %v513 = vld [vmem:[#allocation5 + $0x308] sm:$0xff]
        %v514 = vld [vmem:[#allocation5 + $0x310] sm:$0xff]
        %v515 = vld [vmem:[#allocation5 + $0x318] sm:$0xff]
        %v516 = vld [vmem:[#allocation5 + $0x320] sm:$0xff]
        %v517 = vld [vmem:[#allocation5 + $0x328] sm:$0xff]
        %v518 = vld [vmem:[#allocation5 + $0x330] sm:$0xff]
        %v519 = vld [vmem:[#allocation5 + $0x338] sm:$0xff]
        %v520 = vld [vmem:[#allocation5 + $0x340] sm:$0xff]
        %v521 = vld [vmem:[#allocation5 + $0x348] sm:$0xff]
        %v522 = vld [vmem:[#allocation5 + $0x350] sm:$0xff]
        %v523 = vld [vmem:[#allocation5 + $0x358] sm:$0xff]
        %v524 = vld [vmem:[#allocation5 + $0x360] sm:$0xff]
        %v525 = vld [vmem:[#allocation5 + $0x368] sm:$0xff]
        %v526 = vld [vmem:[#allocation5 + $0x370] sm:$0xff]
        %v527 = vld [vmem:[#allocation5 + $0x378] sm:$0xff]
        %v528 = vld [vmem:[#allocation5 + $0x380] sm:$0xff]
        %v529 = vld [vmem:[#allocation5 + $0x388] sm:$0xff]
        %v530 = vld [vmem:[#allocation5 + $0x390] sm:$0xff]
        %v531 = vld [vmem:[#allocation5 + $0x398] sm:$0xff]
        %v532 = vld [vmem:[#allocation5 + $0x3a0] sm:$0xff]
        %v533 = vld [vmem:[#allocation5 + $0x3a8] sm:$0xff]
        %v534 = vld [vmem:[#allocation5 + $0x3b0] sm:$0xff]
        %v535 = vld [vmem:[#allocation5 + $0x3b8] sm:$0xff]
        %v536 = vld [vmem:[#allocation5 + $0x3c0] sm:$0xff]
        %v537 = vld [vmem:[#allocation5 + $0x3c8] sm:$0xff]
        %v538 = vld [vmem:[#allocation5 + $0x3d0] sm:$0xff]
        %v539 = vld [vmem:[#allocation5 + $0x3d8] sm:$0xff]
        %v540 = vld [vmem:[#allocation5 + $0x3e0] sm:$0xff]
        %v541 = vld [vmem:[#allocation5 + $0x3e8] sm:$0xff]
        %v542 = vld [vmem:[#allocation5 + $0x3f0] sm:$0xff]
        %v543 = vld [vmem:[#allocation5 + $0x3f8] sm:$0xff]
        %v544 = vld [vmem:[#allocation5 + $0x400] sm:$0xff]
        %v545 = vld [vmem:[#allocation5 + $0x408] sm:$0xff]
        %v546 = vld [vmem:[#allocation5 + $0x410] sm:$0xff]
        %v547 = vld [vmem:[#allocation5 + $0x418] sm:$0xff]
        %v548 = vld [vmem:[#allocation5 + $0x420] sm:$0xff]
        %v549 = vld [vmem:[#allocation5 + $0x428] sm:$0xff]
        %v550 = vld [vmem:[#allocation5 + $0x430] sm:$0xff]
        %v551 = vld [vmem:[#allocation5 + $0x438] sm:$0xff]
        %v552 = vld [vmem:[#allocation5 + $0x440] sm:$0xff]
        %v553 = vld [vmem:[#allocation5 + $0x448] sm:$0xff]
        %v554 = vld [vmem:[#allocation5 + $0x450] sm:$0xff]
        %v555 = vld [vmem:[#allocation5 + $0x458] sm:$0xff]
        %v556 = vld [vmem:[#allocation5 + $0x460] sm:$0xff]
        %v557 = vld [vmem:[#allocation5 + $0x468] sm:$0xff]
        %v558 = vld [vmem:[#allocation5 + $0x470] sm:$0xff]
        %v559 = vld [vmem:[#allocation5 + $0x478] sm:$0xff]
        %v560 = vld [vmem:[#allocation5 + $0x480] sm:$0xff]
        %v561 = vld [vmem:[#allocation5 + $0x488] sm:$0xff]
        %v562 = vld [vmem:[#allocation5 + $0x490] sm:$0xff]
        %v563 = vld [vmem:[#allocation5 + $0x498] sm:$0xff]
        %v564 = vld [vmem:[#allocation5 + $0x4a0] sm:$0xff]
        %v565 = vld [vmem:[#allocation5 + $0x4a8] sm:$0xff]
        %v566 = vld [vmem:[#allocation5 + $0x4b0] sm:$0xff]
        %v567 = vld [vmem:[#allocation5 + $0x4b8] sm:$0xff]
        %v568 = vld [vmem:[#allocation5 + $0x4c0] sm:$0xff]
        %v569 = vld [vmem:[#allocation5 + $0x4c8] sm:$0xff]
        %v570 = vld [vmem:[#allocation5 + $0x4d0] sm:$0xff]
        %v571 = vld [vmem:[#allocation5 + $0x4d8] sm:$0xff]
        %v572 = vld [vmem:[#allocation5 + $0x4e0] sm:$0xff]
        %v573 = vld [vmem:[#allocation5 + $0x4e8] sm:$0xff]
        %v574 = vld [vmem:[#allocation5 + $0x4f0] sm:$0xff]
        %v575 = vld [vmem:[#allocation5 + $0x4f8] sm:$0xff]
        %v576 = vld [vmem:[#allocation5 + $0x500] sm:$0xff]
        %v577 = vld [vmem:[#allocation5 + $0x508] sm:$0xff]
        %v578 = vld [vmem:[#allocation5 + $0x510] sm:$0xff]
        %v579 = vld [vmem:[#allocation5 + $0x518] sm:$0xff]
        %v580 = vld [vmem:[#allocation5 + $0x520] sm:$0xff]
        %v581 = vld [vmem:[#allocation5 + $0x528] sm:$0xff]
        %v582 = vld [vmem:[#allocation5 + $0x530] sm:$0xff]
        %v583 = vld [vmem:[#allocation5 + $0x538] sm:$0xff]
        %v584 = vld [vmem:[#allocation5 + $0x540] sm:$0xff]
        %v585 = vld [vmem:[#allocation5 + $0x548] sm:$0xff]
        %v586 = vld [vmem:[#allocation5 + $0x550] sm:$0xff]
        %v587 = vld [vmem:[#allocation5 + $0x558] sm:$0xff]
        %v588 = vld [vmem:[#allocation5 + $0x560] sm:$0xff]
        %v589 = vld [vmem:[#allocation5 + $0x568] sm:$0xff]
        %v590 = vld [vmem:[#allocation5 + $0x570] sm:$0xff]
        %v591 = vld [vmem:[#allocation5 + $0x578] sm:$0xff]
        %v592 = vld [vmem:[#allocation5 + $0x580] sm:$0xff]
        %v593 = vld [vmem:[#allocation5 + $0x588] sm:$0xff]
        %v594 = vld [vmem:[#allocation5 + $0x590] sm:$0xff]
        %v595 = vld [vmem:[#allocation5 + $0x598] sm:$0xff]
        %v596 = vld [vmem:[#allocation5 + $0x5a0] sm:$0xff]
        %v597 = vld [vmem:[#allocation5 + $0x5a8] sm:$0xff]
        %v598 = vld [vmem:[#allocation5 + $0x5b0] sm:$0xff]
        %v599 = vld [vmem:[#allocation5 + $0x5b8] sm:$0xff]
        %v600 = vld [vmem:[#allocation5 + $0x5c0] sm:$0xff]
        %v601 = vld [vmem:[#allocation5 + $0x5c8] sm:$0xff]
        %v602 = vld [vmem:[#allocation5 + $0x5d0] sm:$0xff]
        %v603 = vld [vmem:[#allocation5 + $0x5d8] sm:$0xff]
        %v604 = vld [vmem:[#allocation5 + $0x5e0] sm:$0xff]
        %v605 = vld [vmem:[#allocation5 + $0x5e8] sm:$0xff]
        %v606 = vld [vmem:[#allocation5 + $0x5f0] sm:$0xff]
        %v607 = vld [vmem:[#allocation5 + $0x5f8] sm:$0xff]
        %v608 = vld [vmem:[#allocation5 + $0x600] sm:$0xff]
        %v609 = vld [vmem:[#allocation5 + $0x608] sm:$0xff]
        %v610 = vld [vmem:[#allocation5 + $0x610] sm:$0xff]
        %v611 = vld [vmem:[#allocation5 + $0x618] sm:$0xff]
        %v612 = vld [vmem:[#allocation5 + $0x620] sm:$0xff]
        %v613 = vld [vmem:[#allocation5 + $0x628] sm:$0xff]
        %v614 = vld [vmem:[#allocation5 + $0x630] sm:$0xff]
        %v615 = vld [vmem:[#allocation5 + $0x638] sm:$0xff]
        %v616 = vld [vmem:[#allocation5 + $0x640] sm:$0xff]
        %v617 = vld [vmem:[#allocation5 + $0x648] sm:$0xff]
        %v618 = vld [vmem:[#allocation5 + $0x650] sm:$0xff]
        %v619 = vld [vmem:[#allocation5 + $0x658] sm:$0xff]
        %v620 = vld [vmem:[#allocation5 + $0x660] sm:$0xff]
        %v621 = vld [vmem:[#allocation5 + $0x668] sm:$0xff]
        %v622 = vld [vmem:[#allocation5 + $0x670] sm:$0xff]
        %v623 = vld [vmem:[#allocation5 + $0x678] sm:$0xff]
        %v624 = vld [vmem:[#allocation5 + $0x680] sm:$0xff]
        %v625 = vld [vmem:[#allocation5 + $0x688] sm:$0xff]
        %v626 = vld [vmem:[#allocation5 + $0x690] sm:$0xff]
        %v627 = vld [vmem:[#allocation5 + $0x698] sm:$0xff]
        %v628 = vld [vmem:[#allocation5 + $0x6a0] sm:$0xff]
        %v629 = vld [vmem:[#allocation5 + $0x6a8] sm:$0xff]
        %v630 = vld [vmem:[#allocation5 + $0x6b0] sm:$0xff]
        %v631 = vld [vmem:[#allocation5 + $0x6b8] sm:$0xff]
        %v632 = vld [vmem:[#allocation5 + $0x6c0] sm:$0xff]
        %v633 = vld [vmem:[#allocation5 + $0x6c8] sm:$0xff]
        %v634 = vld [vmem:[#allocation5 + $0x6d0] sm:$0xff]
        %v635 = vld [vmem:[#allocation5 + $0x6d8] sm:$0xff]
        %v636 = vld [vmem:[#allocation5 + $0x6e0] sm:$0xff]
        %v637 = vld [vmem:[#allocation5 + $0x6e8] sm:$0xff]
        %v638 = vld [vmem:[#allocation5 + $0x6f0] sm:$0xff]
        %v639 = vld [vmem:[#allocation5 + $0x6f8] sm:$0xff]
        %v640 = vld [vmem:[#allocation5 + $0x700] sm:$0xff]
        %v641 = vld [vmem:[#allocation5 + $0x708] sm:$0xff]
        %v642 = vld [vmem:[#allocation5 + $0x710] sm:$0xff]
        %v643 = vld [vmem:[#allocation5 + $0x718] sm:$0xff]
        %v644 = vld [vmem:[#allocation5 + $0x720] sm:$0xff]
        %v645 = vld [vmem:[#allocation5 + $0x728] sm:$0xff]
        %v646 = vld [vmem:[#allocation5 + $0x730] sm:$0xff]
        %v647 = vld [vmem:[#allocation5 + $0x738] sm:$0xff]
        %v648 = vld [vmem:[#allocation5 + $0x740] sm:$0xff]
        %v649 = vld [vmem:[#allocation5 + $0x748] sm:$0xff]
        %v650 = vld [vmem:[#allocation5 + $0x750] sm:$0xff]
        %v651 = vld [vmem:[#allocation5 + $0x758] sm:$0xff]
        %v652 = vld [vmem:[#allocation5 + $0x760] sm:$0xff]
        %v653 = vld [vmem:[#allocation5 + $0x768] sm:$0xff]
        %v654 = vld [vmem:[#allocation5 + $0x770] sm:$0xff]
        %v655 = vld [vmem:[#allocation5 + $0x778] sm:$0xff]
        %v656 = vld [vmem:[#allocation5 + $0x780] sm:$0xff]
        %v657 = vld [vmem:[#allocation5 + $0x788] sm:$0xff]
        %v658 = vld [vmem:[#allocation5 + $0x790] sm:$0xff]
        %v659 = vld [vmem:[#allocation5 + $0x798] sm:$0xff]
        %v660 = vld [vmem:[#allocation5 + $0x7a0] sm:$0xff]
        %v661 = vld [vmem:[#allocation5 + $0x7a8] sm:$0xff]
        %v662 = vld [vmem:[#allocation5 + $0x7b0] sm:$0xff]
        %v663 = vld [vmem:[#allocation5 + $0x7b8] sm:$0xff]
        %v664 = vld [vmem:[#allocation5 + $0x7c0] sm:$0xff]
        %v665 = vld [vmem:[#allocation5 + $0x7c8] sm:$0xff]
        %v666 = vld [vmem:[#allocation5 + $0x7d0] sm:$0xff]
        %v667 = vld [vmem:[#allocation5 + $0x7d8] sm:$0xff]
        %v668 = vld [vmem:[#allocation5 + $0x7e0] sm:$0xff]
        %v669 = vld [vmem:[#allocation5 + $0x7e8] sm:$0xff]
        %v670 = vld [vmem:[#allocation5 + $0x7f0] sm:$0xff]
        %v671 = vld [vmem:[#allocation5 + $0x7f8] sm:$0xff]
        %v672 = vld [vmem:[#allocation5 + $0x800] sm:$0xff]
        %v673 = vld [vmem:[#allocation5 + $0x808] sm:$0xff]
        %v674 = vld [vmem:[#allocation5 + $0x810] sm:$0xff]
        %v675 = vld [vmem:[#allocation5 + $0x818] sm:$0xff]
        %v676 = vld [vmem:[#allocation5 + $0x820] sm:$0xff]
        %v677 = vld [vmem:[#allocation5 + $0x828] sm:$0xff]
        %v678 = vld [vmem:[#allocation5 + $0x830] sm:$0xff]
        %v679 = vld [vmem:[#allocation5 + $0x838] sm:$0xff]
        %v680 = vld [vmem:[#allocation5 + $0x840] sm:$0xff]
        %v681 = vld [vmem:[#allocation5 + $0x848] sm:$0xff]
        %v682 = vld [vmem:[#allocation5 + $0x850] sm:$0xff]
        %v683 = vld [vmem:[#allocation5 + $0x858] sm:$0xff]
        %v684 = vld [vmem:[#allocation5 + $0x860] sm:$0xff]
        %v685 = vld [vmem:[#allocation5 + $0x868] sm:$0xff]
        %v686 = vld [vmem:[#allocation5 + $0x870] sm:$0xff]
        %v687 = vld [vmem:[#allocation5 + $0x878] sm:$0xff]
        %v688 = vld [vmem:[#allocation5 + $0x880] sm:$0xff]
        %v689 = vld [vmem:[#allocation5 + $0x888] sm:$0xff]
        %v690 = vld [vmem:[#allocation5 + $0x890] sm:$0xff]
        %v691 = vld [vmem:[#allocation5 + $0x898] sm:$0xff]
        %v692 = vld [vmem:[#allocation5 + $0x8a0] sm:$0xff]
        %v693 = vld [vmem:[#allocation5 + $0x8a8] sm:$0xff]
        %v694 = vld [vmem:[#allocation5 + $0x8b0] sm:$0xff]
        %v695 = vld [vmem:[#allocation5 + $0x8b8] sm:$0xff]
        %v696 = vld [vmem:[#allocation5 + $0x8c0] sm:$0xff]
        %v697 = vld [vmem:[#allocation5 + $0x8c8] sm:$0xff]
        %v698 = vld [vmem:[#allocation5 + $0x8d0] sm:$0xff]
        %v699 = vld [vmem:[#allocation5 + $0x8d8] sm:$0xff]
        %v700 = vld [vmem:[#allocation5 + $0x8e0] sm:$0xff]
        %v701 = vld [vmem:[#allocation5 + $0x8e8] sm:$0xff]
        %v702 = vld [vmem:[#allocation5 + $0x8f0] sm:$0xff]
        %v703 = vld [vmem:[#allocation5 + $0x8f8] sm:$0xff]
        %v704 = vld [vmem:[#allocation5 + $0x900] sm:$0xff]
        %v705 = vld [vmem:[#allocation5 + $0x908] sm:$0xff]
        %v706 = vld [vmem:[#allocation5 + $0x910] sm:$0xff]
        %v707 = vld [vmem:[#allocation5 + $0x918] sm:$0xff]
        %v708 = vld [vmem:[#allocation5 + $0x920] sm:$0xff]
        %v709 = vld [vmem:[#allocation5 + $0x928] sm:$0xff]
        %v710 = vld [vmem:[#allocation5 + $0x930] sm:$0xff]
        %v711 = vld [vmem:[#allocation5 + $0x938] sm:$0xff]
        %v712 = vld [vmem:[#allocation5 + $0x940] sm:$0xff]
        %v713 = vld [vmem:[#allocation5 + $0x948] sm:$0xff]
        %v714 = vld [vmem:[#allocation5 + $0x950] sm:$0xff]
        %v715 = vld [vmem:[#allocation5 + $0x958] sm:$0xff]
        %v716 = vld [vmem:[#allocation5 + $0x960] sm:$0xff]
        %v717 = vld [vmem:[#allocation5 + $0x968] sm:$0xff]
        %v718 = vld [vmem:[#allocation5 + $0x970] sm:$0xff]
        %v719 = vld [vmem:[#allocation5 + $0x978] sm:$0xff]
        %v720 = vld [vmem:[#allocation5 + $0x980] sm:$0xff]
        %v721 = vld [vmem:[#allocation5 + $0x988] sm:$0xff]
        %v722 = vld [vmem:[#allocation5 + $0x990] sm:$0xff]
        %v723 = vld [vmem:[#allocation5 + $0x998] sm:$0xff]
        %v724 = vld [vmem:[#allocation5 + $0x9a0] sm:$0xff]
        %v725 = vld [vmem:[#allocation5 + $0x9a8] sm:$0xff]
        %v726 = vld [vmem:[#allocation5 + $0x9b0] sm:$0xff]
        %v727 = vld [vmem:[#allocation5 + $0x9b8] sm:$0xff]
        %v728 = vld [vmem:[#allocation5 + $0x9c0] sm:$0xff]
        %v729 = vld [vmem:[#allocation5 + $0x9c8] sm:$0xff]
        %v730 = vld [vmem:[#allocation5 + $0x9d0] sm:$0xff]
        %v731 = vld [vmem:[#allocation5 + $0x9d8] sm:$0xff]
        %v732 = vld [vmem:[#allocation5 + $0x9e0] sm:$0xff]
        %v733 = vld [vmem:[#allocation5 + $0x9e8] sm:$0xff]
        %v734 = vld [vmem:[#allocation5 + $0x9f0] sm:$0xff]
        %v735 = vld [vmem:[#allocation5 + $0x9f8] sm:$0xff]
        %v736 = vld [vmem:[#allocation5 + $0xa00] sm:$0xff]
        %v737 = vld [vmem:[#allocation5 + $0xa08] sm:$0xff]
        %v738 = vld [vmem:[#allocation5 + $0xa10] sm:$0xff]
        %v739 = vld [vmem:[#allocation5 + $0xa18] sm:$0xff]
        %v740 = vld [vmem:[#allocation5 + $0xa20] sm:$0xff]
        %v741 = vld [vmem:[#allocation5 + $0xa28] sm:$0xff]
        %v742 = vld [vmem:[#allocation5 + $0xa30] sm:$0xff]
        %v743 = vld [vmem:[#allocation5 + $0xa38] sm:$0xff]
        %v744 = vld [vmem:[#allocation5 + $0xa40] sm:$0xff]
        %v745 = vld [vmem:[#allocation5 + $0xa48] sm:$0xff]
        %v746 = vld [vmem:[#allocation5 + $0xa50] sm:$0xff]
        %v747 = vld [vmem:[#allocation5 + $0xa58] sm:$0xff]
        %v748 = vld [vmem:[#allocation5 + $0xa60] sm:$0xff]
        %v749 = vld [vmem:[#allocation5 + $0xa68] sm:$0xff]
        %v750 = vld [vmem:[#allocation5 + $0xa70] sm:$0xff]
        %v751 = vld [vmem:[#allocation5 + $0xa78] sm:$0xff]
        %v752 = vld [vmem:[#allocation5 + $0xa80] sm:$0xff]
        %v753 = vld [vmem:[#allocation5 + $0xa88] sm:$0xff]
        %v754 = vld [vmem:[#allocation5 + $0xa90] sm:$0xff]
        %v755 = vld [vmem:[#allocation5 + $0xa98] sm:$0xff]
        %v756 = vld [vmem:[#allocation5 + $0xaa0] sm:$0xff]
        %v757 = vld [vmem:[#allocation5 + $0xaa8] sm:$0xff]
        %v758 = vld [vmem:[#allocation5 + $0xab0] sm:$0xff]
        %v759 = vld [vmem:[#allocation5 + $0xab8] sm:$0xff]
        %v760 = vld [vmem:[#allocation5 + $0xac0] sm:$0xff]
        %v761 = vld [vmem:[#allocation5 + $0xac8] sm:$0xff]
        %v762 = vld [vmem:[#allocation5 + $0xad0] sm:$0xff]
        %v763 = vld [vmem:[#allocation5 + $0xad8] sm:$0xff]
        %v764 = vld [vmem:[#allocation5 + $0xae0] sm:$0xff]
        %v765 = vld [vmem:[#allocation5 + $0xae8] sm:$0xff]
        %v766 = vld [vmem:[#allocation5 + $0xaf0] sm:$0xff]
        %v767 = vld [vmem:[#allocation5 + $0xaf8] sm:$0xff]
        %v768 = vld [vmem:[#allocation5 + $0xb00] sm:$0xff]
        %v769 = vld [vmem:[#allocation5 + $0xb08] sm:$0xff]
        %v770 = vld [vmem:[#allocation5 + $0xb10] sm:$0xff]
        %v771 = vld [vmem:[#allocation5 + $0xb18] sm:$0xff]
        %v772 = vld [vmem:[#allocation5 + $0xb20] sm:$0xff]
        %v773 = vld [vmem:[#allocation5 + $0xb28] sm:$0xff]
        %v774 = vld [vmem:[#allocation5 + $0xb30] sm:$0xff]
        %v775 = vld [vmem:[#allocation5 + $0xb38] sm:$0xff]
        %v776 = vld [vmem:[#allocation5 + $0xb40] sm:$0xff]
        %v777 = vld [vmem:[#allocation5 + $0xb48] sm:$0xff]
        %v778 = vld [vmem:[#allocation5 + $0xb50] sm:$0xff]
        %v779 = vld [vmem:[#allocation5 + $0xb58] sm:$0xff]
        %v780 = vld [vmem:[#allocation5 + $0xb60] sm:$0xff]
        %v781 = vld [vmem:[#allocation5 + $0xb68] sm:$0xff]
        %v782 = vld [vmem:[#allocation5 + $0xb70] sm:$0xff]
        %v783 = vld [vmem:[#allocation5 + $0xb78] sm:$0xff]
        %v784 = vld [vmem:[#allocation5 + $0xb80] sm:$0xff]
        %v785 = vld [vmem:[#allocation5 + $0xb88] sm:$0xff]
        %v786 = vld [vmem:[#allocation5 + $0xb90] sm:$0xff]
        %v787 = vld [vmem:[#allocation5 + $0xb98] sm:$0xff]
        %v788 = vld [vmem:[#allocation5 + $0xba0] sm:$0xff]
        %v789 = vld [vmem:[#allocation5 + $0xba8] sm:$0xff]
        %v790 = vld [vmem:[#allocation5 + $0xbb0] sm:$0xff]
        %v791 = vld [vmem:[#allocation5 + $0xbb8] sm:$0xff]
        %v792 = vld [vmem:[#allocation5 + $0xbc0] sm:$0xff]
        %v793 = vld [vmem:[#allocation5 + $0xbc8] sm:$0xff]
        %v794 = vld [vmem:[#allocation5 + $0xbd0] sm:$0xff]
        %v795 = vld [vmem:[#allocation5 + $0xbd8] sm:$0xff]
        %v796 = vld [vmem:[#allocation5 + $0xbe0] sm:$0xff]
        %v797 = vld [vmem:[#allocation5 + $0xbe8] sm:$0xff]
        %v798 = vld [vmem:[#allocation5 + $0xbf0] sm:$0xff]
        %v799 = vld [vmem:[#allocation5 + $0xbf8] sm:$0xff]
        %v800 = vld [vmem:[#allocation5 + $0xc00] sm:$0xff]
        %v801 = vld [vmem:[#allocation5 + $0xc08] sm:$0xff]
        %v802 = vld [vmem:[#allocation5 + $0xc10] sm:$0xff]
        %v803 = vld [vmem:[#allocation5 + $0xc18] sm:$0xff]
        %v804 = vld [vmem:[#allocation5 + $0xc20] sm:$0xff]
        %v805 = vld [vmem:[#allocation5 + $0xc28] sm:$0xff]
        %v806 = vld [vmem:[#allocation5 + $0xc30] sm:$0xff]
        %v807 = vld [vmem:[#allocation5 + $0xc38] sm:$0xff]
        %v808 = vld [vmem:[#allocation5 + $0xc40] sm:$0xff]
        %v809 = vld [vmem:[#allocation5 + $0xc48] sm:$0xff]
        %v810 = vld [vmem:[#allocation5 + $0xc50] sm:$0xff]
        %v811 = vld [vmem:[#allocation5 + $0xc58] sm:$0xff]
        %v812 = vld [vmem:[#allocation5 + $0xc60] sm:$0xff]
        %v813 = vld [vmem:[#allocation5 + $0xc68] sm:$0xff]
        %v814 = vld [vmem:[#allocation5 + $0xc70] sm:$0xff]
        %v815 = vld [vmem:[#allocation5 + $0xc78] sm:$0xff]
        %v816 = vld [vmem:[#allocation5 + $0xc80] sm:$0xff]
        %v817 = vld [vmem:[#allocation5 + $0xc88] sm:$0xff]
        %v818 = vld [vmem:[#allocation5 + $0xc90] sm:$0xff]
        %v819 = vld [vmem:[#allocation5 + $0xc98] sm:$0xff]
        %v820 = vld [vmem:[#allocation5 + $0xca0] sm:$0xff]
        %v821 = vld [vmem:[#allocation5 + $0xca8] sm:$0xff]
        %v822 = vld [vmem:[#allocation5 + $0xcb0] sm:$0xff]
        %v823 = vld [vmem:[#allocation5 + $0xcb8] sm:$0xff]
        %v824 = vld [vmem:[#allocation5 + $0xcc0] sm:$0xff]
        %v825 = vld [vmem:[#allocation5 + $0xcc8] sm:$0xff]
        %v826 = vld [vmem:[#allocation5 + $0xcd0] sm:$0xff]
        %v827 = vld [vmem:[#allocation5 + $0xcd8] sm:$0xff]
        %v828 = vld [vmem:[#allocation5 + $0xce0] sm:$0xff]
        %v829 = vld [vmem:[#allocation5 + $0xce8] sm:$0xff]
        %v830 = vld [vmem:[#allocation5 + $0xcf0] sm:$0xff]
        %v831 = vld [vmem:[#allocation5 + $0xcf8] sm:$0xff]
        %v832 = vld [vmem:[#allocation5 + $0xd00] sm:$0xff]
        %v833 = vld [vmem:[#allocation5 + $0xd08] sm:$0xff]
        %v834 = vld [vmem:[#allocation5 + $0xd10] sm:$0xff]
        %v835 = vld [vmem:[#allocation5 + $0xd18] sm:$0xff]
        %v836 = vld [vmem:[#allocation5 + $0xd20] sm:$0xff]
        %v837 = vld [vmem:[#allocation5 + $0xd28] sm:$0xff]
        %v838 = vld [vmem:[#allocation5 + $0xd30] sm:$0xff]
        %v839 = vld [vmem:[#allocation5 + $0xd38] sm:$0xff]
        %v840 = vld [vmem:[#allocation5 + $0xd40] sm:$0xff]
        %v841 = vld [vmem:[#allocation5 + $0xd48] sm:$0xff]
        %v842 = vld [vmem:[#allocation5 + $0xd50] sm:$0xff]
        %v843 = vld [vmem:[#allocation5 + $0xd58] sm:$0xff]
        %v844 = vld [vmem:[#allocation5 + $0xd60] sm:$0xff]
        %v845 = vld [vmem:[#allocation5 + $0xd68] sm:$0xff]
        %v846 = vld [vmem:[#allocation5 + $0xd70] sm:$0xff]
        %v847 = vld [vmem:[#allocation5 + $0xd78] sm:$0xff]
        %v848 = vld [vmem:[#allocation5 + $0xd80] sm:$0xff]
        %v849 = vld [vmem:[#allocation5 + $0xd88] sm:$0xff]
        %v850 = vld [vmem:[#allocation5 + $0xd90] sm:$0xff]
        %v851 = vld [vmem:[#allocation5 + $0xd98] sm:$0xff]
        %v852 = vld [vmem:[#allocation5 + $0xda0] sm:$0xff]
        %v853 = vld [vmem:[#allocation5 + $0xda8] sm:$0xff]
        %v854 = vld [vmem:[#allocation5 + $0xdb0] sm:$0xff]
        %v855 = vld [vmem:[#allocation5 + $0xdb8] sm:$0xff]
        %v856 = vld [vmem:[#allocation5 + $0xdc0] sm:$0xff]
        %v857 = vld [vmem:[#allocation5 + $0xdc8] sm:$0xff]
        %v858 = vld [vmem:[#allocation5 + $0xdd0] sm:$0xff]
        %v859 = vld [vmem:[#allocation5 + $0xdd8] sm:$0xff]
        %v860 = vld [vmem:[#allocation5 + $0xde0] sm:$0xff]
        %v861 = vld [vmem:[#allocation5 + $0xde8] sm:$0xff]
        %v862 = vld [vmem:[#allocation5 + $0xdf0] sm:$0xff]
        %v863 = vld [vmem:[#allocation5 + $0xdf8] sm:$0xff]
        %v864 = vld [vmem:[#allocation5 + $0xe00] sm:$0xff]
        %v865 = vld [vmem:[#allocation5 + $0xe08] sm:$0xff]
        %v866 = vld [vmem:[#allocation5 + $0xe10] sm:$0xff]
        %v867 = vld [vmem:[#allocation5 + $0xe18] sm:$0xff]
        %v868 = vld [vmem:[#allocation5 + $0xe20] sm:$0xff]
        %v869 = vld [vmem:[#allocation5 + $0xe28] sm:$0xff]
        %v870 = vld [vmem:[#allocation5 + $0xe30] sm:$0xff]
        %v871 = vld [vmem:[#allocation5 + $0xe38] sm:$0xff]
        %v872 = vld [vmem:[#allocation5 + $0xe40] sm:$0xff]
        %v873 = vld [vmem:[#allocation5 + $0xe48] sm:$0xff]
        %v874 = vld [vmem:[#allocation5 + $0xe50] sm:$0xff]
        %v875 = vld [vmem:[#allocation5 + $0xe58] sm:$0xff]
        %v876 = vld [vmem:[#allocation5 + $0xe60] sm:$0xff]
        %v877 = vld [vmem:[#allocation5 + $0xe68] sm:$0xff]
        %v878 = vld [vmem:[#allocation5 + $0xe70] sm:$0xff]
        %v879 = vld [vmem:[#allocation5 + $0xe78] sm:$0xff]
        %v880 = vld [vmem:[#allocation5 + $0xe80] sm:$0xff]
        %v881 = vld [vmem:[#allocation5 + $0xe88] sm:$0xff]
        %v882 = vld [vmem:[#allocation5 + $0xe90] sm:$0xff]
        %v883 = vld [vmem:[#allocation5 + $0xe98] sm:$0xff]
        %v884 = vld [vmem:[#allocation5 + $0xea0] sm:$0xff]
        %v885 = vld [vmem:[#allocation5 + $0xea8] sm:$0xff]
        %v886 = vld [vmem:[#allocation5 + $0xeb0] sm:$0xff]
        %v887 = vld [vmem:[#allocation5 + $0xeb8] sm:$0xff]
        %v888 = vld [vmem:[#allocation5 + $0xec0] sm:$0xff]
        %v889 = vld [vmem:[#allocation5 + $0xec8] sm:$0xff]
        %v890 = vld [vmem:[#allocation5 + $0xed0] sm:$0xff]
        %v891 = vld [vmem:[#allocation5 + $0xed8] sm:$0xff]
        %v892 = vld [vmem:[#allocation5 + $0xee0] sm:$0xff]
        %v893 = vld [vmem:[#allocation5 + $0xee8] sm:$0xff]
        %v894 = vld [vmem:[#allocation5 + $0xef0] sm:$0xff]
        %v895 = vld [vmem:[#allocation5 + $0xef8] sm:$0xff]
        %v896 = vld [vmem:[#allocation5 + $0xf00] sm:$0xff]
        %v897 = vld [vmem:[#allocation5 + $0xf08] sm:$0xff]
        %v898 = vld [vmem:[#allocation5 + $0xf10] sm:$0xff]
        %v899 = vld [vmem:[#allocation5 + $0xf18] sm:$0xff]
        %v900 = vld [vmem:[#allocation5 + $0xf20] sm:$0xff]
        %v901 = vld [vmem:[#allocation5 + $0xf28] sm:$0xff]
        %v902 = vld [vmem:[#allocation5 + $0xf30] sm:$0xff]
        %v903 = vld [vmem:[#allocation5 + $0xf38] sm:$0xff]
        %v904 = vld [vmem:[#allocation5 + $0xf40] sm:$0xff]
        %v905 = vld [vmem:[#allocation5 + $0xf48] sm:$0xff]
        %v906 = vld [vmem:[#allocation5 + $0xf50] sm:$0xff]
        %v907 = vld [vmem:[#allocation5 + $0xf58] sm:$0xff]
        %v908 = vld [vmem:[#allocation5 + $0xf60] sm:$0xff]
        %v909 = vld [vmem:[#allocation5 + $0xf68] sm:$0xff]
        %v910 = vld [vmem:[#allocation5 + $0xf70] sm:$0xff]
        %v911 = vld [vmem:[#allocation5 + $0xf78] sm:$0xff]
        %v912 = vld [vmem:[#allocation5 + $0xf80] sm:$0xff]
        %v913 = vld [vmem:[#allocation5 + $0xf88] sm:$0xff]
        %v914 = vld [vmem:[#allocation5 + $0xf90] sm:$0xff]
        %v915 = vld [vmem:[#allocation5 + $0xf98] sm:$0xff]
        %v916 = vld [vmem:[#allocation5 + $0xfa0] sm:$0xff]
        %v917 = vld [vmem:[#allocation5 + $0xfa8] sm:$0xff]
        %v918 = vld [vmem:[#allocation5 + $0xfb0] sm:$0xff]
        %v919 = vld [vmem:[#allocation5 + $0xfb8] sm:$0xff]
        %v920 = vld [vmem:[#allocation5 + $0xfc0] sm:$0xff]
        %v921 = vld [vmem:[#allocation5 + $0xfc8] sm:$0xff]
        %v922 = vld [vmem:[#allocation5 + $0xfd0] sm:$0xff]
        %v923 = vld [vmem:[#allocation5 + $0xfd8] sm:$0xff]
        %v924 = vld [vmem:[#allocation5 + $0xfe0] sm:$0xff]
        %v925 = vld [vmem:[#allocation5 + $0xfe8] sm:$0xff]
        %v926 = vld [vmem:[#allocation5 + $0xff0] sm:$0xff]
        %v927 = vld [vmem:[#allocation5 + $0xff8] sm:$0xff]
        %v928 = vld [vmem:[#allocation5 + $0x1000] sm:$0xff]
        %v929 = vld [vmem:[#allocation5 + $0x1008] sm:$0xff]
        %v930 = vld [vmem:[#allocation5 + $0x1010] sm:$0xff]
        %v931 = vld [vmem:[#allocation5 + $0x1018] sm:$0xff]
        %v932 = vld [vmem:[#allocation5 + $0x1020] sm:$0xff]
        %v933 = vld [vmem:[#allocation5 + $0x1028] sm:$0xff]
        %v934 = vld [vmem:[#allocation5 + $0x1030] sm:$0xff]
        %v935 = vld [vmem:[#allocation5 + $0x1038] sm:$0xff]
        %v936 = vld [vmem:[#allocation5 + $0x1040] sm:$0xff]
        %v937 = vld [vmem:[#allocation5 + $0x1048] sm:$0xff]
        %v938 = vld [vmem:[#allocation5 + $0x1050] sm:$0xff]
        %v939 = vld [vmem:[#allocation5 + $0x1058] sm:$0xff]
        %v940 = vld [vmem:[#allocation5 + $0x1060] sm:$0xff]
        %v941 = vld [vmem:[#allocation5 + $0x1068] sm:$0xff]
        %v942 = vld [vmem:[#allocation5 + $0x1070] sm:$0xff]
        %v943 = vld [vmem:[#allocation5 + $0x1078] sm:$0xff]
        %v944 = vld [vmem:[#allocation5 + $0x1080] sm:$0xff]
        %v945 = vld [vmem:[#allocation5 + $0x1088] sm:$0xff]
        %v946 = vld [vmem:[#allocation5 + $0x1090] sm:$0xff]
        %v947 = vld [vmem:[#allocation5 + $0x1098] sm:$0xff]
        %v948 = vld [vmem:[#allocation5 + $0x10a0] sm:$0xff]
        %v949 = vld [vmem:[#allocation5 + $0x10a8] sm:$0xff]
        %v950 = vld [vmem:[#allocation5 + $0x10b0] sm:$0xff]
        %v951 = vld [vmem:[#allocation5 + $0x10b8] sm:$0xff]
        %v952 = vld [vmem:[#allocation5 + $0x10c0] sm:$0xff]
        %v953 = vld [vmem:[#allocation5 + $0x10c8] sm:$0xff]
        %v954 = vld [vmem:[#allocation5 + $0x10d0] sm:$0xff]
        %v955 = vld [vmem:[#allocation5 + $0x10d8] sm:$0xff]
        %v956 = vld [vmem:[#allocation5 + $0x10e0] sm:$0xff]
        %v957 = vld [vmem:[#allocation5 + $0x10e8] sm:$0xff]
        %v958 = vld [vmem:[#allocation5 + $0x10f0] sm:$0xff]
        %v959 = vld [vmem:[#allocation5 + $0x10f8] sm:$0xff]
        %v960 = vld [vmem:[#allocation5 + $0x1100] sm:$0xff]
        %v961 = vld [vmem:[#allocation5 + $0x1108] sm:$0xff]
        %v962 = vld [vmem:[#allocation5 + $0x1110] sm:$0xff]
        %v963 = vld [vmem:[#allocation5 + $0x1118] sm:$0xff]
        %v964 = vld [vmem:[#allocation5 + $0x1120] sm:$0xff]
        %v965 = vld [vmem:[#allocation5 + $0x1128] sm:$0xff]
        %v966 = vld [vmem:[#allocation5 + $0x1130] sm:$0xff]
        %v967 = vld [vmem:[#allocation5 + $0x1138] sm:$0xff]
        %v968 = vld [vmem:[#allocation5 + $0x1140] sm:$0xff]
        %v969 = vld [vmem:[#allocation5 + $0x1148] sm:$0xff]
        %v970 = vld [vmem:[#allocation5 + $0x1150] sm:$0xff]
        %v971 = vld [vmem:[#allocation5 + $0x1158] sm:$0xff]
        %v972 = vld [vmem:[#allocation5 + $0x1160] sm:$0xff]
        %v973 = vld [vmem:[#allocation5 + $0x1168] sm:$0xff]
        %v974 = vld [vmem:[#allocation5 + $0x1170] sm:$0xff]
        %v975 = vld [vmem:[#allocation5 + $0x1178] sm:$0xff]
        %v976 = vld [vmem:[#allocation5 + $0x1180] sm:$0xff]
        %v977 = vld [vmem:[#allocation5 + $0x1188] sm:$0xff]
        %v978 = vld [vmem:[#allocation5 + $0x1190] sm:$0xff]
        %v979 = vld [vmem:[#allocation5 + $0x1198] sm:$0xff]
        %v980 = vld [vmem:[#allocation5 + $0x11a0] sm:$0xff]
        %v981 = vld [vmem:[#allocation5 + $0x11a8] sm:$0xff]
        %v982 = vld [vmem:[#allocation5 + $0x11b0] sm:$0xff]
        %v983 = vld [vmem:[#allocation5 + $0x11b8] sm:$0xff]
        %v984 = vld [vmem:[#allocation5 + $0x11c0] sm:$0xff]
        %v985 = vld [vmem:[#allocation5 + $0x11c8] sm:$0xff]
        %v986 = vld [vmem:[#allocation5 + $0x11d0] sm:$0xff]
        %v987 = vld [vmem:[#allocation5 + $0x11d8] sm:$0xff]
        %v988 = vld [vmem:[#allocation5 + $0x11e0] sm:$0xff]
        %v989 = vld [vmem:[#allocation5 + $0x11e8] sm:$0xff]
        %v990 = vld [vmem:[#allocation5 + $0x11f0] sm:$0xff]
        %v991 = vld [vmem:[#allocation5 + $0x11f8] sm:$0xff]
        %v992 = vld [vmem:[#allocation5 + $0x1200] sm:$0xff]
        %v993 = vld [vmem:[#allocation5 + $0x1208] sm:$0xff]
        %v994 = vld [vmem:[#allocation5 + $0x1210] sm:$0xff]
        %v995 = vld [vmem:[#allocation5 + $0x1218] sm:$0xff]
        %v996 = vld [vmem:[#allocation5 + $0x1220] sm:$0xff]
        %v997 = vld [vmem:[#allocation5 + $0x1228] sm:$0xff]
        %v998 = vld [vmem:[#allocation5 + $0x1230] sm:$0xff]
        %v999 = vld [vmem:[#allocation5 + $0x1238] sm:$0xff]
        %v1000 = vld [vmem:[#allocation5 + $0x1240] sm:$0xff]
        %v1001 = vld [vmem:[#allocation5 + $0x1248] sm:$0xff]
        %v1002 = vld [vmem:[#allocation5 + $0x1250] sm:$0xff]
        %v1003 = vld [vmem:[#allocation5 + $0x1258] sm:$0xff]
        %v1004 = vld [vmem:[#allocation5 + $0x1260] sm:$0xff]
        %v1005 = vld [vmem:[#allocation5 + $0x1268] sm:$0xff]
        %v1006 = vld [vmem:[#allocation5 + $0x1270] sm:$0xff]
        %v1007 = vld [vmem:[#allocation5 + $0x1278] sm:$0xff]
        %v1008 = vld [vmem:[#allocation5 + $0x1280] sm:$0xff]
        %v1009 = vld [vmem:[#allocation5 + $0x1288] sm:$0xff]
        %v1010 = vld [vmem:[#allocation5 + $0x1290] sm:$0xff]
        %v1011 = vld [vmem:[#allocation5 + $0x1298] sm:$0xff]
        %v1012 = vld [vmem:[#allocation5 + $0x12a0] sm:$0xff]
        %v1013 = vld [vmem:[#allocation5 + $0x12a8] sm:$0xff]
        %v1014 = vld [vmem:[#allocation5 + $0x12b0] sm:$0xff]
        %v1015 = vld [vmem:[#allocation5 + $0x12b8] sm:$0xff]
        %v1016 = vld [vmem:[#allocation5 + $0x12c0] sm:$0xff]
        %v1017 = vld [vmem:[#allocation5 + $0x12c8] sm:$0xff]
        %v1018 = vld [vmem:[#allocation5 + $0x12d0] sm:$0xff]
        %v1019 = vld [vmem:[#allocation5 + $0x12d8] sm:$0xff]
        %v1020 = vld [vmem:[#allocation5 + $0x12e0] sm:$0xff]
        %v1021 = vld [vmem:[#allocation5 + $0x12e8] sm:$0xff]
        %v1022 = vld [vmem:[#allocation5 + $0x12f0] sm:$0xff]
        %v1023 = vld [vmem:[#allocation5 + $0x12f8] sm:$0xff]
        %v1024 = vld [vmem:[#allocation5 + $0x1300] sm:$0xff]
        %v1025 = vld [vmem:[#allocation5 + $0x1308] sm:$0xff]
        %v1026 = vld [vmem:[#allocation5 + $0x1310] sm:$0xff]
        %v1027 = vld [vmem:[#allocation5 + $0x1318] sm:$0xff]
        %v1028 = vld [vmem:[#allocation5 + $0x1320] sm:$0xff]
        %v1029 = vld [vmem:[#allocation5 + $0x1328] sm:$0xff]
        %v1030 = vld [vmem:[#allocation5 + $0x1330] sm:$0xff]
        %v1031 = vld [vmem:[#allocation5 + $0x1338] sm:$0xff]
        %v1032 = vld [vmem:[#allocation5 + $0x1340] sm:$0xff]
        %v1033 = vld [vmem:[#allocation5 + $0x1348] sm:$0xff]
        %v1034 = vld [vmem:[#allocation5 + $0x1350] sm:$0xff]
        %v1035 = vld [vmem:[#allocation5 + $0x1358] sm:$0xff]
        %v1036 = vld [vmem:[#allocation5 + $0x1360] sm:$0xff]
        %v1037 = vld [vmem:[#allocation5 + $0x1368] sm:$0xff]
        %v1038 = vld [vmem:[#allocation5 + $0x1370] sm:$0xff]
        %v1039 = vld [vmem:[#allocation5 + $0x1378] sm:$0xff]
        %v1040 = vld [vmem:[#allocation5 + $0x1380] sm:$0xff]
        %v1041 = vld [vmem:[#allocation5 + $0x1388] sm:$0xff]
        %v1042 = vld [vmem:[#allocation5 + $0x1390] sm:$0xff]
        %v1043 = vld [vmem:[#allocation5 + $0x1398] sm:$0xff]
        %v1044 = vld [vmem:[#allocation5 + $0x13a0] sm:$0xff]
        %v1045 = vld [vmem:[#allocation5 + $0x13a8] sm:$0xff]
        %v1046 = vld [vmem:[#allocation5 + $0x13b0] sm:$0xff]
        %v1047 = vld [vmem:[#allocation5 + $0x13b8] sm:$0xff]
        %v1048 = vld [vmem:[#allocation5 + $0x13c0] sm:$0xff]
        %v1049 = vld [vmem:[#allocation5 + $0x13c8] sm:$0xff]
        %v1050 = vld [vmem:[#allocation5 + $0x13d0] sm:$0xff]
        %v1051 = vld [vmem:[#allocation5 + $0x13d8] sm:$0xff]
        %v1052 = vld [vmem:[#allocation5 + $0x13e0] sm:$0xff]
        %v1053 = vld [vmem:[#allocation5 + $0x13e8] sm:$0xff]
        %v1054 = vld [vmem:[#allocation5 + $0x13f0] sm:$0xff]
        %v1055 = vld [vmem:[#allocation5 + $0x13f8] sm:$0xff]
        %v1056 = vld [vmem:[#allocation5 + $0x1400] sm:$0xff]
        %v1057 = vld [vmem:[#allocation5 + $0x1408] sm:$0xff]
        %v1058 = vld [vmem:[#allocation5 + $0x1410] sm:$0xff]
        %v1059 = vld [vmem:[#allocation5 + $0x1418] sm:$0xff]
        %v1060 = vld [vmem:[#allocation5 + $0x1420] sm:$0xff]
        %v1061 = vld [vmem:[#allocation5 + $0x1428] sm:$0xff]
        %v1062 = vld [vmem:[#allocation5 + $0x1430] sm:$0xff]
        %v1063 = vld [vmem:[#allocation5 + $0x1438] sm:$0xff]
        %v1064 = vld [vmem:[#allocation5 + $0x1440] sm:$0xff]
        %v1065 = vld [vmem:[#allocation5 + $0x1448] sm:$0xff]
        %v1066 = vld [vmem:[#allocation5 + $0x1450] sm:$0xff]
        %v1067 = vld [vmem:[#allocation5 + $0x1458] sm:$0xff]
        %v1068 = vld [vmem:[#allocation5 + $0x1460] sm:$0xff]
        %v1069 = vld [vmem:[#allocation5 + $0x1468] sm:$0xff]
        %v1070 = vld [vmem:[#allocation5 + $0x1470] sm:$0xff]
        %v1071 = vld [vmem:[#allocation5 + $0x1478] sm:$0xff]
        %v1072 = vld [vmem:[#allocation5 + $0x1480] sm:$0xff]
        %v1073 = vld [vmem:[#allocation5 + $0x1488] sm:$0xff]
        %v1074 = vld [vmem:[#allocation5 + $0x1490] sm:$0xff]
        %v1075 = vld [vmem:[#allocation5 + $0x1498] sm:$0xff]
        %v1076 = vld [vmem:[#allocation5 + $0x14a0] sm:$0xff]
        %v1077 = vld [vmem:[#allocation5 + $0x14a8] sm:$0xff]
        %v1078 = vld [vmem:[#allocation5 + $0x14b0] sm:$0xff]
        %v1079 = vld [vmem:[#allocation5 + $0x14b8] sm:$0xff]
        %v1080 = vld [vmem:[#allocation5 + $0x14c0] sm:$0xff]
        %v1081 = vld [vmem:[#allocation5 + $0x14c8] sm:$0xff]
        %v1082 = vld [vmem:[#allocation5 + $0x14d0] sm:$0xff]
        %v1083 = vld [vmem:[#allocation5 + $0x14d8] sm:$0xff]
        %v1084 = vld [vmem:[#allocation5 + $0x14e0] sm:$0xff]
        %v1085 = vld [vmem:[#allocation5 + $0x14e8] sm:$0xff]
        %v1086 = vld [vmem:[#allocation5 + $0x14f0] sm:$0xff]
        %v1087 = vld [vmem:[#allocation5 + $0x14f8] sm:$0xff]
        %v1088 = vld [vmem:[#allocation5 + $0x1500] sm:$0xff]
        %v1089 = vld [vmem:[#allocation5 + $0x1508] sm:$0xff]
        %v1090 = vld [vmem:[#allocation5 + $0x1510] sm:$0xff]
        %v1091 = vld [vmem:[#allocation5 + $0x1518] sm:$0xff]
        %v1092 = vld [vmem:[#allocation5 + $0x1520] sm:$0xff]
        %v1093 = vld [vmem:[#allocation5 + $0x1528] sm:$0xff]
        %v1094 = vld [vmem:[#allocation5 + $0x1530] sm:$0xff]
        %v1095 = vld [vmem:[#allocation5 + $0x1538] sm:$0xff]
        %v1096 = vld [vmem:[#allocation5 + $0x1540] sm:$0xff]
        %v1097 = vld [vmem:[#allocation5 + $0x1548] sm:$0xff]
        %v1098 = vld [vmem:[#allocation5 + $0x1550] sm:$0xff]
        %v1099 = vld [vmem:[#allocation5 + $0x1558] sm:$0xff]
        %v1100 = vld [vmem:[#allocation5 + $0x1560] sm:$0xff]
        %v1101 = vld [vmem:[#allocation5 + $0x1568] sm:$0xff]
        %v1102 = vld [vmem:[#allocation5 + $0x1570] sm:$0xff]
        %v1103 = vld [vmem:[#allocation5 + $0x1578] sm:$0xff]
        %v1104 = vld [vmem:[#allocation5 + $0x1580] sm:$0xff]
        %v1105 = vld [vmem:[#allocation5 + $0x1588] sm:$0xff]
        %v1106 = vld [vmem:[#allocation5 + $0x1590] sm:$0xff]
        %v1107 = vld [vmem:[#allocation5 + $0x1598] sm:$0xff]
        %v1108 = vld [vmem:[#allocation5 + $0x15a0] sm:$0xff]
        %v1109 = vld [vmem:[#allocation5 + $0x15a8] sm:$0xff]
        %v1110 = vld [vmem:[#allocation5 + $0x15b0] sm:$0xff]
        %v1111 = vld [vmem:[#allocation5 + $0x15b8] sm:$0xff]
        %v1112 = vld [vmem:[#allocation5 + $0x15c0] sm:$0xff]
        %v1113 = vld [vmem:[#allocation5 + $0x15c8] sm:$0xff]
        %v1114 = vld [vmem:[#allocation5 + $0x15d0] sm:$0xff]
        %v1115 = vld [vmem:[#allocation5 + $0x15d8] sm:$0xff]
        %v1116 = vld [vmem:[#allocation5 + $0x15e0] sm:$0xff]
        %v1117 = vld [vmem:[#allocation5 + $0x15e8] sm:$0xff]
        %v1118 = vld [vmem:[#allocation5 + $0x15f0] sm:$0xff]
        %v1119 = vld [vmem:[#allocation5 + $0x15f8] sm:$0xff]
        %v1120 = vld [vmem:[#allocation5 + $0x1600] sm:$0xff]
        %v1121 = vld [vmem:[#allocation5 + $0x1608] sm:$0xff]
        %v1122 = vld [vmem:[#allocation5 + $0x1610] sm:$0xff]
        %v1123 = vld [vmem:[#allocation5 + $0x1618] sm:$0xff]
        %v1124 = vld [vmem:[#allocation5 + $0x1620] sm:$0xff]
        %v1125 = vld [vmem:[#allocation5 + $0x1628] sm:$0xff]
        %v1126 = vld [vmem:[#allocation5 + $0x1630] sm:$0xff]
        %v1127 = vld [vmem:[#allocation5 + $0x1638] sm:$0xff]
        %v1128 = vld [vmem:[#allocation5 + $0x1640] sm:$0xff]
        %v1129 = vld [vmem:[#allocation5 + $0x1648] sm:$0xff]
        %v1130 = vld [vmem:[#allocation5 + $0x1650] sm:$0xff]
        %v1131 = vld [vmem:[#allocation5 + $0x1658] sm:$0xff]
        %v1132 = vld [vmem:[#allocation5 + $0x1660] sm:$0xff]
        %v1133 = vld [vmem:[#allocation5 + $0x1668] sm:$0xff]
        %v1134 = vld [vmem:[#allocation5 + $0x1670] sm:$0xff]
        %v1135 = vld [vmem:[#allocation5 + $0x1678] sm:$0xff]
        %v1136 = vld [vmem:[#allocation5 + $0x1680] sm:$0xff]
        %v1137 = vld [vmem:[#allocation5 + $0x1688] sm:$0xff]
        %v1138 = vld [vmem:[#allocation5 + $0x1690] sm:$0xff]
        %v1139 = vld [vmem:[#allocation5 + $0x1698] sm:$0xff]
        %v1140 = vld [vmem:[#allocation5 + $0x16a0] sm:$0xff]
        %v1141 = vld [vmem:[#allocation5 + $0x16a8] sm:$0xff]
        %v1142 = vld [vmem:[#allocation5 + $0x16b0] sm:$0xff]
        %v1143 = vld [vmem:[#allocation5 + $0x16b8] sm:$0xff]
        %v1144 = vld [vmem:[#allocation5 + $0x16c0] sm:$0xff]
        %v1145 = vld [vmem:[#allocation5 + $0x16c8] sm:$0xff]
        %v1146 = vld [vmem:[#allocation5 + $0x16d0] sm:$0xff]
        %v1147 = vld [vmem:[#allocation5 + $0x16d8] sm:$0xff]
        %v1148 = vld [vmem:[#allocation5 + $0x16e0] sm:$0xff]
        %v1149 = vld [vmem:[#allocation5 + $0x16e8] sm:$0xff]
        %v1150 = vld [vmem:[#allocation5 + $0x16f0] sm:$0xff]
        %v1151 = vld [vmem:[#allocation5 + $0x16f8] sm:$0xff]
        %v1152 = vld [vmem:[#allocation5 + $0x1700] sm:$0xff]
        %v1153 = vld [vmem:[#allocation5 + $0x1708] sm:$0xff]
        %v1154 = vld [vmem:[#allocation5 + $0x1710] sm:$0xff]
        %v1155 = vld [vmem:[#allocation5 + $0x1718] sm:$0xff]
        %v1156 = vld [vmem:[#allocation5 + $0x1720] sm:$0xff]
        %v1157 = vld [vmem:[#allocation5 + $0x1728] sm:$0xff]
        %v1158 = vld [vmem:[#allocation5 + $0x1730] sm:$0xff]
        %v1159 = vld [vmem:[#allocation5 + $0x1738] sm:$0xff]
        %v1160 = vld [vmem:[#allocation5 + $0x1740] sm:$0xff]
        %v1161 = vld [vmem:[#allocation5 + $0x1748] sm:$0xff]
        %v1162 = vld [vmem:[#allocation5 + $0x1750] sm:$0xff]
        %v1163 = vld [vmem:[#allocation5 + $0x1758] sm:$0xff]
        %v1164 = vld [vmem:[#allocation5 + $0x1760] sm:$0xff]
        %v1165 = vld [vmem:[#allocation5 + $0x1768] sm:$0xff]
        %v1166 = vld [vmem:[#allocation5 + $0x1770] sm:$0xff]
        %v1167 = vld [vmem:[#allocation5 + $0x1778] sm:$0xff]
        %v1168 = vld [vmem:[#allocation5 + $0x1780] sm:$0xff]
        %v1169 = vld [vmem:[#allocation5 + $0x1788] sm:$0xff]
        %v1170 = vld [vmem:[#allocation5 + $0x1790] sm:$0xff]
        %v1171 = vld [vmem:[#allocation5 + $0x1798] sm:$0xff]
        %v1172 = vld [vmem:[#allocation5 + $0x17a0] sm:$0xff]
        %v1173 = vld [vmem:[#allocation5 + $0x17a8] sm:$0xff]
        %v1174 = vld [vmem:[#allocation5 + $0x17b0] sm:$0xff]
        %v1175 = vld [vmem:[#allocation5 + $0x17b8] sm:$0xff]
        %v1176 = vld [vmem:[#allocation5 + $0x17c0] sm:$0xff]
        %v1177 = vld [vmem:[#allocation5 + $0x17c8] sm:$0xff]
        %v1178 = vld [vmem:[#allocation5 + $0x17d0] sm:$0xff]
        %v1179 = vld [vmem:[#allocation5 + $0x17d8] sm:$0xff]
        %v1180 = vld [vmem:[#allocation5 + $0x17e0] sm:$0xff]
        %v1181 = vld [vmem:[#allocation5 + $0x17e8] sm:$0xff]
        %v1182 = vld [vmem:[#allocation5 + $0x17f0] sm:$0xff]
        %v1183 = vld [vmem:[#allocation5 + $0x17f8] sm:$0xff]
        %v1184 = vld [vmem:[#allocation5 + $0x1800] sm:$0xff]
        %v1185 = vld [vmem:[#allocation5 + $0x1808] sm:$0xff]
        %v1186 = vld [vmem:[#allocation5 + $0x1810] sm:$0xff]
        %v1187 = vld [vmem:[#allocation5 + $0x1818] sm:$0xff]
        %v1188 = vld [vmem:[#allocation5 + $0x1820] sm:$0xff]
        %v1189 = vld [vmem:[#allocation5 + $0x1828] sm:$0xff]
        %v1190 = vld [vmem:[#allocation5 + $0x1830] sm:$0xff]
        %v1191 = vld [vmem:[#allocation5 + $0x1838] sm:$0xff]
        %v1192 = vld [vmem:[#allocation5 + $0x1840] sm:$0xff]
        %v1193 = vld [vmem:[#allocation5 + $0x1848] sm:$0xff]
        %v1194 = vld [vmem:[#allocation5 + $0x1850] sm:$0xff]
        %v1195 = vld [vmem:[#allocation5 + $0x1858] sm:$0xff]
        %v1196 = vld [vmem:[#allocation5 + $0x1860] sm:$0xff]
        %v1197 = vld [vmem:[#allocation5 + $0x1868] sm:$0xff]
        %v1198 = vld [vmem:[#allocation5 + $0x1870] sm:$0xff]
        %v1199 = vld [vmem:[#allocation5 + $0x1878] sm:$0xff]
        %v1200 = vld [vmem:[#allocation5 + $0x1880] sm:$0xff]
        %v1201 = vld [vmem:[#allocation5 + $0x1888] sm:$0xff]
        %v1202 = vld [vmem:[#allocation5 + $0x1890] sm:$0xff]
        %v1203 = vld [vmem:[#allocation5 + $0x1898] sm:$0xff]
        %v1204 = vld [vmem:[#allocation5 + $0x18a0] sm:$0xff]
        %v1205 = vld [vmem:[#allocation5 + $0x18a8] sm:$0xff]
        %v1206 = vld [vmem:[#allocation5 + $0x18b0] sm:$0xff]
        %v1207 = vld [vmem:[#allocation5 + $0x18b8] sm:$0xff]
        %v1208 = vld [vmem:[#allocation5 + $0x18c0] sm:$0xff]
        %v1209 = vld [vmem:[#allocation5 + $0x18c8] sm:$0xff]
        %v1210 = vld [vmem:[#allocation5 + $0x18d0] sm:$0xff]
        %v1211 = vld [vmem:[#allocation5 + $0x18d8] sm:$0xff]
        %v1212 = vld [vmem:[#allocation5 + $0x18e0] sm:$0xff]
        %v1213 = vld [vmem:[#allocation5 + $0x18e8] sm:$0xff]
        %v1214 = vld [vmem:[#allocation5 + $0x18f0] sm:$0xff]
        %v1215 = vld [vmem:[#allocation5 + $0x18f8] sm:$0xff]
        %v1216 = vld [vmem:[#allocation5 + $0x1900] sm:$0xff]
        %v1217 = vld [vmem:[#allocation5 + $0x1908] sm:$0xff]
        %v1218 = vld [vmem:[#allocation5 + $0x1910] sm:$0xff]
        %v1219 = vld [vmem:[#allocation5 + $0x1918] sm:$0xff]
        %v1220 = vld [vmem:[#allocation5 + $0x1920] sm:$0xff]
        %v1221 = vld [vmem:[#allocation5 + $0x1928] sm:$0xff]
        %v1222 = vld [vmem:[#allocation5 + $0x1930] sm:$0xff]
        %v1223 = vld [vmem:[#allocation5 + $0x1938] sm:$0xff]
        %v1224 = vld [vmem:[#allocation5 + $0x1940] sm:$0xff]
        %v1225 = vld [vmem:[#allocation5 + $0x1948] sm:$0xff]
        %v1226 = vld [vmem:[#allocation5 + $0x1950] sm:$0xff]
        %v1227 = vld [vmem:[#allocation5 + $0x1958] sm:$0xff]
        %v1228 = vld [vmem:[#allocation5 + $0x1960] sm:$0xff]
        %v1229 = vld [vmem:[#allocation5 + $0x1968] sm:$0xff]
        %v1230 = vld [vmem:[#allocation5 + $0x1970] sm:$0xff]
        %v1231 = vld [vmem:[#allocation5 + $0x1978] sm:$0xff]
        %v1232 = vld [vmem:[#allocation5 + $0x1980] sm:$0xff]
        %v1233 = vld [vmem:[#allocation5 + $0x1988] sm:$0xff]
        %v1234 = vld [vmem:[#allocation5 + $0x1990] sm:$0xff]
        %v1235 = vld [vmem:[#allocation5 + $0x1998] sm:$0xff]
        %v1236 = vld [vmem:[#allocation5 + $0x19a0] sm:$0xff]
        %v1237 = vld [vmem:[#allocation5 + $0x19a8] sm:$0xff]
        %v1238 = vld [vmem:[#allocation5 + $0x19b0] sm:$0xff]
        %v1239 = vld [vmem:[#allocation5 + $0x19b8] sm:$0xff]
        %v1240 = vld [vmem:[#allocation5 + $0x19c0] sm:$0xff]
        %v1241 = vld [vmem:[#allocation5 + $0x19c8] sm:$0xff]
        %v1242 = vld [vmem:[#allocation5 + $0x19d0] sm:$0xff]
        %v1243 = vld [vmem:[#allocation5 + $0x19d8] sm:$0xff]
        %v1244 = vld [vmem:[#allocation5 + $0x19e0] sm:$0xff]
        %v1245 = vld [vmem:[#allocation5 + $0x19e8] sm:$0xff]
        %v1246 = vld [vmem:[#allocation5 + $0x19f0] sm:$0xff]
        %v1247 = vld [vmem:[#allocation5 + $0x19f8] sm:$0xff]
        %v1248 = vld [vmem:[#allocation5 + $0x1a00] sm:$0xff]
        %v1249 = vld [vmem:[#allocation5 + $0x1a08] sm:$0xff]
        %v1250 = vld [vmem:[#allocation5 + $0x1a10] sm:$0xff]
        %v1251 = vld [vmem:[#allocation5 + $0x1a18] sm:$0xff]
        %v1252 = vld [vmem:[#allocation5 + $0x1a20] sm:$0xff]
        %v1253 = vld [vmem:[#allocation5 + $0x1a28] sm:$0xff]
        %v1254 = vld [vmem:[#allocation5 + $0x1a30] sm:$0xff]
        %v1255 = vld [vmem:[#allocation5 + $0x1a38] sm:$0xff]
        %v1256 = vld [vmem:[#allocation5 + $0x1a40] sm:$0xff]
        %v1257 = vld [vmem:[#allocation5 + $0x1a48] sm:$0xff]
        %v1258 = vld [vmem:[#allocation5 + $0x1a50] sm:$0xff]
        %v1259 = vld [vmem:[#allocation5 + $0x1a58] sm:$0xff]
        %v1260 = vld [vmem:[#allocation5 + $0x1a60] sm:$0xff]
        %v1261 = vld [vmem:[#allocation5 + $0x1a68] sm:$0xff]
        %v1262 = vld [vmem:[#allocation5 + $0x1a70] sm:$0xff]
        %v1263 = vld [vmem:[#allocation5 + $0x1a78] sm:$0xff]
        %v1264 = vld [vmem:[#allocation5 + $0x1a80] sm:$0xff]
        %v1265 = vld [vmem:[#allocation5 + $0x1a88] sm:$0xff]
        %v1266 = vld [vmem:[#allocation5 + $0x1a90] sm:$0xff]
        %v1267 = vld [vmem:[#allocation5 + $0x1a98] sm:$0xff]
        %v1268 = vld [vmem:[#allocation5 + $0x1aa0] sm:$0xff]
        %v1269 = vld [vmem:[#allocation5 + $0x1aa8] sm:$0xff]
        %v1270 = vld [vmem:[#allocation5 + $0x1ab0] sm:$0xff]
        %v1271 = vld [vmem:[#allocation5 + $0x1ab8] sm:$0xff]
        %v1272 = vld [vmem:[#allocation5 + $0x1ac0] sm:$0xff]
        %v1273 = vld [vmem:[#allocation5 + $0x1ac8] sm:$0xff]
        %v1274 = vld [vmem:[#allocation5 + $0x1ad0] sm:$0xff]
        %v1275 = vld [vmem:[#allocation5 + $0x1ad8] sm:$0xff]
        %v1276 = vld [vmem:[#allocation5 + $0x1ae0] sm:$0xff]
        %v1277 = vld [vmem:[#allocation5 + $0x1ae8] sm:$0xff]
        %v1278 = vld [vmem:[#allocation5 + $0x1af0] sm:$0xff]
        %v1279 = vld [vmem:[#allocation5 + $0x1af8] sm:$0xff]
        %v1280 = vld [vmem:[#allocation5 + $0x1b00] sm:$0xff]
        %v1281 = vld [vmem:[#allocation5 + $0x1b08] sm:$0xff]
        %v1282 = vld [vmem:[#allocation5 + $0x1b10] sm:$0xff]
        %v1283 = vld [vmem:[#allocation5 + $0x1b18] sm:$0xff]
        %v1284 = vld [vmem:[#allocation5 + $0x1b20] sm:$0xff]
        %v1285 = vld [vmem:[#allocation5 + $0x1b28] sm:$0xff]
        %v1286 = vld [vmem:[#allocation5 + $0x1b30] sm:$0xff]
        %v1287 = vld [vmem:[#allocation5 + $0x1b38] sm:$0xff]
        %v1288 = vld [vmem:[#allocation5 + $0x1b40] sm:$0xff]
        %v1289 = vld [vmem:[#allocation5 + $0x1b48] sm:$0xff]
        %v1290 = vld [vmem:[#allocation5 + $0x1b50] sm:$0xff]
        %v1291 = vld [vmem:[#allocation5 + $0x1b58] sm:$0xff]
        %v1292 = vld [vmem:[#allocation5 + $0x1b60] sm:$0xff]
        %v1293 = vld [vmem:[#allocation5 + $0x1b68] sm:$0xff]
        %v1294 = vld [vmem:[#allocation5 + $0x1b70] sm:$0xff]
        %v1295 = vld [vmem:[#allocation5 + $0x1b78] sm:$0xff]
        %v1296 = vld [vmem:[#allocation5 + $0x1b80] sm:$0xff]
        %v1297 = vld [vmem:[#allocation5 + $0x1b88] sm:$0xff]
        %v1298 = vld [vmem:[#allocation5 + $0x1b90] sm:$0xff]
        %v1299 = vld [vmem:[#allocation5 + $0x1b98] sm:$0xff]
        %v1300 = vld [vmem:[#allocation5 + $0x1ba0] sm:$0xff]
        %v1301 = vld [vmem:[#allocation5 + $0x1ba8] sm:$0xff]
        %v1302 = vld [vmem:[#allocation5 + $0x1bb0] sm:$0xff]
        %v1303 = vld [vmem:[#allocation5 + $0x1bb8] sm:$0xff]
        %v1304 = vld [vmem:[#allocation5 + $0x1bc0] sm:$0xff]
        %v1305 = vld [vmem:[#allocation5 + $0x1bc8] sm:$0xff]
        %v1306 = vld [vmem:[#allocation5 + $0x1bd0] sm:$0xff]
        %v1307 = vld [vmem:[#allocation5 + $0x1bd8] sm:$0xff]
        %v1308 = vld [vmem:[#allocation5 + $0x1be0] sm:$0xff]
        %v1309 = vld [vmem:[#allocation5 + $0x1be8] sm:$0xff]
        %v1310 = vld [vmem:[#allocation5 + $0x1bf0] sm:$0xff]
        %v1311 = vld [vmem:[#allocation5 + $0x1bf8] sm:$0xff]
        %v1312 = vld [vmem:[#allocation5 + $0x1c00] sm:$0xff]
        %v1313 = vld [vmem:[#allocation5 + $0x1c08] sm:$0xff]
        %v1314 = vld [vmem:[#allocation5 + $0x1c10] sm:$0xff]
        %v1315 = vld [vmem:[#allocation5 + $0x1c18] sm:$0xff]
        %v1316 = vld [vmem:[#allocation5 + $0x1c20] sm:$0xff]
        %v1317 = vld [vmem:[#allocation5 + $0x1c28] sm:$0xff]
        %v1318 = vld [vmem:[#allocation5 + $0x1c30] sm:$0xff]
        %v1319 = vld [vmem:[#allocation5 + $0x1c38] sm:$0xff]
        %v1320 = vld [vmem:[#allocation5 + $0x1c40] sm:$0xff]
        %v1321 = vld [vmem:[#allocation5 + $0x1c48] sm:$0xff]
        %v1322 = vld [vmem:[#allocation5 + $0x1c50] sm:$0xff]
        %v1323 = vld [vmem:[#allocation5 + $0x1c58] sm:$0xff]
        %v1324 = vld [vmem:[#allocation5 + $0x1c60] sm:$0xff]
        %v1325 = vld [vmem:[#allocation5 + $0x1c68] sm:$0xff]
        %v1326 = vld [vmem:[#allocation5 + $0x1c70] sm:$0xff]
        %v1327 = vld [vmem:[#allocation5 + $0x1c78] sm:$0xff]
        %v1328 = vld [vmem:[#allocation5 + $0x1c80] sm:$0xff]
        %v1329 = vld [vmem:[#allocation5 + $0x1c88] sm:$0xff]
        %v1330 = vld [vmem:[#allocation5 + $0x1c90] sm:$0xff]
        %v1331 = vld [vmem:[#allocation5 + $0x1c98] sm:$0xff]
        %v1332 = vld [vmem:[#allocation5 + $0x1ca0] sm:$0xff]
        %v1333 = vld [vmem:[#allocation5 + $0x1ca8] sm:$0xff]
        %v1334 = vld [vmem:[#allocation5 + $0x1cb0] sm:$0xff]
        %v1335 = vld [vmem:[#allocation5 + $0x1cb8] sm:$0xff]
        %v1336 = vld [vmem:[#allocation5 + $0x1cc0] sm:$0xff]
        %v1337 = vld [vmem:[#allocation5 + $0x1cc8] sm:$0xff]
        %v1338 = vld [vmem:[#allocation5 + $0x1cd0] sm:$0xff]
        %v1339 = vld [vmem:[#allocation5 + $0x1cd8] sm:$0xff]
        %v1340 = vld [vmem:[#allocation5 + $0x1ce0] sm:$0xff]
        %v1341 = vld [vmem:[#allocation5 + $0x1ce8] sm:$0xff]
        %v1342 = vld [vmem:[#allocation5 + $0x1cf0] sm:$0xff]
        %v1343 = vld [vmem:[#allocation5 + $0x1cf8] sm:$0xff]
        %v1344 = vld [vmem:[#allocation5 + $0x1d00] sm:$0xff]
        %v1345 = vld [vmem:[#allocation5 + $0x1d08] sm:$0xff]
        %v1346 = vld [vmem:[#allocation5 + $0x1d10] sm:$0xff]
        %v1347 = vld [vmem:[#allocation5 + $0x1d18] sm:$0xff]
        %v1348 = vld [vmem:[#allocation5 + $0x1d20] sm:$0xff]
        %v1349 = vld [vmem:[#allocation5 + $0x1d28] sm:$0xff]
        %v1350 = vld [vmem:[#allocation5 + $0x1d30] sm:$0xff]
        %v1351 = vld [vmem:[#allocation5 + $0x1d38] sm:$0xff]
        %v1352 = vld [vmem:[#allocation5 + $0x1d40] sm:$0xff]
        %v1353 = vld [vmem:[#allocation5 + $0x1d48] sm:$0xff]
        %v1354 = vld [vmem:[#allocation5 + $0x1d50] sm:$0xff]
        %v1355 = vld [vmem:[#allocation5 + $0x1d58] sm:$0xff]
        %v1356 = vld [vmem:[#allocation5 + $0x1d60] sm:$0xff]
        %v1357 = vld [vmem:[#allocation5 + $0x1d68] sm:$0xff]
        %v1358 = vld [vmem:[#allocation5 + $0x1d70] sm:$0xff]
        %v1359 = vld [vmem:[#allocation5 + $0x1d78] sm:$0xff]
        %v1360 = vld [vmem:[#allocation5 + $0x1d80] sm:$0xff]
        %v1361 = vld [vmem:[#allocation5 + $0x1d88] sm:$0xff]
        %v1362 = vld [vmem:[#allocation5 + $0x1d90] sm:$0xff]
        %v1363 = vld [vmem:[#allocation5 + $0x1d98] sm:$0xff]
        %v1364 = vld [vmem:[#allocation5 + $0x1da0] sm:$0xff]
        %v1365 = vld [vmem:[#allocation5 + $0x1da8] sm:$0xff]
        %v1366 = vld [vmem:[#allocation5 + $0x1db0] sm:$0xff]
        %v1367 = vld [vmem:[#allocation5 + $0x1db8] sm:$0xff]
        %v1368 = vld [vmem:[#allocation5 + $0x1dc0] sm:$0xff]
        %v1369 = vld [vmem:[#allocation5 + $0x1dc8] sm:$0xff]
        %v1370 = vld [vmem:[#allocation5 + $0x1dd0] sm:$0xff]
        %v1371 = vld [vmem:[#allocation5 + $0x1dd8] sm:$0xff]
        %v1372 = vld [vmem:[#allocation5 + $0x1de0] sm:$0xff]
        %v1373 = vld [vmem:[#allocation5 + $0x1de8] sm:$0xff]
        %v1374 = vld [vmem:[#allocation5 + $0x1df0] sm:$0xff]
        %v1375 = vld [vmem:[#allocation5 + $0x1df8] sm:$0xff]
        %v1376 = vld [vmem:[#allocation5 + $0x1e00] sm:$0xff]
        %v1377 = vld [vmem:[#allocation5 + $0x1e08] sm:$0xff]
        %v1378 = vld [vmem:[#allocation5 + $0x1e10] sm:$0xff]
        %v1379 = vld [vmem:[#allocation5 + $0x1e18] sm:$0xff]
        %v1380 = vld [vmem:[#allocation5 + $0x1e20] sm:$0xff]
        %v1381 = vld [vmem:[#allocation5 + $0x1e28] sm:$0xff]
        %v1382 = vld [vmem:[#allocation5 + $0x1e30] sm:$0xff]
        %v1383 = vld [vmem:[#allocation5 + $0x1e38] sm:$0xff]
        %v1384 = vld [vmem:[#allocation5 + $0x1e40] sm:$0xff]
        %v1385 = vld [vmem:[#allocation5 + $0x1e48] sm:$0xff]
        %v1386 = vld [vmem:[#allocation5 + $0x1e50] sm:$0xff]
        %v1387 = vld [vmem:[#allocation5 + $0x1e58] sm:$0xff]
        %v1388 = vld [vmem:[#allocation5 + $0x1e60] sm:$0xff]
        %v1389 = vld [vmem:[#allocation5 + $0x1e68] sm:$0xff]
        %v1390 = vld [vmem:[#allocation5 + $0x1e70] sm:$0xff]
        %v1391 = vld [vmem:[#allocation5 + $0x1e78] sm:$0xff]
        %v1392 = vld [vmem:[#allocation5 + $0x1e80] sm:$0xff]
        %v1393 = vld [vmem:[#allocation5 + $0x1e88] sm:$0xff]
        %v1394 = vld [vmem:[#allocation5 + $0x1e90] sm:$0xff]
        %v1395 = vld [vmem:[#allocation5 + $0x1e98] sm:$0xff]
        %v1396 = vld [vmem:[#allocation5 + $0x1ea0] sm:$0xff]
        %v1397 = vld [vmem:[#allocation5 + $0x1ea8] sm:$0xff]
        %v1398 = vld [vmem:[#allocation5 + $0x1eb0] sm:$0xff]
        %v1399 = vld [vmem:[#allocation5 + $0x1eb8] sm:$0xff]
        %v1400 = vld [vmem:[#allocation5 + $0x1ec0] sm:$0xff]
        %v1401 = vld [vmem:[#allocation5 + $0x1ec8] sm:$0xff]
        %v1402 = vld [vmem:[#allocation5 + $0x1ed0] sm:$0xff]
        %v1403 = vld [vmem:[#allocation5 + $0x1ed8] sm:$0xff]
        %v1404 = vld [vmem:[#allocation5 + $0x1ee0] sm:$0xff]
        %v1405 = vld [vmem:[#allocation5 + $0x1ee8] sm:$0xff]
        %v1406 = vld [vmem:[#allocation5 + $0x1ef0] sm:$0xff]
        %v1407 = vld [vmem:[#allocation5 + $0x1ef8] sm:$0xff]
        %v1408 = vld [vmem:[#allocation5 + $0x1f00] sm:$0xff]
        %v1409 = vld [vmem:[#allocation5 + $0x1f08] sm:$0xff]
        %v1410 = vld [vmem:[#allocation5 + $0x1f10] sm:$0xff]
        %v1411 = vld [vmem:[#allocation5 + $0x1f18] sm:$0xff]
        %v1412 = vld [vmem:[#allocation5 + $0x1f20] sm:$0xff]
        %v1413 = vld [vmem:[#allocation5 + $0x1f28] sm:$0xff]
        %v1414 = vld [vmem:[#allocation5 + $0x1f30] sm:$0xff]
        %v1415 = vld [vmem:[#allocation5 + $0x1f38] sm:$0xff]
        %v1416 = vld [vmem:[#allocation5 + $0x1f40] sm:$0xff]
        %v1417 = vld [vmem:[#allocation5 + $0x1f48] sm:$0xff]
        %v1418 = vld [vmem:[#allocation5 + $0x1f50] sm:$0xff]
        %v1419 = vld [vmem:[#allocation5 + $0x1f58] sm:$0xff]
        %v1420 = vld [vmem:[#allocation5 + $0x1f60] sm:$0xff]
        %v1421 = vld [vmem:[#allocation5 + $0x1f68] sm:$0xff]
        %v1422 = vld [vmem:[#allocation5 + $0x1f70] sm:$0xff]
        %v1423 = vld [vmem:[#allocation5 + $0x1f78] sm:$0xff]
        %v1424 = vld [vmem:[#allocation5 + $0x1f80] sm:$0xff]
        %v1425 = vld [vmem:[#allocation5 + $0x1f88] sm:$0xff]
        %v1426 = vld [vmem:[#allocation5 + $0x1f90] sm:$0xff]
        %v1427 = vld [vmem:[#allocation5 + $0x1f98] sm:$0xff]
        %v1428 = vld [vmem:[#allocation5 + $0x1fa0] sm:$0xff]
        %v1429 = vld [vmem:[#allocation5 + $0x1fa8] sm:$0xff]
        %v1430 = vld [vmem:[#allocation5 + $0x1fb0] sm:$0xff]
        %v1431 = vld [vmem:[#allocation5 + $0x1fb8] sm:$0xff]
        %v1432 = vld [vmem:[#allocation5 + $0x1fc0] sm:$0xff]
        %v1433 = vld [vmem:[#allocation5 + $0x1fc8] sm:$0xff]
        %v1434 = vld [vmem:[#allocation5 + $0x1fd0] sm:$0xff]
        %v1435 = vld [vmem:[#allocation5 + $0x1fd8] sm:$0xff]
        %v1436 = vld [vmem:[#allocation5 + $0x1fe0] sm:$0xff]
        %v1437 = vld [vmem:[#allocation5 + $0x1fe8] sm:$0xff]
        %v1438 = vld [vmem:[#allocation5 + $0x1ff0] sm:$0xff]
        %v1439 = vld [vmem:[#allocation5 + $0x1ff8] sm:$0xff]
        %v1440 = vld [vmem:[#allocation5 + $0x2000] sm:$0xff]
        %v1441 = vld [vmem:[#allocation5 + $0x2008] sm:$0xff]
        %v1442 = vld [vmem:[#allocation5 + $0x2010] sm:$0xff]
        %v1443 = vld [vmem:[#allocation5 + $0x2018] sm:$0xff]
        %v1444 = vld [vmem:[#allocation5 + $0x2020] sm:$0xff]
        %v1445 = vld [vmem:[#allocation5 + $0x2028] sm:$0xff]
        %v1446 = vld [vmem:[#allocation5 + $0x2030] sm:$0xff]
        %v1447 = vld [vmem:[#allocation5 + $0x2038] sm:$0xff]
        %v1448 = vld [vmem:[#allocation5 + $0x2040] sm:$0xff]
        %v1449 = vld [vmem:[#allocation5 + $0x2048] sm:$0xff]
        %v1450 = vld [vmem:[#allocation5 + $0x2050] sm:$0xff]
        %v1451 = vld [vmem:[#allocation5 + $0x2058] sm:$0xff]
        %v1452 = vld [vmem:[#allocation5 + $0x2060] sm:$0xff]
        %v1453 = vld [vmem:[#allocation5 + $0x2068] sm:$0xff]
        %v1454 = vld [vmem:[#allocation5 + $0x2070] sm:$0xff]
        %v1455 = vld [vmem:[#allocation5 + $0x2078] sm:$0xff]
        %v1456 = vld [vmem:[#allocation5 + $0x2080] sm:$0xff]
        %v1457 = vld [vmem:[#allocation5 + $0x2088] sm:$0xff]
        %v1458 = vld [vmem:[#allocation5 + $0x2090] sm:$0xff]
        %v1459 = vld [vmem:[#allocation5 + $0x2098] sm:$0xff]
        %v1460 = vld [vmem:[#allocation5 + $0x20a0] sm:$0xff]
        %v1461 = vld [vmem:[#allocation5 + $0x20a8] sm:$0xff]
        %v1462 = vld [vmem:[#allocation5 + $0x20b0] sm:$0xff]
        %v1463 = vld [vmem:[#allocation5 + $0x20b8] sm:$0xff]
        %v1464 = vld [vmem:[#allocation5 + $0x20c0] sm:$0xff]
        %v1465 = vld [vmem:[#allocation5 + $0x20c8] sm:$0xff]
        %v1466 = vld [vmem:[#allocation5 + $0x20d0] sm:$0xff]
        %v1467 = vld [vmem:[#allocation5 + $0x20d8] sm:$0xff]
        %v1468 = vld [vmem:[#allocation5 + $0x20e0] sm:$0xff]
        %v1469 = vld [vmem:[#allocation5 + $0x20e8] sm:$0xff]
        %v1470 = vld [vmem:[#allocation5 + $0x20f0] sm:$0xff]
        %v1471 = vld [vmem:[#allocation5 + $0x20f8] sm:$0xff]
        %v1472 = vld [vmem:[#allocation5 + $0x2100] sm:$0xff]
        %v1473 = vld [vmem:[#allocation5 + $0x2108] sm:$0xff]
        %v1474 = vld [vmem:[#allocation5 + $0x2110] sm:$0xff]
        %v1475 = vld [vmem:[#allocation5 + $0x2118] sm:$0xff]
        %v1476 = vld [vmem:[#allocation5 + $0x2120] sm:$0xff]
        %v1477 = vld [vmem:[#allocation5 + $0x2128] sm:$0xff]
        %v1478 = vld [vmem:[#allocation5 + $0x2130] sm:$0xff]
        %v1479 = vld [vmem:[#allocation5 + $0x2138] sm:$0xff]
        %v1480 = vld [vmem:[#allocation5 + $0x2140] sm:$0xff]
        %v1481 = vld [vmem:[#allocation5 + $0x2148] sm:$0xff]
        %v1482 = vld [vmem:[#allocation5 + $0x2150] sm:$0xff]
        %v1483 = vld [vmem:[#allocation5 + $0x2158] sm:$0xff]
        %v1484 = vld [vmem:[#allocation5 + $0x2160] sm:$0xff]
        %v1485 = vld [vmem:[#allocation5 + $0x2168] sm:$0xff]
        %v1486 = vld [vmem:[#allocation5 + $0x2170] sm:$0xff]
        %v1487 = vld [vmem:[#allocation5 + $0x2178] sm:$0xff]
        %v1488 = vld [vmem:[#allocation5 + $0x2180] sm:$0xff]
        %v1489 = vld [vmem:[#allocation5 + $0x2188] sm:$0xff]
        %v1490 = vld [vmem:[#allocation5 + $0x2190] sm:$0xff]
        %v1491 = vld [vmem:[#allocation5 + $0x2198] sm:$0xff]
        %v1492 = vld [vmem:[#allocation5 + $0x21a0] sm:$0xff]
        %v1493 = vld [vmem:[#allocation5 + $0x21a8] sm:$0xff]
        %v1494 = vld [vmem:[#allocation5 + $0x21b0] sm:$0xff]
        %v1495 = vld [vmem:[#allocation5 + $0x21b8] sm:$0xff]
        %v1496 = vld [vmem:[#allocation5 + $0x21c0] sm:$0xff]
        %v1497 = vld [vmem:[#allocation5 + $0x21c8] sm:$0xff]
        %v1498 = vld [vmem:[#allocation5 + $0x21d0] sm:$0xff]
        %v1499 = vld [vmem:[#allocation5 + $0x21d8] sm:$0xff]
        %v1500 = vld [vmem:[#allocation5 + $0x21e0] sm:$0xff]
        %v1501 = vld [vmem:[#allocation5 + $0x21e8] sm:$0xff]
        %v1502 = vld [vmem:[#allocation5 + $0x21f0] sm:$0xff]
        %v1503 = vld [vmem:[#allocation5 + $0x21f8] sm:$0xff]
        %v1504 = vld [vmem:[#allocation5 + $0x2200] sm:$0xff]
        %v1505 = vld [vmem:[#allocation5 + $0x2208] sm:$0xff]
        %v1506 = vld [vmem:[#allocation5 + $0x2210] sm:$0xff]
        %v1507 = vld [vmem:[#allocation5 + $0x2218] sm:$0xff]
        %v1508 = vld [vmem:[#allocation5 + $0x2220] sm:$0xff]
        %v1509 = vld [vmem:[#allocation5 + $0x2228] sm:$0xff]
        %v1510 = vld [vmem:[#allocation5 + $0x2230] sm:$0xff]
        %v1511 = vld [vmem:[#allocation5 + $0x2238] sm:$0xff]
        %v1512 = vld [vmem:[#allocation5 + $0x2240] sm:$0xff]
        %v1513 = vld [vmem:[#allocation5 + $0x2248] sm:$0xff]
        %v1514 = vld [vmem:[#allocation5 + $0x2250] sm:$0xff]
        %v1515 = vld [vmem:[#allocation5 + $0x2258] sm:$0xff]
        %v1516 = vld [vmem:[#allocation5 + $0x2260] sm:$0xff]
        %v1517 = vld [vmem:[#allocation5 + $0x2268] sm:$0xff]
        %v1518 = vld [vmem:[#allocation5 + $0x2270] sm:$0xff]
        %v1519 = vld [vmem:[#allocation5 + $0x2278] sm:$0xff]
        %v1520 = vld [vmem:[#allocation5 + $0x2280] sm:$0xff]
        %v1521 = vld [vmem:[#allocation5 + $0x2288] sm:$0xff]
        %v1522 = vld [vmem:[#allocation5 + $0x2290] sm:$0xff]
        %v1523 = vld [vmem:[#allocation5 + $0x2298] sm:$0xff]
        %v1524 = vld [vmem:[#allocation5 + $0x22a0] sm:$0xff]
        %v1525 = vld [vmem:[#allocation5 + $0x22a8] sm:$0xff]
        %v1526 = vld [vmem:[#allocation5 + $0x22b0] sm:$0xff]
        %v1527 = vld [vmem:[#allocation5 + $0x22b8] sm:$0xff]
        %v1528 = vld [vmem:[#allocation5 + $0x22c0] sm:$0xff]
        %v1529 = vld [vmem:[#allocation5 + $0x22c8] sm:$0xff]
        %v1530 = vld [vmem:[#allocation5 + $0x22d0] sm:$0xff]
        %v1531 = vld [vmem:[#allocation5 + $0x22d8] sm:$0xff]
        %v1532 = vld [vmem:[#allocation5 + $0x22e0] sm:$0xff]
        %v1533 = vld [vmem:[#allocation5 + $0x22e8] sm:$0xff]
        %v1534 = vld [vmem:[#allocation5 + $0x22f0] sm:$0xff]
        %v1535 = vld [vmem:[#allocation5 + $0x22f8] sm:$0xff]
        %v1536 = vld [vmem:[#allocation5 + $0x2300] sm:$0xff]
        %v1537 = vld [vmem:[#allocation5 + $0x2308] sm:$0xff]
        %v1538 = vld [vmem:[#allocation5 + $0x2310] sm:$0xff]
        %v1539 = vld [vmem:[#allocation5 + $0x2318] sm:$0xff]
        %v1540 = vld [vmem:[#allocation5 + $0x2320] sm:$0xff]
        %v1541 = vld [vmem:[#allocation5 + $0x2328] sm:$0xff]
        %v1542 = vld [vmem:[#allocation5 + $0x2330] sm:$0xff]
        %v1543 = vld [vmem:[#allocation5 + $0x2338] sm:$0xff]
        %v1544 = vld [vmem:[#allocation5 + $0x2340] sm:$0xff]
        %v1545 = vld [vmem:[#allocation5 + $0x2348] sm:$0xff]
        %v1546 = vld [vmem:[#allocation5 + $0x2350] sm:$0xff]
        %v1547 = vld [vmem:[#allocation5 + $0x2358] sm:$0xff]
        %v1548 = vld [vmem:[#allocation5 + $0x2360] sm:$0xff]
        %v1549 = vld [vmem:[#allocation5 + $0x2368] sm:$0xff]
        %v1550 = vld [vmem:[#allocation5 + $0x2370] sm:$0xff]
        %v1551 = vld [vmem:[#allocation5 + $0x2378] sm:$0xff]
        %v1552 = vld [vmem:[#allocation5 + $0x2380] sm:$0xff]
        %v1553 = vld [vmem:[#allocation5 + $0x2388] sm:$0xff]
        %v1554 = vld [vmem:[#allocation5 + $0x2390] sm:$0xff]
        %v1555 = vld [vmem:[#allocation5 + $0x2398] sm:$0xff]
        %v1556 = vld [vmem:[#allocation5 + $0x23a0] sm:$0xff]
        %v1557 = vld [vmem:[#allocation5 + $0x23a8] sm:$0xff]
        %v1558 = vld [vmem:[#allocation5 + $0x23b0] sm:$0xff]
        %v1559 = vld [vmem:[#allocation5 + $0x23b8] sm:$0xff]
        %v1560 = vld [vmem:[#allocation5 + $0x23c0] sm:$0xff]
        %v1561 = vld [vmem:[#allocation5 + $0x23c8] sm:$0xff]
        %v1562 = vld [vmem:[#allocation5 + $0x23d0] sm:$0xff]
        %v1563 = vld [vmem:[#allocation5 + $0x23d8] sm:$0xff]
        %v1564 = vld [vmem:[#allocation5 + $0x23e0] sm:$0xff]
        %v1565 = vld [vmem:[#allocation5 + $0x23e8] sm:$0xff]
        %v1566 = vld [vmem:[#allocation5 + $0x23f0] sm:$0xff]
        %v1567 = vld [vmem:[#allocation5 + $0x23f8] sm:$0xff]
        %v1568 = vld [vmem:[#allocation5 + $0x2400] sm:$0xff]
        %v1569 = vld [vmem:[#allocation5 + $0x2408] sm:$0xff]
        %v1570 = vld [vmem:[#allocation5 + $0x2410] sm:$0xff]
        %v1571 = vld [vmem:[#allocation5 + $0x2418] sm:$0xff]
        %v1572 = vld [vmem:[#allocation5 + $0x2420] sm:$0xff]
        %v1573 = vld [vmem:[#allocation5 + $0x2428] sm:$0xff]
        %v1574 = vld [vmem:[#allocation5 + $0x2430] sm:$0xff]
        %v1575 = vld [vmem:[#allocation5 + $0x2438] sm:$0xff]
        %v1576 = vld [vmem:[#allocation5 + $0x2440] sm:$0xff]
        %v1577 = vld [vmem:[#allocation5 + $0x2448] sm:$0xff]
        %v1578 = vld [vmem:[#allocation5 + $0x2450] sm:$0xff]
        %v1579 = vld [vmem:[#allocation5 + $0x2458] sm:$0xff]
        %v1580 = vld [vmem:[#allocation5 + $0x2460] sm:$0xff]
        %v1581 = vld [vmem:[#allocation5 + $0x2468] sm:$0xff]
        %v1582 = vld [vmem:[#allocation5 + $0x2470] sm:$0xff]
        %v1583 = vld [vmem:[#allocation5 + $0x2478] sm:$0xff]
        %v1584 = vld [vmem:[#allocation5 + $0x2480] sm:$0xff]
        %v1585 = vld [vmem:[#allocation5 + $0x2488] sm:$0xff]
        %v1586 = vld [vmem:[#allocation5 + $0x2490] sm:$0xff]
        %v1587 = vld [vmem:[#allocation5 + $0x2498] sm:$0xff]
        %v1588 = vld [vmem:[#allocation5 + $0x24a0] sm:$0xff]
        %v1589 = vld [vmem:[#allocation5 + $0x24a8] sm:$0xff]
        %v1590 = vld [vmem:[#allocation5 + $0x24b0] sm:$0xff]
        %v1591 = vld [vmem:[#allocation5 + $0x24b8] sm:$0xff]
        %v1592 = vld [vmem:[#allocation5 + $0x24c0] sm:$0xff]
        %v1593 = vld [vmem:[#allocation5 + $0x24c8] sm:$0xff]
        %v1594 = vld [vmem:[#allocation5 + $0x24d0] sm:$0xff]
        %v1595 = vld [vmem:[#allocation5 + $0x24d8] sm:$0xff]
        %v1596 = vld [vmem:[#allocation5 + $0x24e0] sm:$0xff]
        %v1597 = vld [vmem:[#allocation5 + $0x24e8] sm:$0xff]
        %v1598 = vld [vmem:[#allocation5 + $0x24f0] sm:$0xff]
        %v1599 = vld [vmem:[#allocation5 + $0x24f8] sm:$0xff]
        %v1600 = vld [vmem:[#allocation5 + $0x2500] sm:$0xff]
        %v1601 = vld [vmem:[#allocation5 + $0x2508] sm:$0xff]
        %v1602 = vld [vmem:[#allocation5 + $0x2510] sm:$0xff]
        %v1603 = vld [vmem:[#allocation5 + $0x2518] sm:$0xff]
        %v1604 = vld [vmem:[#allocation5 + $0x2520] sm:$0xff]
        %v1605 = vld [vmem:[#allocation5 + $0x2528] sm:$0xff]
        %v1606 = vld [vmem:[#allocation5 + $0x2530] sm:$0xff]
        %v1607 = vld [vmem:[#allocation5 + $0x2538] sm:$0xff]
        %v1608 = vld [vmem:[#allocation5 + $0x2540] sm:$0xff]
        %v1609 = vld [vmem:[#allocation5 + $0x2548] sm:$0xff]
        %v1610 = vld [vmem:[#allocation5 + $0x2550] sm:$0xff]
        %v1611 = vld [vmem:[#allocation5 + $0x2558] sm:$0xff]
        %v1612 = vld [vmem:[#allocation5 + $0x2560] sm:$0xff]
        %v1613 = vld [vmem:[#allocation5 + $0x2568] sm:$0xff]
        %v1614 = vld [vmem:[#allocation5 + $0x2570] sm:$0xff]
        %v1615 = vld [vmem:[#allocation5 + $0x2578] sm:$0xff]
        %v1616 = vld [vmem:[#allocation5 + $0x2580] sm:$0xff]
        %v1617 = vld [vmem:[#allocation5 + $0x2588] sm:$0xff]
        %v1618 = vld [vmem:[#allocation5 + $0x2590] sm:$0xff]
        %v1619 = vld [vmem:[#allocation5 + $0x2598] sm:$0xff]
        %v1620 = vld [vmem:[#allocation5 + $0x25a0] sm:$0xff]
        %v1621 = vld [vmem:[#allocation5 + $0x25a8] sm:$0xff]
        %v1622 = vld [vmem:[#allocation5 + $0x25b0] sm:$0xff]
        %v1623 = vld [vmem:[#allocation5 + $0x25b8] sm:$0xff]
        %v1624 = vld [vmem:[#allocation5 + $0x25c0] sm:$0xff]
        %v1625 = vld [vmem:[#allocation5 + $0x25c8] sm:$0xff]
        %v1626 = vld [vmem:[#allocation5 + $0x25d0] sm:$0xff]
        %v1627 = vld [vmem:[#allocation5 + $0x25d8] sm:$0xff]
        %v1628 = vld [vmem:[#allocation5 + $0x25e0] sm:$0xff]
        %v1629 = vld [vmem:[#allocation5 + $0x25e8] sm:$0xff]
        %v1630 = vld [vmem:[#allocation5 + $0x25f0] sm:$0xff]
        %v1631 = vld [vmem:[#allocation5 + $0x25f8] sm:$0xff]
        %v1632 = vld [vmem:[#allocation5 + $0x2600] sm:$0xff]
        %v1633 = vld [vmem:[#allocation5 + $0x2608] sm:$0xff]
        %v1634 = vld [vmem:[#allocation5 + $0x2610] sm:$0xff]
        %v1635 = vld [vmem:[#allocation5 + $0x2618] sm:$0xff]
        %v1636 = vld [vmem:[#allocation5 + $0x2620] sm:$0xff]
        %v1637 = vld [vmem:[#allocation5 + $0x2628] sm:$0xff]
        %v1638 = vld [vmem:[#allocation5 + $0x2630] sm:$0xff]
        %v1639 = vld [vmem:[#allocation5 + $0x2638] sm:$0xff]
        %v1640 = vld [vmem:[#allocation5 + $0x2640] sm:$0xff]
        %v1641 = vld [vmem:[#allocation5 + $0x2648] sm:$0xff]
        %v1642 = vld [vmem:[#allocation5 + $0x2650] sm:$0xff]
        %v1643 = vld [vmem:[#allocation5 + $0x2658] sm:$0xff]
        %v1644 = vld [vmem:[#allocation5 + $0x2660] sm:$0xff]
        %v1645 = vld [vmem:[#allocation5 + $0x2668] sm:$0xff]
        %v1646 = vld [vmem:[#allocation5 + $0x2670] sm:$0xff]
        %v1647 = vld [vmem:[#allocation5 + $0x2678] sm:$0xff]
        %v1648 = vld [vmem:[#allocation5 + $0x2680] sm:$0xff]
        %v1649 = vld [vmem:[#allocation5 + $0x2688] sm:$0xff]
        %v1650 = vld [vmem:[#allocation5 + $0x2690] sm:$0xff]
        %v1651 = vld [vmem:[#allocation5 + $0x2698] sm:$0xff]
        %v1652 = vld [vmem:[#allocation5 + $0x26a0] sm:$0xff]
        %v1653 = vld [vmem:[#allocation5 + $0x26a8] sm:$0xff]
        %v1654 = vld [vmem:[#allocation5 + $0x26b0] sm:$0xff]
        %v1655 = vld [vmem:[#allocation5 + $0x26b8] sm:$0xff]
        %v1656 = vld [vmem:[#allocation5 + $0x26c0] sm:$0xff]
        %v1657 = vld [vmem:[#allocation5 + $0x26c8] sm:$0xff]
        %v1658 = vld [vmem:[#allocation5 + $0x26d0] sm:$0xff]
        %v1659 = vld [vmem:[#allocation5 + $0x26d8] sm:$0xff]
        %v1660 = vld [vmem:[#allocation5 + $0x26e0] sm:$0xff]
        %v1661 = vld [vmem:[#allocation5 + $0x26e8] sm:$0xff]
        %v1662 = vld [vmem:[#allocation5 + $0x26f0] sm:$0xff]
        %v1663 = vld [vmem:[#allocation5 + $0x26f8] sm:$0xff]
        %v1664 = vld [vmem:[#allocation5 + $0x2700] sm:$0xff]
        %v1665 = vld [vmem:[#allocation5 + $0x2708] sm:$0xff]
        %v1666 = vld [vmem:[#allocation5 + $0x2710] sm:$0xff]
        %v1667 = vld [vmem:[#allocation5 + $0x2718] sm:$0xff]
        %v1668 = vld [vmem:[#allocation5 + $0x2720] sm:$0xff]
        %v1669 = vld [vmem:[#allocation5 + $0x2728] sm:$0xff]
        %v1670 = vld [vmem:[#allocation5 + $0x2730] sm:$0xff]
        %v1671 = vld [vmem:[#allocation5 + $0x2738] sm:$0xff]
        %v1672 = vld [vmem:[#allocation5 + $0x2740] sm:$0xff]
        %v1673 = vld [vmem:[#allocation5 + $0x2748] sm:$0xff]
        %v1674 = vld [vmem:[#allocation5 + $0x2750] sm:$0xff]
        %v1675 = vld [vmem:[#allocation5 + $0x2758] sm:$0xff]
        %v1676 = vld [vmem:[#allocation5 + $0x2760] sm:$0xff]
        %v1677 = vld [vmem:[#allocation5 + $0x2768] sm:$0xff]
        %v1678 = vld [vmem:[#allocation5 + $0x2770] sm:$0xff]
        %v1679 = vld [vmem:[#allocation5 + $0x2778] sm:$0xff]
        %v1680 = vld [vmem:[#allocation5 + $0x2780] sm:$0xff]
        %v1681 = vld [vmem:[#allocation5 + $0x2788] sm:$0xff]
        %v1682 = vld [vmem:[#allocation5 + $0x2790] sm:$0xff]
        %v1683 = vld [vmem:[#allocation5 + $0x2798] sm:$0xff]
        %v1684 = vld [vmem:[#allocation5 + $0x27a0] sm:$0xff]
        %v1685 = vld [vmem:[#allocation5 + $0x27a8] sm:$0xff]
        %v1686 = vld [vmem:[#allocation5 + $0x27b0] sm:$0xff]
        %v1687 = vld [vmem:[#allocation5 + $0x27b8] sm:$0xff]
        %v1688 = vld [vmem:[#allocation5 + $0x27c0] sm:$0xff]
        %v1689 = vld [vmem:[#allocation5 + $0x27c8] sm:$0xff]
        %v1690 = vld [vmem:[#allocation5 + $0x27d0] sm:$0xff]
        %v1691 = vld [vmem:[#allocation5 + $0x27d8] sm:$0xff]
        %v1692 = vld [vmem:[#allocation5 + $0x27e0] sm:$0xff]
        %v1693 = vld [vmem:[#allocation5 + $0x27e8] sm:$0xff]
        %v1694 = vld [vmem:[#allocation5 + $0x27f0] sm:$0xff]
        %v1695 = vld [vmem:[#allocation5 + $0x27f8] sm:$0xff]
        %v1696 = vld [vmem:[#allocation5 + $0x2800] sm:$0xff]
        %v1697 = vld [vmem:[#allocation5 + $0x2808] sm:$0xff]
        %v1698 = vld [vmem:[#allocation5 + $0x2810] sm:$0xff]
        %v1699 = vld [vmem:[#allocation5 + $0x2818] sm:$0xff]
        %v1700 = vld [vmem:[#allocation5 + $0x2820] sm:$0xff]
        %v1701 = vld [vmem:[#allocation5 + $0x2828] sm:$0xff]
        %v1702 = vld [vmem:[#allocation5 + $0x2830] sm:$0xff]
        %v1703 = vld [vmem:[#allocation5 + $0x2838] sm:$0xff]
        %v1704 = vld [vmem:[#allocation5 + $0x2840] sm:$0xff]
        %v1705 = vld [vmem:[#allocation5 + $0x2848] sm:$0xff]
        %v1706 = vld [vmem:[#allocation5 + $0x2850] sm:$0xff]
        %v1707 = vld [vmem:[#allocation5 + $0x2858] sm:$0xff]
        %v1708 = vld [vmem:[#allocation5 + $0x2860] sm:$0xff]
        %v1709 = vld [vmem:[#allocation5 + $0x2868] sm:$0xff]
        %v1710 = vld [vmem:[#allocation5 + $0x2870] sm:$0xff]
        %v1711 = vld [vmem:[#allocation5 + $0x2878] sm:$0xff]
        %v1712 = vld [vmem:[#allocation5 + $0x2880] sm:$0xff]
        %v1713 = vld [vmem:[#allocation5 + $0x2888] sm:$0xff]
        %v1714 = vld [vmem:[#allocation5 + $0x2890] sm:$0xff]
        %v1715 = vld [vmem:[#allocation5 + $0x2898] sm:$0xff]
        %v1716 = vld [vmem:[#allocation5 + $0x28a0] sm:$0xff]
        %v1717 = vld [vmem:[#allocation5 + $0x28a8] sm:$0xff]
        %v1718 = vld [vmem:[#allocation5 + $0x28b0] sm:$0xff]
        %v1719 = vld [vmem:[#allocation5 + $0x28b8] sm:$0xff]
        %v1720 = vld [vmem:[#allocation5 + $0x28c0] sm:$0xff]
        %v1721 = vld [vmem:[#allocation5 + $0x28c8] sm:$0xff]
        %v1722 = vld [vmem:[#allocation5 + $0x28d0] sm:$0xff]
        %v1723 = vld [vmem:[#allocation5 + $0x28d8] sm:$0xff]
        %v1724 = vld [vmem:[#allocation5 + $0x28e0] sm:$0xff]
        %v1725 = vld [vmem:[#allocation5 + $0x28e8] sm:$0xff]
        %v1726 = vld [vmem:[#allocation5 + $0x28f0] sm:$0xff]
        %v1727 = vld [vmem:[#allocation5 + $0x28f8] sm:$0xff]
        %v1728 = vld [vmem:[#allocation5 + $0x2900] sm:$0xff]
        %v1729 = vld [vmem:[#allocation5 + $0x2908] sm:$0xff]
        %v1730 = vld [vmem:[#allocation5 + $0x2910] sm:$0xff]
        %v1731 = vld [vmem:[#allocation5 + $0x2918] sm:$0xff]
        %v1732 = vld [vmem:[#allocation5 + $0x2920] sm:$0xff]
        %v1733 = vld [vmem:[#allocation5 + $0x2928] sm:$0xff]
        %v1734 = vld [vmem:[#allocation5 + $0x2930] sm:$0xff]
        %v1735 = vld [vmem:[#allocation5 + $0x2938] sm:$0xff]
        %v1736 = vld [vmem:[#allocation5 + $0x2940] sm:$0xff]
        %v1737 = vld [vmem:[#allocation5 + $0x2948] sm:$0xff]
        %v1738 = vld [vmem:[#allocation5 + $0x2950] sm:$0xff]
        %v1739 = vld [vmem:[#allocation5 + $0x2958] sm:$0xff]
        %v1740 = vld [vmem:[#allocation5 + $0x2960] sm:$0xff]
        %v1741 = vld [vmem:[#allocation5 + $0x2968] sm:$0xff]
        %v1742 = vld [vmem:[#allocation5 + $0x2970] sm:$0xff]
        %v1743 = vld [vmem:[#allocation5 + $0x2978] sm:$0xff]
        %v1744 = vld [vmem:[#allocation5 + $0x2980] sm:$0xff]
        %v1745 = vld [vmem:[#allocation5 + $0x2988] sm:$0xff]
        %v1746 = vld [vmem:[#allocation5 + $0x2990] sm:$0xff]
        %v1747 = vld [vmem:[#allocation5 + $0x2998] sm:$0xff]
        %v1748 = vld [vmem:[#allocation5 + $0x29a0] sm:$0xff]
        %v1749 = vld [vmem:[#allocation5 + $0x29a8] sm:$0xff]
        %v1750 = vld [vmem:[#allocation5 + $0x29b0] sm:$0xff]
        %v1751 = vld [vmem:[#allocation5 + $0x29b8] sm:$0xff]
        %v1752 = vld [vmem:[#allocation5 + $0x29c0] sm:$0xff]
        %v1753 = vld [vmem:[#allocation5 + $0x29c8] sm:$0xff]
        %v1754 = vld [vmem:[#allocation5 + $0x29d0] sm:$0xff]
        %v1755 = vld [vmem:[#allocation5 + $0x29d8] sm:$0xff]
        %v1756 = vld [vmem:[#allocation5 + $0x29e0] sm:$0xff]
        %v1757 = vld [vmem:[#allocation5 + $0x29e8] sm:$0xff]
        %v1758 = vld [vmem:[#allocation5 + $0x29f0] sm:$0xff]
        %v1759 = vld [vmem:[#allocation5 + $0x29f8] sm:$0xff]
        %v1760 = vld [vmem:[#allocation5 + $0x2a00] sm:$0xff]
        %v1761 = vld [vmem:[#allocation5 + $0x2a08] sm:$0xff]
        %v1762 = vld [vmem:[#allocation5 + $0x2a10] sm:$0xff]
        %v1763 = vld [vmem:[#allocation5 + $0x2a18] sm:$0xff]
        %v1764 = vld [vmem:[#allocation5 + $0x2a20] sm:$0xff]
        %v1765 = vld [vmem:[#allocation5 + $0x2a28] sm:$0xff]
        %v1766 = vld [vmem:[#allocation5 + $0x2a30] sm:$0xff]
        %v1767 = vld [vmem:[#allocation5 + $0x2a38] sm:$0xff]
        %v1768 = vld [vmem:[#allocation5 + $0x2a40] sm:$0xff]
        %v1769 = vld [vmem:[#allocation5 + $0x2a48] sm:$0xff]
        %v1770 = vld [vmem:[#allocation5 + $0x2a50] sm:$0xff]
        %v1771 = vld [vmem:[#allocation5 + $0x2a58] sm:$0xff]
        %v1772 = vld [vmem:[#allocation5 + $0x2a60] sm:$0xff]
        %v1773 = vld [vmem:[#allocation5 + $0x2a68] sm:$0xff]
        %v1774 = vld [vmem:[#allocation5 + $0x2a70] sm:$0xff]
        %v1775 = vld [vmem:[#allocation5 + $0x2a78] sm:$0xff]
        %v1776 = vld [vmem:[#allocation5 + $0x2a80] sm:$0xff]
        %v1777 = vld [vmem:[#allocation5 + $0x2a88] sm:$0xff]
        %v1778 = vld [vmem:[#allocation5 + $0x2a90] sm:$0xff]
        %v1779 = vld [vmem:[#allocation5 + $0x2a98] sm:$0xff]
        %v1780 = vld [vmem:[#allocation5 + $0x2aa0] sm:$0xff]
        %v1781 = vld [vmem:[#allocation5 + $0x2aa8] sm:$0xff]
        %v1782 = vld [vmem:[#allocation5 + $0x2ab0] sm:$0xff]
        %v1783 = vld [vmem:[#allocation5 + $0x2ab8] sm:$0xff]
        %v1784 = vld [vmem:[#allocation5 + $0x2ac0] sm:$0xff]
        %v1785 = vld [vmem:[#allocation5 + $0x2ac8] sm:$0xff]
        %v1786 = vld [vmem:[#allocation5 + $0x2ad0] sm:$0xff]
        %v1787 = vld [vmem:[#allocation5 + $0x2ad8] sm:$0xff]
        %v1788 = vld [vmem:[#allocation5 + $0x2ae0] sm:$0xff]
        %v1789 = vld [vmem:[#allocation5 + $0x2ae8] sm:$0xff]
        %v1790 = vld [vmem:[#allocation5 + $0x2af0] sm:$0xff]
        %v1791 = vld [vmem:[#allocation5 + $0x2af8] sm:$0xff]
        %v1792 = vld [vmem:[#allocation5 + $0x2b00] sm:$0xff]
        %v1793 = vld [vmem:[#allocation5 + $0x2b08] sm:$0xff]
        %v1794 = vld [vmem:[#allocation5 + $0x2b10] sm:$0xff]
        %v1795 = vld [vmem:[#allocation5 + $0x2b18] sm:$0xff]
        %v1796 = vld [vmem:[#allocation5 + $0x2b20] sm:$0xff]
        %v1797 = vld [vmem:[#allocation5 + $0x2b28] sm:$0xff]
        %v1798 = vld [vmem:[#allocation5 + $0x2b30] sm:$0xff]
        %v1799 = vld [vmem:[#allocation5 + $0x2b38] sm:$0xff]
        %v1800 = vld [vmem:[#allocation5 + $0x2b40] sm:$0xff]
        %v1801 = vld [vmem:[#allocation5 + $0x2b48] sm:$0xff]
        %v1802 = vld [vmem:[#allocation5 + $0x2b50] sm:$0xff]
        %v1803 = vld [vmem:[#allocation5 + $0x2b58] sm:$0xff]
        %v1804 = vld [vmem:[#allocation5 + $0x2b60] sm:$0xff]
        %v1805 = vld [vmem:[#allocation5 + $0x2b68] sm:$0xff]
        %v1806 = vld [vmem:[#allocation5 + $0x2b70] sm:$0xff]
        %v1807 = vld [vmem:[#allocation5 + $0x2b78] sm:$0xff]
        %v1808 = vld [vmem:[#allocation5 + $0x2b80] sm:$0xff]
        %v1809 = vld [vmem:[#allocation5 + $0x2b88] sm:$0xff]
        %v1810 = vld [vmem:[#allocation5 + $0x2b90] sm:$0xff]
        %v1811 = vld [vmem:[#allocation5 + $0x2b98] sm:$0xff]
        %v1812 = vld [vmem:[#allocation5 + $0x2ba0] sm:$0xff]
        %v1813 = vld [vmem:[#allocation5 + $0x2ba8] sm:$0xff]
        %v1814 = vld [vmem:[#allocation5 + $0x2bb0] sm:$0xff]
        %v1815 = vld [vmem:[#allocation5 + $0x2bb8] sm:$0xff]
        %v1816 = vld [vmem:[#allocation5 + $0x2bc0] sm:$0xff]
        %v1817 = vld [vmem:[#allocation5 + $0x2bc8] sm:$0xff]
        %v1818 = vld [vmem:[#allocation5 + $0x2bd0] sm:$0xff]
        %v1819 = vld [vmem:[#allocation5 + $0x2bd8] sm:$0xff]
        %v1820 = vld [vmem:[#allocation5 + $0x2be0] sm:$0xff]
        %v1821 = vld [vmem:[#allocation5 + $0x2be8] sm:$0xff]
        %v1822 = vld [vmem:[#allocation5 + $0x2bf0] sm:$0xff]
        %v1823 = vld [vmem:[#allocation5 + $0x2bf8] sm:$0xff]
        %v1824 = vld [vmem:[#allocation5 + $0x2c00] sm:$0xff]
        %v1825 = vld [vmem:[#allocation5 + $0x2c08] sm:$0xff]
        %v1826 = vld [vmem:[#allocation5 + $0x2c10] sm:$0xff]
        %v1827 = vld [vmem:[#allocation5 + $0x2c18] sm:$0xff]
        %v1828 = vld [vmem:[#allocation5 + $0x2c20] sm:$0xff]
        %v1829 = vld [vmem:[#allocation5 + $0x2c28] sm:$0xff]
        %v1830 = vld [vmem:[#allocation5 + $0x2c30] sm:$0xff]
        %v1831 = vld [vmem:[#allocation5 + $0x2c38] sm:$0xff]
        %v1832 = vld [vmem:[#allocation5 + $0x2c40] sm:$0xff]
        %v1833 = vld [vmem:[#allocation5 + $0x2c48] sm:$0xff]
        %v1834 = vld [vmem:[#allocation5 + $0x2c50] sm:$0xff]
        %v1835 = vld [vmem:[#allocation5 + $0x2c58] sm:$0xff]
        %v1836 = vld [vmem:[#allocation5 + $0x2c60] sm:$0xff]
        %v1837 = vld [vmem:[#allocation5 + $0x2c68] sm:$0xff]
        %v1838 = vld [vmem:[#allocation5 + $0x2c70] sm:$0xff]
        %v1839 = vld [vmem:[#allocation5 + $0x2c78] sm:$0xff]
        %v1840 = vld [vmem:[#allocation5 + $0x2c80] sm:$0xff]
        %v1841 = vld [vmem:[#allocation5 + $0x2c88] sm:$0xff]
        %v1842 = vld [vmem:[#allocation5 + $0x2c90] sm:$0xff]
        %v1843 = vld [vmem:[#allocation5 + $0x2c98] sm:$0xff]
        %v1844 = vld [vmem:[#allocation5 + $0x2ca0] sm:$0xff]
        %v1845 = vld [vmem:[#allocation5 + $0x2ca8] sm:$0xff]
        %v1846 = vld [vmem:[#allocation5 + $0x2cb0] sm:$0xff]
        %v1847 = vld [vmem:[#allocation5 + $0x2cb8] sm:$0xff]
        %v1848 = vld [vmem:[#allocation5 + $0x2cc0] sm:$0xff]
        %v1849 = vld [vmem:[#allocation5 + $0x2cc8] sm:$0xff]
        %v1850 = vld [vmem:[#allocation5 + $0x2cd0] sm:$0xff]
        %v1851 = vld [vmem:[#allocation5 + $0x2cd8] sm:$0xff]
        %v1852 = vld [vmem:[#allocation5 + $0x2ce0] sm:$0xff]
        %v1853 = vld [vmem:[#allocation5 + $0x2ce8] sm:$0xff]
        %v1854 = vld [vmem:[#allocation5 + $0x2cf0] sm:$0xff]
        %v1855 = vld [vmem:[#allocation5 + $0x2cf8] sm:$0xff]
        %v1856 = vld [vmem:[#allocation5 + $0x2d00] sm:$0xff]
        %v1857 = vld [vmem:[#allocation5 + $0x2d08] sm:$0xff]
        %v1858 = vld [vmem:[#allocation5 + $0x2d10] sm:$0xff]
        %v1859 = vld [vmem:[#allocation5 + $0x2d18] sm:$0xff]
        %v1860 = vld [vmem:[#allocation5 + $0x2d20] sm:$0xff]
        %v1861 = vld [vmem:[#allocation5 + $0x2d28] sm:$0xff]
        %v1862 = vld [vmem:[#allocation5 + $0x2d30] sm:$0xff]
        %v1863 = vld [vmem:[#allocation5 + $0x2d38] sm:$0xff]
        %v1864 = vld [vmem:[#allocation5 + $0x2d40] sm:$0xff]
        %v1865 = vld [vmem:[#allocation5 + $0x2d48] sm:$0xff]
        %v1866 = vld [vmem:[#allocation5 + $0x2d50] sm:$0xff]
        %v1867 = vld [vmem:[#allocation5 + $0x2d58] sm:$0xff]
        %v1868 = vld [vmem:[#allocation5 + $0x2d60] sm:$0xff]
        %v1869 = vld [vmem:[#allocation5 + $0x2d68] sm:$0xff]
        %v1870 = vld [vmem:[#allocation5 + $0x2d70] sm:$0xff]
        %v1871 = vld [vmem:[#allocation5 + $0x2d78] sm:$0xff]
        %v1872 = vld [vmem:[#allocation5 + $0x2d80] sm:$0xff]
        %v1873 = vld [vmem:[#allocation5 + $0x2d88] sm:$0xff]
        %v1874 = vld [vmem:[#allocation5 + $0x2d90] sm:$0xff]
        %v1875 = vld [vmem:[#allocation5 + $0x2d98] sm:$0xff]
        %v1876 = vld [vmem:[#allocation5 + $0x2da0] sm:$0xff]
        %v1877 = vld [vmem:[#allocation5 + $0x2da8] sm:$0xff]
        %v1878 = vld [vmem:[#allocation5 + $0x2db0] sm:$0xff]
        %v1879 = vld [vmem:[#allocation5 + $0x2db8] sm:$0xff]
        %v1880 = vld [vmem:[#allocation5 + $0x2dc0] sm:$0xff]
        %v1881 = vld [vmem:[#allocation5 + $0x2dc8] sm:$0xff]
        %v1882 = vld [vmem:[#allocation5 + $0x2dd0] sm:$0xff]
        %v1883 = vld [vmem:[#allocation5 + $0x2dd8] sm:$0xff]
        %v1884 = vld [vmem:[#allocation5 + $0x2de0] sm:$0xff]
        %v1885 = vld [vmem:[#allocation5 + $0x2de8] sm:$0xff]
        %v1886 = vld [vmem:[#allocation5 + $0x2df0] sm:$0xff]
        %v1887 = vld [vmem:[#allocation5 + $0x2df8] sm:$0xff]
        %v1888 = vld [vmem:[#allocation5 + $0x2e00] sm:$0xff]
        %v1889 = vld [vmem:[#allocation5 + $0x2e08] sm:$0xff]
        %v1890 = vld [vmem:[#allocation5 + $0x2e10] sm:$0xff]
        %v1891 = vld [vmem:[#allocation5 + $0x2e18] sm:$0xff]
        %v1892 = vld [vmem:[#allocation5 + $0x2e20] sm:$0xff]
        %v1893 = vld [vmem:[#allocation5 + $0x2e28] sm:$0xff]
        %v1894 = vld [vmem:[#allocation5 + $0x2e30] sm:$0xff]
        %v1895 = vld [vmem:[#allocation5 + $0x2e38] sm:$0xff]
        %v1896 = vld [vmem:[#allocation5 + $0x2e40] sm:$0xff]
        %v1897 = vld [vmem:[#allocation5 + $0x2e48] sm:$0xff]
        %v1898 = vld [vmem:[#allocation5 + $0x2e50] sm:$0xff]
        %v1899 = vld [vmem:[#allocation5 + $0x2e58] sm:$0xff]
        %v1900 = vld [vmem:[#allocation5 + $0x2e60] sm:$0xff]
        %v1901 = vld [vmem:[#allocation5 + $0x2e68] sm:$0xff]
        %v1902 = vld [vmem:[#allocation5 + $0x2e70] sm:$0xff]
        %v1903 = vld [vmem:[#allocation5 + $0x2e78] sm:$0xff]
        %v1904 = vld [vmem:[#allocation5 + $0x2e80] sm:$0xff]
        %v1905 = vld [vmem:[#allocation5 + $0x2e88] sm:$0xff]
        %v1906 = vld [vmem:[#allocation5 + $0x2e90] sm:$0xff]
        %v1907 = vld [vmem:[#allocation5 + $0x2e98] sm:$0xff]
        %v1908 = vld [vmem:[#allocation5 + $0x2ea0] sm:$0xff]
        %v1909 = vld [vmem:[#allocation5 + $0x2ea8] sm:$0xff]
        %v1910 = vld [vmem:[#allocation5 + $0x2eb0] sm:$0xff]
        %v1911 = vld [vmem:[#allocation5 + $0x2eb8] sm:$0xff]
        %v1912 = vld [vmem:[#allocation5 + $0x2ec0] sm:$0xff]
        %v1913 = vld [vmem:[#allocation5 + $0x2ec8] sm:$0xff]
        %v1914 = vld [vmem:[#allocation5 + $0x2ed0] sm:$0xff]
        %v1915 = vld [vmem:[#allocation5 + $0x2ed8] sm:$0xff]
        %v1916 = vld [vmem:[#allocation5 + $0x2ee0] sm:$0xff]
        %v1917 = vld [vmem:[#allocation5 + $0x2ee8] sm:$0xff]
        %v1918 = vld [vmem:[#allocation5 + $0x2ef0] sm:$0xff]
        %v1919 = vld [vmem:[#allocation5 + $0x2ef8] sm:$0xff]
        %v1920 = vld [vmem:[#allocation5 + $0x2f00] sm:$0xff]
        %v1921 = vld [vmem:[#allocation5 + $0x2f08] sm:$0xff]
        %v1922 = vld [vmem:[#allocation5 + $0x2f10] sm:$0xff]
        %v1923 = vld [vmem:[#allocation5 + $0x2f18] sm:$0xff]
        %v1924 = vld [vmem:[#allocation5 + $0x2f20] sm:$0xff]
        %v1925 = vld [vmem:[#allocation5 + $0x2f28] sm:$0xff]
        %v1926 = vld [vmem:[#allocation5 + $0x2f30] sm:$0xff]
        %v1927 = vld [vmem:[#allocation5 + $0x2f38] sm:$0xff]
        %v1928 = vld [vmem:[#allocation5 + $0x2f40] sm:$0xff]
        %v1929 = vld [vmem:[#allocation5 + $0x2f48] sm:$0xff]
        %v1930 = vld [vmem:[#allocation5 + $0x2f50] sm:$0xff]
        %v1931 = vld [vmem:[#allocation5 + $0x2f58] sm:$0xff]
        %v1932 = vld [vmem:[#allocation5 + $0x2f60] sm:$0xff]
        %v1933 = vld [vmem:[#allocation5 + $0x2f68] sm:$0xff]
        %v1934 = vld [vmem:[#allocation5 + $0x2f70] sm:$0xff]
        %v1935 = vld [vmem:[#allocation5 + $0x2f78] sm:$0xff]
        %v1936 = vld [vmem:[#allocation5 + $0x2f80] sm:$0xff]
        %v1937 = vld [vmem:[#allocation5 + $0x2f88] sm:$0xff]
        %v1938 = vld [vmem:[#allocation5 + $0x2f90] sm:$0xff]
        %v1939 = vld [vmem:[#allocation5 + $0x2f98] sm:$0xff]
        %v1940 = vld [vmem:[#allocation5 + $0x2fa0] sm:$0xff]
        %v1941 = vld [vmem:[#allocation5 + $0x2fa8] sm:$0xff]
        %v1942 = vld [vmem:[#allocation5 + $0x2fb0] sm:$0xff]
        %v1943 = vld [vmem:[#allocation5 + $0x2fb8] sm:$0xff]
        %v1944 = vld [vmem:[#allocation5 + $0x2fc0] sm:$0xff]
        %v1945 = vld [vmem:[#allocation5 + $0x2fc8] sm:$0xff]
        %v1946 = vld [vmem:[#allocation5 + $0x2fd0] sm:$0xff]
        %v1947 = vld [vmem:[#allocation5 + $0x2fd8] sm:$0xff]
        %v1948 = vld [vmem:[#allocation5 + $0x2fe0] sm:$0xff]
        %v1949 = vld [vmem:[#allocation5 + $0x2fe8] sm:$0xff]
        %v1950 = vld [vmem:[#allocation5 + $0x2ff0] sm:$0xff]
        %v1951 = vld [vmem:[#allocation5 + $0x2ff8] sm:$0xff]
        %v1952 = vld [vmem:[#allocation5 + $0x3000] sm:$0xff]
        %v1953 = vld [vmem:[#allocation5 + $0x3008] sm:$0xff]
        %v1954 = vld [vmem:[#allocation5 + $0x3010] sm:$0xff]
        %v1955 = vld [vmem:[#allocation5 + $0x3018] sm:$0xff]
        %v1956 = vld [vmem:[#allocation5 + $0x3020] sm:$0xff]
        %v1957 = vld [vmem:[#allocation5 + $0x3028] sm:$0xff]
        %v1958 = vld [vmem:[#allocation5 + $0x3030] sm:$0xff]
        %v1959 = vld [vmem:[#allocation5 + $0x3038] sm:$0xff]
        %v1960 = vld [vmem:[#allocation5 + $0x3040] sm:$0xff]
        %v1961 = vld [vmem:[#allocation5 + $0x3048] sm:$0xff]
        %v1962 = vld [vmem:[#allocation5 + $0x3050] sm:$0xff]
        %v1963 = vld [vmem:[#allocation5 + $0x3058] sm:$0xff]
        %v1964 = vld [vmem:[#allocation5 + $0x3060] sm:$0xff]
        %v1965 = vld [vmem:[#allocation5 + $0x3068] sm:$0xff]
        %v1966 = vld [vmem:[#allocation5 + $0x3070] sm:$0xff]
        %v1967 = vld [vmem:[#allocation5 + $0x3078] sm:$0xff]
        %v1968 = vld [vmem:[#allocation5 + $0x3080] sm:$0xff]
        %v1969 = vld [vmem:[#allocation5 + $0x3088] sm:$0xff]
        %v1970 = vld [vmem:[#allocation5 + $0x3090] sm:$0xff]
        %v1971 = vld [vmem:[#allocation5 + $0x3098] sm:$0xff]
        %v1972 = vld [vmem:[#allocation5 + $0x30a0] sm:$0xff]
        %v1973 = vld [vmem:[#allocation5 + $0x30a8] sm:$0xff]
        %v1974 = vld [vmem:[#allocation5 + $0x30b0] sm:$0xff]
        %v1975 = vld [vmem:[#allocation5 + $0x30b8] sm:$0xff]
        %v1976 = vld [vmem:[#allocation5 + $0x30c0] sm:$0xff]
        %v1977 = vld [vmem:[#allocation5 + $0x30c8] sm:$0xff]
        %v1978 = vld [vmem:[#allocation5 + $0x30d0] sm:$0xff]
        %v1979 = vld [vmem:[#allocation5 + $0x30d8] sm:$0xff]
        %v1980 = vld [vmem:[#allocation5 + $0x30e0] sm:$0xff]
        %v1981 = vld [vmem:[#allocation5 + $0x30e8] sm:$0xff]
        %v1982 = vld [vmem:[#allocation5 + $0x30f0] sm:$0xff]
        %v1983 = vld [vmem:[#allocation5 + $0x30f8] sm:$0xff]
        %v1984 = vld [vmem:[#allocation5 + $0x3100] sm:$0xff]
        %v1985 = vld [vmem:[#allocation5 + $0x3108] sm:$0xff]
        %v1986 = vld [vmem:[#allocation5 + $0x3110] sm:$0xff]
        %v1987 = vld [vmem:[#allocation5 + $0x3118] sm:$0xff]
        %v1988 = vld [vmem:[#allocation5 + $0x3120] sm:$0xff]
        %v1989 = vld [vmem:[#allocation5 + $0x3128] sm:$0xff]
        %v1990 = vld [vmem:[#allocation5 + $0x3130] sm:$0xff]
        %v1991 = vld [vmem:[#allocation5 + $0x3138] sm:$0xff]
        %v1992 = vld [vmem:[#allocation5 + $0x3140] sm:$0xff]
        %v1993 = vld [vmem:[#allocation5 + $0x3148] sm:$0xff]
        %v1994 = vld [vmem:[#allocation5 + $0x3150] sm:$0xff]
        %v1995 = vld [vmem:[#allocation5 + $0x3158] sm:$0xff]
        %v1996 = vld [vmem:[#allocation5 + $0x3160] sm:$0xff]
        %v1997 = vld [vmem:[#allocation5 + $0x3168] sm:$0xff]
        %v1998 = vld [vmem:[#allocation5 + $0x3170] sm:$0xff]
        %v1999 = vld [vmem:[#allocation5 + $0x3178] sm:$0xff]
        %v2000 = vld [vmem:[#allocation5 + $0x3180] sm:$0xff]
        %v2001 = vld [vmem:[#allocation5 + $0x3188] sm:$0xff]
        %v2002 = vld [vmem:[#allocation5 + $0x3190] sm:$0xff]
        %v2003 = vld [vmem:[#allocation5 + $0x3198] sm:$0xff]
        %v2004 = vld [vmem:[#allocation5 + $0x31a0] sm:$0xff]
        %v2005 = vld [vmem:[#allocation5 + $0x31a8] sm:$0xff]
        %v2006 = vld [vmem:[#allocation5 + $0x31b0] sm:$0xff]
        %v2007 = vld [vmem:[#allocation5 + $0x31b8] sm:$0xff]
        %v2008 = vld [vmem:[#allocation5 + $0x31c0] sm:$0xff]
        %v2009 = vld [vmem:[#allocation5 + $0x31c8] sm:$0xff]
        %v2010 = vld [vmem:[#allocation5 + $0x31d0] sm:$0xff]
        %v2011 = vld [vmem:[#allocation5 + $0x31d8] sm:$0xff]
        %v2012 = vld [vmem:[#allocation5 + $0x31e0] sm:$0xff]
        %v2013 = vld [vmem:[#allocation5 + $0x31e8] sm:$0xff]
        %v2014 = vld [vmem:[#allocation5 + $0x31f0] sm:$0xff]
        %v2015 = vld [vmem:[#allocation5 + $0x31f8] sm:$0xff]
        %v2016 = vld [vmem:[#allocation5 + $0x3200] sm:$0xff]
        %v2017 = vld [vmem:[#allocation5 + $0x3208] sm:$0xff]
        %v2018 = vld [vmem:[#allocation5 + $0x3210] sm:$0xff]
        %v2019 = vld [vmem:[#allocation5 + $0x3218] sm:$0xff]
        %v2020 = vld [vmem:[#allocation5 + $0x3220] sm:$0xff]
        %v2021 = vld [vmem:[#allocation5 + $0x3228] sm:$0xff]
        %v2022 = vld [vmem:[#allocation5 + $0x3230] sm:$0xff]
        %v2023 = vld [vmem:[#allocation5 + $0x3238] sm:$0xff]
        %v2024 = vld [vmem:[#allocation5 + $0x3240] sm:$0xff]
        %v2025 = vld [vmem:[#allocation5 + $0x3248] sm:$0xff]
        %v2026 = vld [vmem:[#allocation5 + $0x3250] sm:$0xff]
        %v2027 = vld [vmem:[#allocation5 + $0x3258] sm:$0xff]
        %v2028 = vld [vmem:[#allocation5 + $0x3260] sm:$0xff]
        %v2029 = vld [vmem:[#allocation5 + $0x3268] sm:$0xff]
        %v2030 = vld [vmem:[#allocation5 + $0x3270] sm:$0xff]
        %v2031 = vld [vmem:[#allocation5 + $0x3278] sm:$0xff]
        %v2032 = vld [vmem:[#allocation5 + $0x3280] sm:$0xff]
        %v2033 = vld [vmem:[#allocation5 + $0x3288] sm:$0xff]
        %v2034 = vld [vmem:[#allocation5 + $0x3290] sm:$0xff]
        %v2035 = vld [vmem:[#allocation5 + $0x3298] sm:$0xff]
        %v2036 = vld [vmem:[#allocation5 + $0x32a0] sm:$0xff]
        %v2037 = vld [vmem:[#allocation5 + $0x32a8] sm:$0xff]
        %v2038 = vld [vmem:[#allocation5 + $0x32b0] sm:$0xff]
        %v2039 = vld [vmem:[#allocation5 + $0x32b8] sm:$0xff]
        %v2040 = vld [vmem:[#allocation5 + $0x32c0] sm:$0xff]
        %v2041 = vld [vmem:[#allocation5 + $0x32c8] sm:$0xff]
        %v2042 = vld [vmem:[#allocation5 + $0x32d0] sm:$0xff]
        %v2043 = vld [vmem:[#allocation5 + $0x32d8] sm:$0xff]
        %v2044 = vld [vmem:[#allocation5 + $0x32e0] sm:$0xff]
        %v2045 = vld [vmem:[#allocation5 + $0x32e8] sm:$0xff]
        %v2046 = vld [vmem:[#allocation5 + $0x32f0] sm:$0xff]
        %v2047 = vld [vmem:[#allocation5 + $0x32f8] sm:$0xff]
        %v2048 = vld [vmem:[#allocation5 + $0x3300] sm:$0xff]
        %v2049 = vld [vmem:[#allocation5 + $0x3308] sm:$0xff]
        %v2050 = vld [vmem:[#allocation5 + $0x3310] sm:$0xff]
        %v2051 = vld [vmem:[#allocation5 + $0x3318] sm:$0xff]
        %v2052 = vld [vmem:[#allocation5 + $0x3320] sm:$0xff]
        %v2053 = vld [vmem:[#allocation5 + $0x3328] sm:$0xff]
        %v2054 = vld [vmem:[#allocation5 + $0x3330] sm:$0xff]
        %v2055 = vld [vmem:[#allocation5 + $0x3338] sm:$0xff]
        %v2056 = vld [vmem:[#allocation5 + $0x3340] sm:$0xff]
        %v2057 = vld [vmem:[#allocation5 + $0x3348] sm:$0xff]
        %v2058 = vld [vmem:[#allocation5 + $0x3350] sm:$0xff]
        %v2059 = vld [vmem:[#allocation5 + $0x3358] sm:$0xff]
        %v2060 = vld [vmem:[#allocation5 + $0x3360] sm:$0xff]
        %v2061 = vld [vmem:[#allocation5 + $0x3368] sm:$0xff]
        %v2062 = vld [vmem:[#allocation5 + $0x3370] sm:$0xff]
        %v2063 = vld [vmem:[#allocation5 + $0x3378] sm:$0xff]
        %v2064 = vld [vmem:[#allocation5 + $0x3380] sm:$0xff]
        %v2065 = vld [vmem:[#allocation5 + $0x3388] sm:$0xff]
        %v2066 = vld [vmem:[#allocation5 + $0x3390] sm:$0xff]
        %v2067 = vld [vmem:[#allocation5 + $0x3398] sm:$0xff]
        %v2068 = vld [vmem:[#allocation5 + $0x33a0] sm:$0xff]
        %v2069 = vld [vmem:[#allocation5 + $0x33a8] sm:$0xff]
        %v2070 = vld [vmem:[#allocation5 + $0x33b0] sm:$0xff]
        %v2071 = vld [vmem:[#allocation5 + $0x33b8] sm:$0xff]
        %v2072 = vld [vmem:[#allocation5 + $0x33c0] sm:$0xff]
        %v2073 = vld [vmem:[#allocation5 + $0x33c8] sm:$0xff]
        %v2074 = vld [vmem:[#allocation5 + $0x33d0] sm:$0xff]
        %v2075 = vld [vmem:[#allocation5 + $0x33d8] sm:$0xff]
        %v2076 = vld [vmem:[#allocation5 + $0x33e0] sm:$0xff]
        %v2077 = vld [vmem:[#allocation5 + $0x33e8] sm:$0xff]
        %v2078 = vld [vmem:[#allocation5 + $0x33f0] sm:$0xff]
        %v2079 = vld [vmem:[#allocation5 + $0x33f8] sm:$0xff]
        %v2080 = vld [vmem:[#allocation5 + $0x3400] sm:$0xff]
        %v2081 = vld [vmem:[#allocation5 + $0x3408] sm:$0xff]
        %v2082 = vld [vmem:[#allocation5 + $0x3410] sm:$0xff]
        %v2083 = vld [vmem:[#allocation5 + $0x3418] sm:$0xff]
        %v2084 = vld [vmem:[#allocation5 + $0x3420] sm:$0xff]
        %v2085 = vld [vmem:[#allocation5 + $0x3428] sm:$0xff]
        %v2086 = vld [vmem:[#allocation5 + $0x3430] sm:$0xff]
        %v2087 = vld [vmem:[#allocation5 + $0x3438] sm:$0xff]
        %v2088 = vld [vmem:[#allocation5 + $0x3440] sm:$0xff]
        %v2089 = vld [vmem:[#allocation5 + $0x3448] sm:$0xff]
        %v2090 = vld [vmem:[#allocation5 + $0x3450] sm:$0xff]
        %v2091 = vld [vmem:[#allocation5 + $0x3458] sm:$0xff]
        %v2092 = vld [vmem:[#allocation5 + $0x3460] sm:$0xff]
        %v2093 = vld [vmem:[#allocation5 + $0x3468] sm:$0xff]
        %v2094 = vld [vmem:[#allocation5 + $0x3470] sm:$0xff]
        %v2095 = vld [vmem:[#allocation5 + $0x3478] sm:$0xff]
        %v2096 = vld [vmem:[#allocation5 + $0x3480] sm:$0xff]
        %v2097 = vld [vmem:[#allocation5 + $0x3488] sm:$0xff]
        %v2098 = vld [vmem:[#allocation5 + $0x3490] sm:$0xff]
        %v2099 = vld [vmem:[#allocation5 + $0x3498] sm:$0xff]
        %v2100 = vld [vmem:[#allocation5 + $0x34a0] sm:$0xff]
        %v2101 = vld [vmem:[#allocation5 + $0x34a8] sm:$0xff]
        %v2102 = vld [vmem:[#allocation5 + $0x34b0] sm:$0xff]
        %v2103 = vld [vmem:[#allocation5 + $0x34b8] sm:$0xff]
        %v2104 = vld [vmem:[#allocation5 + $0x34c0] sm:$0xff]
        %v2105 = vld [vmem:[#allocation5 + $0x34c8] sm:$0xff]
        %v2106 = vld [vmem:[#allocation5 + $0x34d0] sm:$0xff]
        %v2107 = vld [vmem:[#allocation5 + $0x34d8] sm:$0xff]
        %v2108 = vld [vmem:[#allocation5 + $0x34e0] sm:$0xff]
        %v2109 = vld [vmem:[#allocation5 + $0x34e8] sm:$0xff]
        %v2110 = vld [vmem:[#allocation5 + $0x34f0] sm:$0xff]
        %v2111 = vld [vmem:[#allocation5 + $0x34f8] sm:$0xff]
        %v2112 = vld [vmem:[#allocation5 + $0x3500] sm:$0xff]
        %v2113 = vld [vmem:[#allocation5 + $0x3508] sm:$0xff]
        %v2114 = vld [vmem:[#allocation5 + $0x3510] sm:$0xff]
        %v2115 = vld [vmem:[#allocation5 + $0x3518] sm:$0xff]
        %v2116 = vld [vmem:[#allocation5 + $0x3520] sm:$0xff]
        %v2117 = vld [vmem:[#allocation5 + $0x3528] sm:$0xff]
        %v2118 = vld [vmem:[#allocation5 + $0x3530] sm:$0xff]
        %v2119 = vld [vmem:[#allocation5 + $0x3538] sm:$0xff]
        %v2120 = vld [vmem:[#allocation5 + $0x3540] sm:$0xff]
        %v2121 = vld [vmem:[#allocation5 + $0x3548] sm:$0xff]
        %v2122 = vld [vmem:[#allocation5 + $0x3550] sm:$0xff]
        %v2123 = vld [vmem:[#allocation5 + $0x3558] sm:$0xff]
        %v2124 = vld [vmem:[#allocation5 + $0x3560] sm:$0xff]
        %v2125 = vld [vmem:[#allocation5 + $0x3568] sm:$0xff]
        %v2126 = vld [vmem:[#allocation5 + $0x3570] sm:$0xff]
        %v2127 = vld [vmem:[#allocation5 + $0x3578] sm:$0xff]
        %v2128 = vld [vmem:[#allocation5 + $0x3580] sm:$0xff]
        %v2129 = vld [vmem:[#allocation5 + $0x3588] sm:$0xff]
        %v2130 = vld [vmem:[#allocation5 + $0x3590] sm:$0xff]
        %v2131 = vld [vmem:[#allocation5 + $0x3598] sm:$0xff]
        %v2132 = vld [vmem:[#allocation5 + $0x35a0] sm:$0xff]
        %v2133 = vld [vmem:[#allocation5 + $0x35a8] sm:$0xff]
        %v2134 = vld [vmem:[#allocation5 + $0x35b0] sm:$0xff]
        %v2135 = vld [vmem:[#allocation5 + $0x35b8] sm:$0xff]
        %v2136 = vld [vmem:[#allocation5 + $0x35c0] sm:$0xff]
        %v2137 = vld [vmem:[#allocation5 + $0x35c8] sm:$0xff]
        %v2138 = vld [vmem:[#allocation5 + $0x35d0] sm:$0xff]
        %v2139 = vld [vmem:[#allocation5 + $0x35d8] sm:$0xff]
        %v2140 = vld [vmem:[#allocation5 + $0x35e0] sm:$0xff]
        %v2141 = vld [vmem:[#allocation5 + $0x35e8] sm:$0xff]
        %v2142 = vld [vmem:[#allocation5 + $0x35f0] sm:$0xff]
        %v2143 = vld [vmem:[#allocation5 + $0x35f8] sm:$0xff]
        %v2144 = vld [vmem:[#allocation5 + $0x3600] sm:$0xff]
        %v2145 = vld [vmem:[#allocation5 + $0x3608] sm:$0xff]
        %v2146 = vld [vmem:[#allocation5 + $0x3610] sm:$0xff]
        %v2147 = vld [vmem:[#allocation5 + $0x3618] sm:$0xff]
        %v2148 = vld [vmem:[#allocation5 + $0x3620] sm:$0xff]
        %v2149 = vld [vmem:[#allocation5 + $0x3628] sm:$0xff]
        %v2150 = vld [vmem:[#allocation5 + $0x3630] sm:$0xff]
        %v2151 = vld [vmem:[#allocation5 + $0x3638] sm:$0xff]
        %v2152 = vld [vmem:[#allocation5 + $0x3640] sm:$0xff]
        %v2153 = vld [vmem:[#allocation5 + $0x3648] sm:$0xff]
        %v2154 = vld [vmem:[#allocation5 + $0x3650] sm:$0xff]
        %v2155 = vld [vmem:[#allocation5 + $0x3658] sm:$0xff]
        %v2156 = vld [vmem:[#allocation5 + $0x3660] sm:$0xff]
        %v2157 = vld [vmem:[#allocation5 + $0x3668] sm:$0xff]
        %v2158 = vld [vmem:[#allocation5 + $0x3670] sm:$0xff]
        %v2159 = vld [vmem:[#allocation5 + $0x3678] sm:$0xff]
        %v2160 = vld [vmem:[#allocation5 + $0x3680] sm:$0xff]
        %v2161 = vld [vmem:[#allocation5 + $0x3688] sm:$0xff]
        %v2162 = vld [vmem:[#allocation5 + $0x3690] sm:$0xff]
        %v2163 = vld [vmem:[#allocation5 + $0x3698] sm:$0xff]
        %v2164 = vld [vmem:[#allocation5 + $0x36a0] sm:$0xff]
        %v2165 = vld [vmem:[#allocation5 + $0x36a8] sm:$0xff]
        %v2166 = vld [vmem:[#allocation5 + $0x36b0] sm:$0xff]
        %v2167 = vld [vmem:[#allocation5 + $0x36b8] sm:$0xff]
        %v2168 = vld [vmem:[#allocation5 + $0x36c0] sm:$0xff]
        %v2169 = vld [vmem:[#allocation5 + $0x36c8] sm:$0xff]
        %v2170 = vld [vmem:[#allocation5 + $0x36d0] sm:$0xff]
        %v2171 = vld [vmem:[#allocation5 + $0x36d8] sm:$0xff]
        %v2172 = vld [vmem:[#allocation5 + $0x36e0] sm:$0xff]
        %v2173 = vld [vmem:[#allocation5 + $0x36e8] sm:$0xff]
        %v2174 = vld [vmem:[#allocation5 + $0x36f0] sm:$0xff]
        %v2175 = vld [vmem:[#allocation5 + $0x36f8] sm:$0xff]
        %v2176 = vld [vmem:[#allocation5 + $0x3700] sm:$0xff]
        %v2177 = vld [vmem:[#allocation5 + $0x3708] sm:$0xff]
        %v2178 = vld [vmem:[#allocation5 + $0x3710] sm:$0xff]
        %v2179 = vld [vmem:[#allocation5 + $0x3718] sm:$0xff]
        %v2180 = vld [vmem:[#allocation5 + $0x3720] sm:$0xff]
        %v2181 = vld [vmem:[#allocation5 + $0x3728] sm:$0xff]
        %v2182 = vld [vmem:[#allocation5 + $0x3730] sm:$0xff]
        %v2183 = vld [vmem:[#allocation5 + $0x3738] sm:$0xff]
        %v2184 = vld [vmem:[#allocation5 + $0x3740] sm:$0xff]
        %v2185 = vld [vmem:[#allocation5 + $0x3748] sm:$0xff]
        %v2186 = vld [vmem:[#allocation5 + $0x3750] sm:$0xff]
        %v2187 = vld [vmem:[#allocation5 + $0x3758] sm:$0xff]
        %v2188 = vld [vmem:[#allocation5 + $0x3760] sm:$0xff]
        %v2189 = vld [vmem:[#allocation5 + $0x3768] sm:$0xff]
        %v2190 = vld [vmem:[#allocation5 + $0x3770] sm:$0xff]
        %v2191 = vld [vmem:[#allocation5 + $0x3778] sm:$0xff]
        %v2192 = vld [vmem:[#allocation5 + $0x3780] sm:$0xff]
        %v2193 = vld [vmem:[#allocation5 + $0x3788] sm:$0xff]
        %v2194 = vld [vmem:[#allocation5 + $0x3790] sm:$0xff]
        %v2195 = vld [vmem:[#allocation5 + $0x3798] sm:$0xff]
        %v2196 = vld [vmem:[#allocation5 + $0x37a0] sm:$0xff]
        %v2197 = vld [vmem:[#allocation5 + $0x37a8] sm:$0xff]
        %v2198 = vld [vmem:[#allocation5 + $0x37b0] sm:$0xff]
        %v2199 = vld [vmem:[#allocation5 + $0x37b8] sm:$0xff]
        %v2200 = vld [vmem:[#allocation5 + $0x37c0] sm:$0xff]
        %v2201 = vld [vmem:[#allocation5 + $0x37c8] sm:$0xff]
        %v2202 = vld [vmem:[#allocation5 + $0x37d0] sm:$0xff]
        %v2203 = vld [vmem:[#allocation5 + $0x37d8] sm:$0xff]
        %v2204 = vld [vmem:[#allocation5 + $0x37e0] sm:$0xff]
        %v2205 = vld [vmem:[#allocation5 + $0x37e8] sm:$0xff]
        %v2206 = vld [vmem:[#allocation5 + $0x37f0] sm:$0xff]
        %v2207 = vld [vmem:[#allocation5 + $0x37f8] sm:$0xff]
        %v2208 = vld [vmem:[#allocation5 + $0x3800] sm:$0xff]
        %v2209 = vld [vmem:[#allocation5 + $0x3808] sm:$0xff]
        %v2210 = vld [vmem:[#allocation5 + $0x3810] sm:$0xff]
        %v2211 = vld [vmem:[#allocation5 + $0x3818] sm:$0xff]
        %v2212 = vld [vmem:[#allocation5 + $0x3820] sm:$0xff]
        %v2213 = vld [vmem:[#allocation5 + $0x3828] sm:$0xff]
        %v2214 = vld [vmem:[#allocation5 + $0x3830] sm:$0xff]
        %v2215 = vld [vmem:[#allocation5 + $0x3838] sm:$0xff]
        %v2216 = vld [vmem:[#allocation5 + $0x3840] sm:$0xff]
        %v2217 = vld [vmem:[#allocation5 + $0x3848] sm:$0xff]
        %v2218 = vld [vmem:[#allocation5 + $0x3850] sm:$0xff]
        %v2219 = vld [vmem:[#allocation5 + $0x3858] sm:$0xff]
        %v2220 = vld [vmem:[#allocation5 + $0x3860] sm:$0xff]
        %v2221 = vld [vmem:[#allocation5 + $0x3868] sm:$0xff]
        %v2222 = vld [vmem:[#allocation5 + $0x3870] sm:$0xff]
        %v2223 = vld [vmem:[#allocation5 + $0x3878] sm:$0xff]
        %v2224 = vld [vmem:[#allocation5 + $0x3880] sm:$0xff]
        %v2225 = vld [vmem:[#allocation5 + $0x3888] sm:$0xff]
        %v2226 = vld [vmem:[#allocation5 + $0x3890] sm:$0xff]
        %v2227 = vld [vmem:[#allocation5 + $0x3898] sm:$0xff]
        %v2228 = vld [vmem:[#allocation5 + $0x38a0] sm:$0xff]
        %v2229 = vld [vmem:[#allocation5 + $0x38a8] sm:$0xff]
        %v2230 = vld [vmem:[#allocation5 + $0x38b0] sm:$0xff]
        %v2231 = vld [vmem:[#allocation5 + $0x38b8] sm:$0xff]
        %v2232 = vld [vmem:[#allocation5 + $0x38c0] sm:$0xff]
        %v2233 = vld [vmem:[#allocation5 + $0x38c8] sm:$0xff]
        %v2234 = vld [vmem:[#allocation5 + $0x38d0] sm:$0xff]
        %v2235 = vld [vmem:[#allocation5 + $0x38d8] sm:$0xff]
        %v2236 = vld [vmem:[#allocation5 + $0x38e0] sm:$0xff]
        %v2237 = vld [vmem:[#allocation5 + $0x38e8] sm:$0xff]
        %v2238 = vld [vmem:[#allocation5 + $0x38f0] sm:$0xff]
        %v2239 = vld [vmem:[#allocation5 + $0x38f8] sm:$0xff]
        %v2240 = vld [vmem:[#allocation5 + $0x3900] sm:$0xff]
        %v2241 = vld [vmem:[#allocation5 + $0x3908] sm:$0xff]
        %v2242 = vld [vmem:[#allocation5 + $0x3910] sm:$0xff]
        %v2243 = vld [vmem:[#allocation5 + $0x3918] sm:$0xff]
        %v2244 = vld [vmem:[#allocation5 + $0x3920] sm:$0xff]
        %v2245 = vld [vmem:[#allocation5 + $0x3928] sm:$0xff]
        %v2246 = vld [vmem:[#allocation5 + $0x3930] sm:$0xff]
        %v2247 = vld [vmem:[#allocation5 + $0x3938] sm:$0xff]
        %v2248 = vld [vmem:[#allocation5 + $0x3940] sm:$0xff]
        %v2249 = vld [vmem:[#allocation5 + $0x3948] sm:$0xff]
        %v2250 = vld [vmem:[#allocation5 + $0x3950] sm:$0xff]
        %v2251 = vld [vmem:[#allocation5 + $0x3958] sm:$0xff]
        %v2252 = vld [vmem:[#allocation5 + $0x3960] sm:$0xff]
        %v2253 = vld [vmem:[#allocation5 + $0x3968] sm:$0xff]
        %v2254 = vld [vmem:[#allocation5 + $0x3970] sm:$0xff]
        %v2255 = vld [vmem:[#allocation5 + $0x3978] sm:$0xff]
        %v2256 = vld [vmem:[#allocation5 + $0x3980] sm:$0xff]
        %v2257 = vld [vmem:[#allocation5 + $0x3988] sm:$0xff]
        %v2258 = vld [vmem:[#allocation5 + $0x3990] sm:$0xff]
        %v2259 = vld [vmem:[#allocation5 + $0x3998] sm:$0xff]
        %v2260 = vld [vmem:[#allocation5 + $0x39a0] sm:$0xff]
        %v2261 = vld [vmem:[#allocation5 + $0x39a8] sm:$0xff]
        %v2262 = vld [vmem:[#allocation5 + $0x39b0] sm:$0xff]
        %v2263 = vld [vmem:[#allocation5 + $0x39b8] sm:$0xff]
        %v2264 = vld [vmem:[#allocation5 + $0x39c0] sm:$0xff]
        %v2265 = vld [vmem:[#allocation5 + $0x39c8] sm:$0xff]
        %v2266 = vld [vmem:[#allocation5 + $0x39d0] sm:$0xff]
        %v2267 = vld [vmem:[#allocation5 + $0x39d8] sm:$0xff]
        %v2268 = vld [vmem:[#allocation5 + $0x39e0] sm:$0xff]
        %v2269 = vld [vmem:[#allocation5 + $0x39e8] sm:$0xff]
        %v2270 = vld [vmem:[#allocation5 + $0x39f0] sm:$0xff]
        %v2271 = vld [vmem:[#allocation5 + $0x39f8] sm:$0xff]
        %v2272 = vld [vmem:[#allocation5 + $0x3a00] sm:$0xff]
        %v2273 = vld [vmem:[#allocation5 + $0x3a08] sm:$0xff]
        %v2274 = vld [vmem:[#allocation5 + $0x3a10] sm:$0xff]
        %v2275 = vld [vmem:[#allocation5 + $0x3a18] sm:$0xff]
        %v2276 = vld [vmem:[#allocation5 + $0x3a20] sm:$0xff]
        %v2277 = vld [vmem:[#allocation5 + $0x3a28] sm:$0xff]
        %v2278 = vld [vmem:[#allocation5 + $0x3a30] sm:$0xff]
        %v2279 = vld [vmem:[#allocation5 + $0x3a38] sm:$0xff]
        %v2280 = vld [vmem:[#allocation5 + $0x3a40] sm:$0xff]
        %v2281 = vld [vmem:[#allocation5 + $0x3a48] sm:$0xff]
        %v2282 = vld [vmem:[#allocation5 + $0x3a50] sm:$0xff]
        %v2283 = vld [vmem:[#allocation5 + $0x3a58] sm:$0xff]
        %v2284 = vld [vmem:[#allocation5 + $0x3a60] sm:$0xff]
        %v2285 = vld [vmem:[#allocation5 + $0x3a68] sm:$0xff]
        %v2286 = vld [vmem:[#allocation5 + $0x3a70] sm:$0xff]
        %v2287 = vld [vmem:[#allocation5 + $0x3a78] sm:$0xff]
        %v2288 = vld [vmem:[#allocation5 + $0x3a80] sm:$0xff]
        %v2289 = vld [vmem:[#allocation5 + $0x3a88] sm:$0xff]
        %v2290 = vld [vmem:[#allocation5 + $0x3a90] sm:$0xff]
        %v2291 = vld [vmem:[#allocation5 + $0x3a98] sm:$0xff]
        %v2292 = vld [vmem:[#allocation5 + $0x3aa0] sm:$0xff]
        %v2293 = vld [vmem:[#allocation5 + $0x3aa8] sm:$0xff]
        %v2294 = vld [vmem:[#allocation5 + $0x3ab0] sm:$0xff]
        %v2295 = vld [vmem:[#allocation5 + $0x3ab8] sm:$0xff]
        %v2296 = vld [vmem:[#allocation5 + $0x3ac0] sm:$0xff]
        %v2297 = vld [vmem:[#allocation5 + $0x3ac8] sm:$0xff]
        %v2298 = vld [vmem:[#allocation5 + $0x3ad0] sm:$0xff]
        %v2299 = vld [vmem:[#allocation5 + $0x3ad8] sm:$0xff]
        %v2300 = vld [vmem:[#allocation5 + $0x3ae0] sm:$0xff]
        %v2301 = vld [vmem:[#allocation5 + $0x3ae8] sm:$0xff]
        %v2302 = vld [vmem:[#allocation5 + $0x3af0] sm:$0xff]
        %v2303 = vld [vmem:[#allocation5 + $0x3af8] sm:$0xff]
        %v2304 = vld [vmem:[#allocation5 + $0x3b00] sm:$0xff]
        %v2305 = vld [vmem:[#allocation5 + $0x3b08] sm:$0xff]
        %v2306 = vld [vmem:[#allocation5 + $0x3b10] sm:$0xff]
        %v2307 = vld [vmem:[#allocation5 + $0x3b18] sm:$0xff]
        %v2308 = vld [vmem:[#allocation5 + $0x3b20] sm:$0xff]
        %v2309 = vld [vmem:[#allocation5 + $0x3b28] sm:$0xff]
        %v2310 = vld [vmem:[#allocation5 + $0x3b30] sm:$0xff]
        %v2311 = vld [vmem:[#allocation5 + $0x3b38] sm:$0xff]
        %v2312 = vld [vmem:[#allocation5 + $0x3b40] sm:$0xff]
        %v2313 = vld [vmem:[#allocation5 + $0x3b48] sm:$0xff]
        %v2314 = vld [vmem:[#allocation5 + $0x3b50] sm:$0xff]
        %v2315 = vld [vmem:[#allocation5 + $0x3b58] sm:$0xff]
        %v2316 = vld [vmem:[#allocation5 + $0x3b60] sm:$0xff]
        %v2317 = vld [vmem:[#allocation5 + $0x3b68] sm:$0xff]
        %v2318 = vld [vmem:[#allocation5 + $0x3b70] sm:$0xff]
        %v2319 = vld [vmem:[#allocation5 + $0x3b78] sm:$0xff]
        %v2320 = vld [vmem:[#allocation5 + $0x3b80] sm:$0xff]
        %v2321 = vld [vmem:[#allocation5 + $0x3b88] sm:$0xff]
        %v2322 = vld [vmem:[#allocation5 + $0x3b90] sm:$0xff]
        %v2323 = vld [vmem:[#allocation5 + $0x3b98] sm:$0xff]
        %v2324 = vld [vmem:[#allocation5 + $0x3ba0] sm:$0xff]
        %v2325 = vld [vmem:[#allocation5 + $0x3ba8] sm:$0xff]
        %v2326 = vld [vmem:[#allocation5 + $0x3bb0] sm:$0xff]
        %v2327 = vld [vmem:[#allocation5 + $0x3bb8] sm:$0xff]
        %v2328 = vld [vmem:[#allocation5 + $0x3bc0] sm:$0xff]
        %v2329 = vld [vmem:[#allocation5 + $0x3bc8] sm:$0xff]
        %v2330 = vld [vmem:[#allocation5 + $0x3bd0] sm:$0xff]
        %v2331 = vld [vmem:[#allocation5 + $0x3bd8] sm:$0xff]
        %v2332 = vld [vmem:[#allocation5 + $0x3be0] sm:$0xff]
        %v2333 = vld [vmem:[#allocation5 + $0x3be8] sm:$0xff]
        %v2334 = vld [vmem:[#allocation5 + $0x3bf0] sm:$0xff]
        %v2335 = vld [vmem:[#allocation5 + $0x3bf8] sm:$0xff]
        %v2336 = vld [vmem:[#allocation5 + $0x3c00] sm:$0xff]
        %v2337 = vld [vmem:[#allocation5 + $0x3c08] sm:$0xff]
        %v2338 = vld [vmem:[#allocation5 + $0x3c10] sm:$0xff]
        %v2339 = vld [vmem:[#allocation5 + $0x3c18] sm:$0xff]
        %v2340 = vld [vmem:[#allocation5 + $0x3c20] sm:$0xff]
        %v2341 = vld [vmem:[#allocation5 + $0x3c28] sm:$0xff]
        %v2342 = vld [vmem:[#allocation5 + $0x3c30] sm:$0xff]
        %v2343 = vld [vmem:[#allocation5 + $0x3c38] sm:$0xff]
        %v2344 = vld [vmem:[#allocation5 + $0x3c40] sm:$0xff]
        %v2345 = vld [vmem:[#allocation5 + $0x3c48] sm:$0xff]
        %v2346 = vld [vmem:[#allocation5 + $0x3c50] sm:$0xff]
        %v2347 = vld [vmem:[#allocation5 + $0x3c58] sm:$0xff]
        %v2348 = vld [vmem:[#allocation5 + $0x3c60] sm:$0xff]
        %v2349 = vld [vmem:[#allocation5 + $0x3c68] sm:$0xff]
        %v2350 = vld [vmem:[#allocation5 + $0x3c70] sm:$0xff]
        %v2351 = vld [vmem:[#allocation5 + $0x3c78] sm:$0xff]
        %v2352 = vld [vmem:[#allocation5 + $0x3c80] sm:$0xff]
        %v2353 = vld [vmem:[#allocation5 + $0x3c88] sm:$0xff]
        %v2354 = vld [vmem:[#allocation5 + $0x3c90] sm:$0xff]
        %v2355 = vld [vmem:[#allocation5 + $0x3c98] sm:$0xff]
        %v2356 = vld [vmem:[#allocation5 + $0x3ca0] sm:$0xff]
        %v2357 = vld [vmem:[#allocation5 + $0x3ca8] sm:$0xff]
        %v2358 = vld [vmem:[#allocation5 + $0x3cb0] sm:$0xff]
        %v2359 = vld [vmem:[#allocation5 + $0x3cb8] sm:$0xff]
        %v2360 = vld [vmem:[#allocation5 + $0x3cc0] sm:$0xff]
        %v2361 = vld [vmem:[#allocation5 + $0x3cc8] sm:$0xff]
        %v2362 = vld [vmem:[#allocation5 + $0x3cd0] sm:$0xff]
        %v2363 = vld [vmem:[#allocation5 + $0x3cd8] sm:$0xff]
        %v2364 = vld [vmem:[#allocation5 + $0x3ce0] sm:$0xff]
        %v2365 = vld [vmem:[#allocation5 + $0x3ce8] sm:$0xff]
        %v2366 = vld [vmem:[#allocation5 + $0x3cf0] sm:$0xff]
        %v2367 = vld [vmem:[#allocation5 + $0x3cf8] sm:$0xff]
        %v2368 = vld [vmem:[#allocation5 + $0x3d00] sm:$0xff]
        %v2369 = vld [vmem:[#allocation5 + $0x3d08] sm:$0xff]
        %v2370 = vld [vmem:[#allocation5 + $0x3d10] sm:$0xff]
        %v2371 = vld [vmem:[#allocation5 + $0x3d18] sm:$0xff]
        %v2372 = vld [vmem:[#allocation5 + $0x3d20] sm:$0xff]
        %v2373 = vld [vmem:[#allocation5 + $0x3d28] sm:$0xff]
        %v2374 = vld [vmem:[#allocation5 + $0x3d30] sm:$0xff]
        %v2375 = vld [vmem:[#allocation5 + $0x3d38] sm:$0xff]
        %v2376 = vld [vmem:[#allocation5 + $0x3d40] sm:$0xff]
        %v2377 = vld [vmem:[#allocation5 + $0x3d48] sm:$0xff]
        %v2378 = vld [vmem:[#allocation5 + $0x3d50] sm:$0xff]
        %v2379 = vld [vmem:[#allocation5 + $0x3d58] sm:$0xff]
        %v2380 = vld [vmem:[#allocation5 + $0x3d60] sm:$0xff]
        %v2381 = vld [vmem:[#allocation5 + $0x3d68] sm:$0xff]
        %v2382 = vld [vmem:[#allocation5 + $0x3d70] sm:$0xff]
        %v2383 = vld [vmem:[#allocation5 + $0x3d78] sm:$0xff]
        %v2384 = vld [vmem:[#allocation5 + $0x3d80] sm:$0xff]
        %v2385 = vld [vmem:[#allocation5 + $0x3d88] sm:$0xff]
        %v2386 = vld [vmem:[#allocation5 + $0x3d90] sm:$0xff]
        %v2387 = vld [vmem:[#allocation5 + $0x3d98] sm:$0xff]
        %v2388 = vld [vmem:[#allocation5 + $0x3da0] sm:$0xff]
        %v2389 = vld [vmem:[#allocation5 + $0x3da8] sm:$0xff]
        %v2390 = vld [vmem:[#allocation5 + $0x3db0] sm:$0xff]
        %v2391 = vld [vmem:[#allocation5 + $0x3db8] sm:$0xff]
        %v2392 = vld [vmem:[#allocation5 + $0x3dc0] sm:$0xff]
        %v2393 = vld [vmem:[#allocation5 + $0x3dc8] sm:$0xff]
        %v2394 = vld [vmem:[#allocation5 + $0x3dd0] sm:$0xff]
        %v2395 = vld [vmem:[#allocation5 + $0x3dd8] sm:$0xff]
        %v2396 = vld [vmem:[#allocation5 + $0x3de0] sm:$0xff]
        %v2397 = vld [vmem:[#allocation5 + $0x3de8] sm:$0xff]
        %v2398 = vld [vmem:[#allocation5 + $0x3df0] sm:$0xff]
        %v2399 = vld [vmem:[#allocation5 + $0x3df8] sm:$0xff]
        %v2400 = vld [vmem:[#allocation5 + $0x3e00] sm:$0xff]
        %v2401 = vld [vmem:[#allocation5 + $0x3e08] sm:$0xff]
        %v2402 = vld [vmem:[#allocation5 + $0x3e10] sm:$0xff]
        %v2403 = vld [vmem:[#allocation5 + $0x3e18] sm:$0xff]
        %v2404 = vld [vmem:[#allocation5 + $0x3e20] sm:$0xff]
        %v2405 = vld [vmem:[#allocation5 + $0x3e28] sm:$0xff]
        %v2406 = vld [vmem:[#allocation5 + $0x3e30] sm:$0xff]
        %v2407 = vld [vmem:[#allocation5 + $0x3e38] sm:$0xff]
        %v2408 = vld [vmem:[#allocation5 + $0x3e40] sm:$0xff]
        %v2409 = vld [vmem:[#allocation5 + $0x3e48] sm:$0xff]
        %v2410 = vld [vmem:[#allocation5 + $0x3e50] sm:$0xff]
        %v2411 = vld [vmem:[#allocation5 + $0x3e58] sm:$0xff]
        %v2412 = vld [vmem:[#allocation5 + $0x3e60] sm:$0xff]
        %v2413 = vld [vmem:[#allocation5 + $0x3e68] sm:$0xff]
        %v2414 = vld [vmem:[#allocation5 + $0x3e70] sm:$0xff]
        %v2415 = vld [vmem:[#allocation5 + $0x3e78] sm:$0xff]
        %v2416 = vld [vmem:[#allocation5 + $0x3e80] sm:$0xff]
        %v2417 = vld [vmem:[#allocation5 + $0x3e88] sm:$0xff]
        %v2418 = vld [vmem:[#allocation5 + $0x3e90] sm:$0xff]
        %v2419 = vld [vmem:[#allocation5 + $0x3e98] sm:$0xff]
        %v2420 = vld [vmem:[#allocation5 + $0x3ea0] sm:$0xff]
        %v2421 = vld [vmem:[#allocation5 + $0x3ea8] sm:$0xff]
        %v2422 = vld [vmem:[#allocation5 + $0x3eb0] sm:$0xff]
        %v2423 = vld [vmem:[#allocation5 + $0x3eb8] sm:$0xff]
        %v2424 = vld [vmem:[#allocation5 + $0x3ec0] sm:$0xff]
        %v2425 = vld [vmem:[#allocation5 + $0x3ec8] sm:$0xff]
        %v2426 = vld [vmem:[#allocation5 + $0x3ed0] sm:$0xff]
        %v2427 = vld [vmem:[#allocation5 + $0x3ed8] sm:$0xff]
        %v2428 = vld [vmem:[#allocation5 + $0x3ee0] sm:$0xff]
        %v2429 = vld [vmem:[#allocation5 + $0x3ee8] sm:$0xff]
        %v2430 = vld [vmem:[#allocation5 + $0x3ef0] sm:$0xff]
        %v2431 = vld [vmem:[#allocation5 + $0x3ef8] sm:$0xff]
        %v2432 = vld [vmem:[#allocation5 + $0x3f00] sm:$0xff]
        %v2433 = vld [vmem:[#allocation5 + $0x3f08] sm:$0xff]
        %v2434 = vld [vmem:[#allocation5 + $0x3f10] sm:$0xff]
        %v2435 = vld [vmem:[#allocation5 + $0x3f18] sm:$0xff]
        %v2436 = vld [vmem:[#allocation5 + $0x3f20] sm:$0xff]
        %v2437 = vld [vmem:[#allocation5 + $0x3f28] sm:$0xff]
        %v2438 = vld [vmem:[#allocation5 + $0x3f30] sm:$0xff]
        %v2439 = vld [vmem:[#allocation5 + $0x3f38] sm:$0xff]
        %v2440 = vld [vmem:[#allocation5 + $0x3f40] sm:$0xff]
        %v2441 = vld [vmem:[#allocation5 + $0x3f48] sm:$0xff]
        %v2442 = vld [vmem:[#allocation5 + $0x3f50] sm:$0xff]
        %v2443 = vld [vmem:[#allocation5 + $0x3f58] sm:$0xff]
        %v2444 = vld [vmem:[#allocation5 + $0x3f60] sm:$0xff]
        %v2445 = vld [vmem:[#allocation5 + $0x3f68] sm:$0xff]
        %v2446 = vld [vmem:[#allocation5 + $0x3f70] sm:$0xff]
        %v2447 = vld [vmem:[#allocation5 + $0x3f78] sm:$0xff]
        %v2448 = vld [vmem:[#allocation5 + $0x3f80] sm:$0xff]
        %v2449 = vld [vmem:[#allocation5 + $0x3f88] sm:$0xff]
        %v2450 = vld [vmem:[#allocation5 + $0x3f90] sm:$0xff]
        %v2451 = vld [vmem:[#allocation5 + $0x3f98] sm:$0xff]
        %v2452 = vld [vmem:[#allocation5 + $0x3fa0] sm:$0xff]
        %v2453 = vld [vmem:[#allocation5 + $0x3fa8] sm:$0xff]
        %v2454 = vld [vmem:[#allocation5 + $0x3fb0] sm:$0xff]
        %v2455 = vld [vmem:[#allocation5 + $0x3fb8] sm:$0xff]
        %v2456 = vld [vmem:[#allocation5 + $0x3fc0] sm:$0xff]
        %v2457 = vld [vmem:[#allocation5 + $0x3fc8] sm:$0xff]
        %v2458 = vld [vmem:[#allocation5 + $0x3fd0] sm:$0xff]
        %v2459 = vld [vmem:[#allocation5 + $0x3fd8] sm:$0xff]
        %v2460 = vld [vmem:[#allocation5 + $0x3fe0] sm:$0xff]
        %v2461 = vld [vmem:[#allocation5 + $0x3fe8] sm:$0xff]
        %v2462 = vld [vmem:[#allocation5 + $0x3ff0] sm:$0xff]
        %v2463 = vld [vmem:[#allocation5 + $0x3ff8] sm:$0xff]
        %v2464 = vld [vmem:[#allocation5 + $0x4000] sm:$0xff]
        %v2465 = vld [vmem:[#allocation5 + $0x4008] sm:$0xff]
        %v2466 = vld [vmem:[#allocation5 + $0x4010] sm:$0xff]
        %v2467 = vld [vmem:[#allocation5 + $0x4018] sm:$0xff]
        %v2468 = vld [vmem:[#allocation5 + $0x4020] sm:$0xff]
        %v2469 = vld [vmem:[#allocation5 + $0x4028] sm:$0xff]
        %v2470 = vld [vmem:[#allocation5 + $0x4030] sm:$0xff]
        %v2471 = vld [vmem:[#allocation5 + $0x4038] sm:$0xff]
        %v2472 = vld [vmem:[#allocation5 + $0x4040] sm:$0xff]
        %v2473 = vld [vmem:[#allocation5 + $0x4048] sm:$0xff]
        %v2474 = vld [vmem:[#allocation5 + $0x4050] sm:$0xff]
        %v2475 = vld [vmem:[#allocation5 + $0x4058] sm:$0xff]
        %v2476 = vld [vmem:[#allocation5 + $0x4060] sm:$0xff]
        %v2477 = vld [vmem:[#allocation5 + $0x4068] sm:$0xff]
        %v2478 = vld [vmem:[#allocation5 + $0x4070] sm:$0xff]
        %v2479 = vld [vmem:[#allocation5 + $0x4078] sm:$0xff]
        %v2480 = vld [vmem:[#allocation5 + $0x4080] sm:$0xff]
        %v2481 = vld [vmem:[#allocation5 + $0x4088] sm:$0xff]
        %v2482 = vld [vmem:[#allocation5 + $0x4090] sm:$0xff]
        %v2483 = vld [vmem:[#allocation5 + $0x4098] sm:$0xff]
        %v2484 = vld [vmem:[#allocation5 + $0x40a0] sm:$0xff]
        %v2485 = vld [vmem:[#allocation5 + $0x40a8] sm:$0xff]
        %v2486 = vld [vmem:[#allocation5 + $0x40b0] sm:$0xff]
        %v2487 = vld [vmem:[#allocation5 + $0x40b8] sm:$0xff]
        %v2488 = vld [vmem:[#allocation5 + $0x40c0] sm:$0xff]
        %v2489 = vld [vmem:[#allocation5 + $0x40c8] sm:$0xff]
        %v2490 = vld [vmem:[#allocation5 + $0x40d0] sm:$0xff]
        %v2491 = vld [vmem:[#allocation5 + $0x40d8] sm:$0xff]
        %v2492 = vld [vmem:[#allocation5 + $0x40e0] sm:$0xff]
        %v2493 = vld [vmem:[#allocation5 + $0x40e8] sm:$0xff]
        %v2494 = vld [vmem:[#allocation5 + $0x40f0] sm:$0xff]
        %v2495 = vld [vmem:[#allocation5 + $0x40f8] sm:$0xff]
        %v2496 = vld [vmem:[#allocation5 + $0x4100] sm:$0xff]
        %v2497 = vld [vmem:[#allocation5 + $0x4108] sm:$0xff]
        %v2498 = vld [vmem:[#allocation5 + $0x4110] sm:$0xff]
        %v2499 = vld [vmem:[#allocation5 + $0x4118] sm:$0xff]
        %v2500 = vld [vmem:[#allocation5 + $0x4120] sm:$0xff]
        %v2501 = vld [vmem:[#allocation5 + $0x4128] sm:$0xff]
        %v2502 = vld [vmem:[#allocation5 + $0x4130] sm:$0xff]
        %v2503 = vld [vmem:[#allocation5 + $0x4138] sm:$0xff]
        %v2504 = vld [vmem:[#allocation5 + $0x4140] sm:$0xff]
        %v2505 = vld [vmem:[#allocation5 + $0x4148] sm:$0xff]
        %v2506 = vld [vmem:[#allocation5 + $0x4150] sm:$0xff]
        %v2507 = vld [vmem:[#allocation5 + $0x4158] sm:$0xff]
        %v2508 = vld [vmem:[#allocation5 + $0x4160] sm:$0xff]
        %v2509 = vld [vmem:[#allocation5 + $0x4168] sm:$0xff]
        %v2510 = vld [vmem:[#allocation5 + $0x4170] sm:$0xff]
        %v2511 = vld [vmem:[#allocation5 + $0x4178] sm:$0xff]
        %v2512 = vld [vmem:[#allocation5 + $0x4180] sm:$0xff]
        %v2513 = vld [vmem:[#allocation5 + $0x4188] sm:$0xff]
        %v2514 = vld [vmem:[#allocation5 + $0x4190] sm:$0xff]
        %v2515 = vld [vmem:[#allocation5 + $0x4198] sm:$0xff]
        %v2516 = vld [vmem:[#allocation5 + $0x41a0] sm:$0xff]
        %v2517 = vld [vmem:[#allocation5 + $0x41a8] sm:$0xff]
        %v2518 = vld [vmem:[#allocation5 + $0x41b0] sm:$0xff]
        %v2519 = vld [vmem:[#allocation5 + $0x41b8] sm:$0xff]
        %v2520 = vld [vmem:[#allocation5 + $0x41c0] sm:$0xff]
        %v2521 = vld [vmem:[#allocation5 + $0x41c8] sm:$0xff]
        %v2522 = vld [vmem:[#allocation5 + $0x41d0] sm:$0xff]
        %v2523 = vld [vmem:[#allocation5 + $0x41d8] sm:$0xff]
        %v2524 = vld [vmem:[#allocation5 + $0x41e0] sm:$0xff]
        %v2525 = vld [vmem:[#allocation5 + $0x41e8] sm:$0xff]
        %v2526 = vld [vmem:[#allocation5 + $0x41f0] sm:$0xff]
        %v2527 = vld [vmem:[#allocation5 + $0x41f8] sm:$0xff]
        %v2528 = vld [vmem:[#allocation5 + $0x4200] sm:$0xff]
        %v2529 = vld [vmem:[#allocation5 + $0x4208] sm:$0xff]
        %v2530 = vld [vmem:[#allocation5 + $0x4210] sm:$0xff]
        %v2531 = vld [vmem:[#allocation5 + $0x4218] sm:$0xff]
        %v2532 = vld [vmem:[#allocation5 + $0x4220] sm:$0xff]
        %v2533 = vld [vmem:[#allocation5 + $0x4228] sm:$0xff]
        %v2534 = vld [vmem:[#allocation5 + $0x4230] sm:$0xff]
        %v2535 = vld [vmem:[#allocation5 + $0x4238] sm:$0xff]
        %v2536 = vld [vmem:[#allocation5 + $0x4240] sm:$0xff]
        %v2537 = vld [vmem:[#allocation5 + $0x4248] sm:$0xff]
        %v2538 = vld [vmem:[#allocation5 + $0x4250] sm:$0xff]
        %v2539 = vld [vmem:[#allocation5 + $0x4258] sm:$0xff]
        %v2540 = vld [vmem:[#allocation5 + $0x4260] sm:$0xff]
        %v2541 = vld [vmem:[#allocation5 + $0x4268] sm:$0xff]
        %v2542 = vld [vmem:[#allocation5 + $0x4270] sm:$0xff]
        %v2543 = vld [vmem:[#allocation5 + $0x4278] sm:$0xff]
        %v2544 = vld [vmem:[#allocation5 + $0x4280] sm:$0xff]
        %v2545 = vld [vmem:[#allocation5 + $0x4288] sm:$0xff]
        %v2546 = vld [vmem:[#allocation5 + $0x4290] sm:$0xff]
        %v2547 = vld [vmem:[#allocation5 + $0x4298] sm:$0xff]
        %v2548 = vld [vmem:[#allocation5 + $0x42a0] sm:$0xff]
        %v2549 = vld [vmem:[#allocation5 + $0x42a8] sm:$0xff]
        %v2550 = vld [vmem:[#allocation5 + $0x42b0] sm:$0xff]
        %v2551 = vld [vmem:[#allocation5 + $0x42b8] sm:$0xff]
        %v2552 = vld [vmem:[#allocation5 + $0x42c0] sm:$0xff]
        %v2553 = vld [vmem:[#allocation5 + $0x42c8] sm:$0xff]
        %v2554 = vld [vmem:[#allocation5 + $0x42d0] sm:$0xff]
        %v2555 = vld [vmem:[#allocation5 + $0x42d8] sm:$0xff]
        %v2556 = vld [vmem:[#allocation5 + $0x42e0] sm:$0xff]
        %v2557 = vld [vmem:[#allocation5 + $0x42e8] sm:$0xff]
        %v2558 = vld [vmem:[#allocation5 + $0x42f0] sm:$0xff]
        %v2559 = vld [vmem:[#allocation5 + $0x42f8] sm:$0xff]
        %v2560 = vld [vmem:[#allocation5 + $0x4300] sm:$0xff]
        %v2561 = vld [vmem:[#allocation5 + $0x4308] sm:$0xff]
        %v2562 = vld [vmem:[#allocation5 + $0x4310] sm:$0xff]
        %v2563 = vld [vmem:[#allocation5 + $0x4318] sm:$0xff]
        %v2564 = vld [vmem:[#allocation5 + $0x4320] sm:$0xff]
        %v2565 = vld [vmem:[#allocation5 + $0x4328] sm:$0xff]
        %v2566 = vld [vmem:[#allocation5 + $0x4330] sm:$0xff]
        %v2567 = vld [vmem:[#allocation5 + $0x4338] sm:$0xff]
        %v2568 = vld [vmem:[#allocation5 + $0x4340] sm:$0xff]
        %v2569 = vld [vmem:[#allocation5 + $0x4348] sm:$0xff]
        %v2570 = vld [vmem:[#allocation5 + $0x4350] sm:$0xff]
        %v2571 = vld [vmem:[#allocation5 + $0x4358] sm:$0xff]
        %v2572 = vld [vmem:[#allocation5 + $0x4360] sm:$0xff]
        %v2573 = vld [vmem:[#allocation5 + $0x4368] sm:$0xff]
        %v2574 = vld [vmem:[#allocation5 + $0x4370] sm:$0xff]
        %v2575 = vld [vmem:[#allocation5 + $0x4378] sm:$0xff]
        %v2576 = vld [vmem:[#allocation5 + $0x4380] sm:$0xff]
        %v2577 = vld [vmem:[#allocation5 + $0x4388] sm:$0xff]
        %v2578 = vld [vmem:[#allocation5 + $0x4390] sm:$0xff]
        %v2579 = vld [vmem:[#allocation5 + $0x4398] sm:$0xff]
        %v2580 = vld [vmem:[#allocation5 + $0x43a0] sm:$0xff]
        %v2581 = vld [vmem:[#allocation5 + $0x43a8] sm:$0xff]
        %v2582 = vld [vmem:[#allocation5 + $0x43b0] sm:$0xff]
        %v2583 = vld [vmem:[#allocation5 + $0x43b8] sm:$0xff]
        %v2584 = vld [vmem:[#allocation5 + $0x43c0] sm:$0xff]
        %v2585 = vld [vmem:[#allocation5 + $0x43c8] sm:$0xff]
        %v2586 = vld [vmem:[#allocation5 + $0x43d0] sm:$0xff]
        %v2587 = vld [vmem:[#allocation5 + $0x43d8] sm:$0xff]
        %v2588 = vld [vmem:[#allocation5 + $0x43e0] sm:$0xff]
        %v2589 = vld [vmem:[#allocation5 + $0x43e8] sm:$0xff]
        %v2590 = vld [vmem:[#allocation5 + $0x43f0] sm:$0xff]
        %v2591 = vld [vmem:[#allocation5 + $0x43f8] sm:$0xff]
        %v2592 = vld [vmem:[#allocation5 + $0x4400] sm:$0xff]
        %v2593 = vld [vmem:[#allocation5 + $0x4408] sm:$0xff]
        %v2594 = vld [vmem:[#allocation5 + $0x4410] sm:$0xff]
        %v2595 = vld [vmem:[#allocation5 + $0x4418] sm:$0xff]
        %v2596 = vld [vmem:[#allocation5 + $0x4420] sm:$0xff]
        %v2597 = vld [vmem:[#allocation5 + $0x4428] sm:$0xff]
        %v2598 = vld [vmem:[#allocation5 + $0x4430] sm:$0xff]
        %v2599 = vld [vmem:[#allocation5 + $0x4438] sm:$0xff]
        %v2600 = vld [vmem:[#allocation5 + $0x4440] sm:$0xff]
        %v2601 = vld [vmem:[#allocation5 + $0x4448] sm:$0xff]
        %v2602 = vld [vmem:[#allocation5 + $0x4450] sm:$0xff]
        %v2603 = vld [vmem:[#allocation5 + $0x4458] sm:$0xff]
        %v2604 = vld [vmem:[#allocation5 + $0x4460] sm:$0xff]
        %v2605 = vld [vmem:[#allocation5 + $0x4468] sm:$0xff]
        %v2606 = vld [vmem:[#allocation5 + $0x4470] sm:$0xff]
        %v2607 = vld [vmem:[#allocation5 + $0x4478] sm:$0xff]
        %v2608 = vld [vmem:[#allocation5 + $0x4480] sm:$0xff]
        %v2609 = vld [vmem:[#allocation5 + $0x4488] sm:$0xff]
        %v2610 = vld [vmem:[#allocation5 + $0x4490] sm:$0xff]
        %v2611 = vld [vmem:[#allocation5 + $0x4498] sm:$0xff]
        %v2612 = vld [vmem:[#allocation5 + $0x44a0] sm:$0xff]
        %v2613 = vld [vmem:[#allocation5 + $0x44a8] sm:$0xff]
        %v2614 = vld [vmem:[#allocation5 + $0x44b0] sm:$0xff]
        %v2615 = vld [vmem:[#allocation5 + $0x44b8] sm:$0xff]
        %v2616 = vld [vmem:[#allocation5 + $0x44c0] sm:$0xff]
        %v2617 = vld [vmem:[#allocation5 + $0x44c8] sm:$0xff]
        %v2618 = vld [vmem:[#allocation5 + $0x44d0] sm:$0xff]
        %v2619 = vld [vmem:[#allocation5 + $0x44d8] sm:$0xff]
        %v2620 = vld [vmem:[#allocation5 + $0x44e0] sm:$0xff]
        %v2621 = vld [vmem:[#allocation5 + $0x44e8] sm:$0xff]
        %v2622 = vld [vmem:[#allocation5 + $0x44f0] sm:$0xff]
        %v2623 = vld [vmem:[#allocation5 + $0x44f8] sm:$0xff]
        %v2624 = vld [vmem:[#allocation5 + $0x4500] sm:$0xff]
        %v2625 = vld [vmem:[#allocation5 + $0x4508] sm:$0xff]
        %v2626 = vld [vmem:[#allocation5 + $0x4510] sm:$0xff]
        %v2627 = vld [vmem:[#allocation5 + $0x4518] sm:$0xff]
        %v2628 = vld [vmem:[#allocation5 + $0x4520] sm:$0xff]
        %v2629 = vld [vmem:[#allocation5 + $0x4528] sm:$0xff]
        %v2630 = vld [vmem:[#allocation5 + $0x4530] sm:$0xff]
        %v2631 = vld [vmem:[#allocation5 + $0x4538] sm:$0xff]
        %v2632 = vld [vmem:[#allocation5 + $0x4540] sm:$0xff]
        %v2633 = vld [vmem:[#allocation5 + $0x4548] sm:$0xff]
        %v2634 = vld [vmem:[#allocation5 + $0x4550] sm:$0xff]
        %v2635 = vld [vmem:[#allocation5 + $0x4558] sm:$0xff]
        %v2636 = vld [vmem:[#allocation5 + $0x4560] sm:$0xff]
        %v2637 = vld [vmem:[#allocation5 + $0x4568] sm:$0xff]
        %v2638 = vld [vmem:[#allocation5 + $0x4570] sm:$0xff]
        %v2639 = vld [vmem:[#allocation5 + $0x4578] sm:$0xff]
        %v2640 = vld [vmem:[#allocation5 + $0x4580] sm:$0xff]
        %v2641 = vld [vmem:[#allocation5 + $0x4588] sm:$0xff]
        %v2642 = vld [vmem:[#allocation5 + $0x4590] sm:$0xff]
        %v2643 = vld [vmem:[#allocation5 + $0x4598] sm:$0xff]
        %v2644 = vld [vmem:[#allocation5 + $0x45a0] sm:$0xff]
        %v2645 = vld [vmem:[#allocation5 + $0x45a8] sm:$0xff]
        %v2646 = vld [vmem:[#allocation5 + $0x45b0] sm:$0xff]
        %v2647 = vld [vmem:[#allocation5 + $0x45b8] sm:$0xff]
        %v2648 = vld [vmem:[#allocation5 + $0x45c0] sm:$0xff]
        %v2649 = vld [vmem:[#allocation5 + $0x45c8] sm:$0xff]
        %v2650 = vld [vmem:[#allocation5 + $0x45d0] sm:$0xff]
        %v2651 = vld [vmem:[#allocation5 + $0x45d8] sm:$0xff]
        %v2652 = vld [vmem:[#allocation5 + $0x45e0] sm:$0xff]
        %v2653 = vld [vmem:[#allocation5 + $0x45e8] sm:$0xff]
        %v2654 = vld [vmem:[#allocation5 + $0x45f0] sm:$0xff]
        %v2655 = vld [vmem:[#allocation5 + $0x45f8] sm:$0xff]
        %v2656 = vld [vmem:[#allocation5 + $0x4600] sm:$0xff]
        %v2657 = vld [vmem:[#allocation5 + $0x4608] sm:$0xff]
        %v2658 = vld [vmem:[#allocation5 + $0x4610] sm:$0xff]
        %v2659 = vld [vmem:[#allocation5 + $0x4618] sm:$0xff]
        %v2660 = vld [vmem:[#allocation5 + $0x4620] sm:$0xff]
        %v2661 = vld [vmem:[#allocation5 + $0x4628] sm:$0xff]
        %v2662 = vld [vmem:[#allocation5 + $0x4630] sm:$0xff]
        %v2663 = vld [vmem:[#allocation5 + $0x4638] sm:$0xff]
        %v2664 = vld [vmem:[#allocation5 + $0x4640] sm:$0xff]
        %v2665 = vld [vmem:[#allocation5 + $0x4648] sm:$0xff]
        %v2666 = vld [vmem:[#allocation5 + $0x4650] sm:$0xff]
        %v2667 = vld [vmem:[#allocation5 + $0x4658] sm:$0xff]
        %v2668 = vld [vmem:[#allocation5 + $0x4660] sm:$0xff]
        %v2669 = vld [vmem:[#allocation5 + $0x4668] sm:$0xff]
        %v2670 = vld [vmem:[#allocation5 + $0x4670] sm:$0xff]
        %v2671 = vld [vmem:[#allocation5 + $0x4678] sm:$0xff]
        %v2672 = vld [vmem:[#allocation5 + $0x4680] sm:$0xff]
        %v2673 = vld [vmem:[#allocation5 + $0x4688] sm:$0xff]
        %v2674 = vld [vmem:[#allocation5 + $0x4690] sm:$0xff]
        %v2675 = vld [vmem:[#allocation5 + $0x4698] sm:$0xff]
        %v2676 = vld [vmem:[#allocation5 + $0x46a0] sm:$0xff]
        %v2677 = vld [vmem:[#allocation5 + $0x46a8] sm:$0xff]
        %v2678 = vld [vmem:[#allocation5 + $0x46b0] sm:$0xff]
        %v2679 = vld [vmem:[#allocation5 + $0x46b8] sm:$0xff]
        %v2680 = vld [vmem:[#allocation5 + $0x46c0] sm:$0xff]
        %v2681 = vld [vmem:[#allocation5 + $0x46c8] sm:$0xff]
        %v2682 = vld [vmem:[#allocation5 + $0x46d0] sm:$0xff]
        %v2683 = vld [vmem:[#allocation5 + $0x46d8] sm:$0xff]
        %v2684 = vld [vmem:[#allocation5 + $0x46e0] sm:$0xff]
        %v2685 = vld [vmem:[#allocation5 + $0x46e8] sm:$0xff]
        %v2686 = vld [vmem:[#allocation5 + $0x46f0] sm:$0xff]
        %v2687 = vld [vmem:[#allocation5 + $0x46f8] sm:$0xff]
        %v2688 = vld [vmem:[#allocation5 + $0x4700] sm:$0xff]
        %v2689 = vld [vmem:[#allocation5 + $0x4708] sm:$0xff]
        %v2690 = vld [vmem:[#allocation5 + $0x4710] sm:$0xff]
        %v2691 = vld [vmem:[#allocation5 + $0x4718] sm:$0xff]
        %v2692 = vld [vmem:[#allocation5 + $0x4720] sm:$0xff]
        %v2693 = vld [vmem:[#allocation5 + $0x4728] sm:$0xff]
        %v2694 = vld [vmem:[#allocation5 + $0x4730] sm:$0xff]
        %v2695 = vld [vmem:[#allocation5 + $0x4738] sm:$0xff]
        %v2696 = vld [vmem:[#allocation5 + $0x4740] sm:$0xff]
        %v2697 = vld [vmem:[#allocation5 + $0x4748] sm:$0xff]
        %v2698 = vld [vmem:[#allocation5 + $0x4750] sm:$0xff]
        %v2699 = vld [vmem:[#allocation5 + $0x4758] sm:$0xff]
        %v2700 = vld [vmem:[#allocation5 + $0x4760] sm:$0xff]
        %v2701 = vld [vmem:[#allocation5 + $0x4768] sm:$0xff]
        %v2702 = vld [vmem:[#allocation5 + $0x4770] sm:$0xff]
        %v2703 = vld [vmem:[#allocation5 + $0x4778] sm:$0xff]
        %v2704 = vld [vmem:[#allocation5 + $0x4780] sm:$0xff]
        %v2705 = vld [vmem:[#allocation5 + $0x4788] sm:$0xff]
        %v2706 = vld [vmem:[#allocation5 + $0x4790] sm:$0xff]
        %v2707 = vld [vmem:[#allocation5 + $0x4798] sm:$0xff]
        %v2708 = vld [vmem:[#allocation5 + $0x47a0] sm:$0xff]
        %v2709 = vld [vmem:[#allocation5 + $0x47a8] sm:$0xff]
        %v2710 = vld [vmem:[#allocation5 + $0x47b0] sm:$0xff]
        %v2711 = vld [vmem:[#allocation5 + $0x47b8] sm:$0xff]
        %v2712 = vld [vmem:[#allocation5 + $0x47c0] sm:$0xff]
        %v2713 = vld [vmem:[#allocation5 + $0x47c8] sm:$0xff]
        %v2714 = vld [vmem:[#allocation5 + $0x47d0] sm:$0xff]
        %v2715 = vld [vmem:[#allocation5 + $0x47d8] sm:$0xff]
        %v2716 = vld [vmem:[#allocation5 + $0x47e0] sm:$0xff]
        %v2717 = vld [vmem:[#allocation5 + $0x47e8] sm:$0xff]
        %v2718 = vld [vmem:[#allocation5 + $0x47f0] sm:$0xff]
        %v2719 = vld [vmem:[#allocation5 + $0x47f8] sm:$0xff]
        %v2720 = vld [vmem:[#allocation5 + $0x4800] sm:$0xff]
        %v2721 = vld [vmem:[#allocation5 + $0x4808] sm:$0xff]
        %v2722 = vld [vmem:[#allocation5 + $0x4810] sm:$0xff]
        %v2723 = vld [vmem:[#allocation5 + $0x4818] sm:$0xff]
        %v2724 = vld [vmem:[#allocation5 + $0x4820] sm:$0xff]
        %v2725 = vld [vmem:[#allocation5 + $0x4828] sm:$0xff]
        %v2726 = vld [vmem:[#allocation5 + $0x4830] sm:$0xff]
        %v2727 = vld [vmem:[#allocation5 + $0x4838] sm:$0xff]
        %v2728 = vld [vmem:[#allocation5 + $0x4840] sm:$0xff]
        %v2729 = vld [vmem:[#allocation5 + $0x4848] sm:$0xff]
        %v2730 = vld [vmem:[#allocation5 + $0x4850] sm:$0xff]
        %v2731 = vld [vmem:[#allocation5 + $0x4858] sm:$0xff]
        %v2732 = vld [vmem:[#allocation5 + $0x4860] sm:$0xff]
        %v2733 = vld [vmem:[#allocation5 + $0x4868] sm:$0xff]
        %v2734 = vld [vmem:[#allocation5 + $0x4870] sm:$0xff]
        %v2735 = vld [vmem:[#allocation5 + $0x4878] sm:$0xff]
        %v2736 = vld [vmem:[#allocation5 + $0x4880] sm:$0xff]
        %v2737 = vld [vmem:[#allocation5 + $0x4888] sm:$0xff]
        %v2738 = vld [vmem:[#allocation5 + $0x4890] sm:$0xff]
        %v2739 = vld [vmem:[#allocation5 + $0x4898] sm:$0xff]
        %v2740 = vld [vmem:[#allocation5 + $0x48a0] sm:$0xff]
        %v2741 = vld [vmem:[#allocation5 + $0x48a8] sm:$0xff]
        %v2742 = vld [vmem:[#allocation5 + $0x48b0] sm:$0xff]
        %v2743 = vld [vmem:[#allocation5 + $0x48b8] sm:$0xff]
        %v2744 = vld [vmem:[#allocation5 + $0x48c0] sm:$0xff]
        %v2745 = vld [vmem:[#allocation5 + $0x48c8] sm:$0xff]
        %v2746 = vld [vmem:[#allocation5 + $0x48d0] sm:$0xff]
        %v2747 = vld [vmem:[#allocation5 + $0x48d8] sm:$0xff]
        %v2748 = vld [vmem:[#allocation5 + $0x48e0] sm:$0xff]
        %v2749 = vld [vmem:[#allocation5 + $0x48e8] sm:$0xff]
        %v2750 = vld [vmem:[#allocation5 + $0x48f0] sm:$0xff]
        %v2751 = vld [vmem:[#allocation5 + $0x48f8] sm:$0xff]
        %v2752 = vld [vmem:[#allocation5 + $0x4900] sm:$0xff]
        %v2753 = vld [vmem:[#allocation5 + $0x4908] sm:$0xff]
        %v2754 = vld [vmem:[#allocation5 + $0x4910] sm:$0xff]
        %v2755 = vld [vmem:[#allocation5 + $0x4918] sm:$0xff]
        %v2756 = vld [vmem:[#allocation5 + $0x4920] sm:$0xff]
        %v2757 = vld [vmem:[#allocation5 + $0x4928] sm:$0xff]
        %v2758 = vld [vmem:[#allocation5 + $0x4930] sm:$0xff]
        %v2759 = vld [vmem:[#allocation5 + $0x4938] sm:$0xff]
        %v2760 = vld [vmem:[#allocation5 + $0x4940] sm:$0xff]
        %v2761 = vld [vmem:[#allocation5 + $0x4948] sm:$0xff]
        %v2762 = vld [vmem:[#allocation5 + $0x4950] sm:$0xff]
        %v2763 = vld [vmem:[#allocation5 + $0x4958] sm:$0xff]
        %v2764 = vld [vmem:[#allocation5 + $0x4960] sm:$0xff]
        %v2765 = vld [vmem:[#allocation5 + $0x4968] sm:$0xff]
        %v2766 = vld [vmem:[#allocation5 + $0x4970] sm:$0xff]
        %v2767 = vld [vmem:[#allocation5 + $0x4978] sm:$0xff]
        %v2768 = vld [vmem:[#allocation5 + $0x4980] sm:$0xff]
        %v2769 = vld [vmem:[#allocation5 + $0x4988] sm:$0xff]
        %v2770 = vld [vmem:[#allocation5 + $0x4990] sm:$0xff]
        %v2771 = vld [vmem:[#allocation5 + $0x4998] sm:$0xff]
        %v2772 = vld [vmem:[#allocation5 + $0x49a0] sm:$0xff]
        %v2773 = vld [vmem:[#allocation5 + $0x49a8] sm:$0xff]
        %v2774 = vld [vmem:[#allocation5 + $0x49b0] sm:$0xff]
        %v2775 = vld [vmem:[#allocation5 + $0x49b8] sm:$0xff]
        %v2776 = vld [vmem:[#allocation5 + $0x49c0] sm:$0xff]
        %v2777 = vld [vmem:[#allocation5 + $0x49c8] sm:$0xff]
        %v2778 = vld [vmem:[#allocation5 + $0x49d0] sm:$0xff]
        %v2779 = vld [vmem:[#allocation5 + $0x49d8] sm:$0xff]
        %v2780 = vld [vmem:[#allocation5 + $0x49e0] sm:$0xff]
        %v2781 = vld [vmem:[#allocation5 + $0x49e8] sm:$0xff]
        %v2782 = vld [vmem:[#allocation5 + $0x49f0] sm:$0xff]
        %v2783 = vld [vmem:[#allocation5 + $0x49f8] sm:$0xff]
        %v2784 = vld [vmem:[#allocation5 + $0x4a00] sm:$0xff]
        %v2785 = vld [vmem:[#allocation5 + $0x4a08] sm:$0xff]
        %v2786 = vld [vmem:[#allocation5 + $0x4a10] sm:$0xff]
        %v2787 = vld [vmem:[#allocation5 + $0x4a18] sm:$0xff]
        %v2788 = vld [vmem:[#allocation5 + $0x4a20] sm:$0xff]
        %v2789 = vld [vmem:[#allocation5 + $0x4a28] sm:$0xff]
        %v2790 = vld [vmem:[#allocation5 + $0x4a30] sm:$0xff]
        %v2791 = vld [vmem:[#allocation5 + $0x4a38] sm:$0xff]
        %v2792 = vld [vmem:[#allocation5 + $0x4a40] sm:$0xff]
        %v2793 = vld [vmem:[#allocation5 + $0x4a48] sm:$0xff]
        %v2794 = vld [vmem:[#allocation5 + $0x4a50] sm:$0xff]
        %v2795 = vld [vmem:[#allocation5 + $0x4a58] sm:$0xff]
        %v2796 = vld [vmem:[#allocation5 + $0x4a60] sm:$0xff]
        %v2797 = vld [vmem:[#allocation5 + $0x4a68] sm:$0xff]
        %v2798 = vld [vmem:[#allocation5 + $0x4a70] sm:$0xff]
        %v2799 = vld [vmem:[#allocation5 + $0x4a78] sm:$0xff]
        %v2800 = vld [vmem:[#allocation5 + $0x4a80] sm:$0xff]
        %v2801 = vld [vmem:[#allocation5 + $0x4a88] sm:$0xff]
        %v2802 = vld [vmem:[#allocation5 + $0x4a90] sm:$0xff]
        %v2803 = vld [vmem:[#allocation5 + $0x4a98] sm:$0xff]
        %v2804 = vld [vmem:[#allocation5 + $0x4aa0] sm:$0xff]
        %v2805 = vld [vmem:[#allocation5 + $0x4aa8] sm:$0xff]
        %v2806 = vld [vmem:[#allocation5 + $0x4ab0] sm:$0xff]
        %v2807 = vld [vmem:[#allocation5 + $0x4ab8] sm:$0xff]
        %v2808 = vld [vmem:[#allocation5 + $0x4ac0] sm:$0xff]
        %v2809 = vld [vmem:[#allocation5 + $0x4ac8] sm:$0xff]
        %v2810 = vld [vmem:[#allocation5 + $0x4ad0] sm:$0xff]
        %v2811 = vld [vmem:[#allocation5 + $0x4ad8] sm:$0xff]
        %v2812 = vld [vmem:[#allocation5 + $0x4ae0] sm:$0xff]
        %v2813 = vld [vmem:[#allocation5 + $0x4ae8] sm:$0xff]
        %v2814 = vld [vmem:[#allocation5 + $0x4af0] sm:$0xff]
        %v2815 = vld [vmem:[#allocation5 + $0x4af8] sm:$0xff]
        %v2816 = vld [vmem:[#allocation5 + $0x4b00] sm:$0xff]
        %v2817 = vld [vmem:[#allocation5 + $0x4b08] sm:$0xff]
        %v2818 = vld [vmem:[#allocation5 + $0x4b10] sm:$0xff]
        %v2819 = vld [vmem:[#allocation5 + $0x4b18] sm:$0xff]
        %v2820 = vld [vmem:[#allocation5 + $0x4b20] sm:$0xff]
        %v2821 = vld [vmem:[#allocation5 + $0x4b28] sm:$0xff]
        %v2822 = vld [vmem:[#allocation5 + $0x4b30] sm:$0xff]
        %v2823 = vld [vmem:[#allocation5 + $0x4b38] sm:$0xff]
        %v2824 = vld [vmem:[#allocation5 + $0x4b40] sm:$0xff]
        %v2825 = vld [vmem:[#allocation5 + $0x4b48] sm:$0xff]
        %v2826 = vld [vmem:[#allocation5 + $0x4b50] sm:$0xff]
        %v2827 = vld [vmem:[#allocation5 + $0x4b58] sm:$0xff]
        %v2828 = vld [vmem:[#allocation5 + $0x4b60] sm:$0xff]
        %v2829 = vld [vmem:[#allocation5 + $0x4b68] sm:$0xff]
        %v2830 = vld [vmem:[#allocation5 + $0x4b70] sm:$0xff]
        %v2831 = vld [vmem:[#allocation5 + $0x4b78] sm:$0xff]
        %v2832 = vld [vmem:[#allocation5 + $0x4b80] sm:$0xff]
        %v2833 = vld [vmem:[#allocation5 + $0x4b88] sm:$0xff]
        %v2834 = vld [vmem:[#allocation5 + $0x4b90] sm:$0xff]
        %v2835 = vld [vmem:[#allocation5 + $0x4b98] sm:$0xff]
        %v2836 = vld [vmem:[#allocation5 + $0x4ba0] sm:$0xff]
        %v2837 = vld [vmem:[#allocation5 + $0x4ba8] sm:$0xff]
        %v2838 = vld [vmem:[#allocation5 + $0x4bb0] sm:$0xff]
        %v2839 = vld [vmem:[#allocation5 + $0x4bb8] sm:$0xff]
        %v2840 = vld [vmem:[#allocation5 + $0x4bc0] sm:$0xff]
        %v2841 = vld [vmem:[#allocation5 + $0x4bc8] sm:$0xff]
        %v2842 = vld [vmem:[#allocation5 + $0x4bd0] sm:$0xff]
        %v2843 = vld [vmem:[#allocation5 + $0x4bd8] sm:$0xff]
        %v2844 = vld [vmem:[#allocation5 + $0x4be0] sm:$0xff]
        %v2845 = vld [vmem:[#allocation5 + $0x4be8] sm:$0xff]
        %v2846 = vld [vmem:[#allocation5 + $0x4bf0] sm:$0xff]
        %v2847 = vld [vmem:[#allocation5 + $0x4bf8] sm:$0xff]
        %v2848 = vld [vmem:[#allocation5 + $0x4c00] sm:$0xff]
        %v2849 = vld [vmem:[#allocation5 + $0x4c08] sm:$0xff]
        %v2850 = vld [vmem:[#allocation5 + $0x4c10] sm:$0xff]
        %v2851 = vld [vmem:[#allocation5 + $0x4c18] sm:$0xff]
        %v2852 = vld [vmem:[#allocation5 + $0x4c20] sm:$0xff]
        %v2853 = vld [vmem:[#allocation5 + $0x4c28] sm:$0xff]
        %v2854 = vld [vmem:[#allocation5 + $0x4c30] sm:$0xff]
        %v2855 = vld [vmem:[#allocation5 + $0x4c38] sm:$0xff]
        %v2856 = vld [vmem:[#allocation5 + $0x4c40] sm:$0xff]
        %v2857 = vld [vmem:[#allocation5 + $0x4c48] sm:$0xff]
        %v2858 = vld [vmem:[#allocation5 + $0x4c50] sm:$0xff]
        %v2859 = vld [vmem:[#allocation5 + $0x4c58] sm:$0xff]
        %v2860 = vld [vmem:[#allocation5 + $0x4c60] sm:$0xff]
        %v2861 = vld [vmem:[#allocation5 + $0x4c68] sm:$0xff]
        %v2862 = vld [vmem:[#allocation5 + $0x4c70] sm:$0xff]
        %v2863 = vld [vmem:[#allocation5 + $0x4c78] sm:$0xff]
        %v2864 = vld [vmem:[#allocation5 + $0x4c80] sm:$0xff]
        %v2865 = vld [vmem:[#allocation5 + $0x4c88] sm:$0xff]
        %v2866 = vld [vmem:[#allocation5 + $0x4c90] sm:$0xff]
        %v2867 = vld [vmem:[#allocation5 + $0x4c98] sm:$0xff]
        %v2868 = vld [vmem:[#allocation5 + $0x4ca0] sm:$0xff]
        %v2869 = vld [vmem:[#allocation5 + $0x4ca8] sm:$0xff]
        %v2870 = vld [vmem:[#allocation5 + $0x4cb0] sm:$0xff]
        %v2871 = vld [vmem:[#allocation5 + $0x4cb8] sm:$0xff]
        %v2872 = vld [vmem:[#allocation5 + $0x4cc0] sm:$0xff]
        %v2873 = vld [vmem:[#allocation5 + $0x4cc8] sm:$0xff]
        %v2874 = vld [vmem:[#allocation5 + $0x4cd0] sm:$0xff]
        %v2875 = vld [vmem:[#allocation5 + $0x4cd8] sm:$0xff]
        %v2876 = vld [vmem:[#allocation5 + $0x4ce0] sm:$0xff]
        %v2877 = vld [vmem:[#allocation5 + $0x4ce8] sm:$0xff]
        %v2878 = vld [vmem:[#allocation5 + $0x4cf0] sm:$0xff]
        %v2879 = vld [vmem:[#allocation5 + $0x4cf8] sm:$0xff]
        %v2880 = vld [vmem:[#allocation5 + $0x4d00] sm:$0xff]
        %v2881 = vld [vmem:[#allocation5 + $0x4d08] sm:$0xff]
        %v2882 = vld [vmem:[#allocation5 + $0x4d10] sm:$0xff]
        %v2883 = vld [vmem:[#allocation5 + $0x4d18] sm:$0xff]
        %v2884 = vld [vmem:[#allocation5 + $0x4d20] sm:$0xff]
        %v2885 = vld [vmem:[#allocation5 + $0x4d28] sm:$0xff]
        %v2886 = vld [vmem:[#allocation5 + $0x4d30] sm:$0xff]
        %v2887 = vld [vmem:[#allocation5 + $0x4d38] sm:$0xff]
        %v2888 = vld [vmem:[#allocation5 + $0x4d40] sm:$0xff]
        %v2889 = vld [vmem:[#allocation5 + $0x4d48] sm:$0xff]
        %v2890 = vld [vmem:[#allocation5 + $0x4d50] sm:$0xff]
        %v2891 = vld [vmem:[#allocation5 + $0x4d58] sm:$0xff]
        %v2892 = vld [vmem:[#allocation5 + $0x4d60] sm:$0xff]
        %v2893 = vld [vmem:[#allocation5 + $0x4d68] sm:$0xff]
        %v2894 = vld [vmem:[#allocation5 + $0x4d70] sm:$0xff]
        %v2895 = vld [vmem:[#allocation5 + $0x4d78] sm:$0xff]
        %v2896 = vld [vmem:[#allocation5 + $0x4d80] sm:$0xff]
        %v2897 = vld [vmem:[#allocation5 + $0x4d88] sm:$0xff]
        %v2898 = vld [vmem:[#allocation5 + $0x4d90] sm:$0xff]
        %v2899 = vld [vmem:[#allocation5 + $0x4d98] sm:$0xff]
        %v2900 = vld [vmem:[#allocation5 + $0x4da0] sm:$0xff]
        %v2901 = vld [vmem:[#allocation5 + $0x4da8] sm:$0xff]
        %v2902 = vld [vmem:[#allocation5 + $0x4db0] sm:$0xff]
        %v2903 = vld [vmem:[#allocation5 + $0x4db8] sm:$0xff]
        %v2904 = vld [vmem:[#allocation5 + $0x4dc0] sm:$0xff]
        %v2905 = vld [vmem:[#allocation5 + $0x4dc8] sm:$0xff]
        %v2906 = vld [vmem:[#allocation5 + $0x4dd0] sm:$0xff]
        %v2907 = vld [vmem:[#allocation5 + $0x4dd8] sm:$0xff]
        %v2908 = vld [vmem:[#allocation5 + $0x4de0] sm:$0xff]
        %v2909 = vld [vmem:[#allocation5 + $0x4de8] sm:$0xff]
        %v2910 = vld [vmem:[#allocation5 + $0x4df0] sm:$0xff]
        %v2911 = vld [vmem:[#allocation5 + $0x4df8] sm:$0xff]
        %v2912 = vld [vmem:[#allocation5 + $0x4e00] sm:$0xff]
        %v2913 = vld [vmem:[#allocation5 + $0x4e08] sm:$0xff]
        %v2914 = vld [vmem:[#allocation5 + $0x4e10] sm:$0xff]
        %v2915 = vld [vmem:[#allocation5 + $0x4e18] sm:$0xff]
        %v2916 = vld [vmem:[#allocation5 + $0x4e20] sm:$0xff]
        %v2917 = vld [vmem:[#allocation5 + $0x4e28] sm:$0xff]
        %v2918 = vld [vmem:[#allocation5 + $0x4e30] sm:$0xff]
        %v2919 = vld [vmem:[#allocation5 + $0x4e38] sm:$0xff]
        %v2920 = vld [vmem:[#allocation5 + $0x4e40] sm:$0xff]
        %v2921 = vld [vmem:[#allocation5 + $0x4e48] sm:$0xff]
        %v2922 = vld [vmem:[#allocation5 + $0x4e50] sm:$0xff]
        %v2923 = vld [vmem:[#allocation5 + $0x4e58] sm:$0xff]
        %v2924 = vld [vmem:[#allocation5 + $0x4e60] sm:$0xff]
        %v2925 = vld [vmem:[#allocation5 + $0x4e68] sm:$0xff]
        %v2926 = vld [vmem:[#allocation5 + $0x4e70] sm:$0xff]
        %v2927 = vld [vmem:[#allocation5 + $0x4e78] sm:$0xff]
        %v2928 = vld [vmem:[#allocation5 + $0x4e80] sm:$0xff]
        %v2929 = vld [vmem:[#allocation5 + $0x4e88] sm:$0xff]
        %v2930 = vld [vmem:[#allocation5 + $0x4e90] sm:$0xff]
        %v2931 = vld [vmem:[#allocation5 + $0x4e98] sm:$0xff]
        %v2932 = vld [vmem:[#allocation5 + $0x4ea0] sm:$0xff]
        %v2933 = vld [vmem:[#allocation5 + $0x4ea8] sm:$0xff]
        %v2934 = vld [vmem:[#allocation5 + $0x4eb0] sm:$0xff]
        %v2935 = vld [vmem:[#allocation5 + $0x4eb8] sm:$0xff]
        %v2936 = vld [vmem:[#allocation5 + $0x4ec0] sm:$0xff]
        %v2937 = vld [vmem:[#allocation5 + $0x4ec8] sm:$0xff]
        %v2938 = vld [vmem:[#allocation5 + $0x4ed0] sm:$0xff]
        %v2939 = vld [vmem:[#allocation5 + $0x4ed8] sm:$0xff]
        %v2940 = vld [vmem:[#allocation5 + $0x4ee0] sm:$0xff]
        %v2941 = vld [vmem:[#allocation5 + $0x4ee8] sm:$0xff]
        %v2942 = vld [vmem:[#allocation5 + $0x4ef0] sm:$0xff]
        %v2943 = vld [vmem:[#allocation5 + $0x4ef8] sm:$0xff]
        %v2944 = vld [vmem:[#allocation5 + $0x4f00] sm:$0xff]
        %v2945 = vld [vmem:[#allocation5 + $0x4f08] sm:$0xff]
        %v2946 = vld [vmem:[#allocation5 + $0x4f10] sm:$0xff]
        %v2947 = vld [vmem:[#allocation5 + $0x4f18] sm:$0xff]
        %v2948 = vld [vmem:[#allocation5 + $0x4f20] sm:$0xff]
        %v2949 = vld [vmem:[#allocation5 + $0x4f28] sm:$0xff]
        %v2950 = vld [vmem:[#allocation5 + $0x4f30] sm:$0xff]
        %v2951 = vld [vmem:[#allocation5 + $0x4f38] sm:$0xff]
        %v2952 = vld [vmem:[#allocation5 + $0x4f40] sm:$0xff]
        %v2953 = vld [vmem:[#allocation5 + $0x4f48] sm:$0xff]
        %v2954 = vld [vmem:[#allocation5 + $0x4f50] sm:$0xff]
        %v2955 = vld [vmem:[#allocation5 + $0x4f58] sm:$0xff]
        %v2956 = vld [vmem:[#allocation5 + $0x4f60] sm:$0xff]
        %v2957 = vld [vmem:[#allocation5 + $0x4f68] sm:$0xff]
        %v2958 = vld [vmem:[#allocation5 + $0x4f70] sm:$0xff]
        %v2959 = vld [vmem:[#allocation5 + $0x4f78] sm:$0xff]
        %v2960 = vld [vmem:[#allocation5 + $0x4f80] sm:$0xff]
        %v2961 = vld [vmem:[#allocation5 + $0x4f88] sm:$0xff]
        %v2962 = vld [vmem:[#allocation5 + $0x4f90] sm:$0xff]
        %v2963 = vld [vmem:[#allocation5 + $0x4f98] sm:$0xff]
        %v2964 = vld [vmem:[#allocation5 + $0x4fa0] sm:$0xff]
        %v2965 = vld [vmem:[#allocation5 + $0x4fa8] sm:$0xff]
        %v2966 = vld [vmem:[#allocation5 + $0x4fb0] sm:$0xff]
        %v2967 = vld [vmem:[#allocation5 + $0x4fb8] sm:$0xff]
        %v2968 = vld [vmem:[#allocation5 + $0x4fc0] sm:$0xff]
        %v2969 = vld [vmem:[#allocation5 + $0x4fc8] sm:$0xff]
        %v2970 = vld [vmem:[#allocation5 + $0x4fd0] sm:$0xff]
        %v2971 = vld [vmem:[#allocation5 + $0x4fd8] sm:$0xff]
        %v2972 = vld [vmem:[#allocation5 + $0x4fe0] sm:$0xff]
        %v2973 = vld [vmem:[#allocation5 + $0x4fe8] sm:$0xff]
        %v2974 = vld [vmem:[#allocation5 + $0x4ff0] sm:$0xff]
        %v2975 = vld [vmem:[#allocation5 + $0x4ff8] sm:$0xff]
        %v2976 = vld [vmem:[#allocation5 + $0x5000] sm:$0xff]
        %v2977 = vld [vmem:[#allocation5 + $0x5008] sm:$0xff]
        %v2978 = vld [vmem:[#allocation5 + $0x5010] sm:$0xff]
        %v2979 = vld [vmem:[#allocation5 + $0x5018] sm:$0xff]
        %v2980 = vld [vmem:[#allocation5 + $0x5020] sm:$0xff]
        %v2981 = vld [vmem:[#allocation5 + $0x5028] sm:$0xff]
        %v2982 = vld [vmem:[#allocation5 + $0x5030] sm:$0xff]
        %v2983 = vld [vmem:[#allocation5 + $0x5038] sm:$0xff]
        %v2984 = vld [vmem:[#allocation5 + $0x5040] sm:$0xff]
        %v2985 = vld [vmem:[#allocation5 + $0x5048] sm:$0xff]
        %v2986 = vld [vmem:[#allocation5 + $0x5050] sm:$0xff]
        %v2987 = vld [vmem:[#allocation5 + $0x5058] sm:$0xff]
        %v2988 = vld [vmem:[#allocation5 + $0x5060] sm:$0xff]
        %v2989 = vld [vmem:[#allocation5 + $0x5068] sm:$0xff]
        %v2990 = vld [vmem:[#allocation5 + $0x5070] sm:$0xff]
        %v2991 = vld [vmem:[#allocation5 + $0x5078] sm:$0xff]
        %v2992 = vld [vmem:[#allocation5 + $0x5080] sm:$0xff]
        %v2993 = vld [vmem:[#allocation5 + $0x5088] sm:$0xff]
        %v2994 = vld [vmem:[#allocation5 + $0x5090] sm:$0xff]
        %v2995 = vld [vmem:[#allocation5 + $0x5098] sm:$0xff]
        %v2996 = vld [vmem:[#allocation5 + $0x50a0] sm:$0xff]
        %v2997 = vld [vmem:[#allocation5 + $0x50a8] sm:$0xff]
        %v2998 = vld [vmem:[#allocation5 + $0x50b0] sm:$0xff]
        %v2999 = vld [vmem:[#allocation5 + $0x50b8] sm:$0xff]
        %v3000 = vld [vmem:[#allocation5 + $0x50c0] sm:$0xff]
        %v3001 = vld [vmem:[#allocation5 + $0x50c8] sm:$0xff]
        %v3002 = vld [vmem:[#allocation5 + $0x50d0] sm:$0xff]
        %v3003 = vld [vmem:[#allocation5 + $0x50d8] sm:$0xff]
        %v3004 = vld [vmem:[#allocation5 + $0x50e0] sm:$0xff]
        %v3005 = vld [vmem:[#allocation5 + $0x50e8] sm:$0xff]
        %v3006 = vld [vmem:[#allocation5 + $0x50f0] sm:$0xff]
        %v3007 = vld [vmem:[#allocation5 + $0x50f8] sm:$0xff]
        %v3008 = vld [vmem:[#allocation5 + $0x5100] sm:$0xff]
        %v3009 = vld [vmem:[#allocation5 + $0x5108] sm:$0xff]
        %v3010 = vld [vmem:[#allocation5 + $0x5110] sm:$0xff]
        %v3011 = vld [vmem:[#allocation5 + $0x5118] sm:$0xff]
        %v3012 = vld [vmem:[#allocation5 + $0x5120] sm:$0xff]
        %v3013 = vld [vmem:[#allocation5 + $0x5128] sm:$0xff]
        %v3014 = vld [vmem:[#allocation5 + $0x5130] sm:$0xff]
        %v3015 = vld [vmem:[#allocation5 + $0x5138] sm:$0xff]
        %v3016 = vld [vmem:[#allocation5 + $0x5140] sm:$0xff]
        %v3017 = vld [vmem:[#allocation5 + $0x5148] sm:$0xff]
        %v3018 = vld [vmem:[#allocation5 + $0x5150] sm:$0xff]
        %v3019 = vld [vmem:[#allocation5 + $0x5158] sm:$0xff]
        %v3020 = vld [vmem:[#allocation5 + $0x5160] sm:$0xff]
        %v3021 = vld [vmem:[#allocation5 + $0x5168] sm:$0xff]
        %v3022 = vld [vmem:[#allocation5 + $0x5170] sm:$0xff]
        %v3023 = vld [vmem:[#allocation5 + $0x5178] sm:$0xff]
        %v3024 = vld [vmem:[#allocation5 + $0x5180] sm:$0xff]
        %v3025 = vld [vmem:[#allocation5 + $0x5188] sm:$0xff]
        %v3026 = vld [vmem:[#allocation5 + $0x5190] sm:$0xff]
        %v3027 = vld [vmem:[#allocation5 + $0x5198] sm:$0xff]
        %v3028 = vld [vmem:[#allocation5 + $0x51a0] sm:$0xff]
        %v3029 = vld [vmem:[#allocation5 + $0x51a8] sm:$0xff]
        %v3030 = vld [vmem:[#allocation5 + $0x51b0] sm:$0xff]
        %v3031 = vld [vmem:[#allocation5 + $0x51b8] sm:$0xff]
        %v3032 = vld [vmem:[#allocation5 + $0x51c0] sm:$0xff]
        %v3033 = vld [vmem:[#allocation5 + $0x51c8] sm:$0xff]
        %v3034 = vld [vmem:[#allocation5 + $0x51d0] sm:$0xff]
        %v3035 = vld [vmem:[#allocation5 + $0x51d8] sm:$0xff]
        %v3036 = vld [vmem:[#allocation5 + $0x51e0] sm:$0xff]
        %v3037 = vld [vmem:[#allocation5 + $0x51e8] sm:$0xff]
        %v3038 = vld [vmem:[#allocation5 + $0x51f0] sm:$0xff]
        %v3039 = vld [vmem:[#allocation5 + $0x51f8] sm:$0xff]
        %v3040 = vld [vmem:[#allocation5 + $0x5200] sm:$0xff]
        %v3041 = vld [vmem:[#allocation5 + $0x5208] sm:$0xff]
        %v3042 = vld [vmem:[#allocation5 + $0x5210] sm:$0xff]
        %v3043 = vld [vmem:[#allocation5 + $0x5218] sm:$0xff]
        %v3044 = vld [vmem:[#allocation5 + $0x5220] sm:$0xff]
        %v3045 = vld [vmem:[#allocation5 + $0x5228] sm:$0xff]
        %v3046 = vld [vmem:[#allocation5 + $0x5230] sm:$0xff]
        %v3047 = vld [vmem:[#allocation5 + $0x5238] sm:$0xff]
        %v3048 = vld [vmem:[#allocation5 + $0x5240] sm:$0xff]
        %v3049 = vld [vmem:[#allocation5 + $0x5248] sm:$0xff]
        %v3050 = vld [vmem:[#allocation5 + $0x5250] sm:$0xff]
        %v3051 = vld [vmem:[#allocation5 + $0x5258] sm:$0xff]
        %v3052 = vld [vmem:[#allocation5 + $0x5260] sm:$0xff]
        %v3053 = vld [vmem:[#allocation5 + $0x5268] sm:$0xff]
        %v3054 = vld [vmem:[#allocation5 + $0x5270] sm:$0xff]
        %v3055 = vld [vmem:[#allocation5 + $0x5278] sm:$0xff]
        %v3056 = vld [vmem:[#allocation5 + $0x5280] sm:$0xff]
        %v3057 = vld [vmem:[#allocation5 + $0x5288] sm:$0xff]
        %v3058 = vld [vmem:[#allocation5 + $0x5290] sm:$0xff]
        %v3059 = vld [vmem:[#allocation5 + $0x5298] sm:$0xff]
        %v3060 = vld [vmem:[#allocation5 + $0x52a0] sm:$0xff]
        %v3061 = vld [vmem:[#allocation5 + $0x52a8] sm:$0xff]
        %v3062 = vld [vmem:[#allocation5 + $0x52b0] sm:$0xff]
        %v3063 = vld [vmem:[#allocation5 + $0x52b8] sm:$0xff]
        %v3064 = vld [vmem:[#allocation5 + $0x52c0] sm:$0xff]
        %v3065 = vld [vmem:[#allocation5 + $0x52c8] sm:$0xff]
        %v3066 = vld [vmem:[#allocation5 + $0x52d0] sm:$0xff]
        %v3067 = vld [vmem:[#allocation5 + $0x52d8] sm:$0xff]
        %v3068 = vld [vmem:[#allocation5 + $0x52e0] sm:$0xff]
        %v3069 = vld [vmem:[#allocation5 + $0x52e8] sm:$0xff]
        %v3070 = vld [vmem:[#allocation5 + $0x52f0] sm:$0xff]
        %v3071 = vld [vmem:[#allocation5 + $0x52f8] sm:$0xff]
        %v3072 = vld [vmem:[#allocation5 + $0x5300] sm:$0xff]
        %v3073 = vld [vmem:[#allocation5 + $0x5308] sm:$0xff]
        %v3074 = vld [vmem:[#allocation5 + $0x5310] sm:$0xff]
        %v3075 = vld [vmem:[#allocation5 + $0x5318] sm:$0xff]
        %v3076 = vld [vmem:[#allocation5 + $0x5320] sm:$0xff]
        %v3077 = vld [vmem:[#allocation5 + $0x5328] sm:$0xff]
        %v3078 = vld [vmem:[#allocation5 + $0x5330] sm:$0xff]
        %v3079 = vld [vmem:[#allocation5 + $0x5338] sm:$0xff]
        %v3080 = vld [vmem:[#allocation5 + $0x5340] sm:$0xff]
        %v3081 = vld [vmem:[#allocation5 + $0x5348] sm:$0xff]
        %v3082 = vld [vmem:[#allocation5 + $0x5350] sm:$0xff]
        %v3083 = vld [vmem:[#allocation5 + $0x5358] sm:$0xff]
        %v3084 = vld [vmem:[#allocation5 + $0x5360] sm:$0xff]
        %v3085 = vld [vmem:[#allocation5 + $0x5368] sm:$0xff]
        %v3086 = vld [vmem:[#allocation5 + $0x5370] sm:$0xff]
        %v3087 = vld [vmem:[#allocation5 + $0x5378] sm:$0xff]
        %v3088 = vld [vmem:[#allocation5 + $0x5380] sm:$0xff]
        %v3089 = vld [vmem:[#allocation5 + $0x5388] sm:$0xff]
        %v3090 = vld [vmem:[#allocation5 + $0x5390] sm:$0xff]
        %v3091 = vld [vmem:[#allocation5 + $0x5398] sm:$0xff]
        %v3092 = vld [vmem:[#allocation5 + $0x53a0] sm:$0xff]
        %v3093 = vld [vmem:[#allocation5 + $0x53a8] sm:$0xff]
        %v3094 = vld [vmem:[#allocation5 + $0x53b0] sm:$0xff]
        %v3095 = vld [vmem:[#allocation5 + $0x53b8] sm:$0xff]
        %v3096 = vld [vmem:[#allocation5 + $0x53c0] sm:$0xff]
        %v3097 = vld [vmem:[#allocation5 + $0x53c8] sm:$0xff]
        %v3098 = vld [vmem:[#allocation5 + $0x53d0] sm:$0xff]
        %v3099 = vld [vmem:[#allocation5 + $0x53d8] sm:$0xff]
        %v3100 = vld [vmem:[#allocation5 + $0x53e0] sm:$0xff]
        %v3101 = vld [vmem:[#allocation5 + $0x53e8] sm:$0xff]
        %v3102 = vld [vmem:[#allocation5 + $0x53f0] sm:$0xff]
        %v3103 = vld [vmem:[#allocation5 + $0x53f8] sm:$0xff]
        %v3104 = vld [vmem:[#allocation5 + $0x5400] sm:$0xff]
        %v3105 = vld [vmem:[#allocation5 + $0x5408] sm:$0xff]
        %v3106 = vld [vmem:[#allocation5 + $0x5410] sm:$0xff]
        %v3107 = vld [vmem:[#allocation5 + $0x5418] sm:$0xff]
        %v3108 = vld [vmem:[#allocation5 + $0x5420] sm:$0xff]
        %v3109 = vld [vmem:[#allocation5 + $0x5428] sm:$0xff]
        %v3110 = vld [vmem:[#allocation5 + $0x5430] sm:$0xff]
        %v3111 = vld [vmem:[#allocation5 + $0x5438] sm:$0xff]
        %v3112 = vld [vmem:[#allocation5 + $0x5440] sm:$0xff]
        %v3113 = vld [vmem:[#allocation5 + $0x5448] sm:$0xff]
        %v3114 = vld [vmem:[#allocation5 + $0x5450] sm:$0xff]
        %v3115 = vld [vmem:[#allocation5 + $0x5458] sm:$0xff]
        %v3116 = vld [vmem:[#allocation5 + $0x5460] sm:$0xff]
        %v3117 = vld [vmem:[#allocation5 + $0x5468] sm:$0xff]
        %v3118 = vld [vmem:[#allocation5 + $0x5470] sm:$0xff]
        %v3119 = vld [vmem:[#allocation5 + $0x5478] sm:$0xff]
        %v3120 = vld [vmem:[#allocation5 + $0x5480] sm:$0xff]
        %v3121 = vld [vmem:[#allocation5 + $0x5488] sm:$0xff]
        %v3122 = vld [vmem:[#allocation5 + $0x5490] sm:$0xff]
        %v3123 = vld [vmem:[#allocation5 + $0x5498] sm:$0xff]
        %v3124 = vld [vmem:[#allocation5 + $0x54a0] sm:$0xff]
        %v3125 = vld [vmem:[#allocation5 + $0x54a8] sm:$0xff]
        %v3126 = vld [vmem:[#allocation5 + $0x54b0] sm:$0xff]
        %v3127 = vld [vmem:[#allocation5 + $0x54b8] sm:$0xff]
        %v3128 = vld [vmem:[#allocation5 + $0x54c0] sm:$0xff]
        %v3129 = vld [vmem:[#allocation5 + $0x54c8] sm:$0xff]
        %v3130 = vld [vmem:[#allocation5 + $0x54d0] sm:$0xff]
        %v3131 = vld [vmem:[#allocation5 + $0x54d8] sm:$0xff]
        %v3132 = vld [vmem:[#allocation5 + $0x54e0] sm:$0xff]
        %v3133 = vld [vmem:[#allocation5 + $0x54e8] sm:$0xff]
        %v3134 = vld [vmem:[#allocation5 + $0x54f0] sm:$0xff]
        %v3135 = vld [vmem:[#allocation5 + $0x54f8] sm:$0xff]
        %v3136 = vld [vmem:[#allocation5 + $0x5500] sm:$0xff]
        %v3137 = vld [vmem:[#allocation5 + $0x5508] sm:$0xff]
        %v3138 = vld [vmem:[#allocation5 + $0x5510] sm:$0xff]
        %v3139 = vld [vmem:[#allocation5 + $0x5518] sm:$0xff]
        %v3140 = vld [vmem:[#allocation5 + $0x5520] sm:$0xff]
        %v3141 = vld [vmem:[#allocation5 + $0x5528] sm:$0xff]
        %v3142 = vld [vmem:[#allocation5 + $0x5530] sm:$0xff]
        %v3143 = vld [vmem:[#allocation5 + $0x5538] sm:$0xff]
        %v3144 = vld [vmem:[#allocation5 + $0x5540] sm:$0xff]
        %v3145 = vld [vmem:[#allocation5 + $0x5548] sm:$0xff]
        %v3146 = vld [vmem:[#allocation5 + $0x5550] sm:$0xff]
        %v3147 = vld [vmem:[#allocation5 + $0x5558] sm:$0xff]
        %v3148 = vld [vmem:[#allocation5 + $0x5560] sm:$0xff]
        %v3149 = vld [vmem:[#allocation5 + $0x5568] sm:$0xff]
        %v3150 = vld [vmem:[#allocation5 + $0x5570] sm:$0xff]
        %v3151 = vld [vmem:[#allocation5 + $0x5578] sm:$0xff]
        %v3152 = vld [vmem:[#allocation5 + $0x5580] sm:$0xff]
        %v3153 = vld [vmem:[#allocation5 + $0x5588] sm:$0xff]
        %v3154 = vld [vmem:[#allocation5 + $0x5590] sm:$0xff]
        %v3155 = vld [vmem:[#allocation5 + $0x5598] sm:$0xff]
        %v3156 = vld [vmem:[#allocation5 + $0x55a0] sm:$0xff]
        %v3157 = vld [vmem:[#allocation5 + $0x55a8] sm:$0xff]
        %v3158 = vld [vmem:[#allocation5 + $0x55b0] sm:$0xff]
        %v3159 = vld [vmem:[#allocation5 + $0x55b8] sm:$0xff]
        %v3160 = vld [vmem:[#allocation5 + $0x55c0] sm:$0xff]
        %v3161 = vld [vmem:[#allocation5 + $0x55c8] sm:$0xff]
        %v3162 = vld [vmem:[#allocation5 + $0x55d0] sm:$0xff]
        %v3163 = vld [vmem:[#allocation5 + $0x55d8] sm:$0xff]
        %v3164 = vld [vmem:[#allocation5 + $0x55e0] sm:$0xff]
        %v3165 = vld [vmem:[#allocation5 + $0x55e8] sm:$0xff]
        %v3166 = vld [vmem:[#allocation5 + $0x55f0] sm:$0xff]
        %v3167 = vld [vmem:[#allocation5 + $0x55f8] sm:$0xff]
        %v3168 = vld [vmem:[#allocation5 + $0x5600] sm:$0xff]
        %v3169 = vld [vmem:[#allocation5 + $0x5608] sm:$0xff]
        %v3170 = vld [vmem:[#allocation5 + $0x5610] sm:$0xff]
        %v3171 = vld [vmem:[#allocation5 + $0x5618] sm:$0xff]
        %v3172 = vld [vmem:[#allocation5 + $0x5620] sm:$0xff]
        %v3173 = vld [vmem:[#allocation5 + $0x5628] sm:$0xff]
        %v3174 = vld [vmem:[#allocation5 + $0x5630] sm:$0xff]
        %v3175 = vld [vmem:[#allocation5 + $0x5638] sm:$0xff]
        %v3176 = vld [vmem:[#allocation5 + $0x5640] sm:$0xff]
        %v3177 = vld [vmem:[#allocation5 + $0x5648] sm:$0xff]
        %v3178 = vld [vmem:[#allocation5 + $0x5650] sm:$0xff]
        %v3179 = vld [vmem:[#allocation5 + $0x5658] sm:$0xff]
        %v3180 = vld [vmem:[#allocation5 + $0x5660] sm:$0xff]
        %v3181 = vld [vmem:[#allocation5 + $0x5668] sm:$0xff]
        %v3182 = vld [vmem:[#allocation5 + $0x5670] sm:$0xff]
        %v3183 = vld [vmem:[#allocation5 + $0x5678] sm:$0xff]
        %v3184 = vld [vmem:[#allocation5 + $0x5680] sm:$0xff]
        %v3185 = vld [vmem:[#allocation5 + $0x5688] sm:$0xff]
        %v3186 = vld [vmem:[#allocation5 + $0x5690] sm:$0xff]
        %v3187 = vld [vmem:[#allocation5 + $0x5698] sm:$0xff]
        %v3188 = vld [vmem:[#allocation5 + $0x56a0] sm:$0xff]
        %v3189 = vld [vmem:[#allocation5 + $0x56a8] sm:$0xff]
        %v3190 = vld [vmem:[#allocation5 + $0x56b0] sm:$0xff]
        %v3191 = vld [vmem:[#allocation5 + $0x56b8] sm:$0xff]
        %v3192 = vld [vmem:[#allocation5 + $0x56c0] sm:$0xff]
        %v3193 = vld [vmem:[#allocation5 + $0x56c8] sm:$0xff]
        %v3194 = vld [vmem:[#allocation5 + $0x56d0] sm:$0xff]
        %v3195 = vld [vmem:[#allocation5 + $0x56d8] sm:$0xff]
        %v3196 = vld [vmem:[#allocation5 + $0x56e0] sm:$0xff]
        %v3197 = vld [vmem:[#allocation5 + $0x56e8] sm:$0xff]
        %v3198 = vld [vmem:[#allocation5 + $0x56f0] sm:$0xff]
        %v3199 = vld [vmem:[#allocation5 + $0x56f8] sm:$0xff]
        %v3200 = vld [vmem:[#allocation5 + $0x5700] sm:$0xff]
        %v3201 = vld [vmem:[#allocation5 + $0x5708] sm:$0xff]
        %v3202 = vld [vmem:[#allocation5 + $0x5710] sm:$0xff]
        %v3203 = vld [vmem:[#allocation5 + $0x5718] sm:$0xff]
        %v3204 = vld [vmem:[#allocation5 + $0x5720] sm:$0xff]
        %v3205 = vld [vmem:[#allocation5 + $0x5728] sm:$0xff]
        %v3206 = vld [vmem:[#allocation5 + $0x5730] sm:$0xff]
        %v3207 = vld [vmem:[#allocation5 + $0x5738] sm:$0xff]
        %v3208 = vld [vmem:[#allocation5 + $0x5740] sm:$0xff]
        %v3209 = vld [vmem:[#allocation5 + $0x5748] sm:$0xff]
        %v3210 = vld [vmem:[#allocation5 + $0x5750] sm:$0xff]
        %v3211 = vld [vmem:[#allocation5 + $0x5758] sm:$0xff]
        %v3212 = vld [vmem:[#allocation5 + $0x5760] sm:$0xff]
        %v3213 = vld [vmem:[#allocation5 + $0x5768] sm:$0xff]
        %v3214 = vld [vmem:[#allocation5 + $0x5770] sm:$0xff]
        %v3215 = vld [vmem:[#allocation5 + $0x5778] sm:$0xff]
        %v3216 = vld [vmem:[#allocation5 + $0x5780] sm:$0xff]
        %v3217 = vld [vmem:[#allocation5 + $0x5788] sm:$0xff]
        %v3218 = vld [vmem:[#allocation5 + $0x5790] sm:$0xff]
        %v3219 = vld [vmem:[#allocation5 + $0x5798] sm:$0xff]
        %v3220 = vld [vmem:[#allocation5 + $0x57a0] sm:$0xff]
        %v3221 = vld [vmem:[#allocation5 + $0x57a8] sm:$0xff]
        %v3222 = vld [vmem:[#allocation5 + $0x57b0] sm:$0xff]
        %v3223 = vld [vmem:[#allocation5 + $0x57b8] sm:$0xff]
        %v3224 = vld [vmem:[#allocation5 + $0x57c0] sm:$0xff]
        %v3225 = vld [vmem:[#allocation5 + $0x57c8] sm:$0xff]
        %v3226 = vld [vmem:[#allocation5 + $0x57d0] sm:$0xff]
        %v3227 = vld [vmem:[#allocation5 + $0x57d8] sm:$0xff]
        %v3228 = vld [vmem:[#allocation5 + $0x57e0] sm:$0xff]
        %v3229 = vld [vmem:[#allocation5 + $0x57e8] sm:$0xff]
        %v3230 = vld [vmem:[#allocation5 + $0x57f0] sm:$0xff]
        %v3231 = vld [vmem:[#allocation5 + $0x57f8] sm:$0xff]
        %v3232 = vld [vmem:[#allocation5 + $0x5800] sm:$0xff]
        %v3233 = vld [vmem:[#allocation5 + $0x5808] sm:$0xff]
        %v3234 = vld [vmem:[#allocation5 + $0x5810] sm:$0xff]
        %v3235 = vld [vmem:[#allocation5 + $0x5818] sm:$0xff]
        %v3236 = vld [vmem:[#allocation5 + $0x5820] sm:$0xff]
        %v3237 = vld [vmem:[#allocation5 + $0x5828] sm:$0xff]
        %v3238 = vld [vmem:[#allocation5 + $0x5830] sm:$0xff]
        %v3239 = vld [vmem:[#allocation5 + $0x5838] sm:$0xff]
        %v3240 = vld [vmem:[#allocation5 + $0x5840] sm:$0xff]
        %v3241 = vld [vmem:[#allocation5 + $0x5848] sm:$0xff]
        %v3242 = vld [vmem:[#allocation5 + $0x5850] sm:$0xff]
        %v3243 = vld [vmem:[#allocation5 + $0x5858] sm:$0xff]
        %v3244 = vld [vmem:[#allocation5 + $0x5860] sm:$0xff]
        %v3245 = vld [vmem:[#allocation5 + $0x5868] sm:$0xff]
        %v3246 = vld [vmem:[#allocation5 + $0x5870] sm:$0xff]
        %v3247 = vld [vmem:[#allocation5 + $0x5878] sm:$0xff]
        %v3248 = vld [vmem:[#allocation5 + $0x5880] sm:$0xff]
        %v3249 = vld [vmem:[#allocation5 + $0x5888] sm:$0xff]
        %v3250 = vld [vmem:[#allocation5 + $0x5890] sm:$0xff]
        %v3251 = vld [vmem:[#allocation5 + $0x5898] sm:$0xff]
        %v3252 = vld [vmem:[#allocation5 + $0x58a0] sm:$0xff]
        %v3253 = vld [vmem:[#allocation5 + $0x58a8] sm:$0xff]
        %v3254 = vld [vmem:[#allocation5 + $0x58b0] sm:$0xff]
        %v3255 = vld [vmem:[#allocation5 + $0x58b8] sm:$0xff]
        %v3256 = vld [vmem:[#allocation5 + $0x58c0] sm:$0xff]
        %v3257 = vld [vmem:[#allocation5 + $0x58c8] sm:$0xff]
        %v3258 = vld [vmem:[#allocation5 + $0x58d0] sm:$0xff]
        %v3259 = vld [vmem:[#allocation5 + $0x58d8] sm:$0xff]
        %v3260 = vld [vmem:[#allocation5 + $0x58e0] sm:$0xff]
        %v3261 = vld [vmem:[#allocation5 + $0x58e8] sm:$0xff]
        %v3262 = vld [vmem:[#allocation5 + $0x58f0] sm:$0xff]
        %v3263 = vld [vmem:[#allocation5 + $0x58f8] sm:$0xff]
        %v3264 = vld [vmem:[#allocation5 + $0x5900] sm:$0xff]
        %v3265 = vld [vmem:[#allocation5 + $0x5908] sm:$0xff]
        %v3266 = vld [vmem:[#allocation5 + $0x5910] sm:$0xff]
        %v3267 = vld [vmem:[#allocation5 + $0x5918] sm:$0xff]
        %v3268 = vld [vmem:[#allocation5 + $0x5920] sm:$0xff]
        %v3269 = vld [vmem:[#allocation5 + $0x5928] sm:$0xff]
        %v3270 = vld [vmem:[#allocation5 + $0x5930] sm:$0xff]
        %v3271 = vld [vmem:[#allocation5 + $0x5938] sm:$0xff]
        %v3272 = vld [vmem:[#allocation5 + $0x5940] sm:$0xff]
        %v3273 = vld [vmem:[#allocation5 + $0x5948] sm:$0xff]
        %v3274 = vld [vmem:[#allocation5 + $0x5950] sm:$0xff]
        %v3275 = vld [vmem:[#allocation5 + $0x5958] sm:$0xff]
        %v3276 = vld [vmem:[#allocation5 + $0x5960] sm:$0xff]
        %v3277 = vld [vmem:[#allocation5 + $0x5968] sm:$0xff]
        %v3278 = vld [vmem:[#allocation5 + $0x5970] sm:$0xff]
        %v3279 = vld [vmem:[#allocation5 + $0x5978] sm:$0xff]
        %v3280 = vld [vmem:[#allocation5 + $0x5980] sm:$0xff]
        %v3281 = vld [vmem:[#allocation5 + $0x5988] sm:$0xff]
        %v3282 = vld [vmem:[#allocation5 + $0x5990] sm:$0xff]
        %v3283 = vld [vmem:[#allocation5 + $0x5998] sm:$0xff]
        %v3284 = vld [vmem:[#allocation5 + $0x59a0] sm:$0xff]
        %v3285 = vld [vmem:[#allocation5 + $0x59a8] sm:$0xff]
        %v3286 = vld [vmem:[#allocation5 + $0x59b0] sm:$0xff]
        %v3287 = vld [vmem:[#allocation5 + $0x59b8] sm:$0xff]
        %v3288 = vld [vmem:[#allocation5 + $0x59c0] sm:$0xff]
        %v3289 = vld [vmem:[#allocation5 + $0x59c8] sm:$0xff]
        %v3290 = vld [vmem:[#allocation5 + $0x59d0] sm:$0xff]
        %v3291 = vld [vmem:[#allocation5 + $0x59d8] sm:$0xff]
        %v3292 = vld [vmem:[#allocation5 + $0x59e0] sm:$0xff]
        %v3293 = vld [vmem:[#allocation5 + $0x59e8] sm:$0xff]
        %v3294 = vld [vmem:[#allocation5 + $0x59f0] sm:$0xff]
        %v3295 = vld [vmem:[#allocation5 + $0x59f8] sm:$0xff]
        %v3296 = vld [vmem:[#allocation5 + $0x5a00] sm:$0xff]
        %v3297 = vld [vmem:[#allocation5 + $0x5a08] sm:$0xff]
        %v3298 = vld [vmem:[#allocation5 + $0x5a10] sm:$0xff]
        %v3299 = vld [vmem:[#allocation5 + $0x5a18] sm:$0xff]
        %v3300 = vld [vmem:[#allocation5 + $0x5a20] sm:$0xff]
        %v3301 = vld [vmem:[#allocation5 + $0x5a28] sm:$0xff]
        %v3302 = vld [vmem:[#allocation5 + $0x5a30] sm:$0xff]
        %v3303 = vld [vmem:[#allocation5 + $0x5a38] sm:$0xff]
        %v3304 = vld [vmem:[#allocation5 + $0x5a40] sm:$0xff]
        %v3305 = vld [vmem:[#allocation5 + $0x5a48] sm:$0xff]
        %v3306 = vld [vmem:[#allocation5 + $0x5a50] sm:$0xff]
        %v3307 = vld [vmem:[#allocation5 + $0x5a58] sm:$0xff]
        %v3308 = vld [vmem:[#allocation5 + $0x5a60] sm:$0xff]
        %v3309 = vld [vmem:[#allocation5 + $0x5a68] sm:$0xff]
        %v3310 = vld [vmem:[#allocation5 + $0x5a70] sm:$0xff]
        %v3311 = vld [vmem:[#allocation5 + $0x5a78] sm:$0xff]
        %v3312 = vld [vmem:[#allocation5 + $0x5a80] sm:$0xff]
        %v3313 = vld [vmem:[#allocation5 + $0x5a88] sm:$0xff]
        %v3314 = vld [vmem:[#allocation5 + $0x5a90] sm:$0xff]
        %v3315 = vld [vmem:[#allocation5 + $0x5a98] sm:$0xff]
        %v3316 = vld [vmem:[#allocation5 + $0x5aa0] sm:$0xff]
        %v3317 = vld [vmem:[#allocation5 + $0x5aa8] sm:$0xff]
        %v3318 = vld [vmem:[#allocation5 + $0x5ab0] sm:$0xff]
        %v3319 = vld [vmem:[#allocation5 + $0x5ab8] sm:$0xff]
        %v3320 = vld [vmem:[#allocation5 + $0x5ac0] sm:$0xff]
        %v3321 = vld [vmem:[#allocation5 + $0x5ac8] sm:$0xff]
        %v3322 = vld [vmem:[#allocation5 + $0x5ad0] sm:$0xff]
        %v3323 = vld [vmem:[#allocation5 + $0x5ad8] sm:$0xff]
        %v3324 = vld [vmem:[#allocation5 + $0x5ae0] sm:$0xff]
        %v3325 = vld [vmem:[#allocation5 + $0x5ae8] sm:$0xff]
        %v3326 = vld [vmem:[#allocation5 + $0x5af0] sm:$0xff]
        %v3327 = vld [vmem:[#allocation5 + $0x5af8] sm:$0xff]
        %v3328 = vld [vmem:[#allocation5 + $0x5b00] sm:$0xff]
        %v3329 = vld [vmem:[#allocation5 + $0x5b08] sm:$0xff]
        %v3330 = vld [vmem:[#allocation5 + $0x5b10] sm:$0xff]
        %v3331 = vld [vmem:[#allocation5 + $0x5b18] sm:$0xff]
        %v3332 = vld [vmem:[#allocation5 + $0x5b20] sm:$0xff]
        %v3333 = vld [vmem:[#allocation5 + $0x5b28] sm:$0xff]
        %v3334 = vld [vmem:[#allocation5 + $0x5b30] sm:$0xff]
        %v3335 = vld [vmem:[#allocation5 + $0x5b38] sm:$0xff]
        %v3336 = vld [vmem:[#allocation5 + $0x5b40] sm:$0xff]
        %v3337 = vld [vmem:[#allocation5 + $0x5b48] sm:$0xff]
        %v3338 = vld [vmem:[#allocation5 + $0x5b50] sm:$0xff]
        %v3339 = vld [vmem:[#allocation5 + $0x5b58] sm:$0xff]
        %v3340 = vld [vmem:[#allocation5 + $0x5b60] sm:$0xff]
        %v3341 = vld [vmem:[#allocation5 + $0x5b68] sm:$0xff]
        %v3342 = vld [vmem:[#allocation5 + $0x5b70] sm:$0xff]
        %v3343 = vld [vmem:[#allocation5 + $0x5b78] sm:$0xff]
        %v3344 = vld [vmem:[#allocation5 + $0x5b80] sm:$0xff]
        %v3345 = vld [vmem:[#allocation5 + $0x5b88] sm:$0xff]
        %v3346 = vld [vmem:[#allocation5 + $0x5b90] sm:$0xff]
        %v3347 = vld [vmem:[#allocation5 + $0x5b98] sm:$0xff]
        %v3348 = vld [vmem:[#allocation5 + $0x5ba0] sm:$0xff]
        %v3349 = vld [vmem:[#allocation5 + $0x5ba8] sm:$0xff]
        %v3350 = vld [vmem:[#allocation5 + $0x5bb0] sm:$0xff]
        %v3351 = vld [vmem:[#allocation5 + $0x5bb8] sm:$0xff]
        %v3352 = vld [vmem:[#allocation5 + $0x5bc0] sm:$0xff]
        %v3353 = vld [vmem:[#allocation5 + $0x5bc8] sm:$0xff]
        %v3354 = vld [vmem:[#allocation5 + $0x5bd0] sm:$0xff]
        %v3355 = vld [vmem:[#allocation5 + $0x5bd8] sm:$0xff]
        %v3356 = vld [vmem:[#allocation5 + $0x5be0] sm:$0xff]
        %v3357 = vld [vmem:[#allocation5 + $0x5be8] sm:$0xff]
        %v3358 = vld [vmem:[#allocation5 + $0x5bf0] sm:$0xff]
        %v3359 = vld [vmem:[#allocation5 + $0x5bf8] sm:$0xff]
        %v3360 = vld [vmem:[#allocation5 + $0x5c00] sm:$0xff]
        %v3361 = vld [vmem:[#allocation5 + $0x5c08] sm:$0xff]
        %v3362 = vld [vmem:[#allocation5 + $0x5c10] sm:$0xff]
        %v3363 = vld [vmem:[#allocation5 + $0x5c18] sm:$0xff]
        %v3364 = vld [vmem:[#allocation5 + $0x5c20] sm:$0xff]
        %v3365 = vld [vmem:[#allocation5 + $0x5c28] sm:$0xff]
        %v3366 = vld [vmem:[#allocation5 + $0x5c30] sm:$0xff]
        %v3367 = vld [vmem:[#allocation5 + $0x5c38] sm:$0xff]
        %v3368 = vld [vmem:[#allocation5 + $0x5c40] sm:$0xff]
        %v3369 = vld [vmem:[#allocation5 + $0x5c48] sm:$0xff]
        %v3370 = vld [vmem:[#allocation5 + $0x5c50] sm:$0xff]
        %v3371 = vld [vmem:[#allocation5 + $0x5c58] sm:$0xff]
        %v3372 = vld [vmem:[#allocation5 + $0x5c60] sm:$0xff]
        %v3373 = vld [vmem:[#allocation5 + $0x5c68] sm:$0xff]
        %v3374 = vld [vmem:[#allocation5 + $0x5c70] sm:$0xff]
        %v3375 = vld [vmem:[#allocation5 + $0x5c78] sm:$0xff]
        %v3376 = vld [vmem:[#allocation5 + $0x5c80] sm:$0xff]
        %v3377 = vld [vmem:[#allocation5 + $0x5c88] sm:$0xff]
        %v3378 = vld [vmem:[#allocation5 + $0x5c90] sm:$0xff]
        %v3379 = vld [vmem:[#allocation5 + $0x5c98] sm:$0xff]
        %v3380 = vld [vmem:[#allocation5 + $0x5ca0] sm:$0xff]
        %v3381 = vld [vmem:[#allocation5 + $0x5ca8] sm:$0xff]
        %v3382 = vld [vmem:[#allocation5 + $0x5cb0] sm:$0xff]
        %v3383 = vld [vmem:[#allocation5 + $0x5cb8] sm:$0xff]
        %v3384 = vld [vmem:[#allocation5 + $0x5cc0] sm:$0xff]
        %v3385 = vld [vmem:[#allocation5 + $0x5cc8] sm:$0xff]
        %v3386 = vld [vmem:[#allocation5 + $0x5cd0] sm:$0xff]
        %v3387 = vld [vmem:[#allocation5 + $0x5cd8] sm:$0xff]
        %v3388 = vld [vmem:[#allocation5 + $0x5ce0] sm:$0xff]
        %v3389 = vld [vmem:[#allocation5 + $0x5ce8] sm:$0xff]
        %v3390 = vld [vmem:[#allocation5 + $0x5cf0] sm:$0xff]
        %v3391 = vld [vmem:[#allocation5 + $0x5cf8] sm:$0xff]
        %v3392 = vld [vmem:[#allocation5 + $0x5d00] sm:$0xff]
        %v3393 = vld [vmem:[#allocation5 + $0x5d08] sm:$0xff]
        %v3394 = vld [vmem:[#allocation5 + $0x5d10] sm:$0xff]
        %v3395 = vld [vmem:[#allocation5 + $0x5d18] sm:$0xff]
        %v3396 = vld [vmem:[#allocation5 + $0x5d20] sm:$0xff]
        %v3397 = vld [vmem:[#allocation5 + $0x5d28] sm:$0xff]
        %v3398 = vld [vmem:[#allocation5 + $0x5d30] sm:$0xff]
        %v3399 = vld [vmem:[#allocation5 + $0x5d38] sm:$0xff]
        %v3400 = vld [vmem:[#allocation5 + $0x5d40] sm:$0xff]
        %v3401 = vld [vmem:[#allocation5 + $0x5d48] sm:$0xff]
        %v3402 = vld [vmem:[#allocation5 + $0x5d50] sm:$0xff]
        %v3403 = vld [vmem:[#allocation5 + $0x5d58] sm:$0xff]
        %v3404 = vld [vmem:[#allocation5 + $0x5d60] sm:$0xff]
        %v3405 = vld [vmem:[#allocation5 + $0x5d68] sm:$0xff]
        %v3406 = vld [vmem:[#allocation5 + $0x5d70] sm:$0xff]
        %v3407 = vld [vmem:[#allocation5 + $0x5d78] sm:$0xff]
        %v3408 = vld [vmem:[#allocation5 + $0x5d80] sm:$0xff]
        %v3409 = vld [vmem:[#allocation5 + $0x5d88] sm:$0xff]
        %v3410 = vld [vmem:[#allocation5 + $0x5d90] sm:$0xff]
        %v3411 = vld [vmem:[#allocation5 + $0x5d98] sm:$0xff]
        %v3412 = vld [vmem:[#allocation5 + $0x5da0] sm:$0xff]
        %v3413 = vld [vmem:[#allocation5 + $0x5da8] sm:$0xff]
        %v3414 = vld [vmem:[#allocation5 + $0x5db0] sm:$0xff]
        %v3415 = vld [vmem:[#allocation5 + $0x5db8] sm:$0xff]
        %v3416 = vld [vmem:[#allocation5 + $0x5dc0] sm:$0xff]
        %v3417 = vld [vmem:[#allocation5 + $0x5dc8] sm:$0xff]
        %v3418 = vld [vmem:[#allocation5 + $0x5dd0] sm:$0xff]
        %v3419 = vld [vmem:[#allocation5 + $0x5dd8] sm:$0xff]
        %v3420 = vld [vmem:[#allocation5 + $0x5de0] sm:$0xff]
        %v3421 = vld [vmem:[#allocation5 + $0x5de8] sm:$0xff]
        %v3422 = vld [vmem:[#allocation5 + $0x5df0] sm:$0xff]
        %v3423 = vld [vmem:[#allocation5 + $0x5df8] sm:$0xff]
        %v3424 = vld [vmem:[#allocation5 + $0x5e00] sm:$0xff]
        %v3425 = vld [vmem:[#allocation5 + $0x5e08] sm:$0xff]
        %v3426 = vld [vmem:[#allocation5 + $0x5e10] sm:$0xff]
        %v3427 = vld [vmem:[#allocation5 + $0x5e18] sm:$0xff]
        %v3428 = vld [vmem:[#allocation5 + $0x5e20] sm:$0xff]
        %v3429 = vld [vmem:[#allocation5 + $0x5e28] sm:$0xff]
        %v3430 = vld [vmem:[#allocation5 + $0x5e30] sm:$0xff]
        %v3431 = vld [vmem:[#allocation5 + $0x5e38] sm:$0xff]
        %v3432 = vld [vmem:[#allocation5 + $0x5e40] sm:$0xff]
        %v3433 = vld [vmem:[#allocation5 + $0x5e48] sm:$0xff]
        %v3434 = vld [vmem:[#allocation5 + $0x5e50] sm:$0xff]
        %v3435 = vld [vmem:[#allocation5 + $0x5e58] sm:$0xff]
        %v3436 = vld [vmem:[#allocation5 + $0x5e60] sm:$0xff]
        %v3437 = vld [vmem:[#allocation5 + $0x5e68] sm:$0xff]
        %v3438 = vld [vmem:[#allocation5 + $0x5e70] sm:$0xff]
        %v3439 = vld [vmem:[#allocation5 + $0x5e78] sm:$0xff]
        %v3440 = vld [vmem:[#allocation5 + $0x5e80] sm:$0xff]
        %v3441 = vld [vmem:[#allocation5 + $0x5e88] sm:$0xff]
        %v3442 = vld [vmem:[#allocation5 + $0x5e90] sm:$0xff]
        %v3443 = vld [vmem:[#allocation5 + $0x5e98] sm:$0xff]
        %v3444 = vld [vmem:[#allocation5 + $0x5ea0] sm:$0xff]
        %v3445 = vld [vmem:[#allocation5 + $0x5ea8] sm:$0xff]
        %v3446 = vld [vmem:[#allocation5 + $0x5eb0] sm:$0xff]
        %v3447 = vld [vmem:[#allocation5 + $0x5eb8] sm:$0xff]
        %v3448 = vld [vmem:[#allocation5 + $0x5ec0] sm:$0xff]
        %v3449 = vld [vmem:[#allocation5 + $0x5ec8] sm:$0xff]
        %v3450 = vld [vmem:[#allocation5 + $0x5ed0] sm:$0xff]
        %v3451 = vld [vmem:[#allocation5 + $0x5ed8] sm:$0xff]
        %v3452 = vld [vmem:[#allocation5 + $0x5ee0] sm:$0xff]
        %v3453 = vld [vmem:[#allocation5 + $0x5ee8] sm:$0xff]
        %v3454 = vld [vmem:[#allocation5 + $0x5ef0] sm:$0xff]
        %v3455 = vld [vmem:[#allocation5 + $0x5ef8] sm:$0xff]
        %v3456 = vld [vmem:[#allocation5 + $0x5f00] sm:$0xff]
        %v3457 = vld [vmem:[#allocation5 + $0x5f08] sm:$0xff]
        %v3458 = vld [vmem:[#allocation5 + $0x5f10] sm:$0xff]
        %v3459 = vld [vmem:[#allocation5 + $0x5f18] sm:$0xff]
        %v3460 = vld [vmem:[#allocation5 + $0x5f20] sm:$0xff]
        %v3461 = vld [vmem:[#allocation5 + $0x5f28] sm:$0xff]
        %v3462 = vld [vmem:[#allocation5 + $0x5f30] sm:$0xff]
        %v3463 = vld [vmem:[#allocation5 + $0x5f38] sm:$0xff]
        %v3464 = vld [vmem:[#allocation5 + $0x5f40] sm:$0xff]
        %v3465 = vld [vmem:[#allocation5 + $0x5f48] sm:$0xff]
        %v3466 = vld [vmem:[#allocation5 + $0x5f50] sm:$0xff]
        %v3467 = vld [vmem:[#allocation5 + $0x5f58] sm:$0xff]
        %v3468 = vld [vmem:[#allocation5 + $0x5f60] sm:$0xff]
        %v3469 = vld [vmem:[#allocation5 + $0x5f68] sm:$0xff]
        %v3470 = vld [vmem:[#allocation5 + $0x5f70] sm:$0xff]
        %v3471 = vld [vmem:[#allocation5 + $0x5f78] sm:$0xff]
        %v3472 = vld [vmem:[#allocation5 + $0x5f80] sm:$0xff]
        %v3473 = vld [vmem:[#allocation5 + $0x5f88] sm:$0xff]
        %v3474 = vld [vmem:[#allocation5 + $0x5f90] sm:$0xff]
        %v3475 = vld [vmem:[#allocation5 + $0x5f98] sm:$0xff]
        %v3476 = vld [vmem:[#allocation5 + $0x5fa0] sm:$0xff]
        %v3477 = vld [vmem:[#allocation5 + $0x5fa8] sm:$0xff]
        %v3478 = vld [vmem:[#allocation5 + $0x5fb0] sm:$0xff]
        %v3479 = vld [vmem:[#allocation5 + $0x5fb8] sm:$0xff]
        %v3480 = vld [vmem:[#allocation5 + $0x5fc0] sm:$0xff]
        %v3481 = vld [vmem:[#allocation5 + $0x5fc8] sm:$0xff]
        %v3482 = vld [vmem:[#allocation5 + $0x5fd0] sm:$0xff]
        %v3483 = vld [vmem:[#allocation5 + $0x5fd8] sm:$0xff]
        %v3484 = vld [vmem:[#allocation5 + $0x5fe0] sm:$0xff]
        %v3485 = vld [vmem:[#allocation5 + $0x5fe8] sm:$0xff]
        %v3486 = vld [vmem:[#allocation5 + $0x5ff0] sm:$0xff]
        %v3487 = vld [vmem:[#allocation5 + $0x5ff8] sm:$0xff]
        %v3488 = vld [vmem:[#allocation5 + $0x6000] sm:$0xff]
        %v3489 = vld [vmem:[#allocation5 + $0x6008] sm:$0xff]
        %v3490 = vld [vmem:[#allocation5 + $0x6010] sm:$0xff]
        %v3491 = vld [vmem:[#allocation5 + $0x6018] sm:$0xff]
        %v3492 = vld [vmem:[#allocation5 + $0x6020] sm:$0xff]
        %v3493 = vld [vmem:[#allocation5 + $0x6028] sm:$0xff]
        %v3494 = vld [vmem:[#allocation5 + $0x6030] sm:$0xff]
        %v3495 = vld [vmem:[#allocation5 + $0x6038] sm:$0xff]
        %v3496 = vld [vmem:[#allocation5 + $0x6040] sm:$0xff]
        %v3497 = vld [vmem:[#allocation5 + $0x6048] sm:$0xff]
        %v3498 = vld [vmem:[#allocation5 + $0x6050] sm:$0xff]
        %v3499 = vld [vmem:[#allocation5 + $0x6058] sm:$0xff]
        %v3500 = vld [vmem:[#allocation5 + $0x6060] sm:$0xff]
        %v3501 = vld [vmem:[#allocation5 + $0x6068] sm:$0xff]
        %v3502 = vld [vmem:[#allocation5 + $0x6070] sm:$0xff]
        %v3503 = vld [vmem:[#allocation5 + $0x6078] sm:$0xff]
        %v3504 = vld [vmem:[#allocation5 + $0x6080] sm:$0xff]
        %v3505 = vld [vmem:[#allocation5 + $0x6088] sm:$0xff]
        %v3506 = vld [vmem:[#allocation5 + $0x6090] sm:$0xff]
        %v3507 = vld [vmem:[#allocation5 + $0x6098] sm:$0xff]
        %v3508 = vld [vmem:[#allocation5 + $0x60a0] sm:$0xff]
        %v3509 = vld [vmem:[#allocation5 + $0x60a8] sm:$0xff]
        %v3510 = vld [vmem:[#allocation5 + $0x60b0] sm:$0xff]
        %v3511 = vld [vmem:[#allocation5 + $0x60b8] sm:$0xff]
        %v3512 = vld [vmem:[#allocation5 + $0x60c0] sm:$0xff]
        %v3513 = vld [vmem:[#allocation5 + $0x60c8] sm:$0xff]
        %v3514 = vld [vmem:[#allocation5 + $0x60d0] sm:$0xff]
        %v3515 = vld [vmem:[#allocation5 + $0x60d8] sm:$0xff]
        %v3516 = vld [vmem:[#allocation5 + $0x60e0] sm:$0xff]
        %v3517 = vld [vmem:[#allocation5 + $0x60e8] sm:$0xff]
        %v3518 = vld [vmem:[#allocation5 + $0x60f0] sm:$0xff]
        %v3519 = vld [vmem:[#allocation5 + $0x60f8] sm:$0xff]
        %v3520 = vld [vmem:[#allocation5 + $0x6100] sm:$0xff]
        %v3521 = vld [vmem:[#allocation5 + $0x6108] sm:$0xff]
        %v3522 = vld [vmem:[#allocation5 + $0x6110] sm:$0xff]
        %v3523 = vld [vmem:[#allocation5 + $0x6118] sm:$0xff]
        %v3524 = vld [vmem:[#allocation5 + $0x6120] sm:$0xff]
        %v3525 = vld [vmem:[#allocation5 + $0x6128] sm:$0xff]
        %v3526 = vld [vmem:[#allocation5 + $0x6130] sm:$0xff]
        %v3527 = vld [vmem:[#allocation5 + $0x6138] sm:$0xff]
        %v3528 = vld [vmem:[#allocation5 + $0x6140] sm:$0xff]
        %v3529 = vld [vmem:[#allocation5 + $0x6148] sm:$0xff]
        %v3530 = vld [vmem:[#allocation5 + $0x6150] sm:$0xff]
        %v3531 = vld [vmem:[#allocation5 + $0x6158] sm:$0xff]
        %v3532 = vld [vmem:[#allocation5 + $0x6160] sm:$0xff]
        %v3533 = vld [vmem:[#allocation5 + $0x6168] sm:$0xff]
        %v3534 = vld [vmem:[#allocation5 + $0x6170] sm:$0xff]
        %v3535 = vld [vmem:[#allocation5 + $0x6178] sm:$0xff]
        %v3536 = vld [vmem:[#allocation5 + $0x6180] sm:$0xff]
        %v3537 = vld [vmem:[#allocation5 + $0x6188] sm:$0xff]
        %v3538 = vld [vmem:[#allocation5 + $0x6190] sm:$0xff]
        %v3539 = vld [vmem:[#allocation5 + $0x6198] sm:$0xff]
        %v3540 = vld [vmem:[#allocation5 + $0x61a0] sm:$0xff]
        %v3541 = vld [vmem:[#allocation5 + $0x61a8] sm:$0xff]
        %v3542 = vld [vmem:[#allocation5 + $0x61b0] sm:$0xff]
        %v3543 = vld [vmem:[#allocation5 + $0x61b8] sm:$0xff]
        %v3544 = vld [vmem:[#allocation5 + $0x61c0] sm:$0xff]
        %v3545 = vld [vmem:[#allocation5 + $0x61c8] sm:$0xff]
        %v3546 = vld [vmem:[#allocation5 + $0x61d0] sm:$0xff]
        %v3547 = vld [vmem:[#allocation5 + $0x61d8] sm:$0xff]
        %v3548 = vld [vmem:[#allocation5 + $0x61e0] sm:$0xff]
        %v3549 = vld [vmem:[#allocation5 + $0x61e8] sm:$0xff]
        %v3550 = vld [vmem:[#allocation5 + $0x61f0] sm:$0xff]
        %v3551 = vld [vmem:[#allocation5 + $0x61f8] sm:$0xff]
        %v3552 = vld [vmem:[#allocation7] sm:$0x1]
        %v3554 = vperm.slane %v3552, 0
        %3556 = vmatpush.msra.mxu0 %v431
        %3557 = vmatpush.msra.mxu0 %v430
        %3558 = vmatpush.msra.mxu0 %v429
        %3559 = vmatpush.msra.mxu0 %v428
        %3560 = vmatpush.msra.mxu0 %v427
        %3561 = vmatpush.msra.mxu0 %v426
        %3562 = vmatpush.msra.mxu0 %v425
        %3563 = vmatpush.msra.mxu0 %v424
        %3564 = vmatpush.msra.mxu0 %v423
        %3565 = vmatpush.msra.mxu0 %v422
        %3566 = vmatpush.msra.mxu0 %v421
        %3567 = vmatpush.msra.mxu0 %v420
        %3568 = vmatpush.msra.mxu0 %v419
        %3569 = vmatpush.msra.mxu0 %v418
        %3570 = vmatpush.msra.mxu0 %v417
        %3571 = vmatpush.msra.mxu0 %v416
        %3572 = vmatmul.f32.gmra.mxu0 %v220
        %v3573 = vpop.f32.mrf.mxu0
        %v3574 = vadd.f32 %v3554, %v3573
        %3575 = vdwg.mxu0
        %3576 = vmatpush.msra.mxu0 %v447
        %3577 = vmatpush.msra.mxu0 %v446
        %3578 = vmatpush.msra.mxu0 %v445
        %3579 = vmatpush.msra.mxu0 %v444
        %3580 = vmatpush.msra.mxu0 %v443
        %3581 = vmatpush.msra.mxu0 %v442
        %3582 = vmatpush.msra.mxu0 %v441
        %3583 = vmatpush.msra.mxu0 %v440
        %3584 = vmatpush.msra.mxu0 %v439
        %3585 = vmatpush.msra.mxu0 %v438
        %3586 = vmatpush.msra.mxu0 %v437
        %3587 = vmatpush.msra.mxu0 %v436
        %3588 = vmatpush.msra.mxu0 %v435
        %3589 = vmatpush.msra.mxu0 %v434
        %3590 = vmatpush.msra.mxu0 %v433
        %3591 = vmatpush.msra.mxu0 %v432
        %3592 = vmatmul.f32.gmra.mxu0 %v221
        %v3593 = vpop.f32.mrf.mxu0
        %v3594 = vadd.f32 %v3574, %v3593
        %3595 = vdwg.mxu0
        %3596 = vmatpush.msra.mxu0 %v463
        %3597 = vmatpush.msra.mxu0 %v462
        %3598 = vmatpush.msra.mxu0 %v461
        %3599 = vmatpush.msra.mxu0 %v460
        %3600 = vmatpush.msra.mxu0 %v459
        %3601 = vmatpush.msra.mxu0 %v458
        %3602 = vmatpush.msra.mxu0 %v457
        %3603 = vmatpush.msra.mxu0 %v456
        %3604 = vmatpush.msra.mxu0 %v455
        %3605 = vmatpush.msra.mxu0 %v454
        %3606 = vmatpush.msra.mxu0 %v453
        %3607 = vmatpush.msra.mxu0 %v452
        %3608 = vmatpush.msra.mxu0 %v451
        %3609 = vmatpush.msra.mxu0 %v450
        %3610 = vmatpush.msra.mxu0 %v449
        %3611 = vmatpush.msra.mxu0 %v448
        %3612 = vmatmul.f32.gmra.mxu0 %v222
        %v3613 = vpop.f32.mrf.mxu0
        %v3614 = vadd.f32 %v3594, %v3613
        %3615 = vdwg.mxu0
        %3616 = vmatpush.msra.mxu0 %v479
        %3617 = vmatpush.msra.mxu0 %v478
        %3618 = vmatpush.msra.mxu0 %v477
        %3619 = vmatpush.msra.mxu0 %v476
        %3620 = vmatpush.msra.mxu0 %v475
        %3621 = vmatpush.msra.mxu0 %v474
        %3622 = vmatpush.msra.mxu0 %v473
        %3623 = vmatpush.msra.mxu0 %v472
        %3624 = vmatpush.msra.mxu0 %v471
        %3625 = vmatpush.msra.mxu0 %v470
        %3626 = vmatpush.msra.mxu0 %v469
        %3627 = vmatpush.msra.mxu0 %v468
        %3628 = vmatpush.msra.mxu0 %v467
        %3629 = vmatpush.msra.mxu0 %v466
        %3630 = vmatpush.msra.mxu0 %v465
        %3631 = vmatpush.msra.mxu0 %v464
        %3632 = vmatmul.f32.gmra.mxu0 %v223
        %v3633 = vpop.f32.mrf.mxu0
        %v3634 = vadd.f32 %v3614, %v3633
        %3635 = vdwg.mxu0
        %3636 = vmatpush.msra.mxu0 %v495
        %3637 = vmatpush.msra.mxu0 %v494
        %3638 = vmatpush.msra.mxu0 %v493
        %3639 = vmatpush.msra.mxu0 %v492
        %3640 = vmatpush.msra.mxu0 %v491
        %3641 = vmatpush.msra.mxu0 %v490
        %3642 = vmatpush.msra.mxu0 %v489
        %3643 = vmatpush.msra.mxu0 %v488
        %3644 = vmatpush.msra.mxu0 %v487
        %3645 = vmatpush.msra.mxu0 %v486
        %3646 = vmatpush.msra.mxu0 %v485
        %3647 = vmatpush.msra.mxu0 %v484
        %3648 = vmatpush.msra.mxu0 %v483
        %3649 = vmatpush.msra.mxu0 %v482
        %3650 = vmatpush.msra.mxu0 %v481
        %3651 = vmatpush.msra.mxu0 %v480
        %3652 = vmatmul.f32.gmra.mxu0 %v224
        %v3653 = vpop.f32.mrf.mxu0
        %v3654 = vadd.f32 %v3634, %v3653
        %3655 = vdwg.mxu0
        %3656 = vmatpush.msra.mxu0 %v511
        %3657 = vmatpush.msra.mxu0 %v510
        %3658 = vmatpush.msra.mxu0 %v509
        %3659 = vmatpush.msra.mxu0 %v508
        %3660 = vmatpush.msra.mxu0 %v507
        %3661 = vmatpush.msra.mxu0 %v506
        %3662 = vmatpush.msra.mxu0 %v505
        %3663 = vmatpush.msra.mxu0 %v504
        %3664 = vmatpush.msra.mxu0 %v503
        %3665 = vmatpush.msra.mxu0 %v502
        %3666 = vmatpush.msra.mxu0 %v501
        %3667 = vmatpush.msra.mxu0 %v500
        %3668 = vmatpush.msra.mxu0 %v499
        %3669 = vmatpush.msra.mxu0 %v498
        %3670 = vmatpush.msra.mxu0 %v497
        %3671 = vmatpush.msra.mxu0 %v496
        %3672 = vmatmul.f32.gmra.mxu0 %v225
        %v3673 = vpop.f32.mrf.mxu0
        %v3674 = vadd.f32 %v3654, %v3673
        %3675 = vdwg.mxu0
        %3676 = vmatpush.msra.mxu0 %v527
        %3677 = vmatpush.msra.mxu0 %v526
        %3678 = vmatpush.msra.mxu0 %v525
        %3679 = vmatpush.msra.mxu0 %v524
        %3680 = vmatpush.msra.mxu0 %v523
        %3681 = vmatpush.msra.mxu0 %v522
        %3682 = vmatpush.msra.mxu0 %v521
        %3683 = vmatpush.msra.mxu0 %v520
        %3684 = vmatpush.msra.mxu0 %v519
        %3685 = vmatpush.msra.mxu0 %v518
        %3686 = vmatpush.msra.mxu0 %v517
        %3687 = vmatpush.msra.mxu0 %v516
        %3688 = vmatpush.msra.mxu0 %v515
        %3689 = vmatpush.msra.mxu0 %v514
        %3690 = vmatpush.msra.mxu0 %v513
        %3691 = vmatpush.msra.mxu0 %v512
        %3692 = vmatmul.f32.gmra.mxu0 %v226
        %v3693 = vpop.f32.mrf.mxu0
        %v3694 = vadd.f32 %v3674, %v3693
        %3695 = vdwg.mxu0
        %3696 = vmatpush.msra.mxu0 %v543
        %3697 = vmatpush.msra.mxu0 %v542
        %3698 = vmatpush.msra.mxu0 %v541
        %3699 = vmatpush.msra.mxu0 %v540
        %3700 = vmatpush.msra.mxu0 %v539
        %3701 = vmatpush.msra.mxu0 %v538
        %3702 = vmatpush.msra.mxu0 %v537
        %3703 = vmatpush.msra.mxu0 %v536
        %3704 = vmatpush.msra.mxu0 %v535
        %3705 = vmatpush.msra.mxu0 %v534
        %3706 = vmatpush.msra.mxu0 %v533
        %3707 = vmatpush.msra.mxu0 %v532
        %3708 = vmatpush.msra.mxu0 %v531
        %3709 = vmatpush.msra.mxu0 %v530
        %3710 = vmatpush.msra.mxu0 %v529
        %3711 = vmatpush.msra.mxu0 %v528
        %3712 = vmatmul.f32.gmra.mxu0 %v227
        %v3713 = vpop.f32.mrf.mxu0
        %v3714 = vadd.f32 %v3694, %v3713
        %3715 = vdwg.mxu0
        %3716 = vmatpush.msra.mxu0 %v559
        %3717 = vmatpush.msra.mxu0 %v558
        %3718 = vmatpush.msra.mxu0 %v557
        %3719 = vmatpush.msra.mxu0 %v556
        %3720 = vmatpush.msra.mxu0 %v555
        %3721 = vmatpush.msra.mxu0 %v554
        %3722 = vmatpush.msra.mxu0 %v553
        %3723 = vmatpush.msra.mxu0 %v552
        %3724 = vmatpush.msra.mxu0 %v551
        %3725 = vmatpush.msra.mxu0 %v550
        %3726 = vmatpush.msra.mxu0 %v549
        %3727 = vmatpush.msra.mxu0 %v548
        %3728 = vmatpush.msra.mxu0 %v547
        %3729 = vmatpush.msra.mxu0 %v546
        %3730 = vmatpush.msra.mxu0 %v545
        %3731 = vmatpush.msra.mxu0 %v544
        %3732 = vmatmul.f32.gmra.mxu0 %v228
        %v3733 = vpop.f32.mrf.mxu0
        %v3734 = vadd.f32 %v3714, %v3733
        %3735 = vdwg.mxu0
        %3736 = vmatpush.msra.mxu0 %v575
        %3737 = vmatpush.msra.mxu0 %v574
        %3738 = vmatpush.msra.mxu0 %v573
        %3739 = vmatpush.msra.mxu0 %v572
        %3740 = vmatpush.msra.mxu0 %v571
        %3741 = vmatpush.msra.mxu0 %v570
        %3742 = vmatpush.msra.mxu0 %v569
        %3743 = vmatpush.msra.mxu0 %v568
        %3744 = vmatpush.msra.mxu0 %v567
        %3745 = vmatpush.msra.mxu0 %v566
        %3746 = vmatpush.msra.mxu0 %v565
        %3747 = vmatpush.msra.mxu0 %v564
        %3748 = vmatpush.msra.mxu0 %v563
        %3749 = vmatpush.msra.mxu0 %v562
        %3750 = vmatpush.msra.mxu0 %v561
        %3751 = vmatpush.msra.mxu0 %v560
        %3752 = vmatmul.f32.gmra.mxu0 %v229
        %v3753 = vpop.f32.mrf.mxu0
        %v3754 = vadd.f32 %v3734, %v3753
        %3755 = vdwg.mxu0
        %3756 = vmatpush.msra.mxu0 %v591
        %3757 = vmatpush.msra.mxu0 %v590
        %3758 = vmatpush.msra.mxu0 %v589
        %3759 = vmatpush.msra.mxu0 %v588
        %3760 = vmatpush.msra.mxu0 %v587
        %3761 = vmatpush.msra.mxu0 %v586
        %3762 = vmatpush.msra.mxu0 %v585
        %3763 = vmatpush.msra.mxu0 %v584
        %3764 = vmatpush.msra.mxu0 %v583
        %3765 = vmatpush.msra.mxu0 %v582
        %3766 = vmatpush.msra.mxu0 %v581
        %3767 = vmatpush.msra.mxu0 %v580
        %3768 = vmatpush.msra.mxu0 %v579
        %3769 = vmatpush.msra.mxu0 %v578
        %3770 = vmatpush.msra.mxu0 %v577
        %3771 = vmatpush.msra.mxu0 %v576
        %3772 = vmatmul.f32.gmra.mxu0 %v230
        %v3773 = vpop.f32.mrf.mxu0
        %v3774 = vadd.f32 %v3754, %v3773
        %3775 = vdwg.mxu0
        %3776 = vmatpush.msra.mxu0 %v607
        %3777 = vmatpush.msra.mxu0 %v606
        %3778 = vmatpush.msra.mxu0 %v605
        %3779 = vmatpush.msra.mxu0 %v604
        %3780 = vmatpush.msra.mxu0 %v603
        %3781 = vmatpush.msra.mxu0 %v602
        %3782 = vmatpush.msra.mxu0 %v601
        %3783 = vmatpush.msra.mxu0 %v600
        %3784 = vmatpush.msra.mxu0 %v599
        %3785 = vmatpush.msra.mxu0 %v598
        %3786 = vmatpush.msra.mxu0 %v597
        %3787 = vmatpush.msra.mxu0 %v596
        %3788 = vmatpush.msra.mxu0 %v595
        %3789 = vmatpush.msra.mxu0 %v594
        %3790 = vmatpush.msra.mxu0 %v593
        %3791 = vmatpush.msra.mxu0 %v592
        %3792 = vmatmul.f32.gmra.mxu0 %v231
        %v3793 = vpop.f32.mrf.mxu0
        %v3794 = vadd.f32 %v3774, %v3793
        %3795 = vdwg.mxu0
        %3796 = vmatpush.msra.mxu0 %v623
        %3797 = vmatpush.msra.mxu0 %v622
        %3798 = vmatpush.msra.mxu0 %v621
        %3799 = vmatpush.msra.mxu0 %v620
        %3800 = vmatpush.msra.mxu0 %v619
        %3801 = vmatpush.msra.mxu0 %v618
        %3802 = vmatpush.msra.mxu0 %v617
        %3803 = vmatpush.msra.mxu0 %v616
        %3804 = vmatpush.msra.mxu0 %v615
        %3805 = vmatpush.msra.mxu0 %v614
        %3806 = vmatpush.msra.mxu0 %v613
        %3807 = vmatpush.msra.mxu0 %v612
        %3808 = vmatpush.msra.mxu0 %v611
        %3809 = vmatpush.msra.mxu0 %v610
        %3810 = vmatpush.msra.mxu0 %v609
        %3811 = vmatpush.msra.mxu0 %v608
        %3812 = vmatmul.f32.gmra.mxu0 %v232
        %v3813 = vpop.f32.mrf.mxu0
        %v3814 = vadd.f32 %v3794, %v3813
        %3815 = vdwg.mxu0
        %3816 = vmatpush.msra.mxu0 %v639
        %3817 = vmatpush.msra.mxu0 %v638
        %3818 = vmatpush.msra.mxu0 %v637
        %3819 = vmatpush.msra.mxu0 %v636
        %3820 = vmatpush.msra.mxu0 %v635
        %3821 = vmatpush.msra.mxu0 %v634
        %3822 = vmatpush.msra.mxu0 %v633
        %3823 = vmatpush.msra.mxu0 %v632
        %3824 = vmatpush.msra.mxu0 %v631
        %3825 = vmatpush.msra.mxu0 %v630
        %3826 = vmatpush.msra.mxu0 %v629
        %3827 = vmatpush.msra.mxu0 %v628
        %3828 = vmatpush.msra.mxu0 %v627
        %3829 = vmatpush.msra.mxu0 %v626
        %3830 = vmatpush.msra.mxu0 %v625
        %3831 = vmatpush.msra.mxu0 %v624
        %3832 = vmatmul.f32.gmra.mxu0 %v233
        %v3833 = vpop.f32.mrf.mxu0
        %v3834 = vadd.f32 %v3814, %v3833
        %3835 = vdwg.mxu0
        %3836 = vmatpush.msra.mxu0 %v655
        %3837 = vmatpush.msra.mxu0 %v654
        %3838 = vmatpush.msra.mxu0 %v653
        %3839 = vmatpush.msra.mxu0 %v652
        %3840 = vmatpush.msra.mxu0 %v651
        %3841 = vmatpush.msra.mxu0 %v650
        %3842 = vmatpush.msra.mxu0 %v649
        %3843 = vmatpush.msra.mxu0 %v648
        %3844 = vmatpush.msra.mxu0 %v647
        %3845 = vmatpush.msra.mxu0 %v646
        %3846 = vmatpush.msra.mxu0 %v645
        %3847 = vmatpush.msra.mxu0 %v644
        %3848 = vmatpush.msra.mxu0 %v643
        %3849 = vmatpush.msra.mxu0 %v642
        %3850 = vmatpush.msra.mxu0 %v641
        %3851 = vmatpush.msra.mxu0 %v640
        %3852 = vmatmul.f32.gmra.mxu0 %v234
        %v3853 = vpop.f32.mrf.mxu0
        %v3854 = vadd.f32 %v3834, %v3853
        %3855 = vdwg.mxu0
        %3856 = vmatpush.msra.mxu0 %v671
        %3857 = vmatpush.msra.mxu0 %v670
        %3858 = vmatpush.msra.mxu0 %v669
        %3859 = vmatpush.msra.mxu0 %v668
        %3860 = vmatpush.msra.mxu0 %v667
        %3861 = vmatpush.msra.mxu0 %v666
        %3862 = vmatpush.msra.mxu0 %v665
        %3863 = vmatpush.msra.mxu0 %v664
        %3864 = vmatpush.msra.mxu0 %v663
        %3865 = vmatpush.msra.mxu0 %v662
        %3866 = vmatpush.msra.mxu0 %v661
        %3867 = vmatpush.msra.mxu0 %v660
        %3868 = vmatpush.msra.mxu0 %v659
        %3869 = vmatpush.msra.mxu0 %v658
        %3870 = vmatpush.msra.mxu0 %v657
        %3871 = vmatpush.msra.mxu0 %v656
        %3872 = vmatmul.f32.gmra.mxu0 %v235
        %v3873 = vpop.f32.mrf.mxu0
        %v3874 = vadd.f32 %v3854, %v3873
        %3875 = vdwg.mxu0
        %3876 = vmatpush.msra.mxu0 %v687
        %3877 = vmatpush.msra.mxu0 %v686
        %3878 = vmatpush.msra.mxu0 %v685
        %3879 = vmatpush.msra.mxu0 %v684
        %3880 = vmatpush.msra.mxu0 %v683
        %3881 = vmatpush.msra.mxu0 %v682
        %3882 = vmatpush.msra.mxu0 %v681
        %3883 = vmatpush.msra.mxu0 %v680
        %3884 = vmatpush.msra.mxu0 %v679
        %3885 = vmatpush.msra.mxu0 %v678
        %3886 = vmatpush.msra.mxu0 %v677
        %3887 = vmatpush.msra.mxu0 %v676
        %3888 = vmatpush.msra.mxu0 %v675
        %3889 = vmatpush.msra.mxu0 %v674
        %3890 = vmatpush.msra.mxu0 %v673
        %3891 = vmatpush.msra.mxu0 %v672
        %3892 = vmatmul.f32.gmra.mxu0 %v236
        %v3893 = vpop.f32.mrf.mxu0
        %v3894 = vadd.f32 %v3874, %v3893
        %3895 = vdwg.mxu0
        %3896 = vmatpush.msra.mxu0 %v703
        %3897 = vmatpush.msra.mxu0 %v702
        %3898 = vmatpush.msra.mxu0 %v701
        %3899 = vmatpush.msra.mxu0 %v700
        %3900 = vmatpush.msra.mxu0 %v699
        %3901 = vmatpush.msra.mxu0 %v698
        %3902 = vmatpush.msra.mxu0 %v697
        %3903 = vmatpush.msra.mxu0 %v696
        %3904 = vmatpush.msra.mxu0 %v695
        %3905 = vmatpush.msra.mxu0 %v694
        %3906 = vmatpush.msra.mxu0 %v693
        %3907 = vmatpush.msra.mxu0 %v692
        %3908 = vmatpush.msra.mxu0 %v691
        %3909 = vmatpush.msra.mxu0 %v690
        %3910 = vmatpush.msra.mxu0 %v689
        %3911 = vmatpush.msra.mxu0 %v688
        %3912 = vmatmul.f32.gmra.mxu0 %v237
        %v3913 = vpop.f32.mrf.mxu0
        %v3914 = vadd.f32 %v3894, %v3913
        %3915 = vdwg.mxu0
        %3916 = vmatpush.msra.mxu0 %v719
        %3917 = vmatpush.msra.mxu0 %v718
        %3918 = vmatpush.msra.mxu0 %v717
        %3919 = vmatpush.msra.mxu0 %v716
        %3920 = vmatpush.msra.mxu0 %v715
        %3921 = vmatpush.msra.mxu0 %v714
        %3922 = vmatpush.msra.mxu0 %v713
        %3923 = vmatpush.msra.mxu0 %v712
        %3924 = vmatpush.msra.mxu0 %v711
        %3925 = vmatpush.msra.mxu0 %v710
        %3926 = vmatpush.msra.mxu0 %v709
        %3927 = vmatpush.msra.mxu0 %v708
        %3928 = vmatpush.msra.mxu0 %v707
        %3929 = vmatpush.msra.mxu0 %v706
        %3930 = vmatpush.msra.mxu0 %v705
        %3931 = vmatpush.msra.mxu0 %v704
        %3932 = vmatmul.f32.gmra.mxu0 %v238
        %v3933 = vpop.f32.mrf.mxu0
        %v3934 = vadd.f32 %v3914, %v3933
        %3935 = vdwg.mxu0
        %3936 = vmatpush.msra.mxu0 %v735
        %3937 = vmatpush.msra.mxu0 %v734
        %3938 = vmatpush.msra.mxu0 %v733
        %3939 = vmatpush.msra.mxu0 %v732
        %3940 = vmatpush.msra.mxu0 %v731
        %3941 = vmatpush.msra.mxu0 %v730
        %3942 = vmatpush.msra.mxu0 %v729
        %3943 = vmatpush.msra.mxu0 %v728
        %3944 = vmatpush.msra.mxu0 %v727
        %3945 = vmatpush.msra.mxu0 %v726
        %3946 = vmatpush.msra.mxu0 %v725
        %3947 = vmatpush.msra.mxu0 %v724
        %3948 = vmatpush.msra.mxu0 %v723
        %3949 = vmatpush.msra.mxu0 %v722
        %3950 = vmatpush.msra.mxu0 %v721
        %3951 = vmatpush.msra.mxu0 %v720
        %3952 = vmatmul.f32.gmra.mxu0 %v239
        %v3953 = vpop.f32.mrf.mxu0
        %v3954 = vadd.f32 %v3934, %v3953
        %3955 = vdwg.mxu0
        %3956 = vmatpush.msra.mxu0 %v751
        %3957 = vmatpush.msra.mxu0 %v750
        %3958 = vmatpush.msra.mxu0 %v749
        %3959 = vmatpush.msra.mxu0 %v748
        %3960 = vmatpush.msra.mxu0 %v747
        %3961 = vmatpush.msra.mxu0 %v746
        %3962 = vmatpush.msra.mxu0 %v745
        %3963 = vmatpush.msra.mxu0 %v744
        %3964 = vmatpush.msra.mxu0 %v743
        %3965 = vmatpush.msra.mxu0 %v742
        %3966 = vmatpush.msra.mxu0 %v741
        %3967 = vmatpush.msra.mxu0 %v740
        %3968 = vmatpush.msra.mxu0 %v739
        %3969 = vmatpush.msra.mxu0 %v738
        %3970 = vmatpush.msra.mxu0 %v737
        %3971 = vmatpush.msra.mxu0 %v736
        %3972 = vmatmul.f32.gmra.mxu0 %v240
        %v3973 = vpop.f32.mrf.mxu0
        %v3974 = vadd.f32 %v3954, %v3973
        %3975 = vdwg.mxu0
        %3976 = vmatpush.msra.mxu0 %v767
        %3977 = vmatpush.msra.mxu0 %v766
        %3978 = vmatpush.msra.mxu0 %v765
        %3979 = vmatpush.msra.mxu0 %v764
        %3980 = vmatpush.msra.mxu0 %v763
        %3981 = vmatpush.msra.mxu0 %v762
        %3982 = vmatpush.msra.mxu0 %v761
        %3983 = vmatpush.msra.mxu0 %v760
        %3984 = vmatpush.msra.mxu0 %v759
        %3985 = vmatpush.msra.mxu0 %v758
        %3986 = vmatpush.msra.mxu0 %v757
        %3987 = vmatpush.msra.mxu0 %v756
        %3988 = vmatpush.msra.mxu0 %v755
        %3989 = vmatpush.msra.mxu0 %v754
        %3990 = vmatpush.msra.mxu0 %v753
        %3991 = vmatpush.msra.mxu0 %v752
        %3992 = vmatmul.f32.gmra.mxu0 %v241
        %v3993 = vpop.f32.mrf.mxu0
        %v3994 = vadd.f32 %v3974, %v3993
        %3995 = vdwg.mxu0
        %3996 = vmatpush.msra.mxu0 %v783
        %3997 = vmatpush.msra.mxu0 %v782
        %3998 = vmatpush.msra.mxu0 %v781
        %3999 = vmatpush.msra.mxu0 %v780
        %4000 = vmatpush.msra.mxu0 %v779
        %4001 = vmatpush.msra.mxu0 %v778
        %4002 = vmatpush.msra.mxu0 %v777
        %4003 = vmatpush.msra.mxu0 %v776
        %4004 = vmatpush.msra.mxu0 %v775
        %4005 = vmatpush.msra.mxu0 %v774
        %4006 = vmatpush.msra.mxu0 %v773
        %4007 = vmatpush.msra.mxu0 %v772
        %4008 = vmatpush.msra.mxu0 %v771
        %4009 = vmatpush.msra.mxu0 %v770
        %4010 = vmatpush.msra.mxu0 %v769
        %4011 = vmatpush.msra.mxu0 %v768
        %4012 = vmatmul.f32.gmra.mxu0 %v242
        %v4013 = vpop.f32.mrf.mxu0
        %v4014 = vadd.f32 %v3994, %v4013
        %4015 = vdwg.mxu0
        %4016 = vmatpush.msra.mxu0 %v799
        %4017 = vmatpush.msra.mxu0 %v798
        %4018 = vmatpush.msra.mxu0 %v797
        %4019 = vmatpush.msra.mxu0 %v796
        %4020 = vmatpush.msra.mxu0 %v795
        %4021 = vmatpush.msra.mxu0 %v794
        %4022 = vmatpush.msra.mxu0 %v793
        %4023 = vmatpush.msra.mxu0 %v792
        %4024 = vmatpush.msra.mxu0 %v791
        %4025 = vmatpush.msra.mxu0 %v790
        %4026 = vmatpush.msra.mxu0 %v789
        %4027 = vmatpush.msra.mxu0 %v788
        %4028 = vmatpush.msra.mxu0 %v787
        %4029 = vmatpush.msra.mxu0 %v786
        %4030 = vmatpush.msra.mxu0 %v785
        %4031 = vmatpush.msra.mxu0 %v784
        %4032 = vmatmul.f32.gmra.mxu0 %v243
        %v4033 = vpop.f32.mrf.mxu0
        %v4034 = vadd.f32 %v4014, %v4033
        %4035 = vdwg.mxu0
        %4036 = vmatpush.msra.mxu0 %v815
        %4037 = vmatpush.msra.mxu0 %v814
        %4038 = vmatpush.msra.mxu0 %v813
        %4039 = vmatpush.msra.mxu0 %v812
        %4040 = vmatpush.msra.mxu0 %v811
        %4041 = vmatpush.msra.mxu0 %v810
        %4042 = vmatpush.msra.mxu0 %v809
        %4043 = vmatpush.msra.mxu0 %v808
        %4044 = vmatpush.msra.mxu0 %v807
        %4045 = vmatpush.msra.mxu0 %v806
        %4046 = vmatpush.msra.mxu0 %v805
        %4047 = vmatpush.msra.mxu0 %v804
        %4048 = vmatpush.msra.mxu0 %v803
        %4049 = vmatpush.msra.mxu0 %v802
        %4050 = vmatpush.msra.mxu0 %v801
        %4051 = vmatpush.msra.mxu0 %v800
        %4052 = vmatmul.f32.gmra.mxu0 %v244
        %v4053 = vpop.f32.mrf.mxu0
        %v4054 = vadd.f32 %v4034, %v4053
        %4055 = vdwg.mxu0
        %4056 = vmatpush.msra.mxu0 %v831
        %4057 = vmatpush.msra.mxu0 %v830
        %4058 = vmatpush.msra.mxu0 %v829
        %4059 = vmatpush.msra.mxu0 %v828
        %4060 = vmatpush.msra.mxu0 %v827
        %4061 = vmatpush.msra.mxu0 %v826
        %4062 = vmatpush.msra.mxu0 %v825
        %4063 = vmatpush.msra.mxu0 %v824
        %4064 = vmatpush.msra.mxu0 %v823
        %4065 = vmatpush.msra.mxu0 %v822
        %4066 = vmatpush.msra.mxu0 %v821
        %4067 = vmatpush.msra.mxu0 %v820
        %4068 = vmatpush.msra.mxu0 %v819
        %4069 = vmatpush.msra.mxu0 %v818
        %4070 = vmatpush.msra.mxu0 %v817
        %4071 = vmatpush.msra.mxu0 %v816
        %4072 = vmatmul.f32.gmra.mxu0 %v245
        %v4073 = vpop.f32.mrf.mxu0
        %v4074 = vadd.f32 %v4054, %v4073
        %4075 = vdwg.mxu0
        %4076 = vmatpush.msra.mxu0 %v847
        %4077 = vmatpush.msra.mxu0 %v846
        %4078 = vmatpush.msra.mxu0 %v845
        %4079 = vmatpush.msra.mxu0 %v844
        %4080 = vmatpush.msra.mxu0 %v843
        %4081 = vmatpush.msra.mxu0 %v842
        %4082 = vmatpush.msra.mxu0 %v841
        %4083 = vmatpush.msra.mxu0 %v840
        %4084 = vmatpush.msra.mxu0 %v839
        %4085 = vmatpush.msra.mxu0 %v838
        %4086 = vmatpush.msra.mxu0 %v837
        %4087 = vmatpush.msra.mxu0 %v836
        %4088 = vmatpush.msra.mxu0 %v835
        %4089 = vmatpush.msra.mxu0 %v834
        %4090 = vmatpush.msra.mxu0 %v833
        %4091 = vmatpush.msra.mxu0 %v832
        %4092 = vmatmul.f32.gmra.mxu0 %v246
        %v4093 = vpop.f32.mrf.mxu0
        %v4094 = vadd.f32 %v4074, %v4093
        %4095 = vdwg.mxu0
        %4096 = vmatpush.msra.mxu0 %v863
        %4097 = vmatpush.msra.mxu0 %v862
        %4098 = vmatpush.msra.mxu0 %v861
        %4099 = vmatpush.msra.mxu0 %v860
        %4100 = vmatpush.msra.mxu0 %v859
        %4101 = vmatpush.msra.mxu0 %v858
        %4102 = vmatpush.msra.mxu0 %v857
        %4103 = vmatpush.msra.mxu0 %v856
        %4104 = vmatpush.msra.mxu0 %v855
        %4105 = vmatpush.msra.mxu0 %v854
        %4106 = vmatpush.msra.mxu0 %v853
        %4107 = vmatpush.msra.mxu0 %v852
        %4108 = vmatpush.msra.mxu0 %v851
        %4109 = vmatpush.msra.mxu0 %v850
        %4110 = vmatpush.msra.mxu0 %v849
        %4111 = vmatpush.msra.mxu0 %v848
        %4112 = vmatmul.f32.gmra.mxu0 %v247
        %v4113 = vpop.f32.mrf.mxu0
        %v4114 = vadd.f32 %v4094, %v4113
        %4115 = vdwg.mxu0
        %4116 = vmatpush.msra.mxu0 %v879
        %4117 = vmatpush.msra.mxu0 %v878
        %4118 = vmatpush.msra.mxu0 %v877
        %4119 = vmatpush.msra.mxu0 %v876
        %4120 = vmatpush.msra.mxu0 %v875
        %4121 = vmatpush.msra.mxu0 %v874
        %4122 = vmatpush.msra.mxu0 %v873
        %4123 = vmatpush.msra.mxu0 %v872
        %4124 = vmatpush.msra.mxu0 %v871
        %4125 = vmatpush.msra.mxu0 %v870
        %4126 = vmatpush.msra.mxu0 %v869
        %4127 = vmatpush.msra.mxu0 %v868
        %4128 = vmatpush.msra.mxu0 %v867
        %4129 = vmatpush.msra.mxu0 %v866
        %4130 = vmatpush.msra.mxu0 %v865
        %4131 = vmatpush.msra.mxu0 %v864
        %4132 = vmatmul.f32.gmra.mxu0 %v248
        %v4133 = vpop.f32.mrf.mxu0
        %v4134 = vadd.f32 %v4114, %v4133
        %4135 = vdwg.mxu0
        %4136 = vmatpush.msra.mxu0 %v895
        %4137 = vmatpush.msra.mxu0 %v894
        %4138 = vmatpush.msra.mxu0 %v893
        %4139 = vmatpush.msra.mxu0 %v892
        %4140 = vmatpush.msra.mxu0 %v891
        %4141 = vmatpush.msra.mxu0 %v890
        %4142 = vmatpush.msra.mxu0 %v889
        %4143 = vmatpush.msra.mxu0 %v888
        %4144 = vmatpush.msra.mxu0 %v887
        %4145 = vmatpush.msra.mxu0 %v886
        %4146 = vmatpush.msra.mxu0 %v885
        %4147 = vmatpush.msra.mxu0 %v884
        %4148 = vmatpush.msra.mxu0 %v883
        %4149 = vmatpush.msra.mxu0 %v882
        %4150 = vmatpush.msra.mxu0 %v881
        %4151 = vmatpush.msra.mxu0 %v880
        %4152 = vmatmul.f32.gmra.mxu0 %v249
        %v4153 = vpop.f32.mrf.mxu0
        %v4154 = vadd.f32 %v4134, %v4153
        %4155 = vdwg.mxu0
        %4156 = vmatpush.msra.mxu0 %v911
        %4157 = vmatpush.msra.mxu0 %v910
        %4158 = vmatpush.msra.mxu0 %v909
        %4159 = vmatpush.msra.mxu0 %v908
        %4160 = vmatpush.msra.mxu0 %v907
        %4161 = vmatpush.msra.mxu0 %v906
        %4162 = vmatpush.msra.mxu0 %v905
        %4163 = vmatpush.msra.mxu0 %v904
        %4164 = vmatpush.msra.mxu0 %v903
        %4165 = vmatpush.msra.mxu0 %v902
        %4166 = vmatpush.msra.mxu0 %v901
        %4167 = vmatpush.msra.mxu0 %v900
        %4168 = vmatpush.msra.mxu0 %v899
        %4169 = vmatpush.msra.mxu0 %v898
        %4170 = vmatpush.msra.mxu0 %v897
        %4171 = vmatpush.msra.mxu0 %v896
        %4172 = vmatmul.f32.gmra.mxu0 %v250
        %v4173 = vpop.f32.mrf.mxu0
        %v4174 = vadd.f32 %v4154, %v4173
        %4175 = vdwg.mxu0
        %4176 = vmatpush.msra.mxu0 %v927
        %4177 = vmatpush.msra.mxu0 %v926
        %4178 = vmatpush.msra.mxu0 %v925
        %4179 = vmatpush.msra.mxu0 %v924
        %4180 = vmatpush.msra.mxu0 %v923
        %4181 = vmatpush.msra.mxu0 %v922
        %4182 = vmatpush.msra.mxu0 %v921
        %4183 = vmatpush.msra.mxu0 %v920
        %4184 = vmatpush.msra.mxu0 %v919
        %4185 = vmatpush.msra.mxu0 %v918
        %4186 = vmatpush.msra.mxu0 %v917
        %4187 = vmatpush.msra.mxu0 %v916
        %4188 = vmatpush.msra.mxu0 %v915
        %4189 = vmatpush.msra.mxu0 %v914
        %4190 = vmatpush.msra.mxu0 %v913
        %4191 = vmatpush.msra.mxu0 %v912
        %4192 = vmatmul.f32.gmra.mxu0 %v251
        %v4193 = vpop.f32.mrf.mxu0
        %v4194 = vadd.f32 %v4174, %v4193
        %4195 = vdwg.mxu0
        %4196 = vmatpush.msra.mxu0 %v943
        %4197 = vmatpush.msra.mxu0 %v942
        %4198 = vmatpush.msra.mxu0 %v941
        %4199 = vmatpush.msra.mxu0 %v940
        %4200 = vmatpush.msra.mxu0 %v939
        %4201 = vmatpush.msra.mxu0 %v938
        %4202 = vmatpush.msra.mxu0 %v937
        %4203 = vmatpush.msra.mxu0 %v936
        %4204 = vmatpush.msra.mxu0 %v935
        %4205 = vmatpush.msra.mxu0 %v934
        %4206 = vmatpush.msra.mxu0 %v933
        %4207 = vmatpush.msra.mxu0 %v932
        %4208 = vmatpush.msra.mxu0 %v931
        %4209 = vmatpush.msra.mxu0 %v930
        %4210 = vmatpush.msra.mxu0 %v929
        %4211 = vmatpush.msra.mxu0 %v928
        %4212 = vmatmul.f32.gmra.mxu0 %v252
        %v4213 = vpop.f32.mrf.mxu0
        %v4214 = vadd.f32 %v4194, %v4213
        %4215 = vdwg.mxu0
        %4216 = vmatpush.msra.mxu0 %v959
        %4217 = vmatpush.msra.mxu0 %v958
        %4218 = vmatpush.msra.mxu0 %v957
        %4219 = vmatpush.msra.mxu0 %v956
        %4220 = vmatpush.msra.mxu0 %v955
        %4221 = vmatpush.msra.mxu0 %v954
        %4222 = vmatpush.msra.mxu0 %v953
        %4223 = vmatpush.msra.mxu0 %v952
        %4224 = vmatpush.msra.mxu0 %v951
        %4225 = vmatpush.msra.mxu0 %v950
        %4226 = vmatpush.msra.mxu0 %v949
        %4227 = vmatpush.msra.mxu0 %v948
        %4228 = vmatpush.msra.mxu0 %v947
        %4229 = vmatpush.msra.mxu0 %v946
        %4230 = vmatpush.msra.mxu0 %v945
        %4231 = vmatpush.msra.mxu0 %v944
        %4232 = vmatmul.f32.gmra.mxu0 %v253
        %v4233 = vpop.f32.mrf.mxu0
        %v4234 = vadd.f32 %v4214, %v4233
        %4235 = vdwg.mxu0
        %4236 = vmatpush.msra.mxu0 %v975
        %4237 = vmatpush.msra.mxu0 %v974
        %4238 = vmatpush.msra.mxu0 %v973
        %4239 = vmatpush.msra.mxu0 %v972
        %4240 = vmatpush.msra.mxu0 %v971
        %4241 = vmatpush.msra.mxu0 %v970
        %4242 = vmatpush.msra.mxu0 %v969
        %4243 = vmatpush.msra.mxu0 %v968
        %4244 = vmatpush.msra.mxu0 %v967
        %4245 = vmatpush.msra.mxu0 %v966
        %4246 = vmatpush.msra.mxu0 %v965
        %4247 = vmatpush.msra.mxu0 %v964
        %4248 = vmatpush.msra.mxu0 %v963
        %4249 = vmatpush.msra.mxu0 %v962
        %4250 = vmatpush.msra.mxu0 %v961
        %4251 = vmatpush.msra.mxu0 %v960
        %4252 = vmatmul.f32.gmra.mxu0 %v254
        %v4253 = vpop.f32.mrf.mxu0
        %v4254 = vadd.f32 %v4234, %v4253
        %4255 = vdwg.mxu0
        %4256 = vmatpush.msra.mxu0 %v991
        %4257 = vmatpush.msra.mxu0 %v990
        %4258 = vmatpush.msra.mxu0 %v989
        %4259 = vmatpush.msra.mxu0 %v988
        %4260 = vmatpush.msra.mxu0 %v987
        %4261 = vmatpush.msra.mxu0 %v986
        %4262 = vmatpush.msra.mxu0 %v985
        %4263 = vmatpush.msra.mxu0 %v984
        %4264 = vmatpush.msra.mxu0 %v983
        %4265 = vmatpush.msra.mxu0 %v982
        %4266 = vmatpush.msra.mxu0 %v981
        %4267 = vmatpush.msra.mxu0 %v980
        %4268 = vmatpush.msra.mxu0 %v979
        %4269 = vmatpush.msra.mxu0 %v978
        %4270 = vmatpush.msra.mxu0 %v977
        %4271 = vmatpush.msra.mxu0 %v976
        %4272 = vmatmul.f32.gmra.mxu0 %v255
        %v4273 = vpop.f32.mrf.mxu0
        %v4274 = vadd.f32 %v4254, %v4273
        %4275 = vdwg.mxu0
        %4276 = vmatpush.msra.mxu0 %v1007
        %4277 = vmatpush.msra.mxu0 %v1006
        %4278 = vmatpush.msra.mxu0 %v1005
        %4279 = vmatpush.msra.mxu0 %v1004
        %4280 = vmatpush.msra.mxu0 %v1003
        %4281 = vmatpush.msra.mxu0 %v1002
        %4282 = vmatpush.msra.mxu0 %v1001
        %4283 = vmatpush.msra.mxu0 %v1000
        %4284 = vmatpush.msra.mxu0 %v999
        %4285 = vmatpush.msra.mxu0 %v998
        %4286 = vmatpush.msra.mxu0 %v997
        %4287 = vmatpush.msra.mxu0 %v996
        %4288 = vmatpush.msra.mxu0 %v995
        %4289 = vmatpush.msra.mxu0 %v994
        %4290 = vmatpush.msra.mxu0 %v993
        %4291 = vmatpush.msra.mxu0 %v992
        %4292 = vmatmul.f32.gmra.mxu0 %v256
        %v4293 = vpop.f32.mrf.mxu0
        %v4294 = vadd.f32 %v4274, %v4293
        %4295 = vdwg.mxu0
        %4296 = vmatpush.msra.mxu0 %v1023
        %4297 = vmatpush.msra.mxu0 %v1022
        %4298 = vmatpush.msra.mxu0 %v1021
        %4299 = vmatpush.msra.mxu0 %v1020
        %4300 = vmatpush.msra.mxu0 %v1019
        %4301 = vmatpush.msra.mxu0 %v1018
        %4302 = vmatpush.msra.mxu0 %v1017
        %4303 = vmatpush.msra.mxu0 %v1016
        %4304 = vmatpush.msra.mxu0 %v1015
        %4305 = vmatpush.msra.mxu0 %v1014
        %4306 = vmatpush.msra.mxu0 %v1013
        %4307 = vmatpush.msra.mxu0 %v1012
        %4308 = vmatpush.msra.mxu0 %v1011
        %4309 = vmatpush.msra.mxu0 %v1010
        %4310 = vmatpush.msra.mxu0 %v1009
        %4311 = vmatpush.msra.mxu0 %v1008
        %4312 = vmatmul.f32.gmra.mxu0 %v257
        %v4313 = vpop.f32.mrf.mxu0
        %v4314 = vadd.f32 %v4294, %v4313
        %4315 = vdwg.mxu0
        %4316 = vmatpush.msra.mxu0 %v1039
        %4317 = vmatpush.msra.mxu0 %v1038
        %4318 = vmatpush.msra.mxu0 %v1037
        %4319 = vmatpush.msra.mxu0 %v1036
        %4320 = vmatpush.msra.mxu0 %v1035
        %4321 = vmatpush.msra.mxu0 %v1034
        %4322 = vmatpush.msra.mxu0 %v1033
        %4323 = vmatpush.msra.mxu0 %v1032
        %4324 = vmatpush.msra.mxu0 %v1031
        %4325 = vmatpush.msra.mxu0 %v1030
        %4326 = vmatpush.msra.mxu0 %v1029
        %4327 = vmatpush.msra.mxu0 %v1028
        %4328 = vmatpush.msra.mxu0 %v1027
        %4329 = vmatpush.msra.mxu0 %v1026
        %4330 = vmatpush.msra.mxu0 %v1025
        %4331 = vmatpush.msra.mxu0 %v1024
        %4332 = vmatmul.f32.gmra.mxu0 %v258
        %v4333 = vpop.f32.mrf.mxu0
        %v4334 = vadd.f32 %v4314, %v4333
        %4335 = vdwg.mxu0
        %4336 = vmatpush.msra.mxu0 %v1055
        %4337 = vmatpush.msra.mxu0 %v1054
        %4338 = vmatpush.msra.mxu0 %v1053
        %4339 = vmatpush.msra.mxu0 %v1052
        %4340 = vmatpush.msra.mxu0 %v1051
        %4341 = vmatpush.msra.mxu0 %v1050
        %4342 = vmatpush.msra.mxu0 %v1049
        %4343 = vmatpush.msra.mxu0 %v1048
        %4344 = vmatpush.msra.mxu0 %v1047
        %4345 = vmatpush.msra.mxu0 %v1046
        %4346 = vmatpush.msra.mxu0 %v1045
        %4347 = vmatpush.msra.mxu0 %v1044
        %4348 = vmatpush.msra.mxu0 %v1043
        %4349 = vmatpush.msra.mxu0 %v1042
        %4350 = vmatpush.msra.mxu0 %v1041
        %4351 = vmatpush.msra.mxu0 %v1040
        %4352 = vmatmul.f32.gmra.mxu0 %v259
        %v4353 = vpop.f32.mrf.mxu0
        %v4354 = vadd.f32 %v4334, %v4353
        %4355 = vdwg.mxu0
        %4356 = vmatpush.msra.mxu0 %v1071
        %4357 = vmatpush.msra.mxu0 %v1070
        %4358 = vmatpush.msra.mxu0 %v1069
        %4359 = vmatpush.msra.mxu0 %v1068
        %4360 = vmatpush.msra.mxu0 %v1067
        %4361 = vmatpush.msra.mxu0 %v1066
        %4362 = vmatpush.msra.mxu0 %v1065
        %4363 = vmatpush.msra.mxu0 %v1064
        %4364 = vmatpush.msra.mxu0 %v1063
        %4365 = vmatpush.msra.mxu0 %v1062
        %4366 = vmatpush.msra.mxu0 %v1061
        %4367 = vmatpush.msra.mxu0 %v1060
        %4368 = vmatpush.msra.mxu0 %v1059
        %4369 = vmatpush.msra.mxu0 %v1058
        %4370 = vmatpush.msra.mxu0 %v1057
        %4371 = vmatpush.msra.mxu0 %v1056
        %4372 = vmatmul.f32.gmra.mxu0 %v260
        %v4373 = vpop.f32.mrf.mxu0
        %v4374 = vadd.f32 %v4354, %v4373
        %4375 = vdwg.mxu0
        %4376 = vmatpush.msra.mxu0 %v1087
        %4377 = vmatpush.msra.mxu0 %v1086
        %4378 = vmatpush.msra.mxu0 %v1085
        %4379 = vmatpush.msra.mxu0 %v1084
        %4380 = vmatpush.msra.mxu0 %v1083
        %4381 = vmatpush.msra.mxu0 %v1082
        %4382 = vmatpush.msra.mxu0 %v1081
        %4383 = vmatpush.msra.mxu0 %v1080
        %4384 = vmatpush.msra.mxu0 %v1079
        %4385 = vmatpush.msra.mxu0 %v1078
        %4386 = vmatpush.msra.mxu0 %v1077
        %4387 = vmatpush.msra.mxu0 %v1076
        %4388 = vmatpush.msra.mxu0 %v1075
        %4389 = vmatpush.msra.mxu0 %v1074
        %4390 = vmatpush.msra.mxu0 %v1073
        %4391 = vmatpush.msra.mxu0 %v1072
        %4392 = vmatmul.f32.gmra.mxu0 %v261
        %v4393 = vpop.f32.mrf.mxu0
        %v4394 = vadd.f32 %v4374, %v4393
        %4395 = vdwg.mxu0
        %4396 = vmatpush.msra.mxu0 %v1103
        %4397 = vmatpush.msra.mxu0 %v1102
        %4398 = vmatpush.msra.mxu0 %v1101
        %4399 = vmatpush.msra.mxu0 %v1100
        %4400 = vmatpush.msra.mxu0 %v1099
        %4401 = vmatpush.msra.mxu0 %v1098
        %4402 = vmatpush.msra.mxu0 %v1097
        %4403 = vmatpush.msra.mxu0 %v1096
        %4404 = vmatpush.msra.mxu0 %v1095
        %4405 = vmatpush.msra.mxu0 %v1094
        %4406 = vmatpush.msra.mxu0 %v1093
        %4407 = vmatpush.msra.mxu0 %v1092
        %4408 = vmatpush.msra.mxu0 %v1091
        %4409 = vmatpush.msra.mxu0 %v1090
        %4410 = vmatpush.msra.mxu0 %v1089
        %4411 = vmatpush.msra.mxu0 %v1088
        %4412 = vmatmul.f32.gmra.mxu0 %v262
        %v4413 = vpop.f32.mrf.mxu0
        %v4414 = vadd.f32 %v4394, %v4413
        %4415 = vdwg.mxu0
        %4416 = vmatpush.msra.mxu0 %v1119
        %4417 = vmatpush.msra.mxu0 %v1118
        %4418 = vmatpush.msra.mxu0 %v1117
        %4419 = vmatpush.msra.mxu0 %v1116
        %4420 = vmatpush.msra.mxu0 %v1115
        %4421 = vmatpush.msra.mxu0 %v1114
        %4422 = vmatpush.msra.mxu0 %v1113
        %4423 = vmatpush.msra.mxu0 %v1112
        %4424 = vmatpush.msra.mxu0 %v1111
        %4425 = vmatpush.msra.mxu0 %v1110
        %4426 = vmatpush.msra.mxu0 %v1109
        %4427 = vmatpush.msra.mxu0 %v1108
        %4428 = vmatpush.msra.mxu0 %v1107
        %4429 = vmatpush.msra.mxu0 %v1106
        %4430 = vmatpush.msra.mxu0 %v1105
        %4431 = vmatpush.msra.mxu0 %v1104
        %4432 = vmatmul.f32.gmra.mxu0 %v263
        %v4433 = vpop.f32.mrf.mxu0
        %v4434 = vadd.f32 %v4414, %v4433
        %4435 = vdwg.mxu0
        %4436 = vmatpush.msra.mxu0 %v1135
        %4437 = vmatpush.msra.mxu0 %v1134
        %4438 = vmatpush.msra.mxu0 %v1133
        %4439 = vmatpush.msra.mxu0 %v1132
        %4440 = vmatpush.msra.mxu0 %v1131
        %4441 = vmatpush.msra.mxu0 %v1130
        %4442 = vmatpush.msra.mxu0 %v1129
        %4443 = vmatpush.msra.mxu0 %v1128
        %4444 = vmatpush.msra.mxu0 %v1127
        %4445 = vmatpush.msra.mxu0 %v1126
        %4446 = vmatpush.msra.mxu0 %v1125
        %4447 = vmatpush.msra.mxu0 %v1124
        %4448 = vmatpush.msra.mxu0 %v1123
        %4449 = vmatpush.msra.mxu0 %v1122
        %4450 = vmatpush.msra.mxu0 %v1121
        %4451 = vmatpush.msra.mxu0 %v1120
        %4452 = vmatmul.f32.gmra.mxu0 %v264
        %v4453 = vpop.f32.mrf.mxu0
        %v4454 = vadd.f32 %v4434, %v4453
        %4455 = vdwg.mxu0
        %4456 = vmatpush.msra.mxu0 %v1151
        %4457 = vmatpush.msra.mxu0 %v1150
        %4458 = vmatpush.msra.mxu0 %v1149
        %4459 = vmatpush.msra.mxu0 %v1148
        %4460 = vmatpush.msra.mxu0 %v1147
        %4461 = vmatpush.msra.mxu0 %v1146
        %4462 = vmatpush.msra.mxu0 %v1145
        %4463 = vmatpush.msra.mxu0 %v1144
        %4464 = vmatpush.msra.mxu0 %v1143
        %4465 = vmatpush.msra.mxu0 %v1142
        %4466 = vmatpush.msra.mxu0 %v1141
        %4467 = vmatpush.msra.mxu0 %v1140
        %4468 = vmatpush.msra.mxu0 %v1139
        %4469 = vmatpush.msra.mxu0 %v1138
        %4470 = vmatpush.msra.mxu0 %v1137
        %4471 = vmatpush.msra.mxu0 %v1136
        %4472 = vmatmul.f32.gmra.mxu0 %v265
        %v4473 = vpop.f32.mrf.mxu0
        %v4474 = vadd.f32 %v4454, %v4473
        %4475 = vdwg.mxu0
        %4476 = vmatpush.msra.mxu0 %v1167
        %4477 = vmatpush.msra.mxu0 %v1166
        %4478 = vmatpush.msra.mxu0 %v1165
        %4479 = vmatpush.msra.mxu0 %v1164
        %4480 = vmatpush.msra.mxu0 %v1163
        %4481 = vmatpush.msra.mxu0 %v1162
        %4482 = vmatpush.msra.mxu0 %v1161
        %4483 = vmatpush.msra.mxu0 %v1160
        %4484 = vmatpush.msra.mxu0 %v1159
        %4485 = vmatpush.msra.mxu0 %v1158
        %4486 = vmatpush.msra.mxu0 %v1157
        %4487 = vmatpush.msra.mxu0 %v1156
        %4488 = vmatpush.msra.mxu0 %v1155
        %4489 = vmatpush.msra.mxu0 %v1154
        %4490 = vmatpush.msra.mxu0 %v1153
        %4491 = vmatpush.msra.mxu0 %v1152
        %4492 = vmatmul.f32.gmra.mxu0 %v266
        %v4493 = vpop.f32.mrf.mxu0
        %v4494 = vadd.f32 %v4474, %v4493
        %4495 = vdwg.mxu0
        %4496 = vmatpush.msra.mxu0 %v1183
        %4497 = vmatpush.msra.mxu0 %v1182
        %4498 = vmatpush.msra.mxu0 %v1181
        %4499 = vmatpush.msra.mxu0 %v1180
        %4500 = vmatpush.msra.mxu0 %v1179
        %4501 = vmatpush.msra.mxu0 %v1178
        %4502 = vmatpush.msra.mxu0 %v1177
        %4503 = vmatpush.msra.mxu0 %v1176
        %4504 = vmatpush.msra.mxu0 %v1175
        %4505 = vmatpush.msra.mxu0 %v1174
        %4506 = vmatpush.msra.mxu0 %v1173
        %4507 = vmatpush.msra.mxu0 %v1172
        %4508 = vmatpush.msra.mxu0 %v1171
        %4509 = vmatpush.msra.mxu0 %v1170
        %4510 = vmatpush.msra.mxu0 %v1169
        %4511 = vmatpush.msra.mxu0 %v1168
        %4512 = vmatmul.f32.gmra.mxu0 %v267
        %v4513 = vpop.f32.mrf.mxu0
        %v4514 = vadd.f32 %v4494, %v4513
        %4515 = vdwg.mxu0
        %4516 = vmatpush.msra.mxu0 %v1199
        %4517 = vmatpush.msra.mxu0 %v1198
        %4518 = vmatpush.msra.mxu0 %v1197
        %4519 = vmatpush.msra.mxu0 %v1196
        %4520 = vmatpush.msra.mxu0 %v1195
        %4521 = vmatpush.msra.mxu0 %v1194
        %4522 = vmatpush.msra.mxu0 %v1193
        %4523 = vmatpush.msra.mxu0 %v1192
        %4524 = vmatpush.msra.mxu0 %v1191
        %4525 = vmatpush.msra.mxu0 %v1190
        %4526 = vmatpush.msra.mxu0 %v1189
        %4527 = vmatpush.msra.mxu0 %v1188
        %4528 = vmatpush.msra.mxu0 %v1187
        %4529 = vmatpush.msra.mxu0 %v1186
        %4530 = vmatpush.msra.mxu0 %v1185
        %4531 = vmatpush.msra.mxu0 %v1184
        %4532 = vmatmul.f32.gmra.mxu0 %v268
        %v4533 = vpop.f32.mrf.mxu0
        %v4534 = vadd.f32 %v4514, %v4533
        %4535 = vdwg.mxu0
        %4536 = vmatpush.msra.mxu0 %v1215
        %4537 = vmatpush.msra.mxu0 %v1214
        %4538 = vmatpush.msra.mxu0 %v1213
        %4539 = vmatpush.msra.mxu0 %v1212
        %4540 = vmatpush.msra.mxu0 %v1211
        %4541 = vmatpush.msra.mxu0 %v1210
        %4542 = vmatpush.msra.mxu0 %v1209
        %4543 = vmatpush.msra.mxu0 %v1208
        %4544 = vmatpush.msra.mxu0 %v1207
        %4545 = vmatpush.msra.mxu0 %v1206
        %4546 = vmatpush.msra.mxu0 %v1205
        %4547 = vmatpush.msra.mxu0 %v1204
        %4548 = vmatpush.msra.mxu0 %v1203
        %4549 = vmatpush.msra.mxu0 %v1202
        %4550 = vmatpush.msra.mxu0 %v1201
        %4551 = vmatpush.msra.mxu0 %v1200
        %4552 = vmatmul.f32.gmra.mxu0 %v269
        %v4553 = vpop.f32.mrf.mxu0
        %v4554 = vadd.f32 %v4534, %v4553
        %4555 = vdwg.mxu0
        %4556 = vmatpush.msra.mxu0 %v1231
        %4557 = vmatpush.msra.mxu0 %v1230
        %4558 = vmatpush.msra.mxu0 %v1229
        %4559 = vmatpush.msra.mxu0 %v1228
        %4560 = vmatpush.msra.mxu0 %v1227
        %4561 = vmatpush.msra.mxu0 %v1226
        %4562 = vmatpush.msra.mxu0 %v1225
        %4563 = vmatpush.msra.mxu0 %v1224
        %4564 = vmatpush.msra.mxu0 %v1223
        %4565 = vmatpush.msra.mxu0 %v1222
        %4566 = vmatpush.msra.mxu0 %v1221
        %4567 = vmatpush.msra.mxu0 %v1220
        %4568 = vmatpush.msra.mxu0 %v1219
        %4569 = vmatpush.msra.mxu0 %v1218
        %4570 = vmatpush.msra.mxu0 %v1217
        %4571 = vmatpush.msra.mxu0 %v1216
        %4572 = vmatmul.f32.gmra.mxu0 %v270
        %v4573 = vpop.f32.mrf.mxu0
        %v4574 = vadd.f32 %v4554, %v4573
        %4575 = vdwg.mxu0
        %4576 = vmatpush.msra.mxu0 %v1247
        %4577 = vmatpush.msra.mxu0 %v1246
        %4578 = vmatpush.msra.mxu0 %v1245
        %4579 = vmatpush.msra.mxu0 %v1244
        %4580 = vmatpush.msra.mxu0 %v1243
        %4581 = vmatpush.msra.mxu0 %v1242
        %4582 = vmatpush.msra.mxu0 %v1241
        %4583 = vmatpush.msra.mxu0 %v1240
        %4584 = vmatpush.msra.mxu0 %v1239
        %4585 = vmatpush.msra.mxu0 %v1238
        %4586 = vmatpush.msra.mxu0 %v1237
        %4587 = vmatpush.msra.mxu0 %v1236
        %4588 = vmatpush.msra.mxu0 %v1235
        %4589 = vmatpush.msra.mxu0 %v1234
        %4590 = vmatpush.msra.mxu0 %v1233
        %4591 = vmatpush.msra.mxu0 %v1232
        %4592 = vmatmul.f32.gmra.mxu0 %v271
        %v4593 = vpop.f32.mrf.mxu0
        %v4594 = vadd.f32 %v4574, %v4593
        %4595 = vdwg.mxu0
        %4596 = vmatpush.msra.mxu0 %v1263
        %4597 = vmatpush.msra.mxu0 %v1262
        %4598 = vmatpush.msra.mxu0 %v1261
        %4599 = vmatpush.msra.mxu0 %v1260
        %4600 = vmatpush.msra.mxu0 %v1259
        %4601 = vmatpush.msra.mxu0 %v1258
        %4602 = vmatpush.msra.mxu0 %v1257
        %4603 = vmatpush.msra.mxu0 %v1256
        %4604 = vmatpush.msra.mxu0 %v1255
        %4605 = vmatpush.msra.mxu0 %v1254
        %4606 = vmatpush.msra.mxu0 %v1253
        %4607 = vmatpush.msra.mxu0 %v1252
        %4608 = vmatpush.msra.mxu0 %v1251
        %4609 = vmatpush.msra.mxu0 %v1250
        %4610 = vmatpush.msra.mxu0 %v1249
        %4611 = vmatpush.msra.mxu0 %v1248
        %4612 = vmatmul.f32.gmra.mxu0 %v272
        %v4613 = vpop.f32.mrf.mxu0
        %v4614 = vadd.f32 %v4594, %v4613
        %4615 = vdwg.mxu0
        %4616 = vmatpush.msra.mxu0 %v1279
        %4617 = vmatpush.msra.mxu0 %v1278
        %4618 = vmatpush.msra.mxu0 %v1277
        %4619 = vmatpush.msra.mxu0 %v1276
        %4620 = vmatpush.msra.mxu0 %v1275
        %4621 = vmatpush.msra.mxu0 %v1274
        %4622 = vmatpush.msra.mxu0 %v1273
        %4623 = vmatpush.msra.mxu0 %v1272
        %4624 = vmatpush.msra.mxu0 %v1271
        %4625 = vmatpush.msra.mxu0 %v1270
        %4626 = vmatpush.msra.mxu0 %v1269
        %4627 = vmatpush.msra.mxu0 %v1268
        %4628 = vmatpush.msra.mxu0 %v1267
        %4629 = vmatpush.msra.mxu0 %v1266
        %4630 = vmatpush.msra.mxu0 %v1265
        %4631 = vmatpush.msra.mxu0 %v1264
        %4632 = vmatmul.f32.gmra.mxu0 %v273
        %v4633 = vpop.f32.mrf.mxu0
        %v4634 = vadd.f32 %v4614, %v4633
        %4635 = vdwg.mxu0
        %4636 = vmatpush.msra.mxu0 %v1295
        %4637 = vmatpush.msra.mxu0 %v1294
        %4638 = vmatpush.msra.mxu0 %v1293
        %4639 = vmatpush.msra.mxu0 %v1292
        %4640 = vmatpush.msra.mxu0 %v1291
        %4641 = vmatpush.msra.mxu0 %v1290
        %4642 = vmatpush.msra.mxu0 %v1289
        %4643 = vmatpush.msra.mxu0 %v1288
        %4644 = vmatpush.msra.mxu0 %v1287
        %4645 = vmatpush.msra.mxu0 %v1286
        %4646 = vmatpush.msra.mxu0 %v1285
        %4647 = vmatpush.msra.mxu0 %v1284
        %4648 = vmatpush.msra.mxu0 %v1283
        %4649 = vmatpush.msra.mxu0 %v1282
        %4650 = vmatpush.msra.mxu0 %v1281
        %4651 = vmatpush.msra.mxu0 %v1280
        %4652 = vmatmul.f32.gmra.mxu0 %v274
        %v4653 = vpop.f32.mrf.mxu0
        %v4654 = vadd.f32 %v4634, %v4653
        %4655 = vdwg.mxu0
        %4656 = vmatpush.msra.mxu0 %v1311
        %4657 = vmatpush.msra.mxu0 %v1310
        %4658 = vmatpush.msra.mxu0 %v1309
        %4659 = vmatpush.msra.mxu0 %v1308
        %4660 = vmatpush.msra.mxu0 %v1307
        %4661 = vmatpush.msra.mxu0 %v1306
        %4662 = vmatpush.msra.mxu0 %v1305
        %4663 = vmatpush.msra.mxu0 %v1304
        %4664 = vmatpush.msra.mxu0 %v1303
        %4665 = vmatpush.msra.mxu0 %v1302
        %4666 = vmatpush.msra.mxu0 %v1301
        %4667 = vmatpush.msra.mxu0 %v1300
        %4668 = vmatpush.msra.mxu0 %v1299
        %4669 = vmatpush.msra.mxu0 %v1298
        %4670 = vmatpush.msra.mxu0 %v1297
        %4671 = vmatpush.msra.mxu0 %v1296
        %4672 = vmatmul.f32.gmra.mxu0 %v275
        %v4673 = vpop.f32.mrf.mxu0
        %v4674 = vadd.f32 %v4654, %v4673
        %4675 = vdwg.mxu0
        %4676 = vmatpush.msra.mxu0 %v1327
        %4677 = vmatpush.msra.mxu0 %v1326
        %4678 = vmatpush.msra.mxu0 %v1325
        %4679 = vmatpush.msra.mxu0 %v1324
        %4680 = vmatpush.msra.mxu0 %v1323
        %4681 = vmatpush.msra.mxu0 %v1322
        %4682 = vmatpush.msra.mxu0 %v1321
        %4683 = vmatpush.msra.mxu0 %v1320
        %4684 = vmatpush.msra.mxu0 %v1319
        %4685 = vmatpush.msra.mxu0 %v1318
        %4686 = vmatpush.msra.mxu0 %v1317
        %4687 = vmatpush.msra.mxu0 %v1316
        %4688 = vmatpush.msra.mxu0 %v1315
        %4689 = vmatpush.msra.mxu0 %v1314
        %4690 = vmatpush.msra.mxu0 %v1313
        %4691 = vmatpush.msra.mxu0 %v1312
        %4692 = vmatmul.f32.gmra.mxu0 %v276
        %v4693 = vpop.f32.mrf.mxu0
        %v4694 = vadd.f32 %v4674, %v4693
        %4695 = vdwg.mxu0
        %4696 = vmatpush.msra.mxu0 %v1343
        %4697 = vmatpush.msra.mxu0 %v1342
        %4698 = vmatpush.msra.mxu0 %v1341
        %4699 = vmatpush.msra.mxu0 %v1340
        %4700 = vmatpush.msra.mxu0 %v1339
        %4701 = vmatpush.msra.mxu0 %v1338
        %4702 = vmatpush.msra.mxu0 %v1337
        %4703 = vmatpush.msra.mxu0 %v1336
        %4704 = vmatpush.msra.mxu0 %v1335
        %4705 = vmatpush.msra.mxu0 %v1334
        %4706 = vmatpush.msra.mxu0 %v1333
        %4707 = vmatpush.msra.mxu0 %v1332
        %4708 = vmatpush.msra.mxu0 %v1331
        %4709 = vmatpush.msra.mxu0 %v1330
        %4710 = vmatpush.msra.mxu0 %v1329
        %4711 = vmatpush.msra.mxu0 %v1328
        %4712 = vmatmul.f32.gmra.mxu0 %v277
        %v4713 = vpop.f32.mrf.mxu0
        %v4714 = vadd.f32 %v4694, %v4713
        %4715 = vdwg.mxu0
        %4716 = vmatpush.msra.mxu0 %v1359
        %4717 = vmatpush.msra.mxu0 %v1358
        %4718 = vmatpush.msra.mxu0 %v1357
        %4719 = vmatpush.msra.mxu0 %v1356
        %4720 = vmatpush.msra.mxu0 %v1355
        %4721 = vmatpush.msra.mxu0 %v1354
        %4722 = vmatpush.msra.mxu0 %v1353
        %4723 = vmatpush.msra.mxu0 %v1352
        %4724 = vmatpush.msra.mxu0 %v1351
        %4725 = vmatpush.msra.mxu0 %v1350
        %4726 = vmatpush.msra.mxu0 %v1349
        %4727 = vmatpush.msra.mxu0 %v1348
        %4728 = vmatpush.msra.mxu0 %v1347
        %4729 = vmatpush.msra.mxu0 %v1346
        %4730 = vmatpush.msra.mxu0 %v1345
        %4731 = vmatpush.msra.mxu0 %v1344
        %4732 = vmatmul.f32.gmra.mxu0 %v278
        %v4733 = vpop.f32.mrf.mxu0
        %v4734 = vadd.f32 %v4714, %v4733
        %4735 = vdwg.mxu0
        %4736 = vmatpush.msra.mxu0 %v1375
        %4737 = vmatpush.msra.mxu0 %v1374
        %4738 = vmatpush.msra.mxu0 %v1373
        %4739 = vmatpush.msra.mxu0 %v1372
        %4740 = vmatpush.msra.mxu0 %v1371
        %4741 = vmatpush.msra.mxu0 %v1370
        %4742 = vmatpush.msra.mxu0 %v1369
        %4743 = vmatpush.msra.mxu0 %v1368
        %4744 = vmatpush.msra.mxu0 %v1367
        %4745 = vmatpush.msra.mxu0 %v1366
        %4746 = vmatpush.msra.mxu0 %v1365
        %4747 = vmatpush.msra.mxu0 %v1364
        %4748 = vmatpush.msra.mxu0 %v1363
        %4749 = vmatpush.msra.mxu0 %v1362
        %4750 = vmatpush.msra.mxu0 %v1361
        %4751 = vmatpush.msra.mxu0 %v1360
        %4752 = vmatmul.f32.gmra.mxu0 %v279
        %v4753 = vpop.f32.mrf.mxu0
        %v4754 = vadd.f32 %v4734, %v4753
        %4755 = vdwg.mxu0
        %4756 = vmatpush.msra.mxu0 %v1391
        %4757 = vmatpush.msra.mxu0 %v1390
        %4758 = vmatpush.msra.mxu0 %v1389
        %4759 = vmatpush.msra.mxu0 %v1388
        %4760 = vmatpush.msra.mxu0 %v1387
        %4761 = vmatpush.msra.mxu0 %v1386
        %4762 = vmatpush.msra.mxu0 %v1385
        %4763 = vmatpush.msra.mxu0 %v1384
        %4764 = vmatpush.msra.mxu0 %v1383
        %4765 = vmatpush.msra.mxu0 %v1382
        %4766 = vmatpush.msra.mxu0 %v1381
        %4767 = vmatpush.msra.mxu0 %v1380
        %4768 = vmatpush.msra.mxu0 %v1379
        %4769 = vmatpush.msra.mxu0 %v1378
        %4770 = vmatpush.msra.mxu0 %v1377
        %4771 = vmatpush.msra.mxu0 %v1376
        %4772 = vmatmul.f32.gmra.mxu0 %v280
        %v4773 = vpop.f32.mrf.mxu0
        %v4774 = vadd.f32 %v4754, %v4773
        %4775 = vdwg.mxu0
        %4776 = vmatpush.msra.mxu0 %v1407
        %4777 = vmatpush.msra.mxu0 %v1406
        %4778 = vmatpush.msra.mxu0 %v1405
        %4779 = vmatpush.msra.mxu0 %v1404
        %4780 = vmatpush.msra.mxu0 %v1403
        %4781 = vmatpush.msra.mxu0 %v1402
        %4782 = vmatpush.msra.mxu0 %v1401
        %4783 = vmatpush.msra.mxu0 %v1400
        %4784 = vmatpush.msra.mxu0 %v1399
        %4785 = vmatpush.msra.mxu0 %v1398
        %4786 = vmatpush.msra.mxu0 %v1397
        %4787 = vmatpush.msra.mxu0 %v1396
        %4788 = vmatpush.msra.mxu0 %v1395
        %4789 = vmatpush.msra.mxu0 %v1394
        %4790 = vmatpush.msra.mxu0 %v1393
        %4791 = vmatpush.msra.mxu0 %v1392
        %4792 = vmatmul.f32.gmra.mxu0 %v281
        %v4793 = vpop.f32.mrf.mxu0
        %v4794 = vadd.f32 %v4774, %v4793
        %4795 = vdwg.mxu0
        %4796 = vmatpush.msra.mxu0 %v1423
        %4797 = vmatpush.msra.mxu0 %v1422
        %4798 = vmatpush.msra.mxu0 %v1421
        %4799 = vmatpush.msra.mxu0 %v1420
        %4800 = vmatpush.msra.mxu0 %v1419
        %4801 = vmatpush.msra.mxu0 %v1418
        %4802 = vmatpush.msra.mxu0 %v1417
        %4803 = vmatpush.msra.mxu0 %v1416
        %4804 = vmatpush.msra.mxu0 %v1415
        %4805 = vmatpush.msra.mxu0 %v1414
        %4806 = vmatpush.msra.mxu0 %v1413
        %4807 = vmatpush.msra.mxu0 %v1412
        %4808 = vmatpush.msra.mxu0 %v1411
        %4809 = vmatpush.msra.mxu0 %v1410
        %4810 = vmatpush.msra.mxu0 %v1409
        %4811 = vmatpush.msra.mxu0 %v1408
        %4812 = vmatmul.f32.gmra.mxu0 %v282
        %v4813 = vpop.f32.mrf.mxu0
        %v4814 = vadd.f32 %v4794, %v4813
        %4815 = vdwg.mxu0
        %4816 = vmatpush.msra.mxu0 %v1439
        %4817 = vmatpush.msra.mxu0 %v1438
        %4818 = vmatpush.msra.mxu0 %v1437
        %4819 = vmatpush.msra.mxu0 %v1436
        %4820 = vmatpush.msra.mxu0 %v1435
        %4821 = vmatpush.msra.mxu0 %v1434
        %4822 = vmatpush.msra.mxu0 %v1433
        %4823 = vmatpush.msra.mxu0 %v1432
        %4824 = vmatpush.msra.mxu0 %v1431
        %4825 = vmatpush.msra.mxu0 %v1430
        %4826 = vmatpush.msra.mxu0 %v1429
        %4827 = vmatpush.msra.mxu0 %v1428
        %4828 = vmatpush.msra.mxu0 %v1427
        %4829 = vmatpush.msra.mxu0 %v1426
        %4830 = vmatpush.msra.mxu0 %v1425
        %4831 = vmatpush.msra.mxu0 %v1424
        %4832 = vmatmul.f32.gmra.mxu0 %v283
        %v4833 = vpop.f32.mrf.mxu0
        %v4834 = vadd.f32 %v4814, %v4833
        %4835 = vdwg.mxu0
        %4836 = vmatpush.msra.mxu0 %v1455
        %4837 = vmatpush.msra.mxu0 %v1454
        %4838 = vmatpush.msra.mxu0 %v1453
        %4839 = vmatpush.msra.mxu0 %v1452
        %4840 = vmatpush.msra.mxu0 %v1451
        %4841 = vmatpush.msra.mxu0 %v1450
        %4842 = vmatpush.msra.mxu0 %v1449
        %4843 = vmatpush.msra.mxu0 %v1448
        %4844 = vmatpush.msra.mxu0 %v1447
        %4845 = vmatpush.msra.mxu0 %v1446
        %4846 = vmatpush.msra.mxu0 %v1445
        %4847 = vmatpush.msra.mxu0 %v1444
        %4848 = vmatpush.msra.mxu0 %v1443
        %4849 = vmatpush.msra.mxu0 %v1442
        %4850 = vmatpush.msra.mxu0 %v1441
        %4851 = vmatpush.msra.mxu0 %v1440
        %4852 = vmatmul.f32.gmra.mxu0 %v284
        %v4853 = vpop.f32.mrf.mxu0
        %v4854 = vadd.f32 %v4834, %v4853
        %4855 = vdwg.mxu0
        %4856 = vmatpush.msra.mxu0 %v1471
        %4857 = vmatpush.msra.mxu0 %v1470
        %4858 = vmatpush.msra.mxu0 %v1469
        %4859 = vmatpush.msra.mxu0 %v1468
        %4860 = vmatpush.msra.mxu0 %v1467
        %4861 = vmatpush.msra.mxu0 %v1466
        %4862 = vmatpush.msra.mxu0 %v1465
        %4863 = vmatpush.msra.mxu0 %v1464
        %4864 = vmatpush.msra.mxu0 %v1463
        %4865 = vmatpush.msra.mxu0 %v1462
        %4866 = vmatpush.msra.mxu0 %v1461
        %4867 = vmatpush.msra.mxu0 %v1460
        %4868 = vmatpush.msra.mxu0 %v1459
        %4869 = vmatpush.msra.mxu0 %v1458
        %4870 = vmatpush.msra.mxu0 %v1457
        %4871 = vmatpush.msra.mxu0 %v1456
        %4872 = vmatmul.f32.gmra.mxu0 %v285
        %v4873 = vpop.f32.mrf.mxu0
        %v4874 = vadd.f32 %v4854, %v4873
        %4875 = vdwg.mxu0
        %4876 = vmatpush.msra.mxu0 %v1487
        %4877 = vmatpush.msra.mxu0 %v1486
        %4878 = vmatpush.msra.mxu0 %v1485
        %4879 = vmatpush.msra.mxu0 %v1484
        %4880 = vmatpush.msra.mxu0 %v1483
        %4881 = vmatpush.msra.mxu0 %v1482
        %4882 = vmatpush.msra.mxu0 %v1481
        %4883 = vmatpush.msra.mxu0 %v1480
        %4884 = vmatpush.msra.mxu0 %v1479
        %4885 = vmatpush.msra.mxu0 %v1478
        %4886 = vmatpush.msra.mxu0 %v1477
        %4887 = vmatpush.msra.mxu0 %v1476
        %4888 = vmatpush.msra.mxu0 %v1475
        %4889 = vmatpush.msra.mxu0 %v1474
        %4890 = vmatpush.msra.mxu0 %v1473
        %4891 = vmatpush.msra.mxu0 %v1472
        %4892 = vmatmul.f32.gmra.mxu0 %v286
        %v4893 = vpop.f32.mrf.mxu0
        %v4894 = vadd.f32 %v4874, %v4893
        %4895 = vdwg.mxu0
        %4896 = vmatpush.msra.mxu0 %v1503
        %4897 = vmatpush.msra.mxu0 %v1502
        %4898 = vmatpush.msra.mxu0 %v1501
        %4899 = vmatpush.msra.mxu0 %v1500
        %4900 = vmatpush.msra.mxu0 %v1499
        %4901 = vmatpush.msra.mxu0 %v1498
        %4902 = vmatpush.msra.mxu0 %v1497
        %4903 = vmatpush.msra.mxu0 %v1496
        %4904 = vmatpush.msra.mxu0 %v1495
        %4905 = vmatpush.msra.mxu0 %v1494
        %4906 = vmatpush.msra.mxu0 %v1493
        %4907 = vmatpush.msra.mxu0 %v1492
        %4908 = vmatpush.msra.mxu0 %v1491
        %4909 = vmatpush.msra.mxu0 %v1490
        %4910 = vmatpush.msra.mxu0 %v1489
        %4911 = vmatpush.msra.mxu0 %v1488
        %4912 = vmatmul.f32.gmra.mxu0 %v287
        %v4913 = vpop.f32.mrf.mxu0
        %v4914 = vadd.f32 %v4894, %v4913
        %4915 = vdwg.mxu0
        %4916 = vmatpush.msra.mxu0 %v1519
        %4917 = vmatpush.msra.mxu0 %v1518
        %4918 = vmatpush.msra.mxu0 %v1517
        %4919 = vmatpush.msra.mxu0 %v1516
        %4920 = vmatpush.msra.mxu0 %v1515
        %4921 = vmatpush.msra.mxu0 %v1514
        %4922 = vmatpush.msra.mxu0 %v1513
        %4923 = vmatpush.msra.mxu0 %v1512
        %4924 = vmatpush.msra.mxu0 %v1511
        %4925 = vmatpush.msra.mxu0 %v1510
        %4926 = vmatpush.msra.mxu0 %v1509
        %4927 = vmatpush.msra.mxu0 %v1508
        %4928 = vmatpush.msra.mxu0 %v1507
        %4929 = vmatpush.msra.mxu0 %v1506
        %4930 = vmatpush.msra.mxu0 %v1505
        %4931 = vmatpush.msra.mxu0 %v1504
        %4932 = vmatmul.f32.gmra.mxu0 %v288
        %v4933 = vpop.f32.mrf.mxu0
        %v4934 = vadd.f32 %v4914, %v4933
        %4935 = vdwg.mxu0
        %4936 = vmatpush.msra.mxu0 %v1535
        %4937 = vmatpush.msra.mxu0 %v1534
        %4938 = vmatpush.msra.mxu0 %v1533
        %4939 = vmatpush.msra.mxu0 %v1532
        %4940 = vmatpush.msra.mxu0 %v1531
        %4941 = vmatpush.msra.mxu0 %v1530
        %4942 = vmatpush.msra.mxu0 %v1529
        %4943 = vmatpush.msra.mxu0 %v1528
        %4944 = vmatpush.msra.mxu0 %v1527
        %4945 = vmatpush.msra.mxu0 %v1526
        %4946 = vmatpush.msra.mxu0 %v1525
        %4947 = vmatpush.msra.mxu0 %v1524
        %4948 = vmatpush.msra.mxu0 %v1523
        %4949 = vmatpush.msra.mxu0 %v1522
        %4950 = vmatpush.msra.mxu0 %v1521
        %4951 = vmatpush.msra.mxu0 %v1520
        %4952 = vmatmul.f32.gmra.mxu0 %v289
        %v4953 = vpop.f32.mrf.mxu0
        %v4954 = vadd.f32 %v4934, %v4953
        %4955 = vdwg.mxu0
        %4956 = vmatpush.msra.mxu0 %v1551
        %4957 = vmatpush.msra.mxu0 %v1550
        %4958 = vmatpush.msra.mxu0 %v1549
        %4959 = vmatpush.msra.mxu0 %v1548
        %4960 = vmatpush.msra.mxu0 %v1547
        %4961 = vmatpush.msra.mxu0 %v1546
        %4962 = vmatpush.msra.mxu0 %v1545
        %4963 = vmatpush.msra.mxu0 %v1544
        %4964 = vmatpush.msra.mxu0 %v1543
        %4965 = vmatpush.msra.mxu0 %v1542
        %4966 = vmatpush.msra.mxu0 %v1541
        %4967 = vmatpush.msra.mxu0 %v1540
        %4968 = vmatpush.msra.mxu0 %v1539
        %4969 = vmatpush.msra.mxu0 %v1538
        %4970 = vmatpush.msra.mxu0 %v1537
        %4971 = vmatpush.msra.mxu0 %v1536
        %4972 = vmatmul.f32.gmra.mxu0 %v290
        %v4973 = vpop.f32.mrf.mxu0
        %v4974 = vadd.f32 %v4954, %v4973
        %4975 = vdwg.mxu0
        %4976 = vmatpush.msra.mxu0 %v1567
        %4977 = vmatpush.msra.mxu0 %v1566
        %4978 = vmatpush.msra.mxu0 %v1565
        %4979 = vmatpush.msra.mxu0 %v1564
        %4980 = vmatpush.msra.mxu0 %v1563
        %4981 = vmatpush.msra.mxu0 %v1562
        %4982 = vmatpush.msra.mxu0 %v1561
        %4983 = vmatpush.msra.mxu0 %v1560
        %4984 = vmatpush.msra.mxu0 %v1559
        %4985 = vmatpush.msra.mxu0 %v1558
        %4986 = vmatpush.msra.mxu0 %v1557
        %4987 = vmatpush.msra.mxu0 %v1556
        %4988 = vmatpush.msra.mxu0 %v1555
        %4989 = vmatpush.msra.mxu0 %v1554
        %4990 = vmatpush.msra.mxu0 %v1553
        %4991 = vmatpush.msra.mxu0 %v1552
        %4992 = vmatmul.f32.gmra.mxu0 %v291
        %v4993 = vpop.f32.mrf.mxu0
        %v4994 = vadd.f32 %v4974, %v4993
        %4995 = vdwg.mxu0
        %4996 = vmatpush.msra.mxu0 %v1583
        %4997 = vmatpush.msra.mxu0 %v1582
        %4998 = vmatpush.msra.mxu0 %v1581
        %4999 = vmatpush.msra.mxu0 %v1580
        %5000 = vmatpush.msra.mxu0 %v1579
        %5001 = vmatpush.msra.mxu0 %v1578
        %5002 = vmatpush.msra.mxu0 %v1577
        %5003 = vmatpush.msra.mxu0 %v1576
        %5004 = vmatpush.msra.mxu0 %v1575
        %5005 = vmatpush.msra.mxu0 %v1574
        %5006 = vmatpush.msra.mxu0 %v1573
        %5007 = vmatpush.msra.mxu0 %v1572
        %5008 = vmatpush.msra.mxu0 %v1571
        %5009 = vmatpush.msra.mxu0 %v1570
        %5010 = vmatpush.msra.mxu0 %v1569
        %5011 = vmatpush.msra.mxu0 %v1568
        %5012 = vmatmul.f32.gmra.mxu0 %v292
        %v5013 = vpop.f32.mrf.mxu0
        %v5014 = vadd.f32 %v4994, %v5013
        %5015 = vdwg.mxu0
        %5016 = vmatpush.msra.mxu0 %v1599
        %5017 = vmatpush.msra.mxu0 %v1598
        %5018 = vmatpush.msra.mxu0 %v1597
        %5019 = vmatpush.msra.mxu0 %v1596
        %5020 = vmatpush.msra.mxu0 %v1595
        %5021 = vmatpush.msra.mxu0 %v1594
        %5022 = vmatpush.msra.mxu0 %v1593
        %5023 = vmatpush.msra.mxu0 %v1592
        %5024 = vmatpush.msra.mxu0 %v1591
        %5025 = vmatpush.msra.mxu0 %v1590
        %5026 = vmatpush.msra.mxu0 %v1589
        %5027 = vmatpush.msra.mxu0 %v1588
        %5028 = vmatpush.msra.mxu0 %v1587
        %5029 = vmatpush.msra.mxu0 %v1586
        %5030 = vmatpush.msra.mxu0 %v1585
        %5031 = vmatpush.msra.mxu0 %v1584
        %5032 = vmatmul.f32.gmra.mxu0 %v293
        %v5033 = vpop.f32.mrf.mxu0
        %v5034 = vadd.f32 %v5014, %v5033
        %5035 = vdwg.mxu0
        %5036 = vmatpush.msra.mxu0 %v1615
        %5037 = vmatpush.msra.mxu0 %v1614
        %5038 = vmatpush.msra.mxu0 %v1613
        %5039 = vmatpush.msra.mxu0 %v1612
        %5040 = vmatpush.msra.mxu0 %v1611
        %5041 = vmatpush.msra.mxu0 %v1610
        %5042 = vmatpush.msra.mxu0 %v1609
        %5043 = vmatpush.msra.mxu0 %v1608
        %5044 = vmatpush.msra.mxu0 %v1607
        %5045 = vmatpush.msra.mxu0 %v1606
        %5046 = vmatpush.msra.mxu0 %v1605
        %5047 = vmatpush.msra.mxu0 %v1604
        %5048 = vmatpush.msra.mxu0 %v1603
        %5049 = vmatpush.msra.mxu0 %v1602
        %5050 = vmatpush.msra.mxu0 %v1601
        %5051 = vmatpush.msra.mxu0 %v1600
        %5052 = vmatmul.f32.gmra.mxu0 %v294
        %v5053 = vpop.f32.mrf.mxu0
        %v5054 = vadd.f32 %v5034, %v5053
        %5055 = vdwg.mxu0
        %5056 = vmatpush.msra.mxu0 %v1631
        %5057 = vmatpush.msra.mxu0 %v1630
        %5058 = vmatpush.msra.mxu0 %v1629
        %5059 = vmatpush.msra.mxu0 %v1628
        %5060 = vmatpush.msra.mxu0 %v1627
        %5061 = vmatpush.msra.mxu0 %v1626
        %5062 = vmatpush.msra.mxu0 %v1625
        %5063 = vmatpush.msra.mxu0 %v1624
        %5064 = vmatpush.msra.mxu0 %v1623
        %5065 = vmatpush.msra.mxu0 %v1622
        %5066 = vmatpush.msra.mxu0 %v1621
        %5067 = vmatpush.msra.mxu0 %v1620
        %5068 = vmatpush.msra.mxu0 %v1619
        %5069 = vmatpush.msra.mxu0 %v1618
        %5070 = vmatpush.msra.mxu0 %v1617
        %5071 = vmatpush.msra.mxu0 %v1616
        %5072 = vmatmul.f32.gmra.mxu0 %v295
        %v5073 = vpop.f32.mrf.mxu0
        %v5074 = vadd.f32 %v5054, %v5073
        %5075 = vdwg.mxu0
        %5076 = vmatpush.msra.mxu0 %v1647
        %5077 = vmatpush.msra.mxu0 %v1646
        %5078 = vmatpush.msra.mxu0 %v1645
        %5079 = vmatpush.msra.mxu0 %v1644
        %5080 = vmatpush.msra.mxu0 %v1643
        %5081 = vmatpush.msra.mxu0 %v1642
        %5082 = vmatpush.msra.mxu0 %v1641
        %5083 = vmatpush.msra.mxu0 %v1640
        %5084 = vmatpush.msra.mxu0 %v1639
        %5085 = vmatpush.msra.mxu0 %v1638
        %5086 = vmatpush.msra.mxu0 %v1637
        %5087 = vmatpush.msra.mxu0 %v1636
        %5088 = vmatpush.msra.mxu0 %v1635
        %5089 = vmatpush.msra.mxu0 %v1634
        %5090 = vmatpush.msra.mxu0 %v1633
        %5091 = vmatpush.msra.mxu0 %v1632
        %5092 = vmatmul.f32.gmra.mxu0 %v296
        %v5093 = vpop.f32.mrf.mxu0
        %v5094 = vadd.f32 %v5074, %v5093
        %5095 = vdwg.mxu0
        %5096 = vmatpush.msra.mxu0 %v1663
        %5097 = vmatpush.msra.mxu0 %v1662
        %5098 = vmatpush.msra.mxu0 %v1661
        %5099 = vmatpush.msra.mxu0 %v1660
        %5100 = vmatpush.msra.mxu0 %v1659
        %5101 = vmatpush.msra.mxu0 %v1658
        %5102 = vmatpush.msra.mxu0 %v1657
        %5103 = vmatpush.msra.mxu0 %v1656
        %5104 = vmatpush.msra.mxu0 %v1655
        %5105 = vmatpush.msra.mxu0 %v1654
        %5106 = vmatpush.msra.mxu0 %v1653
        %5107 = vmatpush.msra.mxu0 %v1652
        %5108 = vmatpush.msra.mxu0 %v1651
        %5109 = vmatpush.msra.mxu0 %v1650
        %5110 = vmatpush.msra.mxu0 %v1649
        %5111 = vmatpush.msra.mxu0 %v1648
        %5112 = vmatmul.f32.gmra.mxu0 %v297
        %v5113 = vpop.f32.mrf.mxu0
        %v5114 = vadd.f32 %v5094, %v5113
        %5115 = vdwg.mxu0
        %5116 = vmatpush.msra.mxu0 %v1679
        %5117 = vmatpush.msra.mxu0 %v1678
        %5118 = vmatpush.msra.mxu0 %v1677
        %5119 = vmatpush.msra.mxu0 %v1676
        %5120 = vmatpush.msra.mxu0 %v1675
        %5121 = vmatpush.msra.mxu0 %v1674
        %5122 = vmatpush.msra.mxu0 %v1673
        %5123 = vmatpush.msra.mxu0 %v1672
        %5124 = vmatpush.msra.mxu0 %v1671
        %5125 = vmatpush.msra.mxu0 %v1670
        %5126 = vmatpush.msra.mxu0 %v1669
        %5127 = vmatpush.msra.mxu0 %v1668
        %5128 = vmatpush.msra.mxu0 %v1667
        %5129 = vmatpush.msra.mxu0 %v1666
        %5130 = vmatpush.msra.mxu0 %v1665
        %5131 = vmatpush.msra.mxu0 %v1664
        %5132 = vmatmul.f32.gmra.mxu0 %v298
        %v5133 = vpop.f32.mrf.mxu0
        %v5134 = vadd.f32 %v5114, %v5133
        %5135 = vdwg.mxu0
        %5136 = vmatpush.msra.mxu0 %v1695
        %5137 = vmatpush.msra.mxu0 %v1694
        %5138 = vmatpush.msra.mxu0 %v1693
        %5139 = vmatpush.msra.mxu0 %v1692
        %5140 = vmatpush.msra.mxu0 %v1691
        %5141 = vmatpush.msra.mxu0 %v1690
        %5142 = vmatpush.msra.mxu0 %v1689
        %5143 = vmatpush.msra.mxu0 %v1688
        %5144 = vmatpush.msra.mxu0 %v1687
        %5145 = vmatpush.msra.mxu0 %v1686
        %5146 = vmatpush.msra.mxu0 %v1685
        %5147 = vmatpush.msra.mxu0 %v1684
        %5148 = vmatpush.msra.mxu0 %v1683
        %5149 = vmatpush.msra.mxu0 %v1682
        %5150 = vmatpush.msra.mxu0 %v1681
        %5151 = vmatpush.msra.mxu0 %v1680
        %5152 = vmatmul.f32.gmra.mxu0 %v299
        %v5153 = vpop.f32.mrf.mxu0
        %v5154 = vadd.f32 %v5134, %v5153
        %5155 = vdwg.mxu0
        %5156 = vmatpush.msra.mxu0 %v1711
        %5157 = vmatpush.msra.mxu0 %v1710
        %5158 = vmatpush.msra.mxu0 %v1709
        %5159 = vmatpush.msra.mxu0 %v1708
        %5160 = vmatpush.msra.mxu0 %v1707
        %5161 = vmatpush.msra.mxu0 %v1706
        %5162 = vmatpush.msra.mxu0 %v1705
        %5163 = vmatpush.msra.mxu0 %v1704
        %5164 = vmatpush.msra.mxu0 %v1703
        %5165 = vmatpush.msra.mxu0 %v1702
        %5166 = vmatpush.msra.mxu0 %v1701
        %5167 = vmatpush.msra.mxu0 %v1700
        %5168 = vmatpush.msra.mxu0 %v1699
        %5169 = vmatpush.msra.mxu0 %v1698
        %5170 = vmatpush.msra.mxu0 %v1697
        %5171 = vmatpush.msra.mxu0 %v1696
        %5172 = vmatmul.f32.gmra.mxu0 %v300
        %v5173 = vpop.f32.mrf.mxu0
        %v5174 = vadd.f32 %v5154, %v5173
        %5175 = vdwg.mxu0
        %5176 = vmatpush.msra.mxu0 %v1727
        %5177 = vmatpush.msra.mxu0 %v1726
        %5178 = vmatpush.msra.mxu0 %v1725
        %5179 = vmatpush.msra.mxu0 %v1724
        %5180 = vmatpush.msra.mxu0 %v1723
        %5181 = vmatpush.msra.mxu0 %v1722
        %5182 = vmatpush.msra.mxu0 %v1721
        %5183 = vmatpush.msra.mxu0 %v1720
        %5184 = vmatpush.msra.mxu0 %v1719
        %5185 = vmatpush.msra.mxu0 %v1718
        %5186 = vmatpush.msra.mxu0 %v1717
        %5187 = vmatpush.msra.mxu0 %v1716
        %5188 = vmatpush.msra.mxu0 %v1715
        %5189 = vmatpush.msra.mxu0 %v1714
        %5190 = vmatpush.msra.mxu0 %v1713
        %5191 = vmatpush.msra.mxu0 %v1712
        %5192 = vmatmul.f32.gmra.mxu0 %v301
        %v5193 = vpop.f32.mrf.mxu0
        %v5194 = vadd.f32 %v5174, %v5193
        %5195 = vdwg.mxu0
        %5196 = vmatpush.msra.mxu0 %v1743
        %5197 = vmatpush.msra.mxu0 %v1742
        %5198 = vmatpush.msra.mxu0 %v1741
        %5199 = vmatpush.msra.mxu0 %v1740
        %5200 = vmatpush.msra.mxu0 %v1739
        %5201 = vmatpush.msra.mxu0 %v1738
        %5202 = vmatpush.msra.mxu0 %v1737
        %5203 = vmatpush.msra.mxu0 %v1736
        %5204 = vmatpush.msra.mxu0 %v1735
        %5205 = vmatpush.msra.mxu0 %v1734
        %5206 = vmatpush.msra.mxu0 %v1733
        %5207 = vmatpush.msra.mxu0 %v1732
        %5208 = vmatpush.msra.mxu0 %v1731
        %5209 = vmatpush.msra.mxu0 %v1730
        %5210 = vmatpush.msra.mxu0 %v1729
        %5211 = vmatpush.msra.mxu0 %v1728
        %5212 = vmatmul.f32.gmra.mxu0 %v302
        %v5213 = vpop.f32.mrf.mxu0
        %v5214 = vadd.f32 %v5194, %v5213
        %5215 = vdwg.mxu0
        %5216 = vmatpush.msra.mxu0 %v1759
        %5217 = vmatpush.msra.mxu0 %v1758
        %5218 = vmatpush.msra.mxu0 %v1757
        %5219 = vmatpush.msra.mxu0 %v1756
        %5220 = vmatpush.msra.mxu0 %v1755
        %5221 = vmatpush.msra.mxu0 %v1754
        %5222 = vmatpush.msra.mxu0 %v1753
        %5223 = vmatpush.msra.mxu0 %v1752
        %5224 = vmatpush.msra.mxu0 %v1751
        %5225 = vmatpush.msra.mxu0 %v1750
        %5226 = vmatpush.msra.mxu0 %v1749
        %5227 = vmatpush.msra.mxu0 %v1748
        %5228 = vmatpush.msra.mxu0 %v1747
        %5229 = vmatpush.msra.mxu0 %v1746
        %5230 = vmatpush.msra.mxu0 %v1745
        %5231 = vmatpush.msra.mxu0 %v1744
        %5232 = vmatmul.f32.gmra.mxu0 %v303
        %v5233 = vpop.f32.mrf.mxu0
        %v5234 = vadd.f32 %v5214, %v5233
        %5235 = vdwg.mxu0
        %5236 = vmatpush.msra.mxu0 %v1775
        %5237 = vmatpush.msra.mxu0 %v1774
        %5238 = vmatpush.msra.mxu0 %v1773
        %5239 = vmatpush.msra.mxu0 %v1772
        %5240 = vmatpush.msra.mxu0 %v1771
        %5241 = vmatpush.msra.mxu0 %v1770
        %5242 = vmatpush.msra.mxu0 %v1769
        %5243 = vmatpush.msra.mxu0 %v1768
        %5244 = vmatpush.msra.mxu0 %v1767
        %5245 = vmatpush.msra.mxu0 %v1766
        %5246 = vmatpush.msra.mxu0 %v1765
        %5247 = vmatpush.msra.mxu0 %v1764
        %5248 = vmatpush.msra.mxu0 %v1763
        %5249 = vmatpush.msra.mxu0 %v1762
        %5250 = vmatpush.msra.mxu0 %v1761
        %5251 = vmatpush.msra.mxu0 %v1760
        %5252 = vmatmul.f32.gmra.mxu0 %v304
        %v5253 = vpop.f32.mrf.mxu0
        %v5254 = vadd.f32 %v5234, %v5253
        %5255 = vdwg.mxu0
        %5256 = vmatpush.msra.mxu0 %v1791
        %5257 = vmatpush.msra.mxu0 %v1790
        %5258 = vmatpush.msra.mxu0 %v1789
        %5259 = vmatpush.msra.mxu0 %v1788
        %5260 = vmatpush.msra.mxu0 %v1787
        %5261 = vmatpush.msra.mxu0 %v1786
        %5262 = vmatpush.msra.mxu0 %v1785
        %5263 = vmatpush.msra.mxu0 %v1784
        %5264 = vmatpush.msra.mxu0 %v1783
        %5265 = vmatpush.msra.mxu0 %v1782
        %5266 = vmatpush.msra.mxu0 %v1781
        %5267 = vmatpush.msra.mxu0 %v1780
        %5268 = vmatpush.msra.mxu0 %v1779
        %5269 = vmatpush.msra.mxu0 %v1778
        %5270 = vmatpush.msra.mxu0 %v1777
        %5271 = vmatpush.msra.mxu0 %v1776
        %5272 = vmatmul.f32.gmra.mxu0 %v305
        %v5273 = vpop.f32.mrf.mxu0
        %v5274 = vadd.f32 %v5254, %v5273
        %5275 = vdwg.mxu0
        %5276 = vmatpush.msra.mxu0 %v1807
        %5277 = vmatpush.msra.mxu0 %v1806
        %5278 = vmatpush.msra.mxu0 %v1805
        %5279 = vmatpush.msra.mxu0 %v1804
        %5280 = vmatpush.msra.mxu0 %v1803
        %5281 = vmatpush.msra.mxu0 %v1802
        %5282 = vmatpush.msra.mxu0 %v1801
        %5283 = vmatpush.msra.mxu0 %v1800
        %5284 = vmatpush.msra.mxu0 %v1799
        %5285 = vmatpush.msra.mxu0 %v1798
        %5286 = vmatpush.msra.mxu0 %v1797
        %5287 = vmatpush.msra.mxu0 %v1796
        %5288 = vmatpush.msra.mxu0 %v1795
        %5289 = vmatpush.msra.mxu0 %v1794
        %5290 = vmatpush.msra.mxu0 %v1793
        %5291 = vmatpush.msra.mxu0 %v1792
        %5292 = vmatmul.f32.gmra.mxu0 %v306
        %v5293 = vpop.f32.mrf.mxu0
        %v5294 = vadd.f32 %v5274, %v5293
        %5295 = vdwg.mxu0
        %5296 = vmatpush.msra.mxu0 %v1823
        %5297 = vmatpush.msra.mxu0 %v1822
        %5298 = vmatpush.msra.mxu0 %v1821
        %5299 = vmatpush.msra.mxu0 %v1820
        %5300 = vmatpush.msra.mxu0 %v1819
        %5301 = vmatpush.msra.mxu0 %v1818
        %5302 = vmatpush.msra.mxu0 %v1817
        %5303 = vmatpush.msra.mxu0 %v1816
        %5304 = vmatpush.msra.mxu0 %v1815
        %5305 = vmatpush.msra.mxu0 %v1814
        %5306 = vmatpush.msra.mxu0 %v1813
        %5307 = vmatpush.msra.mxu0 %v1812
        %5308 = vmatpush.msra.mxu0 %v1811
        %5309 = vmatpush.msra.mxu0 %v1810
        %5310 = vmatpush.msra.mxu0 %v1809
        %5311 = vmatpush.msra.mxu0 %v1808
        %5312 = vmatmul.f32.gmra.mxu0 %v307
        %v5313 = vpop.f32.mrf.mxu0
        %v5314 = vadd.f32 %v5294, %v5313
        %5315 = vdwg.mxu0
        %5316 = vmatpush.msra.mxu0 %v1839
        %5317 = vmatpush.msra.mxu0 %v1838
        %5318 = vmatpush.msra.mxu0 %v1837
        %5319 = vmatpush.msra.mxu0 %v1836
        %5320 = vmatpush.msra.mxu0 %v1835
        %5321 = vmatpush.msra.mxu0 %v1834
        %5322 = vmatpush.msra.mxu0 %v1833
        %5323 = vmatpush.msra.mxu0 %v1832
        %5324 = vmatpush.msra.mxu0 %v1831
        %5325 = vmatpush.msra.mxu0 %v1830
        %5326 = vmatpush.msra.mxu0 %v1829
        %5327 = vmatpush.msra.mxu0 %v1828
        %5328 = vmatpush.msra.mxu0 %v1827
        %5329 = vmatpush.msra.mxu0 %v1826
        %5330 = vmatpush.msra.mxu0 %v1825
        %5331 = vmatpush.msra.mxu0 %v1824
        %5332 = vmatmul.f32.gmra.mxu0 %v308
        %v5333 = vpop.f32.mrf.mxu0
        %v5334 = vadd.f32 %v5314, %v5333
        %5335 = vdwg.mxu0
        %5336 = vmatpush.msra.mxu0 %v1855
        %5337 = vmatpush.msra.mxu0 %v1854
        %5338 = vmatpush.msra.mxu0 %v1853
        %5339 = vmatpush.msra.mxu0 %v1852
        %5340 = vmatpush.msra.mxu0 %v1851
        %5341 = vmatpush.msra.mxu0 %v1850
        %5342 = vmatpush.msra.mxu0 %v1849
        %5343 = vmatpush.msra.mxu0 %v1848
        %5344 = vmatpush.msra.mxu0 %v1847
        %5345 = vmatpush.msra.mxu0 %v1846
        %5346 = vmatpush.msra.mxu0 %v1845
        %5347 = vmatpush.msra.mxu0 %v1844
        %5348 = vmatpush.msra.mxu0 %v1843
        %5349 = vmatpush.msra.mxu0 %v1842
        %5350 = vmatpush.msra.mxu0 %v1841
        %5351 = vmatpush.msra.mxu0 %v1840
        %5352 = vmatmul.f32.gmra.mxu0 %v309
        %v5353 = vpop.f32.mrf.mxu0
        %v5354 = vadd.f32 %v5334, %v5353
        %5355 = vdwg.mxu0
        %5356 = vmatpush.msra.mxu0 %v1871
        %5357 = vmatpush.msra.mxu0 %v1870
        %5358 = vmatpush.msra.mxu0 %v1869
        %5359 = vmatpush.msra.mxu0 %v1868
        %5360 = vmatpush.msra.mxu0 %v1867
        %5361 = vmatpush.msra.mxu0 %v1866
        %5362 = vmatpush.msra.mxu0 %v1865
        %5363 = vmatpush.msra.mxu0 %v1864
        %5364 = vmatpush.msra.mxu0 %v1863
        %5365 = vmatpush.msra.mxu0 %v1862
        %5366 = vmatpush.msra.mxu0 %v1861
        %5367 = vmatpush.msra.mxu0 %v1860
        %5368 = vmatpush.msra.mxu0 %v1859
        %5369 = vmatpush.msra.mxu0 %v1858
        %5370 = vmatpush.msra.mxu0 %v1857
        %5371 = vmatpush.msra.mxu0 %v1856
        %5372 = vmatmul.f32.gmra.mxu0 %v310
        %v5373 = vpop.f32.mrf.mxu0
        %v5374 = vadd.f32 %v5354, %v5373
        %5375 = vdwg.mxu0
        %5376 = vmatpush.msra.mxu0 %v1887
        %5377 = vmatpush.msra.mxu0 %v1886
        %5378 = vmatpush.msra.mxu0 %v1885
        %5379 = vmatpush.msra.mxu0 %v1884
        %5380 = vmatpush.msra.mxu0 %v1883
        %5381 = vmatpush.msra.mxu0 %v1882
        %5382 = vmatpush.msra.mxu0 %v1881
        %5383 = vmatpush.msra.mxu0 %v1880
        %5384 = vmatpush.msra.mxu0 %v1879
        %5385 = vmatpush.msra.mxu0 %v1878
        %5386 = vmatpush.msra.mxu0 %v1877
        %5387 = vmatpush.msra.mxu0 %v1876
        %5388 = vmatpush.msra.mxu0 %v1875
        %5389 = vmatpush.msra.mxu0 %v1874
        %5390 = vmatpush.msra.mxu0 %v1873
        %5391 = vmatpush.msra.mxu0 %v1872
        %5392 = vmatmul.f32.gmra.mxu0 %v311
        %v5393 = vpop.f32.mrf.mxu0
        %v5394 = vadd.f32 %v5374, %v5393
        %5395 = vdwg.mxu0
        %5396 = vmatpush.msra.mxu0 %v1903
        %5397 = vmatpush.msra.mxu0 %v1902
        %5398 = vmatpush.msra.mxu0 %v1901
        %5399 = vmatpush.msra.mxu0 %v1900
        %5400 = vmatpush.msra.mxu0 %v1899
        %5401 = vmatpush.msra.mxu0 %v1898
        %5402 = vmatpush.msra.mxu0 %v1897
        %5403 = vmatpush.msra.mxu0 %v1896
        %5404 = vmatpush.msra.mxu0 %v1895
        %5405 = vmatpush.msra.mxu0 %v1894
        %5406 = vmatpush.msra.mxu0 %v1893
        %5407 = vmatpush.msra.mxu0 %v1892
        %5408 = vmatpush.msra.mxu0 %v1891
        %5409 = vmatpush.msra.mxu0 %v1890
        %5410 = vmatpush.msra.mxu0 %v1889
        %5411 = vmatpush.msra.mxu0 %v1888
        %5412 = vmatmul.f32.gmra.mxu0 %v312
        %v5413 = vpop.f32.mrf.mxu0
        %v5414 = vadd.f32 %v5394, %v5413
        %5415 = vdwg.mxu0
        %5416 = vmatpush.msra.mxu0 %v1919
        %5417 = vmatpush.msra.mxu0 %v1918
        %5418 = vmatpush.msra.mxu0 %v1917
        %5419 = vmatpush.msra.mxu0 %v1916
        %5420 = vmatpush.msra.mxu0 %v1915
        %5421 = vmatpush.msra.mxu0 %v1914
        %5422 = vmatpush.msra.mxu0 %v1913
        %5423 = vmatpush.msra.mxu0 %v1912
        %5424 = vmatpush.msra.mxu0 %v1911
        %5425 = vmatpush.msra.mxu0 %v1910
        %5426 = vmatpush.msra.mxu0 %v1909
        %5427 = vmatpush.msra.mxu0 %v1908
        %5428 = vmatpush.msra.mxu0 %v1907
        %5429 = vmatpush.msra.mxu0 %v1906
        %5430 = vmatpush.msra.mxu0 %v1905
        %5431 = vmatpush.msra.mxu0 %v1904
        %5432 = vmatmul.f32.gmra.mxu0 %v313
        %v5433 = vpop.f32.mrf.mxu0
        %v5434 = vadd.f32 %v5414, %v5433
        %5435 = vdwg.mxu0
        %5436 = vmatpush.msra.mxu0 %v1935
        %5437 = vmatpush.msra.mxu0 %v1934
        %5438 = vmatpush.msra.mxu0 %v1933
        %5439 = vmatpush.msra.mxu0 %v1932
        %5440 = vmatpush.msra.mxu0 %v1931
        %5441 = vmatpush.msra.mxu0 %v1930
        %5442 = vmatpush.msra.mxu0 %v1929
        %5443 = vmatpush.msra.mxu0 %v1928
        %5444 = vmatpush.msra.mxu0 %v1927
        %5445 = vmatpush.msra.mxu0 %v1926
        %5446 = vmatpush.msra.mxu0 %v1925
        %5447 = vmatpush.msra.mxu0 %v1924
        %5448 = vmatpush.msra.mxu0 %v1923
        %5449 = vmatpush.msra.mxu0 %v1922
        %5450 = vmatpush.msra.mxu0 %v1921
        %5451 = vmatpush.msra.mxu0 %v1920
        %5452 = vmatmul.f32.gmra.mxu0 %v314
        %v5453 = vpop.f32.mrf.mxu0
        %v5454 = vadd.f32 %v5434, %v5453
        %5455 = vdwg.mxu0
        %5456 = vmatpush.msra.mxu0 %v1951
        %5457 = vmatpush.msra.mxu0 %v1950
        %5458 = vmatpush.msra.mxu0 %v1949
        %5459 = vmatpush.msra.mxu0 %v1948
        %5460 = vmatpush.msra.mxu0 %v1947
        %5461 = vmatpush.msra.mxu0 %v1946
        %5462 = vmatpush.msra.mxu0 %v1945
        %5463 = vmatpush.msra.mxu0 %v1944
        %5464 = vmatpush.msra.mxu0 %v1943
        %5465 = vmatpush.msra.mxu0 %v1942
        %5466 = vmatpush.msra.mxu0 %v1941
        %5467 = vmatpush.msra.mxu0 %v1940
        %5468 = vmatpush.msra.mxu0 %v1939
        %5469 = vmatpush.msra.mxu0 %v1938
        %5470 = vmatpush.msra.mxu0 %v1937
        %5471 = vmatpush.msra.mxu0 %v1936
        %5472 = vmatmul.f32.gmra.mxu0 %v315
        %v5473 = vpop.f32.mrf.mxu0
        %v5474 = vadd.f32 %v5454, %v5473
        %5475 = vdwg.mxu0
        %5476 = vmatpush.msra.mxu0 %v1967
        %5477 = vmatpush.msra.mxu0 %v1966
        %5478 = vmatpush.msra.mxu0 %v1965
        %5479 = vmatpush.msra.mxu0 %v1964
        %5480 = vmatpush.msra.mxu0 %v1963
        %5481 = vmatpush.msra.mxu0 %v1962
        %5482 = vmatpush.msra.mxu0 %v1961
        %5483 = vmatpush.msra.mxu0 %v1960
        %5484 = vmatpush.msra.mxu0 %v1959
        %5485 = vmatpush.msra.mxu0 %v1958
        %5486 = vmatpush.msra.mxu0 %v1957
        %5487 = vmatpush.msra.mxu0 %v1956
        %5488 = vmatpush.msra.mxu0 %v1955
        %5489 = vmatpush.msra.mxu0 %v1954
        %5490 = vmatpush.msra.mxu0 %v1953
        %5491 = vmatpush.msra.mxu0 %v1952
        %5492 = vmatmul.f32.gmra.mxu0 %v316
        %v5493 = vpop.f32.mrf.mxu0
        %v5494 = vadd.f32 %v5474, %v5493
        %5495 = vdwg.mxu0
        %5496 = vmatpush.msra.mxu0 %v1983
        %5497 = vmatpush.msra.mxu0 %v1982
        %5498 = vmatpush.msra.mxu0 %v1981
        %5499 = vmatpush.msra.mxu0 %v1980
        %5500 = vmatpush.msra.mxu0 %v1979
        %5501 = vmatpush.msra.mxu0 %v1978
        %5502 = vmatpush.msra.mxu0 %v1977
        %5503 = vmatpush.msra.mxu0 %v1976
        %5504 = vmatpush.msra.mxu0 %v1975
        %5505 = vmatpush.msra.mxu0 %v1974
        %5506 = vmatpush.msra.mxu0 %v1973
        %5507 = vmatpush.msra.mxu0 %v1972
        %5508 = vmatpush.msra.mxu0 %v1971
        %5509 = vmatpush.msra.mxu0 %v1970
        %5510 = vmatpush.msra.mxu0 %v1969
        %5511 = vmatpush.msra.mxu0 %v1968
        %5512 = vmatmul.f32.gmra.mxu0 %v317
        %v5513 = vpop.f32.mrf.mxu0
        %v5514 = vadd.f32 %v5494, %v5513
        %5515 = vdwg.mxu0
        %5516 = vmatpush.msra.mxu0 %v1999
        %5517 = vmatpush.msra.mxu0 %v1998
        %5518 = vmatpush.msra.mxu0 %v1997
        %5519 = vmatpush.msra.mxu0 %v1996
        %5520 = vmatpush.msra.mxu0 %v1995
        %5521 = vmatpush.msra.mxu0 %v1994
        %5522 = vmatpush.msra.mxu0 %v1993
        %5523 = vmatpush.msra.mxu0 %v1992
        %5524 = vmatpush.msra.mxu0 %v1991
        %5525 = vmatpush.msra.mxu0 %v1990
        %5526 = vmatpush.msra.mxu0 %v1989
        %5527 = vmatpush.msra.mxu0 %v1988
        %5528 = vmatpush.msra.mxu0 %v1987
        %5529 = vmatpush.msra.mxu0 %v1986
        %5530 = vmatpush.msra.mxu0 %v1985
        %5531 = vmatpush.msra.mxu0 %v1984
        %5532 = vmatmul.f32.gmra.mxu0 %v318
        %v5533 = vpop.f32.mrf.mxu0
        %v5534 = vadd.f32 %v5514, %v5533
        %5535 = vdwg.mxu0
        %5536 = vmatpush.msra.mxu0 %v2015
        %5537 = vmatpush.msra.mxu0 %v2014
        %5538 = vmatpush.msra.mxu0 %v2013
        %5539 = vmatpush.msra.mxu0 %v2012
        %5540 = vmatpush.msra.mxu0 %v2011
        %5541 = vmatpush.msra.mxu0 %v2010
        %5542 = vmatpush.msra.mxu0 %v2009
        %5543 = vmatpush.msra.mxu0 %v2008
        %5544 = vmatpush.msra.mxu0 %v2007
        %5545 = vmatpush.msra.mxu0 %v2006
        %5546 = vmatpush.msra.mxu0 %v2005
        %5547 = vmatpush.msra.mxu0 %v2004
        %5548 = vmatpush.msra.mxu0 %v2003
        %5549 = vmatpush.msra.mxu0 %v2002
        %5550 = vmatpush.msra.mxu0 %v2001
        %5551 = vmatpush.msra.mxu0 %v2000
        %5552 = vmatmul.f32.gmra.mxu0 %v319
        %v5553 = vpop.f32.mrf.mxu0
        %v5554 = vadd.f32 %v5534, %v5553
        %5555 = vdwg.mxu0
        %5556 = vmatpush.msra.mxu0 %v2031
        %5557 = vmatpush.msra.mxu0 %v2030
        %5558 = vmatpush.msra.mxu0 %v2029
        %5559 = vmatpush.msra.mxu0 %v2028
        %5560 = vmatpush.msra.mxu0 %v2027
        %5561 = vmatpush.msra.mxu0 %v2026
        %5562 = vmatpush.msra.mxu0 %v2025
        %5563 = vmatpush.msra.mxu0 %v2024
        %5564 = vmatpush.msra.mxu0 %v2023
        %5565 = vmatpush.msra.mxu0 %v2022
        %5566 = vmatpush.msra.mxu0 %v2021
        %5567 = vmatpush.msra.mxu0 %v2020
        %5568 = vmatpush.msra.mxu0 %v2019
        %5569 = vmatpush.msra.mxu0 %v2018
        %5570 = vmatpush.msra.mxu0 %v2017
        %5571 = vmatpush.msra.mxu0 %v2016
        %5572 = vmatmul.f32.gmra.mxu0 %v320
        %v5573 = vpop.f32.mrf.mxu0
        %v5574 = vadd.f32 %v5554, %v5573
        %5575 = vdwg.mxu0
        %5576 = vmatpush.msra.mxu0 %v2047
        %5577 = vmatpush.msra.mxu0 %v2046
        %5578 = vmatpush.msra.mxu0 %v2045
        %5579 = vmatpush.msra.mxu0 %v2044
        %5580 = vmatpush.msra.mxu0 %v2043
        %5581 = vmatpush.msra.mxu0 %v2042
        %5582 = vmatpush.msra.mxu0 %v2041
        %5583 = vmatpush.msra.mxu0 %v2040
        %5584 = vmatpush.msra.mxu0 %v2039
        %5585 = vmatpush.msra.mxu0 %v2038
        %5586 = vmatpush.msra.mxu0 %v2037
        %5587 = vmatpush.msra.mxu0 %v2036
        %5588 = vmatpush.msra.mxu0 %v2035
        %5589 = vmatpush.msra.mxu0 %v2034
        %5590 = vmatpush.msra.mxu0 %v2033
        %5591 = vmatpush.msra.mxu0 %v2032
        %5592 = vmatmul.f32.gmra.mxu0 %v321
        %v5593 = vpop.f32.mrf.mxu0
        %v5594 = vadd.f32 %v5574, %v5593
        %5595 = vdwg.mxu0
        %5596 = vmatpush.msra.mxu0 %v2063
        %5597 = vmatpush.msra.mxu0 %v2062
        %5598 = vmatpush.msra.mxu0 %v2061
        %5599 = vmatpush.msra.mxu0 %v2060
        %5600 = vmatpush.msra.mxu0 %v2059
        %5601 = vmatpush.msra.mxu0 %v2058
        %5602 = vmatpush.msra.mxu0 %v2057
        %5603 = vmatpush.msra.mxu0 %v2056
        %5604 = vmatpush.msra.mxu0 %v2055
        %5605 = vmatpush.msra.mxu0 %v2054
        %5606 = vmatpush.msra.mxu0 %v2053
        %5607 = vmatpush.msra.mxu0 %v2052
        %5608 = vmatpush.msra.mxu0 %v2051
        %5609 = vmatpush.msra.mxu0 %v2050
        %5610 = vmatpush.msra.mxu0 %v2049
        %5611 = vmatpush.msra.mxu0 %v2048
        %5612 = vmatmul.f32.gmra.mxu0 %v322
        %v5613 = vpop.f32.mrf.mxu0
        %v5614 = vadd.f32 %v5594, %v5613
        %5615 = vdwg.mxu0
        %5616 = vmatpush.msra.mxu0 %v2079
        %5617 = vmatpush.msra.mxu0 %v2078
        %5618 = vmatpush.msra.mxu0 %v2077
        %5619 = vmatpush.msra.mxu0 %v2076
        %5620 = vmatpush.msra.mxu0 %v2075
        %5621 = vmatpush.msra.mxu0 %v2074
        %5622 = vmatpush.msra.mxu0 %v2073
        %5623 = vmatpush.msra.mxu0 %v2072
        %5624 = vmatpush.msra.mxu0 %v2071
        %5625 = vmatpush.msra.mxu0 %v2070
        %5626 = vmatpush.msra.mxu0 %v2069
        %5627 = vmatpush.msra.mxu0 %v2068
        %5628 = vmatpush.msra.mxu0 %v2067
        %5629 = vmatpush.msra.mxu0 %v2066
        %5630 = vmatpush.msra.mxu0 %v2065
        %5631 = vmatpush.msra.mxu0 %v2064
        %5632 = vmatmul.f32.gmra.mxu0 %v323
        %v5633 = vpop.f32.mrf.mxu0
        %v5634 = vadd.f32 %v5614, %v5633
        %5635 = vdwg.mxu0
        %5636 = vmatpush.msra.mxu0 %v2095
        %5637 = vmatpush.msra.mxu0 %v2094
        %5638 = vmatpush.msra.mxu0 %v2093
        %5639 = vmatpush.msra.mxu0 %v2092
        %5640 = vmatpush.msra.mxu0 %v2091
        %5641 = vmatpush.msra.mxu0 %v2090
        %5642 = vmatpush.msra.mxu0 %v2089
        %5643 = vmatpush.msra.mxu0 %v2088
        %5644 = vmatpush.msra.mxu0 %v2087
        %5645 = vmatpush.msra.mxu0 %v2086
        %5646 = vmatpush.msra.mxu0 %v2085
        %5647 = vmatpush.msra.mxu0 %v2084
        %5648 = vmatpush.msra.mxu0 %v2083
        %5649 = vmatpush.msra.mxu0 %v2082
        %5650 = vmatpush.msra.mxu0 %v2081
        %5651 = vmatpush.msra.mxu0 %v2080
        %5652 = vmatmul.f32.gmra.mxu0 %v324
        %v5653 = vpop.f32.mrf.mxu0
        %v5654 = vadd.f32 %v5634, %v5653
        %5655 = vdwg.mxu0
        %5656 = vmatpush.msra.mxu0 %v2111
        %5657 = vmatpush.msra.mxu0 %v2110
        %5658 = vmatpush.msra.mxu0 %v2109
        %5659 = vmatpush.msra.mxu0 %v2108
        %5660 = vmatpush.msra.mxu0 %v2107
        %5661 = vmatpush.msra.mxu0 %v2106
        %5662 = vmatpush.msra.mxu0 %v2105
        %5663 = vmatpush.msra.mxu0 %v2104
        %5664 = vmatpush.msra.mxu0 %v2103
        %5665 = vmatpush.msra.mxu0 %v2102
        %5666 = vmatpush.msra.mxu0 %v2101
        %5667 = vmatpush.msra.mxu0 %v2100
        %5668 = vmatpush.msra.mxu0 %v2099
        %5669 = vmatpush.msra.mxu0 %v2098
        %5670 = vmatpush.msra.mxu0 %v2097
        %5671 = vmatpush.msra.mxu0 %v2096
        %5672 = vmatmul.f32.gmra.mxu0 %v325
        %v5673 = vpop.f32.mrf.mxu0
        %v5674 = vadd.f32 %v5654, %v5673
        %5675 = vdwg.mxu0
        %5676 = vmatpush.msra.mxu0 %v2127
        %5677 = vmatpush.msra.mxu0 %v2126
        %5678 = vmatpush.msra.mxu0 %v2125
        %5679 = vmatpush.msra.mxu0 %v2124
        %5680 = vmatpush.msra.mxu0 %v2123
        %5681 = vmatpush.msra.mxu0 %v2122
        %5682 = vmatpush.msra.mxu0 %v2121
        %5683 = vmatpush.msra.mxu0 %v2120
        %5684 = vmatpush.msra.mxu0 %v2119
        %5685 = vmatpush.msra.mxu0 %v2118
        %5686 = vmatpush.msra.mxu0 %v2117
        %5687 = vmatpush.msra.mxu0 %v2116
        %5688 = vmatpush.msra.mxu0 %v2115
        %5689 = vmatpush.msra.mxu0 %v2114
        %5690 = vmatpush.msra.mxu0 %v2113
        %5691 = vmatpush.msra.mxu0 %v2112
        %5692 = vmatmul.f32.gmra.mxu0 %v326
        %v5693 = vpop.f32.mrf.mxu0
        %v5694 = vadd.f32 %v5674, %v5693
        %5695 = vdwg.mxu0
        %5696 = vmatpush.msra.mxu0 %v2143
        %5697 = vmatpush.msra.mxu0 %v2142
        %5698 = vmatpush.msra.mxu0 %v2141
        %5699 = vmatpush.msra.mxu0 %v2140
        %5700 = vmatpush.msra.mxu0 %v2139
        %5701 = vmatpush.msra.mxu0 %v2138
        %5702 = vmatpush.msra.mxu0 %v2137
        %5703 = vmatpush.msra.mxu0 %v2136
        %5704 = vmatpush.msra.mxu0 %v2135
        %5705 = vmatpush.msra.mxu0 %v2134
        %5706 = vmatpush.msra.mxu0 %v2133
        %5707 = vmatpush.msra.mxu0 %v2132
        %5708 = vmatpush.msra.mxu0 %v2131
        %5709 = vmatpush.msra.mxu0 %v2130
        %5710 = vmatpush.msra.mxu0 %v2129
        %5711 = vmatpush.msra.mxu0 %v2128
        %5712 = vmatmul.f32.gmra.mxu0 %v327
        %v5713 = vpop.f32.mrf.mxu0
        %v5714 = vadd.f32 %v5694, %v5713
        %5715 = vdwg.mxu0
        %5716 = vmatpush.msra.mxu0 %v2159
        %5717 = vmatpush.msra.mxu0 %v2158
        %5718 = vmatpush.msra.mxu0 %v2157
        %5719 = vmatpush.msra.mxu0 %v2156
        %5720 = vmatpush.msra.mxu0 %v2155
        %5721 = vmatpush.msra.mxu0 %v2154
        %5722 = vmatpush.msra.mxu0 %v2153
        %5723 = vmatpush.msra.mxu0 %v2152
        %5724 = vmatpush.msra.mxu0 %v2151
        %5725 = vmatpush.msra.mxu0 %v2150
        %5726 = vmatpush.msra.mxu0 %v2149
        %5727 = vmatpush.msra.mxu0 %v2148
        %5728 = vmatpush.msra.mxu0 %v2147
        %5729 = vmatpush.msra.mxu0 %v2146
        %5730 = vmatpush.msra.mxu0 %v2145
        %5731 = vmatpush.msra.mxu0 %v2144
        %5732 = vmatmul.f32.gmra.mxu0 %v328
        %v5733 = vpop.f32.mrf.mxu0
        %v5734 = vadd.f32 %v5714, %v5733
        %5735 = vdwg.mxu0
        %5736 = vmatpush.msra.mxu0 %v2175
        %5737 = vmatpush.msra.mxu0 %v2174
        %5738 = vmatpush.msra.mxu0 %v2173
        %5739 = vmatpush.msra.mxu0 %v2172
        %5740 = vmatpush.msra.mxu0 %v2171
        %5741 = vmatpush.msra.mxu0 %v2170
        %5742 = vmatpush.msra.mxu0 %v2169
        %5743 = vmatpush.msra.mxu0 %v2168
        %5744 = vmatpush.msra.mxu0 %v2167
        %5745 = vmatpush.msra.mxu0 %v2166
        %5746 = vmatpush.msra.mxu0 %v2165
        %5747 = vmatpush.msra.mxu0 %v2164
        %5748 = vmatpush.msra.mxu0 %v2163
        %5749 = vmatpush.msra.mxu0 %v2162
        %5750 = vmatpush.msra.mxu0 %v2161
        %5751 = vmatpush.msra.mxu0 %v2160
        %5752 = vmatmul.f32.gmra.mxu0 %v329
        %v5753 = vpop.f32.mrf.mxu0
        %v5754 = vadd.f32 %v5734, %v5753
        %5755 = vdwg.mxu0
        %5756 = vmatpush.msra.mxu0 %v2191
        %5757 = vmatpush.msra.mxu0 %v2190
        %5758 = vmatpush.msra.mxu0 %v2189
        %5759 = vmatpush.msra.mxu0 %v2188
        %5760 = vmatpush.msra.mxu0 %v2187
        %5761 = vmatpush.msra.mxu0 %v2186
        %5762 = vmatpush.msra.mxu0 %v2185
        %5763 = vmatpush.msra.mxu0 %v2184
        %5764 = vmatpush.msra.mxu0 %v2183
        %5765 = vmatpush.msra.mxu0 %v2182
        %5766 = vmatpush.msra.mxu0 %v2181
        %5767 = vmatpush.msra.mxu0 %v2180
        %5768 = vmatpush.msra.mxu0 %v2179
        %5769 = vmatpush.msra.mxu0 %v2178
        %5770 = vmatpush.msra.mxu0 %v2177
        %5771 = vmatpush.msra.mxu0 %v2176
        %5772 = vmatmul.f32.gmra.mxu0 %v330
        %v5773 = vpop.f32.mrf.mxu0
        %v5774 = vadd.f32 %v5754, %v5773
        %5775 = vdwg.mxu0
        %5776 = vmatpush.msra.mxu0 %v2207
        %5777 = vmatpush.msra.mxu0 %v2206
        %5778 = vmatpush.msra.mxu0 %v2205
        %5779 = vmatpush.msra.mxu0 %v2204
        %5780 = vmatpush.msra.mxu0 %v2203
        %5781 = vmatpush.msra.mxu0 %v2202
        %5782 = vmatpush.msra.mxu0 %v2201
        %5783 = vmatpush.msra.mxu0 %v2200
        %5784 = vmatpush.msra.mxu0 %v2199
        %5785 = vmatpush.msra.mxu0 %v2198
        %5786 = vmatpush.msra.mxu0 %v2197
        %5787 = vmatpush.msra.mxu0 %v2196
        %5788 = vmatpush.msra.mxu0 %v2195
        %5789 = vmatpush.msra.mxu0 %v2194
        %5790 = vmatpush.msra.mxu0 %v2193
        %5791 = vmatpush.msra.mxu0 %v2192
        %5792 = vmatmul.f32.gmra.mxu0 %v331
        %v5793 = vpop.f32.mrf.mxu0
        %v5794 = vadd.f32 %v5774, %v5793
        %5795 = vdwg.mxu0
        %5796 = vmatpush.msra.mxu0 %v2223
        %5797 = vmatpush.msra.mxu0 %v2222
        %5798 = vmatpush.msra.mxu0 %v2221
        %5799 = vmatpush.msra.mxu0 %v2220
        %5800 = vmatpush.msra.mxu0 %v2219
        %5801 = vmatpush.msra.mxu0 %v2218
        %5802 = vmatpush.msra.mxu0 %v2217
        %5803 = vmatpush.msra.mxu0 %v2216
        %5804 = vmatpush.msra.mxu0 %v2215
        %5805 = vmatpush.msra.mxu0 %v2214
        %5806 = vmatpush.msra.mxu0 %v2213
        %5807 = vmatpush.msra.mxu0 %v2212
        %5808 = vmatpush.msra.mxu0 %v2211
        %5809 = vmatpush.msra.mxu0 %v2210
        %5810 = vmatpush.msra.mxu0 %v2209
        %5811 = vmatpush.msra.mxu0 %v2208
        %5812 = vmatmul.f32.gmra.mxu0 %v332
        %v5813 = vpop.f32.mrf.mxu0
        %v5814 = vadd.f32 %v5794, %v5813
        %5815 = vdwg.mxu0
        %5816 = vmatpush.msra.mxu0 %v2239
        %5817 = vmatpush.msra.mxu0 %v2238
        %5818 = vmatpush.msra.mxu0 %v2237
        %5819 = vmatpush.msra.mxu0 %v2236
        %5820 = vmatpush.msra.mxu0 %v2235
        %5821 = vmatpush.msra.mxu0 %v2234
        %5822 = vmatpush.msra.mxu0 %v2233
        %5823 = vmatpush.msra.mxu0 %v2232
        %5824 = vmatpush.msra.mxu0 %v2231
        %5825 = vmatpush.msra.mxu0 %v2230
        %5826 = vmatpush.msra.mxu0 %v2229
        %5827 = vmatpush.msra.mxu0 %v2228
        %5828 = vmatpush.msra.mxu0 %v2227
        %5829 = vmatpush.msra.mxu0 %v2226
        %5830 = vmatpush.msra.mxu0 %v2225
        %5831 = vmatpush.msra.mxu0 %v2224
        %5832 = vmatmul.f32.gmra.mxu0 %v333
        %v5833 = vpop.f32.mrf.mxu0
        %v5834 = vadd.f32 %v5814, %v5833
        %5835 = vdwg.mxu0
        %5836 = vmatpush.msra.mxu0 %v2255
        %5837 = vmatpush.msra.mxu0 %v2254
        %5838 = vmatpush.msra.mxu0 %v2253
        %5839 = vmatpush.msra.mxu0 %v2252
        %5840 = vmatpush.msra.mxu0 %v2251
        %5841 = vmatpush.msra.mxu0 %v2250
        %5842 = vmatpush.msra.mxu0 %v2249
        %5843 = vmatpush.msra.mxu0 %v2248
        %5844 = vmatpush.msra.mxu0 %v2247
        %5845 = vmatpush.msra.mxu0 %v2246
        %5846 = vmatpush.msra.mxu0 %v2245
        %5847 = vmatpush.msra.mxu0 %v2244
        %5848 = vmatpush.msra.mxu0 %v2243
        %5849 = vmatpush.msra.mxu0 %v2242
        %5850 = vmatpush.msra.mxu0 %v2241
        %5851 = vmatpush.msra.mxu0 %v2240
        %5852 = vmatmul.f32.gmra.mxu0 %v334
        %v5853 = vpop.f32.mrf.mxu0
        %v5854 = vadd.f32 %v5834, %v5853
        %5855 = vdwg.mxu0
        %5856 = vmatpush.msra.mxu0 %v2271
        %5857 = vmatpush.msra.mxu0 %v2270
        %5858 = vmatpush.msra.mxu0 %v2269
        %5859 = vmatpush.msra.mxu0 %v2268
        %5860 = vmatpush.msra.mxu0 %v2267
        %5861 = vmatpush.msra.mxu0 %v2266
        %5862 = vmatpush.msra.mxu0 %v2265
        %5863 = vmatpush.msra.mxu0 %v2264
        %5864 = vmatpush.msra.mxu0 %v2263
        %5865 = vmatpush.msra.mxu0 %v2262
        %5866 = vmatpush.msra.mxu0 %v2261
        %5867 = vmatpush.msra.mxu0 %v2260
        %5868 = vmatpush.msra.mxu0 %v2259
        %5869 = vmatpush.msra.mxu0 %v2258
        %5870 = vmatpush.msra.mxu0 %v2257
        %5871 = vmatpush.msra.mxu0 %v2256
        %5872 = vmatmul.f32.gmra.mxu0 %v335
        %v5873 = vpop.f32.mrf.mxu0
        %v5874 = vadd.f32 %v5854, %v5873
        %5875 = vdwg.mxu0
        %5876 = vmatpush.msra.mxu0 %v2287
        %5877 = vmatpush.msra.mxu0 %v2286
        %5878 = vmatpush.msra.mxu0 %v2285
        %5879 = vmatpush.msra.mxu0 %v2284
        %5880 = vmatpush.msra.mxu0 %v2283
        %5881 = vmatpush.msra.mxu0 %v2282
        %5882 = vmatpush.msra.mxu0 %v2281
        %5883 = vmatpush.msra.mxu0 %v2280
        %5884 = vmatpush.msra.mxu0 %v2279
        %5885 = vmatpush.msra.mxu0 %v2278
        %5886 = vmatpush.msra.mxu0 %v2277
        %5887 = vmatpush.msra.mxu0 %v2276
        %5888 = vmatpush.msra.mxu0 %v2275
        %5889 = vmatpush.msra.mxu0 %v2274
        %5890 = vmatpush.msra.mxu0 %v2273
        %5891 = vmatpush.msra.mxu0 %v2272
        %5892 = vmatmul.f32.gmra.mxu0 %v336
        %v5893 = vpop.f32.mrf.mxu0
        %v5894 = vadd.f32 %v5874, %v5893
        %5895 = vdwg.mxu0
        %5896 = vmatpush.msra.mxu0 %v2303
        %5897 = vmatpush.msra.mxu0 %v2302
        %5898 = vmatpush.msra.mxu0 %v2301
        %5899 = vmatpush.msra.mxu0 %v2300
        %5900 = vmatpush.msra.mxu0 %v2299
        %5901 = vmatpush.msra.mxu0 %v2298
        %5902 = vmatpush.msra.mxu0 %v2297
        %5903 = vmatpush.msra.mxu0 %v2296
        %5904 = vmatpush.msra.mxu0 %v2295
        %5905 = vmatpush.msra.mxu0 %v2294
        %5906 = vmatpush.msra.mxu0 %v2293
        %5907 = vmatpush.msra.mxu0 %v2292
        %5908 = vmatpush.msra.mxu0 %v2291
        %5909 = vmatpush.msra.mxu0 %v2290
        %5910 = vmatpush.msra.mxu0 %v2289
        %5911 = vmatpush.msra.mxu0 %v2288
        %5912 = vmatmul.f32.gmra.mxu0 %v337
        %v5913 = vpop.f32.mrf.mxu0
        %v5914 = vadd.f32 %v5894, %v5913
        %5915 = vdwg.mxu0
        %5916 = vmatpush.msra.mxu0 %v2319
        %5917 = vmatpush.msra.mxu0 %v2318
        %5918 = vmatpush.msra.mxu0 %v2317
        %5919 = vmatpush.msra.mxu0 %v2316
        %5920 = vmatpush.msra.mxu0 %v2315
        %5921 = vmatpush.msra.mxu0 %v2314
        %5922 = vmatpush.msra.mxu0 %v2313
        %5923 = vmatpush.msra.mxu0 %v2312
        %5924 = vmatpush.msra.mxu0 %v2311
        %5925 = vmatpush.msra.mxu0 %v2310
        %5926 = vmatpush.msra.mxu0 %v2309
        %5927 = vmatpush.msra.mxu0 %v2308
        %5928 = vmatpush.msra.mxu0 %v2307
        %5929 = vmatpush.msra.mxu0 %v2306
        %5930 = vmatpush.msra.mxu0 %v2305
        %5931 = vmatpush.msra.mxu0 %v2304
        %5932 = vmatmul.f32.gmra.mxu0 %v338
        %v5933 = vpop.f32.mrf.mxu0
        %v5934 = vadd.f32 %v5914, %v5933
        %5935 = vdwg.mxu0
        %5936 = vmatpush.msra.mxu0 %v2335
        %5937 = vmatpush.msra.mxu0 %v2334
        %5938 = vmatpush.msra.mxu0 %v2333
        %5939 = vmatpush.msra.mxu0 %v2332
        %5940 = vmatpush.msra.mxu0 %v2331
        %5941 = vmatpush.msra.mxu0 %v2330
        %5942 = vmatpush.msra.mxu0 %v2329
        %5943 = vmatpush.msra.mxu0 %v2328
        %5944 = vmatpush.msra.mxu0 %v2327
        %5945 = vmatpush.msra.mxu0 %v2326
        %5946 = vmatpush.msra.mxu0 %v2325
        %5947 = vmatpush.msra.mxu0 %v2324
        %5948 = vmatpush.msra.mxu0 %v2323
        %5949 = vmatpush.msra.mxu0 %v2322
        %5950 = vmatpush.msra.mxu0 %v2321
        %5951 = vmatpush.msra.mxu0 %v2320
        %5952 = vmatmul.f32.gmra.mxu0 %v339
        %v5953 = vpop.f32.mrf.mxu0
        %v5954 = vadd.f32 %v5934, %v5953
        %5955 = vdwg.mxu0
        %5956 = vmatpush.msra.mxu0 %v2351
        %5957 = vmatpush.msra.mxu0 %v2350
        %5958 = vmatpush.msra.mxu0 %v2349
        %5959 = vmatpush.msra.mxu0 %v2348
        %5960 = vmatpush.msra.mxu0 %v2347
        %5961 = vmatpush.msra.mxu0 %v2346
        %5962 = vmatpush.msra.mxu0 %v2345
        %5963 = vmatpush.msra.mxu0 %v2344
        %5964 = vmatpush.msra.mxu0 %v2343
        %5965 = vmatpush.msra.mxu0 %v2342
        %5966 = vmatpush.msra.mxu0 %v2341
        %5967 = vmatpush.msra.mxu0 %v2340
        %5968 = vmatpush.msra.mxu0 %v2339
        %5969 = vmatpush.msra.mxu0 %v2338
        %5970 = vmatpush.msra.mxu0 %v2337
        %5971 = vmatpush.msra.mxu0 %v2336
        %5972 = vmatmul.f32.gmra.mxu0 %v340
        %v5973 = vpop.f32.mrf.mxu0
        %v5974 = vadd.f32 %v5954, %v5973
        %5975 = vdwg.mxu0
        %5976 = vmatpush.msra.mxu0 %v2367
        %5977 = vmatpush.msra.mxu0 %v2366
        %5978 = vmatpush.msra.mxu0 %v2365
        %5979 = vmatpush.msra.mxu0 %v2364
        %5980 = vmatpush.msra.mxu0 %v2363
        %5981 = vmatpush.msra.mxu0 %v2362
        %5982 = vmatpush.msra.mxu0 %v2361
        %5983 = vmatpush.msra.mxu0 %v2360
        %5984 = vmatpush.msra.mxu0 %v2359
        %5985 = vmatpush.msra.mxu0 %v2358
        %5986 = vmatpush.msra.mxu0 %v2357
        %5987 = vmatpush.msra.mxu0 %v2356
        %5988 = vmatpush.msra.mxu0 %v2355
        %5989 = vmatpush.msra.mxu0 %v2354
        %5990 = vmatpush.msra.mxu0 %v2353
        %5991 = vmatpush.msra.mxu0 %v2352
        %5992 = vmatmul.f32.gmra.mxu0 %v341
        %v5993 = vpop.f32.mrf.mxu0
        %v5994 = vadd.f32 %v5974, %v5993
        %5995 = vdwg.mxu0
        %5996 = vmatpush.msra.mxu0 %v2383
        %5997 = vmatpush.msra.mxu0 %v2382
        %5998 = vmatpush.msra.mxu0 %v2381
        %5999 = vmatpush.msra.mxu0 %v2380
        %6000 = vmatpush.msra.mxu0 %v2379
        %6001 = vmatpush.msra.mxu0 %v2378
        %6002 = vmatpush.msra.mxu0 %v2377
        %6003 = vmatpush.msra.mxu0 %v2376
        %6004 = vmatpush.msra.mxu0 %v2375
        %6005 = vmatpush.msra.mxu0 %v2374
        %6006 = vmatpush.msra.mxu0 %v2373
        %6007 = vmatpush.msra.mxu0 %v2372
        %6008 = vmatpush.msra.mxu0 %v2371
        %6009 = vmatpush.msra.mxu0 %v2370
        %6010 = vmatpush.msra.mxu0 %v2369
        %6011 = vmatpush.msra.mxu0 %v2368
        %6012 = vmatmul.f32.gmra.mxu0 %v342
        %v6013 = vpop.f32.mrf.mxu0
        %v6014 = vadd.f32 %v5994, %v6013
        %6015 = vdwg.mxu0
        %6016 = vmatpush.msra.mxu0 %v2399
        %6017 = vmatpush.msra.mxu0 %v2398
        %6018 = vmatpush.msra.mxu0 %v2397
        %6019 = vmatpush.msra.mxu0 %v2396
        %6020 = vmatpush.msra.mxu0 %v2395
        %6021 = vmatpush.msra.mxu0 %v2394
        %6022 = vmatpush.msra.mxu0 %v2393
        %6023 = vmatpush.msra.mxu0 %v2392
        %6024 = vmatpush.msra.mxu0 %v2391
        %6025 = vmatpush.msra.mxu0 %v2390
        %6026 = vmatpush.msra.mxu0 %v2389
        %6027 = vmatpush.msra.mxu0 %v2388
        %6028 = vmatpush.msra.mxu0 %v2387
        %6029 = vmatpush.msra.mxu0 %v2386
        %6030 = vmatpush.msra.mxu0 %v2385
        %6031 = vmatpush.msra.mxu0 %v2384
        %6032 = vmatmul.f32.gmra.mxu0 %v343
        %v6033 = vpop.f32.mrf.mxu0
        %v6034 = vadd.f32 %v6014, %v6033
        %6035 = vdwg.mxu0
        %6036 = vmatpush.msra.mxu0 %v2415
        %6037 = vmatpush.msra.mxu0 %v2414
        %6038 = vmatpush.msra.mxu0 %v2413
        %6039 = vmatpush.msra.mxu0 %v2412
        %6040 = vmatpush.msra.mxu0 %v2411
        %6041 = vmatpush.msra.mxu0 %v2410
        %6042 = vmatpush.msra.mxu0 %v2409
        %6043 = vmatpush.msra.mxu0 %v2408
        %6044 = vmatpush.msra.mxu0 %v2407
        %6045 = vmatpush.msra.mxu0 %v2406
        %6046 = vmatpush.msra.mxu0 %v2405
        %6047 = vmatpush.msra.mxu0 %v2404
        %6048 = vmatpush.msra.mxu0 %v2403
        %6049 = vmatpush.msra.mxu0 %v2402
        %6050 = vmatpush.msra.mxu0 %v2401
        %6051 = vmatpush.msra.mxu0 %v2400
        %6052 = vmatmul.f32.gmra.mxu0 %v344
        %v6053 = vpop.f32.mrf.mxu0
        %v6054 = vadd.f32 %v6034, %v6053
        %6055 = vdwg.mxu0
        %6056 = vmatpush.msra.mxu0 %v2431
        %6057 = vmatpush.msra.mxu0 %v2430
        %6058 = vmatpush.msra.mxu0 %v2429
        %6059 = vmatpush.msra.mxu0 %v2428
        %6060 = vmatpush.msra.mxu0 %v2427
        %6061 = vmatpush.msra.mxu0 %v2426
        %6062 = vmatpush.msra.mxu0 %v2425
        %6063 = vmatpush.msra.mxu0 %v2424
        %6064 = vmatpush.msra.mxu0 %v2423
        %6065 = vmatpush.msra.mxu0 %v2422
        %6066 = vmatpush.msra.mxu0 %v2421
        %6067 = vmatpush.msra.mxu0 %v2420
        %6068 = vmatpush.msra.mxu0 %v2419
        %6069 = vmatpush.msra.mxu0 %v2418
        %6070 = vmatpush.msra.mxu0 %v2417
        %6071 = vmatpush.msra.mxu0 %v2416
        %6072 = vmatmul.f32.gmra.mxu0 %v345
        %v6073 = vpop.f32.mrf.mxu0
        %v6074 = vadd.f32 %v6054, %v6073
        %6075 = vdwg.mxu0
        %6076 = vmatpush.msra.mxu0 %v2447
        %6077 = vmatpush.msra.mxu0 %v2446
        %6078 = vmatpush.msra.mxu0 %v2445
        %6079 = vmatpush.msra.mxu0 %v2444
        %6080 = vmatpush.msra.mxu0 %v2443
        %6081 = vmatpush.msra.mxu0 %v2442
        %6082 = vmatpush.msra.mxu0 %v2441
        %6083 = vmatpush.msra.mxu0 %v2440
        %6084 = vmatpush.msra.mxu0 %v2439
        %6085 = vmatpush.msra.mxu0 %v2438
        %6086 = vmatpush.msra.mxu0 %v2437
        %6087 = vmatpush.msra.mxu0 %v2436
        %6088 = vmatpush.msra.mxu0 %v2435
        %6089 = vmatpush.msra.mxu0 %v2434
        %6090 = vmatpush.msra.mxu0 %v2433
        %6091 = vmatpush.msra.mxu0 %v2432
        %6092 = vmatmul.f32.gmra.mxu0 %v346
        %v6093 = vpop.f32.mrf.mxu0
        %v6094 = vadd.f32 %v6074, %v6093
        %6095 = vdwg.mxu0
        %6096 = vmatpush.msra.mxu0 %v2463
        %6097 = vmatpush.msra.mxu0 %v2462
        %6098 = vmatpush.msra.mxu0 %v2461
        %6099 = vmatpush.msra.mxu0 %v2460
        %6100 = vmatpush.msra.mxu0 %v2459
        %6101 = vmatpush.msra.mxu0 %v2458
        %6102 = vmatpush.msra.mxu0 %v2457
        %6103 = vmatpush.msra.mxu0 %v2456
        %6104 = vmatpush.msra.mxu0 %v2455
        %6105 = vmatpush.msra.mxu0 %v2454
        %6106 = vmatpush.msra.mxu0 %v2453
        %6107 = vmatpush.msra.mxu0 %v2452
        %6108 = vmatpush.msra.mxu0 %v2451
        %6109 = vmatpush.msra.mxu0 %v2450
        %6110 = vmatpush.msra.mxu0 %v2449
        %6111 = vmatpush.msra.mxu0 %v2448
        %6112 = vmatmul.f32.gmra.mxu0 %v347
        %v6113 = vpop.f32.mrf.mxu0
        %v6114 = vadd.f32 %v6094, %v6113
        %6115 = vdwg.mxu0
        %6116 = vmatpush.msra.mxu0 %v2479
        %6117 = vmatpush.msra.mxu0 %v2478
        %6118 = vmatpush.msra.mxu0 %v2477
        %6119 = vmatpush.msra.mxu0 %v2476
        %6120 = vmatpush.msra.mxu0 %v2475
        %6121 = vmatpush.msra.mxu0 %v2474
        %6122 = vmatpush.msra.mxu0 %v2473
        %6123 = vmatpush.msra.mxu0 %v2472
        %6124 = vmatpush.msra.mxu0 %v2471
        %6125 = vmatpush.msra.mxu0 %v2470
        %6126 = vmatpush.msra.mxu0 %v2469
        %6127 = vmatpush.msra.mxu0 %v2468
        %6128 = vmatpush.msra.mxu0 %v2467
        %6129 = vmatpush.msra.mxu0 %v2466
        %6130 = vmatpush.msra.mxu0 %v2465
        %6131 = vmatpush.msra.mxu0 %v2464
        %6132 = vmatmul.f32.gmra.mxu0 %v348
        %v6133 = vpop.f32.mrf.mxu0
        %v6134 = vadd.f32 %v6114, %v6133
        %6135 = vdwg.mxu0
        %6136 = vmatpush.msra.mxu0 %v2495
        %6137 = vmatpush.msra.mxu0 %v2494
        %6138 = vmatpush.msra.mxu0 %v2493
        %6139 = vmatpush.msra.mxu0 %v2492
        %6140 = vmatpush.msra.mxu0 %v2491
        %6141 = vmatpush.msra.mxu0 %v2490
        %6142 = vmatpush.msra.mxu0 %v2489
        %6143 = vmatpush.msra.mxu0 %v2488
        %6144 = vmatpush.msra.mxu0 %v2487
        %6145 = vmatpush.msra.mxu0 %v2486
        %6146 = vmatpush.msra.mxu0 %v2485
        %6147 = vmatpush.msra.mxu0 %v2484
        %6148 = vmatpush.msra.mxu0 %v2483
        %6149 = vmatpush.msra.mxu0 %v2482
        %6150 = vmatpush.msra.mxu0 %v2481
        %6151 = vmatpush.msra.mxu0 %v2480
        %6152 = vmatmul.f32.gmra.mxu0 %v349
        %v6153 = vpop.f32.mrf.mxu0
        %v6154 = vadd.f32 %v6134, %v6153
        %6155 = vdwg.mxu0
        %6156 = vmatpush.msra.mxu0 %v2511
        %6157 = vmatpush.msra.mxu0 %v2510
        %6158 = vmatpush.msra.mxu0 %v2509
        %6159 = vmatpush.msra.mxu0 %v2508
        %6160 = vmatpush.msra.mxu0 %v2507
        %6161 = vmatpush.msra.mxu0 %v2506
        %6162 = vmatpush.msra.mxu0 %v2505
        %6163 = vmatpush.msra.mxu0 %v2504
        %6164 = vmatpush.msra.mxu0 %v2503
        %6165 = vmatpush.msra.mxu0 %v2502
        %6166 = vmatpush.msra.mxu0 %v2501
        %6167 = vmatpush.msra.mxu0 %v2500
        %6168 = vmatpush.msra.mxu0 %v2499
        %6169 = vmatpush.msra.mxu0 %v2498
        %6170 = vmatpush.msra.mxu0 %v2497
        %6171 = vmatpush.msra.mxu0 %v2496
        %6172 = vmatmul.f32.gmra.mxu0 %v350
        %v6173 = vpop.f32.mrf.mxu0
        %v6174 = vadd.f32 %v6154, %v6173
        %6175 = vdwg.mxu0
        %6176 = vmatpush.msra.mxu0 %v2527
        %6177 = vmatpush.msra.mxu0 %v2526
        %6178 = vmatpush.msra.mxu0 %v2525
        %6179 = vmatpush.msra.mxu0 %v2524
        %6180 = vmatpush.msra.mxu0 %v2523
        %6181 = vmatpush.msra.mxu0 %v2522
        %6182 = vmatpush.msra.mxu0 %v2521
        %6183 = vmatpush.msra.mxu0 %v2520
        %6184 = vmatpush.msra.mxu0 %v2519
        %6185 = vmatpush.msra.mxu0 %v2518
        %6186 = vmatpush.msra.mxu0 %v2517
        %6187 = vmatpush.msra.mxu0 %v2516
        %6188 = vmatpush.msra.mxu0 %v2515
        %6189 = vmatpush.msra.mxu0 %v2514
        %6190 = vmatpush.msra.mxu0 %v2513
        %6191 = vmatpush.msra.mxu0 %v2512
        %6192 = vmatmul.f32.gmra.mxu0 %v351
        %v6193 = vpop.f32.mrf.mxu0
        %v6194 = vadd.f32 %v6174, %v6193
        %6195 = vdwg.mxu0
        %6196 = vmatpush.msra.mxu0 %v2543
        %6197 = vmatpush.msra.mxu0 %v2542
        %6198 = vmatpush.msra.mxu0 %v2541
        %6199 = vmatpush.msra.mxu0 %v2540
        %6200 = vmatpush.msra.mxu0 %v2539
        %6201 = vmatpush.msra.mxu0 %v2538
        %6202 = vmatpush.msra.mxu0 %v2537
        %6203 = vmatpush.msra.mxu0 %v2536
        %6204 = vmatpush.msra.mxu0 %v2535
        %6205 = vmatpush.msra.mxu0 %v2534
        %6206 = vmatpush.msra.mxu0 %v2533
        %6207 = vmatpush.msra.mxu0 %v2532
        %6208 = vmatpush.msra.mxu0 %v2531
        %6209 = vmatpush.msra.mxu0 %v2530
        %6210 = vmatpush.msra.mxu0 %v2529
        %6211 = vmatpush.msra.mxu0 %v2528
        %6212 = vmatmul.f32.gmra.mxu0 %v352
        %v6213 = vpop.f32.mrf.mxu0
        %v6214 = vadd.f32 %v6194, %v6213
        %6215 = vdwg.mxu0
        %6216 = vmatpush.msra.mxu0 %v2559
        %6217 = vmatpush.msra.mxu0 %v2558
        %6218 = vmatpush.msra.mxu0 %v2557
        %6219 = vmatpush.msra.mxu0 %v2556
        %6220 = vmatpush.msra.mxu0 %v2555
        %6221 = vmatpush.msra.mxu0 %v2554
        %6222 = vmatpush.msra.mxu0 %v2553
        %6223 = vmatpush.msra.mxu0 %v2552
        %6224 = vmatpush.msra.mxu0 %v2551
        %6225 = vmatpush.msra.mxu0 %v2550
        %6226 = vmatpush.msra.mxu0 %v2549
        %6227 = vmatpush.msra.mxu0 %v2548
        %6228 = vmatpush.msra.mxu0 %v2547
        %6229 = vmatpush.msra.mxu0 %v2546
        %6230 = vmatpush.msra.mxu0 %v2545
        %6231 = vmatpush.msra.mxu0 %v2544
        %6232 = vmatmul.f32.gmra.mxu0 %v353
        %v6233 = vpop.f32.mrf.mxu0
        %v6234 = vadd.f32 %v6214, %v6233
        %6235 = vdwg.mxu0
        %6236 = vmatpush.msra.mxu0 %v2575
        %6237 = vmatpush.msra.mxu0 %v2574
        %6238 = vmatpush.msra.mxu0 %v2573
        %6239 = vmatpush.msra.mxu0 %v2572
        %6240 = vmatpush.msra.mxu0 %v2571
        %6241 = vmatpush.msra.mxu0 %v2570
        %6242 = vmatpush.msra.mxu0 %v2569
        %6243 = vmatpush.msra.mxu0 %v2568
        %6244 = vmatpush.msra.mxu0 %v2567
        %6245 = vmatpush.msra.mxu0 %v2566
        %6246 = vmatpush.msra.mxu0 %v2565
        %6247 = vmatpush.msra.mxu0 %v2564
        %6248 = vmatpush.msra.mxu0 %v2563
        %6249 = vmatpush.msra.mxu0 %v2562
        %6250 = vmatpush.msra.mxu0 %v2561
        %6251 = vmatpush.msra.mxu0 %v2560
        %6252 = vmatmul.f32.gmra.mxu0 %v354
        %v6253 = vpop.f32.mrf.mxu0
        %v6254 = vadd.f32 %v6234, %v6253
        %6255 = vdwg.mxu0
        %6256 = vmatpush.msra.mxu0 %v2591
        %6257 = vmatpush.msra.mxu0 %v2590
        %6258 = vmatpush.msra.mxu0 %v2589
        %6259 = vmatpush.msra.mxu0 %v2588
        %6260 = vmatpush.msra.mxu0 %v2587
        %6261 = vmatpush.msra.mxu0 %v2586
        %6262 = vmatpush.msra.mxu0 %v2585
        %6263 = vmatpush.msra.mxu0 %v2584
        %6264 = vmatpush.msra.mxu0 %v2583
        %6265 = vmatpush.msra.mxu0 %v2582
        %6266 = vmatpush.msra.mxu0 %v2581
        %6267 = vmatpush.msra.mxu0 %v2580
        %6268 = vmatpush.msra.mxu0 %v2579
        %6269 = vmatpush.msra.mxu0 %v2578
        %6270 = vmatpush.msra.mxu0 %v2577
        %6271 = vmatpush.msra.mxu0 %v2576
        %6272 = vmatmul.f32.gmra.mxu0 %v355
        %v6273 = vpop.f32.mrf.mxu0
        %v6274 = vadd.f32 %v6254, %v6273
        %6275 = vdwg.mxu0
        %6276 = vmatpush.msra.mxu0 %v2607
        %6277 = vmatpush.msra.mxu0 %v2606
        %6278 = vmatpush.msra.mxu0 %v2605
        %6279 = vmatpush.msra.mxu0 %v2604
        %6280 = vmatpush.msra.mxu0 %v2603
        %6281 = vmatpush.msra.mxu0 %v2602
        %6282 = vmatpush.msra.mxu0 %v2601
        %6283 = vmatpush.msra.mxu0 %v2600
        %6284 = vmatpush.msra.mxu0 %v2599
        %6285 = vmatpush.msra.mxu0 %v2598
        %6286 = vmatpush.msra.mxu0 %v2597
        %6287 = vmatpush.msra.mxu0 %v2596
        %6288 = vmatpush.msra.mxu0 %v2595
        %6289 = vmatpush.msra.mxu0 %v2594
        %6290 = vmatpush.msra.mxu0 %v2593
        %6291 = vmatpush.msra.mxu0 %v2592
        %6292 = vmatmul.f32.gmra.mxu0 %v356
        %v6293 = vpop.f32.mrf.mxu0
        %v6294 = vadd.f32 %v6274, %v6293
        %6295 = vdwg.mxu0
        %6296 = vmatpush.msra.mxu0 %v2623
        %6297 = vmatpush.msra.mxu0 %v2622
        %6298 = vmatpush.msra.mxu0 %v2621
        %6299 = vmatpush.msra.mxu0 %v2620
        %6300 = vmatpush.msra.mxu0 %v2619
        %6301 = vmatpush.msra.mxu0 %v2618
        %6302 = vmatpush.msra.mxu0 %v2617
        %6303 = vmatpush.msra.mxu0 %v2616
        %6304 = vmatpush.msra.mxu0 %v2615
        %6305 = vmatpush.msra.mxu0 %v2614
        %6306 = vmatpush.msra.mxu0 %v2613
        %6307 = vmatpush.msra.mxu0 %v2612
        %6308 = vmatpush.msra.mxu0 %v2611
        %6309 = vmatpush.msra.mxu0 %v2610
        %6310 = vmatpush.msra.mxu0 %v2609
        %6311 = vmatpush.msra.mxu0 %v2608
        %6312 = vmatmul.f32.gmra.mxu0 %v357
        %v6313 = vpop.f32.mrf.mxu0
        %v6314 = vadd.f32 %v6294, %v6313
        %6315 = vdwg.mxu0
        %6316 = vmatpush.msra.mxu0 %v2639
        %6317 = vmatpush.msra.mxu0 %v2638
        %6318 = vmatpush.msra.mxu0 %v2637
        %6319 = vmatpush.msra.mxu0 %v2636
        %6320 = vmatpush.msra.mxu0 %v2635
        %6321 = vmatpush.msra.mxu0 %v2634
        %6322 = vmatpush.msra.mxu0 %v2633
        %6323 = vmatpush.msra.mxu0 %v2632
        %6324 = vmatpush.msra.mxu0 %v2631
        %6325 = vmatpush.msra.mxu0 %v2630
        %6326 = vmatpush.msra.mxu0 %v2629
        %6327 = vmatpush.msra.mxu0 %v2628
        %6328 = vmatpush.msra.mxu0 %v2627
        %6329 = vmatpush.msra.mxu0 %v2626
        %6330 = vmatpush.msra.mxu0 %v2625
        %6331 = vmatpush.msra.mxu0 %v2624
        %6332 = vmatmul.f32.gmra.mxu0 %v358
        %v6333 = vpop.f32.mrf.mxu0
        %v6334 = vadd.f32 %v6314, %v6333
        %6335 = vdwg.mxu0
        %6336 = vmatpush.msra.mxu0 %v2655
        %6337 = vmatpush.msra.mxu0 %v2654
        %6338 = vmatpush.msra.mxu0 %v2653
        %6339 = vmatpush.msra.mxu0 %v2652
        %6340 = vmatpush.msra.mxu0 %v2651
        %6341 = vmatpush.msra.mxu0 %v2650
        %6342 = vmatpush.msra.mxu0 %v2649
        %6343 = vmatpush.msra.mxu0 %v2648
        %6344 = vmatpush.msra.mxu0 %v2647
        %6345 = vmatpush.msra.mxu0 %v2646
        %6346 = vmatpush.msra.mxu0 %v2645
        %6347 = vmatpush.msra.mxu0 %v2644
        %6348 = vmatpush.msra.mxu0 %v2643
        %6349 = vmatpush.msra.mxu0 %v2642
        %6350 = vmatpush.msra.mxu0 %v2641
        %6351 = vmatpush.msra.mxu0 %v2640
        %6352 = vmatmul.f32.gmra.mxu0 %v359
        %v6353 = vpop.f32.mrf.mxu0
        %v6354 = vadd.f32 %v6334, %v6353
        %6355 = vdwg.mxu0
        %6356 = vmatpush.msra.mxu0 %v2671
        %6357 = vmatpush.msra.mxu0 %v2670
        %6358 = vmatpush.msra.mxu0 %v2669
        %6359 = vmatpush.msra.mxu0 %v2668
        %6360 = vmatpush.msra.mxu0 %v2667
        %6361 = vmatpush.msra.mxu0 %v2666
        %6362 = vmatpush.msra.mxu0 %v2665
        %6363 = vmatpush.msra.mxu0 %v2664
        %6364 = vmatpush.msra.mxu0 %v2663
        %6365 = vmatpush.msra.mxu0 %v2662
        %6366 = vmatpush.msra.mxu0 %v2661
        %6367 = vmatpush.msra.mxu0 %v2660
        %6368 = vmatpush.msra.mxu0 %v2659
        %6369 = vmatpush.msra.mxu0 %v2658
        %6370 = vmatpush.msra.mxu0 %v2657
        %6371 = vmatpush.msra.mxu0 %v2656
        %6372 = vmatmul.f32.gmra.mxu0 %v360
        %v6373 = vpop.f32.mrf.mxu0
        %v6374 = vadd.f32 %v6354, %v6373
        %6375 = vdwg.mxu0
        %6376 = vmatpush.msra.mxu0 %v2687
        %6377 = vmatpush.msra.mxu0 %v2686
        %6378 = vmatpush.msra.mxu0 %v2685
        %6379 = vmatpush.msra.mxu0 %v2684
        %6380 = vmatpush.msra.mxu0 %v2683
        %6381 = vmatpush.msra.mxu0 %v2682
        %6382 = vmatpush.msra.mxu0 %v2681
        %6383 = vmatpush.msra.mxu0 %v2680
        %6384 = vmatpush.msra.mxu0 %v2679
        %6385 = vmatpush.msra.mxu0 %v2678
        %6386 = vmatpush.msra.mxu0 %v2677
        %6387 = vmatpush.msra.mxu0 %v2676
        %6388 = vmatpush.msra.mxu0 %v2675
        %6389 = vmatpush.msra.mxu0 %v2674
        %6390 = vmatpush.msra.mxu0 %v2673
        %6391 = vmatpush.msra.mxu0 %v2672
        %6392 = vmatmul.f32.gmra.mxu0 %v361
        %v6393 = vpop.f32.mrf.mxu0
        %v6394 = vadd.f32 %v6374, %v6393
        %6395 = vdwg.mxu0
        %6396 = vmatpush.msra.mxu0 %v2703
        %6397 = vmatpush.msra.mxu0 %v2702
        %6398 = vmatpush.msra.mxu0 %v2701
        %6399 = vmatpush.msra.mxu0 %v2700
        %6400 = vmatpush.msra.mxu0 %v2699
        %6401 = vmatpush.msra.mxu0 %v2698
        %6402 = vmatpush.msra.mxu0 %v2697
        %6403 = vmatpush.msra.mxu0 %v2696
        %6404 = vmatpush.msra.mxu0 %v2695
        %6405 = vmatpush.msra.mxu0 %v2694
        %6406 = vmatpush.msra.mxu0 %v2693
        %6407 = vmatpush.msra.mxu0 %v2692
        %6408 = vmatpush.msra.mxu0 %v2691
        %6409 = vmatpush.msra.mxu0 %v2690
        %6410 = vmatpush.msra.mxu0 %v2689
        %6411 = vmatpush.msra.mxu0 %v2688
        %6412 = vmatmul.f32.gmra.mxu0 %v362
        %v6413 = vpop.f32.mrf.mxu0
        %v6414 = vadd.f32 %v6394, %v6413
        %6415 = vdwg.mxu0
        %6416 = vmatpush.msra.mxu0 %v2719
        %6417 = vmatpush.msra.mxu0 %v2718
        %6418 = vmatpush.msra.mxu0 %v2717
        %6419 = vmatpush.msra.mxu0 %v2716
        %6420 = vmatpush.msra.mxu0 %v2715
        %6421 = vmatpush.msra.mxu0 %v2714
        %6422 = vmatpush.msra.mxu0 %v2713
        %6423 = vmatpush.msra.mxu0 %v2712
        %6424 = vmatpush.msra.mxu0 %v2711
        %6425 = vmatpush.msra.mxu0 %v2710
        %6426 = vmatpush.msra.mxu0 %v2709
        %6427 = vmatpush.msra.mxu0 %v2708
        %6428 = vmatpush.msra.mxu0 %v2707
        %6429 = vmatpush.msra.mxu0 %v2706
        %6430 = vmatpush.msra.mxu0 %v2705
        %6431 = vmatpush.msra.mxu0 %v2704
        %6432 = vmatmul.f32.gmra.mxu0 %v363
        %v6433 = vpop.f32.mrf.mxu0
        %v6434 = vadd.f32 %v6414, %v6433
        %6435 = vdwg.mxu0
        %6436 = vmatpush.msra.mxu0 %v2735
        %6437 = vmatpush.msra.mxu0 %v2734
        %6438 = vmatpush.msra.mxu0 %v2733
        %6439 = vmatpush.msra.mxu0 %v2732
        %6440 = vmatpush.msra.mxu0 %v2731
        %6441 = vmatpush.msra.mxu0 %v2730
        %6442 = vmatpush.msra.mxu0 %v2729
        %6443 = vmatpush.msra.mxu0 %v2728
        %6444 = vmatpush.msra.mxu0 %v2727
        %6445 = vmatpush.msra.mxu0 %v2726
        %6446 = vmatpush.msra.mxu0 %v2725
        %6447 = vmatpush.msra.mxu0 %v2724
        %6448 = vmatpush.msra.mxu0 %v2723
        %6449 = vmatpush.msra.mxu0 %v2722
        %6450 = vmatpush.msra.mxu0 %v2721
        %6451 = vmatpush.msra.mxu0 %v2720
        %6452 = vmatmul.f32.gmra.mxu0 %v364
        %v6453 = vpop.f32.mrf.mxu0
        %v6454 = vadd.f32 %v6434, %v6453
        %6455 = vdwg.mxu0
        %6456 = vmatpush.msra.mxu0 %v2751
        %6457 = vmatpush.msra.mxu0 %v2750
        %6458 = vmatpush.msra.mxu0 %v2749
        %6459 = vmatpush.msra.mxu0 %v2748
        %6460 = vmatpush.msra.mxu0 %v2747
        %6461 = vmatpush.msra.mxu0 %v2746
        %6462 = vmatpush.msra.mxu0 %v2745
        %6463 = vmatpush.msra.mxu0 %v2744
        %6464 = vmatpush.msra.mxu0 %v2743
        %6465 = vmatpush.msra.mxu0 %v2742
        %6466 = vmatpush.msra.mxu0 %v2741
        %6467 = vmatpush.msra.mxu0 %v2740
        %6468 = vmatpush.msra.mxu0 %v2739
        %6469 = vmatpush.msra.mxu0 %v2738
        %6470 = vmatpush.msra.mxu0 %v2737
        %6471 = vmatpush.msra.mxu0 %v2736
        %6472 = vmatmul.f32.gmra.mxu0 %v365
        %v6473 = vpop.f32.mrf.mxu0
        %v6474 = vadd.f32 %v6454, %v6473
        %6475 = vdwg.mxu0
        %6476 = vmatpush.msra.mxu0 %v2767
        %6477 = vmatpush.msra.mxu0 %v2766
        %6478 = vmatpush.msra.mxu0 %v2765
        %6479 = vmatpush.msra.mxu0 %v2764
        %6480 = vmatpush.msra.mxu0 %v2763
        %6481 = vmatpush.msra.mxu0 %v2762
        %6482 = vmatpush.msra.mxu0 %v2761
        %6483 = vmatpush.msra.mxu0 %v2760
        %6484 = vmatpush.msra.mxu0 %v2759
        %6485 = vmatpush.msra.mxu0 %v2758
        %6486 = vmatpush.msra.mxu0 %v2757
        %6487 = vmatpush.msra.mxu0 %v2756
        %6488 = vmatpush.msra.mxu0 %v2755
        %6489 = vmatpush.msra.mxu0 %v2754
        %6490 = vmatpush.msra.mxu0 %v2753
        %6491 = vmatpush.msra.mxu0 %v2752
        %6492 = vmatmul.f32.gmra.mxu0 %v366
        %v6493 = vpop.f32.mrf.mxu0
        %v6494 = vadd.f32 %v6474, %v6493
        %6495 = vdwg.mxu0
        %6496 = vmatpush.msra.mxu0 %v2783
        %6497 = vmatpush.msra.mxu0 %v2782
        %6498 = vmatpush.msra.mxu0 %v2781
        %6499 = vmatpush.msra.mxu0 %v2780
        %6500 = vmatpush.msra.mxu0 %v2779
        %6501 = vmatpush.msra.mxu0 %v2778
        %6502 = vmatpush.msra.mxu0 %v2777
        %6503 = vmatpush.msra.mxu0 %v2776
        %6504 = vmatpush.msra.mxu0 %v2775
        %6505 = vmatpush.msra.mxu0 %v2774
        %6506 = vmatpush.msra.mxu0 %v2773
        %6507 = vmatpush.msra.mxu0 %v2772
        %6508 = vmatpush.msra.mxu0 %v2771
        %6509 = vmatpush.msra.mxu0 %v2770
        %6510 = vmatpush.msra.mxu0 %v2769
        %6511 = vmatpush.msra.mxu0 %v2768
        %6512 = vmatmul.f32.gmra.mxu0 %v367
        %v6513 = vpop.f32.mrf.mxu0
        %v6514 = vadd.f32 %v6494, %v6513
        %6515 = vdwg.mxu0
        %6516 = vmatpush.msra.mxu0 %v2799
        %6517 = vmatpush.msra.mxu0 %v2798
        %6518 = vmatpush.msra.mxu0 %v2797
        %6519 = vmatpush.msra.mxu0 %v2796
        %6520 = vmatpush.msra.mxu0 %v2795
        %6521 = vmatpush.msra.mxu0 %v2794
        %6522 = vmatpush.msra.mxu0 %v2793
        %6523 = vmatpush.msra.mxu0 %v2792
        %6524 = vmatpush.msra.mxu0 %v2791
        %6525 = vmatpush.msra.mxu0 %v2790
        %6526 = vmatpush.msra.mxu0 %v2789
        %6527 = vmatpush.msra.mxu0 %v2788
        %6528 = vmatpush.msra.mxu0 %v2787
        %6529 = vmatpush.msra.mxu0 %v2786
        %6530 = vmatpush.msra.mxu0 %v2785
        %6531 = vmatpush.msra.mxu0 %v2784
        %6532 = vmatmul.f32.gmra.mxu0 %v368
        %v6533 = vpop.f32.mrf.mxu0
        %v6534 = vadd.f32 %v6514, %v6533
        %6535 = vdwg.mxu0
        %6536 = vmatpush.msra.mxu0 %v2815
        %6537 = vmatpush.msra.mxu0 %v2814
        %6538 = vmatpush.msra.mxu0 %v2813
        %6539 = vmatpush.msra.mxu0 %v2812
        %6540 = vmatpush.msra.mxu0 %v2811
        %6541 = vmatpush.msra.mxu0 %v2810
        %6542 = vmatpush.msra.mxu0 %v2809
        %6543 = vmatpush.msra.mxu0 %v2808
        %6544 = vmatpush.msra.mxu0 %v2807
        %6545 = vmatpush.msra.mxu0 %v2806
        %6546 = vmatpush.msra.mxu0 %v2805
        %6547 = vmatpush.msra.mxu0 %v2804
        %6548 = vmatpush.msra.mxu0 %v2803
        %6549 = vmatpush.msra.mxu0 %v2802
        %6550 = vmatpush.msra.mxu0 %v2801
        %6551 = vmatpush.msra.mxu0 %v2800
        %6552 = vmatmul.f32.gmra.mxu0 %v369
        %v6553 = vpop.f32.mrf.mxu0
        %v6554 = vadd.f32 %v6534, %v6553
        %6555 = vdwg.mxu0
        %6556 = vmatpush.msra.mxu0 %v2831
        %6557 = vmatpush.msra.mxu0 %v2830
        %6558 = vmatpush.msra.mxu0 %v2829
        %6559 = vmatpush.msra.mxu0 %v2828
        %6560 = vmatpush.msra.mxu0 %v2827
        %6561 = vmatpush.msra.mxu0 %v2826
        %6562 = vmatpush.msra.mxu0 %v2825
        %6563 = vmatpush.msra.mxu0 %v2824
        %6564 = vmatpush.msra.mxu0 %v2823
        %6565 = vmatpush.msra.mxu0 %v2822
        %6566 = vmatpush.msra.mxu0 %v2821
        %6567 = vmatpush.msra.mxu0 %v2820
        %6568 = vmatpush.msra.mxu0 %v2819
        %6569 = vmatpush.msra.mxu0 %v2818
        %6570 = vmatpush.msra.mxu0 %v2817
        %6571 = vmatpush.msra.mxu0 %v2816
        %6572 = vmatmul.f32.gmra.mxu0 %v370
        %v6573 = vpop.f32.mrf.mxu0
        %v6574 = vadd.f32 %v6554, %v6573
        %6575 = vdwg.mxu0
        %6576 = vmatpush.msra.mxu0 %v2847
        %6577 = vmatpush.msra.mxu0 %v2846
        %6578 = vmatpush.msra.mxu0 %v2845
        %6579 = vmatpush.msra.mxu0 %v2844
        %6580 = vmatpush.msra.mxu0 %v2843
        %6581 = vmatpush.msra.mxu0 %v2842
        %6582 = vmatpush.msra.mxu0 %v2841
        %6583 = vmatpush.msra.mxu0 %v2840
        %6584 = vmatpush.msra.mxu0 %v2839
        %6585 = vmatpush.msra.mxu0 %v2838
        %6586 = vmatpush.msra.mxu0 %v2837
        %6587 = vmatpush.msra.mxu0 %v2836
        %6588 = vmatpush.msra.mxu0 %v2835
        %6589 = vmatpush.msra.mxu0 %v2834
        %6590 = vmatpush.msra.mxu0 %v2833
        %6591 = vmatpush.msra.mxu0 %v2832
        %6592 = vmatmul.f32.gmra.mxu0 %v371
        %v6593 = vpop.f32.mrf.mxu0
        %v6594 = vadd.f32 %v6574, %v6593
        %6595 = vdwg.mxu0
        %6596 = vmatpush.msra.mxu0 %v2863
        %6597 = vmatpush.msra.mxu0 %v2862
        %6598 = vmatpush.msra.mxu0 %v2861
        %6599 = vmatpush.msra.mxu0 %v2860
        %6600 = vmatpush.msra.mxu0 %v2859
        %6601 = vmatpush.msra.mxu0 %v2858
        %6602 = vmatpush.msra.mxu0 %v2857
        %6603 = vmatpush.msra.mxu0 %v2856
        %6604 = vmatpush.msra.mxu0 %v2855
        %6605 = vmatpush.msra.mxu0 %v2854
        %6606 = vmatpush.msra.mxu0 %v2853
        %6607 = vmatpush.msra.mxu0 %v2852
        %6608 = vmatpush.msra.mxu0 %v2851
        %6609 = vmatpush.msra.mxu0 %v2850
        %6610 = vmatpush.msra.mxu0 %v2849
        %6611 = vmatpush.msra.mxu0 %v2848
        %6612 = vmatmul.f32.gmra.mxu0 %v372
        %v6613 = vpop.f32.mrf.mxu0
        %v6614 = vadd.f32 %v6594, %v6613
        %6615 = vdwg.mxu0
        %6616 = vmatpush.msra.mxu0 %v2879
        %6617 = vmatpush.msra.mxu0 %v2878
        %6618 = vmatpush.msra.mxu0 %v2877
        %6619 = vmatpush.msra.mxu0 %v2876
        %6620 = vmatpush.msra.mxu0 %v2875
        %6621 = vmatpush.msra.mxu0 %v2874
        %6622 = vmatpush.msra.mxu0 %v2873
        %6623 = vmatpush.msra.mxu0 %v2872
        %6624 = vmatpush.msra.mxu0 %v2871
        %6625 = vmatpush.msra.mxu0 %v2870
        %6626 = vmatpush.msra.mxu0 %v2869
        %6627 = vmatpush.msra.mxu0 %v2868
        %6628 = vmatpush.msra.mxu0 %v2867
        %6629 = vmatpush.msra.mxu0 %v2866
        %6630 = vmatpush.msra.mxu0 %v2865
        %6631 = vmatpush.msra.mxu0 %v2864
        %6632 = vmatmul.f32.gmra.mxu0 %v373
        %v6633 = vpop.f32.mrf.mxu0
        %v6634 = vadd.f32 %v6614, %v6633
        %6635 = vdwg.mxu0
        %6636 = vmatpush.msra.mxu0 %v2895
        %6637 = vmatpush.msra.mxu0 %v2894
        %6638 = vmatpush.msra.mxu0 %v2893
        %6639 = vmatpush.msra.mxu0 %v2892
        %6640 = vmatpush.msra.mxu0 %v2891
        %6641 = vmatpush.msra.mxu0 %v2890
        %6642 = vmatpush.msra.mxu0 %v2889
        %6643 = vmatpush.msra.mxu0 %v2888
        %6644 = vmatpush.msra.mxu0 %v2887
        %6645 = vmatpush.msra.mxu0 %v2886
        %6646 = vmatpush.msra.mxu0 %v2885
        %6647 = vmatpush.msra.mxu0 %v2884
        %6648 = vmatpush.msra.mxu0 %v2883
        %6649 = vmatpush.msra.mxu0 %v2882
        %6650 = vmatpush.msra.mxu0 %v2881
        %6651 = vmatpush.msra.mxu0 %v2880
        %6652 = vmatmul.f32.gmra.mxu0 %v374
        %v6653 = vpop.f32.mrf.mxu0
        %v6654 = vadd.f32 %v6634, %v6653
        %6655 = vdwg.mxu0
        %6656 = vmatpush.msra.mxu0 %v2911
        %6657 = vmatpush.msra.mxu0 %v2910
        %6658 = vmatpush.msra.mxu0 %v2909
        %6659 = vmatpush.msra.mxu0 %v2908
        %6660 = vmatpush.msra.mxu0 %v2907
        %6661 = vmatpush.msra.mxu0 %v2906
        %6662 = vmatpush.msra.mxu0 %v2905
        %6663 = vmatpush.msra.mxu0 %v2904
        %6664 = vmatpush.msra.mxu0 %v2903
        %6665 = vmatpush.msra.mxu0 %v2902
        %6666 = vmatpush.msra.mxu0 %v2901
        %6667 = vmatpush.msra.mxu0 %v2900
        %6668 = vmatpush.msra.mxu0 %v2899
        %6669 = vmatpush.msra.mxu0 %v2898
        %6670 = vmatpush.msra.mxu0 %v2897
        %6671 = vmatpush.msra.mxu0 %v2896
        %6672 = vmatmul.f32.gmra.mxu0 %v375
        %v6673 = vpop.f32.mrf.mxu0
        %v6674 = vadd.f32 %v6654, %v6673
        %6675 = vdwg.mxu0
        %6676 = vmatpush.msra.mxu0 %v2927
        %6677 = vmatpush.msra.mxu0 %v2926
        %6678 = vmatpush.msra.mxu0 %v2925
        %6679 = vmatpush.msra.mxu0 %v2924
        %6680 = vmatpush.msra.mxu0 %v2923
        %6681 = vmatpush.msra.mxu0 %v2922
        %6682 = vmatpush.msra.mxu0 %v2921
        %6683 = vmatpush.msra.mxu0 %v2920
        %6684 = vmatpush.msra.mxu0 %v2919
        %6685 = vmatpush.msra.mxu0 %v2918
        %6686 = vmatpush.msra.mxu0 %v2917
        %6687 = vmatpush.msra.mxu0 %v2916
        %6688 = vmatpush.msra.mxu0 %v2915
        %6689 = vmatpush.msra.mxu0 %v2914
        %6690 = vmatpush.msra.mxu0 %v2913
        %6691 = vmatpush.msra.mxu0 %v2912
        %6692 = vmatmul.f32.gmra.mxu0 %v376
        %v6693 = vpop.f32.mrf.mxu0
        %v6694 = vadd.f32 %v6674, %v6693
        %6695 = vdwg.mxu0
        %6696 = vmatpush.msra.mxu0 %v2943
        %6697 = vmatpush.msra.mxu0 %v2942
        %6698 = vmatpush.msra.mxu0 %v2941
        %6699 = vmatpush.msra.mxu0 %v2940
        %6700 = vmatpush.msra.mxu0 %v2939
        %6701 = vmatpush.msra.mxu0 %v2938
        %6702 = vmatpush.msra.mxu0 %v2937
        %6703 = vmatpush.msra.mxu0 %v2936
        %6704 = vmatpush.msra.mxu0 %v2935
        %6705 = vmatpush.msra.mxu0 %v2934
        %6706 = vmatpush.msra.mxu0 %v2933
        %6707 = vmatpush.msra.mxu0 %v2932
        %6708 = vmatpush.msra.mxu0 %v2931
        %6709 = vmatpush.msra.mxu0 %v2930
        %6710 = vmatpush.msra.mxu0 %v2929
        %6711 = vmatpush.msra.mxu0 %v2928
        %6712 = vmatmul.f32.gmra.mxu0 %v377
        %v6713 = vpop.f32.mrf.mxu0
        %v6714 = vadd.f32 %v6694, %v6713
        %6715 = vdwg.mxu0
        %6716 = vmatpush.msra.mxu0 %v2959
        %6717 = vmatpush.msra.mxu0 %v2958
        %6718 = vmatpush.msra.mxu0 %v2957
        %6719 = vmatpush.msra.mxu0 %v2956
        %6720 = vmatpush.msra.mxu0 %v2955
        %6721 = vmatpush.msra.mxu0 %v2954
        %6722 = vmatpush.msra.mxu0 %v2953
        %6723 = vmatpush.msra.mxu0 %v2952
        %6724 = vmatpush.msra.mxu0 %v2951
        %6725 = vmatpush.msra.mxu0 %v2950
        %6726 = vmatpush.msra.mxu0 %v2949
        %6727 = vmatpush.msra.mxu0 %v2948
        %6728 = vmatpush.msra.mxu0 %v2947
        %6729 = vmatpush.msra.mxu0 %v2946
        %6730 = vmatpush.msra.mxu0 %v2945
        %6731 = vmatpush.msra.mxu0 %v2944
        %6732 = vmatmul.f32.gmra.mxu0 %v378
        %v6733 = vpop.f32.mrf.mxu0
        %v6734 = vadd.f32 %v6714, %v6733
        %6735 = vdwg.mxu0
        %6736 = vmatpush.msra.mxu0 %v2975
        %6737 = vmatpush.msra.mxu0 %v2974
        %6738 = vmatpush.msra.mxu0 %v2973
        %6739 = vmatpush.msra.mxu0 %v2972
        %6740 = vmatpush.msra.mxu0 %v2971
        %6741 = vmatpush.msra.mxu0 %v2970
        %6742 = vmatpush.msra.mxu0 %v2969
        %6743 = vmatpush.msra.mxu0 %v2968
        %6744 = vmatpush.msra.mxu0 %v2967
        %6745 = vmatpush.msra.mxu0 %v2966
        %6746 = vmatpush.msra.mxu0 %v2965
        %6747 = vmatpush.msra.mxu0 %v2964
        %6748 = vmatpush.msra.mxu0 %v2963
        %6749 = vmatpush.msra.mxu0 %v2962
        %6750 = vmatpush.msra.mxu0 %v2961
        %6751 = vmatpush.msra.mxu0 %v2960
        %6752 = vmatmul.f32.gmra.mxu0 %v379
        %v6753 = vpop.f32.mrf.mxu0
        %v6754 = vadd.f32 %v6734, %v6753
        %6755 = vdwg.mxu0
        %6756 = vmatpush.msra.mxu0 %v2991
        %6757 = vmatpush.msra.mxu0 %v2990
        %6758 = vmatpush.msra.mxu0 %v2989
        %6759 = vmatpush.msra.mxu0 %v2988
        %6760 = vmatpush.msra.mxu0 %v2987
        %6761 = vmatpush.msra.mxu0 %v2986
        %6762 = vmatpush.msra.mxu0 %v2985
        %6763 = vmatpush.msra.mxu0 %v2984
        %6764 = vmatpush.msra.mxu0 %v2983
        %6765 = vmatpush.msra.mxu0 %v2982
        %6766 = vmatpush.msra.mxu0 %v2981
        %6767 = vmatpush.msra.mxu0 %v2980
        %6768 = vmatpush.msra.mxu0 %v2979
        %6769 = vmatpush.msra.mxu0 %v2978
        %6770 = vmatpush.msra.mxu0 %v2977
        %6771 = vmatpush.msra.mxu0 %v2976
        %6772 = vmatmul.f32.gmra.mxu0 %v380
        %v6773 = vpop.f32.mrf.mxu0
        %v6774 = vadd.f32 %v6754, %v6773
        %6775 = vdwg.mxu0
        %6776 = vmatpush.msra.mxu0 %v3007
        %6777 = vmatpush.msra.mxu0 %v3006
        %6778 = vmatpush.msra.mxu0 %v3005
        %6779 = vmatpush.msra.mxu0 %v3004
        %6780 = vmatpush.msra.mxu0 %v3003
        %6781 = vmatpush.msra.mxu0 %v3002
        %6782 = vmatpush.msra.mxu0 %v3001
        %6783 = vmatpush.msra.mxu0 %v3000
        %6784 = vmatpush.msra.mxu0 %v2999
        %6785 = vmatpush.msra.mxu0 %v2998
        %6786 = vmatpush.msra.mxu0 %v2997
        %6787 = vmatpush.msra.mxu0 %v2996
        %6788 = vmatpush.msra.mxu0 %v2995
        %6789 = vmatpush.msra.mxu0 %v2994
        %6790 = vmatpush.msra.mxu0 %v2993
        %6791 = vmatpush.msra.mxu0 %v2992
        %6792 = vmatmul.f32.gmra.mxu0 %v381
        %v6793 = vpop.f32.mrf.mxu0
        %v6794 = vadd.f32 %v6774, %v6793
        %6795 = vdwg.mxu0
        %6796 = vmatpush.msra.mxu0 %v3023
        %6797 = vmatpush.msra.mxu0 %v3022
        %6798 = vmatpush.msra.mxu0 %v3021
        %6799 = vmatpush.msra.mxu0 %v3020
        %6800 = vmatpush.msra.mxu0 %v3019
        %6801 = vmatpush.msra.mxu0 %v3018
        %6802 = vmatpush.msra.mxu0 %v3017
        %6803 = vmatpush.msra.mxu0 %v3016
        %6804 = vmatpush.msra.mxu0 %v3015
        %6805 = vmatpush.msra.mxu0 %v3014
        %6806 = vmatpush.msra.mxu0 %v3013
        %6807 = vmatpush.msra.mxu0 %v3012
        %6808 = vmatpush.msra.mxu0 %v3011
        %6809 = vmatpush.msra.mxu0 %v3010
        %6810 = vmatpush.msra.mxu0 %v3009
        %6811 = vmatpush.msra.mxu0 %v3008
        %6812 = vmatmul.f32.gmra.mxu0 %v382
        %v6813 = vpop.f32.mrf.mxu0
        %v6814 = vadd.f32 %v6794, %v6813
        %6815 = vdwg.mxu0
        %6816 = vmatpush.msra.mxu0 %v3039
        %6817 = vmatpush.msra.mxu0 %v3038
        %6818 = vmatpush.msra.mxu0 %v3037
        %6819 = vmatpush.msra.mxu0 %v3036
        %6820 = vmatpush.msra.mxu0 %v3035
        %6821 = vmatpush.msra.mxu0 %v3034
        %6822 = vmatpush.msra.mxu0 %v3033
        %6823 = vmatpush.msra.mxu0 %v3032
        %6824 = vmatpush.msra.mxu0 %v3031
        %6825 = vmatpush.msra.mxu0 %v3030
        %6826 = vmatpush.msra.mxu0 %v3029
        %6827 = vmatpush.msra.mxu0 %v3028
        %6828 = vmatpush.msra.mxu0 %v3027
        %6829 = vmatpush.msra.mxu0 %v3026
        %6830 = vmatpush.msra.mxu0 %v3025
        %6831 = vmatpush.msra.mxu0 %v3024
        %6832 = vmatmul.f32.gmra.mxu0 %v383
        %v6833 = vpop.f32.mrf.mxu0
        %v6834 = vadd.f32 %v6814, %v6833
        %6835 = vdwg.mxu0
        %6836 = vmatpush.msra.mxu0 %v3055
        %6837 = vmatpush.msra.mxu0 %v3054
        %6838 = vmatpush.msra.mxu0 %v3053
        %6839 = vmatpush.msra.mxu0 %v3052
        %6840 = vmatpush.msra.mxu0 %v3051
        %6841 = vmatpush.msra.mxu0 %v3050
        %6842 = vmatpush.msra.mxu0 %v3049
        %6843 = vmatpush.msra.mxu0 %v3048
        %6844 = vmatpush.msra.mxu0 %v3047
        %6845 = vmatpush.msra.mxu0 %v3046
        %6846 = vmatpush.msra.mxu0 %v3045
        %6847 = vmatpush.msra.mxu0 %v3044
        %6848 = vmatpush.msra.mxu0 %v3043
        %6849 = vmatpush.msra.mxu0 %v3042
        %6850 = vmatpush.msra.mxu0 %v3041
        %6851 = vmatpush.msra.mxu0 %v3040
        %6852 = vmatmul.f32.gmra.mxu0 %v384
        %v6853 = vpop.f32.mrf.mxu0
        %v6854 = vadd.f32 %v6834, %v6853
        %6855 = vdwg.mxu0
        %6856 = vmatpush.msra.mxu0 %v3071
        %6857 = vmatpush.msra.mxu0 %v3070
        %6858 = vmatpush.msra.mxu0 %v3069
        %6859 = vmatpush.msra.mxu0 %v3068
        %6860 = vmatpush.msra.mxu0 %v3067
        %6861 = vmatpush.msra.mxu0 %v3066
        %6862 = vmatpush.msra.mxu0 %v3065
        %6863 = vmatpush.msra.mxu0 %v3064
        %6864 = vmatpush.msra.mxu0 %v3063
        %6865 = vmatpush.msra.mxu0 %v3062
        %6866 = vmatpush.msra.mxu0 %v3061
        %6867 = vmatpush.msra.mxu0 %v3060
        %6868 = vmatpush.msra.mxu0 %v3059
        %6869 = vmatpush.msra.mxu0 %v3058
        %6870 = vmatpush.msra.mxu0 %v3057
        %6871 = vmatpush.msra.mxu0 %v3056
        %6872 = vmatmul.f32.gmra.mxu0 %v385
        %v6873 = vpop.f32.mrf.mxu0
        %v6874 = vadd.f32 %v6854, %v6873
        %6875 = vdwg.mxu0
        %6876 = vmatpush.msra.mxu0 %v3087
        %6877 = vmatpush.msra.mxu0 %v3086
        %6878 = vmatpush.msra.mxu0 %v3085
        %6879 = vmatpush.msra.mxu0 %v3084
        %6880 = vmatpush.msra.mxu0 %v3083
        %6881 = vmatpush.msra.mxu0 %v3082
        %6882 = vmatpush.msra.mxu0 %v3081
        %6883 = vmatpush.msra.mxu0 %v3080
        %6884 = vmatpush.msra.mxu0 %v3079
        %6885 = vmatpush.msra.mxu0 %v3078
        %6886 = vmatpush.msra.mxu0 %v3077
        %6887 = vmatpush.msra.mxu0 %v3076
        %6888 = vmatpush.msra.mxu0 %v3075
        %6889 = vmatpush.msra.mxu0 %v3074
        %6890 = vmatpush.msra.mxu0 %v3073
        %6891 = vmatpush.msra.mxu0 %v3072
        %6892 = vmatmul.f32.gmra.mxu0 %v386
        %v6893 = vpop.f32.mrf.mxu0
        %v6894 = vadd.f32 %v6874, %v6893
        %6895 = vdwg.mxu0
        %6896 = vmatpush.msra.mxu0 %v3103
        %6897 = vmatpush.msra.mxu0 %v3102
        %6898 = vmatpush.msra.mxu0 %v3101
        %6899 = vmatpush.msra.mxu0 %v3100
        %6900 = vmatpush.msra.mxu0 %v3099
        %6901 = vmatpush.msra.mxu0 %v3098
        %6902 = vmatpush.msra.mxu0 %v3097
        %6903 = vmatpush.msra.mxu0 %v3096
        %6904 = vmatpush.msra.mxu0 %v3095
        %6905 = vmatpush.msra.mxu0 %v3094
        %6906 = vmatpush.msra.mxu0 %v3093
        %6907 = vmatpush.msra.mxu0 %v3092
        %6908 = vmatpush.msra.mxu0 %v3091
        %6909 = vmatpush.msra.mxu0 %v3090
        %6910 = vmatpush.msra.mxu0 %v3089
        %6911 = vmatpush.msra.mxu0 %v3088
        %6912 = vmatmul.f32.gmra.mxu0 %v387
        %v6913 = vpop.f32.mrf.mxu0
        %v6914 = vadd.f32 %v6894, %v6913
        %6915 = vdwg.mxu0
        %6916 = vmatpush.msra.mxu0 %v3119
        %6917 = vmatpush.msra.mxu0 %v3118
        %6918 = vmatpush.msra.mxu0 %v3117
        %6919 = vmatpush.msra.mxu0 %v3116
        %6920 = vmatpush.msra.mxu0 %v3115
        %6921 = vmatpush.msra.mxu0 %v3114
        %6922 = vmatpush.msra.mxu0 %v3113
        %6923 = vmatpush.msra.mxu0 %v3112
        %6924 = vmatpush.msra.mxu0 %v3111
        %6925 = vmatpush.msra.mxu0 %v3110
        %6926 = vmatpush.msra.mxu0 %v3109
        %6927 = vmatpush.msra.mxu0 %v3108
        %6928 = vmatpush.msra.mxu0 %v3107
        %6929 = vmatpush.msra.mxu0 %v3106
        %6930 = vmatpush.msra.mxu0 %v3105
        %6931 = vmatpush.msra.mxu0 %v3104
        %6932 = vmatmul.f32.gmra.mxu0 %v388
        %v6933 = vpop.f32.mrf.mxu0
        %v6934 = vadd.f32 %v6914, %v6933
        %6935 = vdwg.mxu0
        %6936 = vmatpush.msra.mxu0 %v3135
        %6937 = vmatpush.msra.mxu0 %v3134
        %6938 = vmatpush.msra.mxu0 %v3133
        %6939 = vmatpush.msra.mxu0 %v3132
        %6940 = vmatpush.msra.mxu0 %v3131
        %6941 = vmatpush.msra.mxu0 %v3130
        %6942 = vmatpush.msra.mxu0 %v3129
        %6943 = vmatpush.msra.mxu0 %v3128
        %6944 = vmatpush.msra.mxu0 %v3127
        %6945 = vmatpush.msra.mxu0 %v3126
        %6946 = vmatpush.msra.mxu0 %v3125
        %6947 = vmatpush.msra.mxu0 %v3124
        %6948 = vmatpush.msra.mxu0 %v3123
        %6949 = vmatpush.msra.mxu0 %v3122
        %6950 = vmatpush.msra.mxu0 %v3121
        %6951 = vmatpush.msra.mxu0 %v3120
        %6952 = vmatmul.f32.gmra.mxu0 %v389
        %v6953 = vpop.f32.mrf.mxu0
        %v6954 = vadd.f32 %v6934, %v6953
        %6955 = vdwg.mxu0
        %6956 = vmatpush.msra.mxu0 %v3151
        %6957 = vmatpush.msra.mxu0 %v3150
        %6958 = vmatpush.msra.mxu0 %v3149
        %6959 = vmatpush.msra.mxu0 %v3148
        %6960 = vmatpush.msra.mxu0 %v3147
        %6961 = vmatpush.msra.mxu0 %v3146
        %6962 = vmatpush.msra.mxu0 %v3145
        %6963 = vmatpush.msra.mxu0 %v3144
        %6964 = vmatpush.msra.mxu0 %v3143
        %6965 = vmatpush.msra.mxu0 %v3142
        %6966 = vmatpush.msra.mxu0 %v3141
        %6967 = vmatpush.msra.mxu0 %v3140
        %6968 = vmatpush.msra.mxu0 %v3139
        %6969 = vmatpush.msra.mxu0 %v3138
        %6970 = vmatpush.msra.mxu0 %v3137
        %6971 = vmatpush.msra.mxu0 %v3136
        %6972 = vmatmul.f32.gmra.mxu0 %v390
        %v6973 = vpop.f32.mrf.mxu0
        %v6974 = vadd.f32 %v6954, %v6973
        %6975 = vdwg.mxu0
        %6976 = vmatpush.msra.mxu0 %v3167
        %6977 = vmatpush.msra.mxu0 %v3166
        %6978 = vmatpush.msra.mxu0 %v3165
        %6979 = vmatpush.msra.mxu0 %v3164
        %6980 = vmatpush.msra.mxu0 %v3163
        %6981 = vmatpush.msra.mxu0 %v3162
        %6982 = vmatpush.msra.mxu0 %v3161
        %6983 = vmatpush.msra.mxu0 %v3160
        %6984 = vmatpush.msra.mxu0 %v3159
        %6985 = vmatpush.msra.mxu0 %v3158
        %6986 = vmatpush.msra.mxu0 %v3157
        %6987 = vmatpush.msra.mxu0 %v3156
        %6988 = vmatpush.msra.mxu0 %v3155
        %6989 = vmatpush.msra.mxu0 %v3154
        %6990 = vmatpush.msra.mxu0 %v3153
        %6991 = vmatpush.msra.mxu0 %v3152
        %6992 = vmatmul.f32.gmra.mxu0 %v391
        %v6993 = vpop.f32.mrf.mxu0
        %v6994 = vadd.f32 %v6974, %v6993
        %6995 = vdwg.mxu0
        %6996 = vmatpush.msra.mxu0 %v3183
        %6997 = vmatpush.msra.mxu0 %v3182
        %6998 = vmatpush.msra.mxu0 %v3181
        %6999 = vmatpush.msra.mxu0 %v3180
        %7000 = vmatpush.msra.mxu0 %v3179
        %7001 = vmatpush.msra.mxu0 %v3178
        %7002 = vmatpush.msra.mxu0 %v3177
        %7003 = vmatpush.msra.mxu0 %v3176
        %7004 = vmatpush.msra.mxu0 %v3175
        %7005 = vmatpush.msra.mxu0 %v3174
        %7006 = vmatpush.msra.mxu0 %v3173
        %7007 = vmatpush.msra.mxu0 %v3172
        %7008 = vmatpush.msra.mxu0 %v3171
        %7009 = vmatpush.msra.mxu0 %v3170
        %7010 = vmatpush.msra.mxu0 %v3169
        %7011 = vmatpush.msra.mxu0 %v3168
        %7012 = vmatmul.f32.gmra.mxu0 %v392
        %v7013 = vpop.f32.mrf.mxu0
        %v7014 = vadd.f32 %v6994, %v7013
        %7015 = vdwg.mxu0
        %7016 = vmatpush.msra.mxu0 %v3199
        %7017 = vmatpush.msra.mxu0 %v3198
        %7018 = vmatpush.msra.mxu0 %v3197
        %7019 = vmatpush.msra.mxu0 %v3196
        %7020 = vmatpush.msra.mxu0 %v3195
        %7021 = vmatpush.msra.mxu0 %v3194
        %7022 = vmatpush.msra.mxu0 %v3193
        %7023 = vmatpush.msra.mxu0 %v3192
        %7024 = vmatpush.msra.mxu0 %v3191
        %7025 = vmatpush.msra.mxu0 %v3190
        %7026 = vmatpush.msra.mxu0 %v3189
        %7027 = vmatpush.msra.mxu0 %v3188
        %7028 = vmatpush.msra.mxu0 %v3187
        %7029 = vmatpush.msra.mxu0 %v3186
        %7030 = vmatpush.msra.mxu0 %v3185
        %7031 = vmatpush.msra.mxu0 %v3184
        %7032 = vmatmul.f32.gmra.mxu0 %v393
        %v7033 = vpop.f32.mrf.mxu0
        %v7034 = vadd.f32 %v7014, %v7033
        %7035 = vdwg.mxu0
        %7036 = vmatpush.msra.mxu0 %v3215
        %7037 = vmatpush.msra.mxu0 %v3214
        %7038 = vmatpush.msra.mxu0 %v3213
        %7039 = vmatpush.msra.mxu0 %v3212
        %7040 = vmatpush.msra.mxu0 %v3211
        %7041 = vmatpush.msra.mxu0 %v3210
        %7042 = vmatpush.msra.mxu0 %v3209
        %7043 = vmatpush.msra.mxu0 %v3208
        %7044 = vmatpush.msra.mxu0 %v3207
        %7045 = vmatpush.msra.mxu0 %v3206
        %7046 = vmatpush.msra.mxu0 %v3205
        %7047 = vmatpush.msra.mxu0 %v3204
        %7048 = vmatpush.msra.mxu0 %v3203
        %7049 = vmatpush.msra.mxu0 %v3202
        %7050 = vmatpush.msra.mxu0 %v3201
        %7051 = vmatpush.msra.mxu0 %v3200
        %7052 = vmatmul.f32.gmra.mxu0 %v394
        %v7053 = vpop.f32.mrf.mxu0
        %v7054 = vadd.f32 %v7034, %v7053
        %7055 = vdwg.mxu0
        %7056 = vmatpush.msra.mxu0 %v3231
        %7057 = vmatpush.msra.mxu0 %v3230
        %7058 = vmatpush.msra.mxu0 %v3229
        %7059 = vmatpush.msra.mxu0 %v3228
        %7060 = vmatpush.msra.mxu0 %v3227
        %7061 = vmatpush.msra.mxu0 %v3226
        %7062 = vmatpush.msra.mxu0 %v3225
        %7063 = vmatpush.msra.mxu0 %v3224
        %7064 = vmatpush.msra.mxu0 %v3223
        %7065 = vmatpush.msra.mxu0 %v3222
        %7066 = vmatpush.msra.mxu0 %v3221
        %7067 = vmatpush.msra.mxu0 %v3220
        %7068 = vmatpush.msra.mxu0 %v3219
        %7069 = vmatpush.msra.mxu0 %v3218
        %7070 = vmatpush.msra.mxu0 %v3217
        %7071 = vmatpush.msra.mxu0 %v3216
        %7072 = vmatmul.f32.gmra.mxu0 %v395
        %v7073 = vpop.f32.mrf.mxu0
        %v7074 = vadd.f32 %v7054, %v7073
        %7075 = vdwg.mxu0
        %7076 = vmatpush.msra.mxu0 %v3247
        %7077 = vmatpush.msra.mxu0 %v3246
        %7078 = vmatpush.msra.mxu0 %v3245
        %7079 = vmatpush.msra.mxu0 %v3244
        %7080 = vmatpush.msra.mxu0 %v3243
        %7081 = vmatpush.msra.mxu0 %v3242
        %7082 = vmatpush.msra.mxu0 %v3241
        %7083 = vmatpush.msra.mxu0 %v3240
        %7084 = vmatpush.msra.mxu0 %v3239
        %7085 = vmatpush.msra.mxu0 %v3238
        %7086 = vmatpush.msra.mxu0 %v3237
        %7087 = vmatpush.msra.mxu0 %v3236
        %7088 = vmatpush.msra.mxu0 %v3235
        %7089 = vmatpush.msra.mxu0 %v3234
        %7090 = vmatpush.msra.mxu0 %v3233
        %7091 = vmatpush.msra.mxu0 %v3232
        %7092 = vmatmul.f32.gmra.mxu0 %v396
        %v7093 = vpop.f32.mrf.mxu0
        %v7094 = vadd.f32 %v7074, %v7093
        %7095 = vdwg.mxu0
        %7096 = vmatpush.msra.mxu0 %v3263
        %7097 = vmatpush.msra.mxu0 %v3262
        %7098 = vmatpush.msra.mxu0 %v3261
        %7099 = vmatpush.msra.mxu0 %v3260
        %7100 = vmatpush.msra.mxu0 %v3259
        %7101 = vmatpush.msra.mxu0 %v3258
        %7102 = vmatpush.msra.mxu0 %v3257
        %7103 = vmatpush.msra.mxu0 %v3256
        %7104 = vmatpush.msra.mxu0 %v3255
        %7105 = vmatpush.msra.mxu0 %v3254
        %7106 = vmatpush.msra.mxu0 %v3253
        %7107 = vmatpush.msra.mxu0 %v3252
        %7108 = vmatpush.msra.mxu0 %v3251
        %7109 = vmatpush.msra.mxu0 %v3250
        %7110 = vmatpush.msra.mxu0 %v3249
        %7111 = vmatpush.msra.mxu0 %v3248
        %7112 = vmatmul.f32.gmra.mxu0 %v397
        %v7113 = vpop.f32.mrf.mxu0
        %v7114 = vadd.f32 %v7094, %v7113
        %7115 = vdwg.mxu0
        %7116 = vmatpush.msra.mxu0 %v3279
        %7117 = vmatpush.msra.mxu0 %v3278
        %7118 = vmatpush.msra.mxu0 %v3277
        %7119 = vmatpush.msra.mxu0 %v3276
        %7120 = vmatpush.msra.mxu0 %v3275
        %7121 = vmatpush.msra.mxu0 %v3274
        %7122 = vmatpush.msra.mxu0 %v3273
        %7123 = vmatpush.msra.mxu0 %v3272
        %7124 = vmatpush.msra.mxu0 %v3271
        %7125 = vmatpush.msra.mxu0 %v3270
        %7126 = vmatpush.msra.mxu0 %v3269
        %7127 = vmatpush.msra.mxu0 %v3268
        %7128 = vmatpush.msra.mxu0 %v3267
        %7129 = vmatpush.msra.mxu0 %v3266
        %7130 = vmatpush.msra.mxu0 %v3265
        %7131 = vmatpush.msra.mxu0 %v3264
        %7132 = vmatmul.f32.gmra.mxu0 %v398
        %v7133 = vpop.f32.mrf.mxu0
        %v7134 = vadd.f32 %v7114, %v7133
        %7135 = vdwg.mxu0
        %7136 = vmatpush.msra.mxu0 %v3295
        %7137 = vmatpush.msra.mxu0 %v3294
        %7138 = vmatpush.msra.mxu0 %v3293
        %7139 = vmatpush.msra.mxu0 %v3292
        %7140 = vmatpush.msra.mxu0 %v3291
        %7141 = vmatpush.msra.mxu0 %v3290
        %7142 = vmatpush.msra.mxu0 %v3289
        %7143 = vmatpush.msra.mxu0 %v3288
        %7144 = vmatpush.msra.mxu0 %v3287
        %7145 = vmatpush.msra.mxu0 %v3286
        %7146 = vmatpush.msra.mxu0 %v3285
        %7147 = vmatpush.msra.mxu0 %v3284
        %7148 = vmatpush.msra.mxu0 %v3283
        %7149 = vmatpush.msra.mxu0 %v3282
        %7150 = vmatpush.msra.mxu0 %v3281
        %7151 = vmatpush.msra.mxu0 %v3280
        %7152 = vmatmul.f32.gmra.mxu0 %v399
        %v7153 = vpop.f32.mrf.mxu0
        %v7154 = vadd.f32 %v7134, %v7153
        %7155 = vdwg.mxu0
        %7156 = vmatpush.msra.mxu0 %v3311
        %7157 = vmatpush.msra.mxu0 %v3310
        %7158 = vmatpush.msra.mxu0 %v3309
        %7159 = vmatpush.msra.mxu0 %v3308
        %7160 = vmatpush.msra.mxu0 %v3307
        %7161 = vmatpush.msra.mxu0 %v3306
        %7162 = vmatpush.msra.mxu0 %v3305
        %7163 = vmatpush.msra.mxu0 %v3304
        %7164 = vmatpush.msra.mxu0 %v3303
        %7165 = vmatpush.msra.mxu0 %v3302
        %7166 = vmatpush.msra.mxu0 %v3301
        %7167 = vmatpush.msra.mxu0 %v3300
        %7168 = vmatpush.msra.mxu0 %v3299
        %7169 = vmatpush.msra.mxu0 %v3298
        %7170 = vmatpush.msra.mxu0 %v3297
        %7171 = vmatpush.msra.mxu0 %v3296
        %7172 = vmatmul.f32.gmra.mxu0 %v400
        %v7173 = vpop.f32.mrf.mxu0
        %v7174 = vadd.f32 %v7154, %v7173
        %7175 = vdwg.mxu0
        %7176 = vmatpush.msra.mxu0 %v3327
        %7177 = vmatpush.msra.mxu0 %v3326
        %7178 = vmatpush.msra.mxu0 %v3325
        %7179 = vmatpush.msra.mxu0 %v3324
        %7180 = vmatpush.msra.mxu0 %v3323
        %7181 = vmatpush.msra.mxu0 %v3322
        %7182 = vmatpush.msra.mxu0 %v3321
        %7183 = vmatpush.msra.mxu0 %v3320
        %7184 = vmatpush.msra.mxu0 %v3319
        %7185 = vmatpush.msra.mxu0 %v3318
        %7186 = vmatpush.msra.mxu0 %v3317
        %7187 = vmatpush.msra.mxu0 %v3316
        %7188 = vmatpush.msra.mxu0 %v3315
        %7189 = vmatpush.msra.mxu0 %v3314
        %7190 = vmatpush.msra.mxu0 %v3313
        %7191 = vmatpush.msra.mxu0 %v3312
        %7192 = vmatmul.f32.gmra.mxu0 %v401
        %v7193 = vpop.f32.mrf.mxu0
        %v7194 = vadd.f32 %v7174, %v7193
        %7195 = vdwg.mxu0
        %7196 = vmatpush.msra.mxu0 %v3343
        %7197 = vmatpush.msra.mxu0 %v3342
        %7198 = vmatpush.msra.mxu0 %v3341
        %7199 = vmatpush.msra.mxu0 %v3340
        %7200 = vmatpush.msra.mxu0 %v3339
        %7201 = vmatpush.msra.mxu0 %v3338
        %7202 = vmatpush.msra.mxu0 %v3337
        %7203 = vmatpush.msra.mxu0 %v3336
        %7204 = vmatpush.msra.mxu0 %v3335
        %7205 = vmatpush.msra.mxu0 %v3334
        %7206 = vmatpush.msra.mxu0 %v3333
        %7207 = vmatpush.msra.mxu0 %v3332
        %7208 = vmatpush.msra.mxu0 %v3331
        %7209 = vmatpush.msra.mxu0 %v3330
        %7210 = vmatpush.msra.mxu0 %v3329
        %7211 = vmatpush.msra.mxu0 %v3328
        %7212 = vmatmul.f32.gmra.mxu0 %v402
        %v7213 = vpop.f32.mrf.mxu0
        %v7214 = vadd.f32 %v7194, %v7213
        %7215 = vdwg.mxu0
        %7216 = vmatpush.msra.mxu0 %v3359
        %7217 = vmatpush.msra.mxu0 %v3358
        %7218 = vmatpush.msra.mxu0 %v3357
        %7219 = vmatpush.msra.mxu0 %v3356
        %7220 = vmatpush.msra.mxu0 %v3355
        %7221 = vmatpush.msra.mxu0 %v3354
        %7222 = vmatpush.msra.mxu0 %v3353
        %7223 = vmatpush.msra.mxu0 %v3352
        %7224 = vmatpush.msra.mxu0 %v3351
        %7225 = vmatpush.msra.mxu0 %v3350
        %7226 = vmatpush.msra.mxu0 %v3349
        %7227 = vmatpush.msra.mxu0 %v3348
        %7228 = vmatpush.msra.mxu0 %v3347
        %7229 = vmatpush.msra.mxu0 %v3346
        %7230 = vmatpush.msra.mxu0 %v3345
        %7231 = vmatpush.msra.mxu0 %v3344
        %7232 = vmatmul.f32.gmra.mxu0 %v403
        %v7233 = vpop.f32.mrf.mxu0
        %v7234 = vadd.f32 %v7214, %v7233
        %7235 = vdwg.mxu0
        %7236 = vmatpush.msra.mxu0 %v3375
        %7237 = vmatpush.msra.mxu0 %v3374
        %7238 = vmatpush.msra.mxu0 %v3373
        %7239 = vmatpush.msra.mxu0 %v3372
        %7240 = vmatpush.msra.mxu0 %v3371
        %7241 = vmatpush.msra.mxu0 %v3370
        %7242 = vmatpush.msra.mxu0 %v3369
        %7243 = vmatpush.msra.mxu0 %v3368
        %7244 = vmatpush.msra.mxu0 %v3367
        %7245 = vmatpush.msra.mxu0 %v3366
        %7246 = vmatpush.msra.mxu0 %v3365
        %7247 = vmatpush.msra.mxu0 %v3364
        %7248 = vmatpush.msra.mxu0 %v3363
        %7249 = vmatpush.msra.mxu0 %v3362
        %7250 = vmatpush.msra.mxu0 %v3361
        %7251 = vmatpush.msra.mxu0 %v3360
        %7252 = vmatmul.f32.gmra.mxu0 %v404
        %v7253 = vpop.f32.mrf.mxu0
        %v7254 = vadd.f32 %v7234, %v7253
        %7255 = vdwg.mxu0
        %7256 = vmatpush.msra.mxu0 %v3391
        %7257 = vmatpush.msra.mxu0 %v3390
        %7258 = vmatpush.msra.mxu0 %v3389
        %7259 = vmatpush.msra.mxu0 %v3388
        %7260 = vmatpush.msra.mxu0 %v3387
        %7261 = vmatpush.msra.mxu0 %v3386
        %7262 = vmatpush.msra.mxu0 %v3385
        %7263 = vmatpush.msra.mxu0 %v3384
        %7264 = vmatpush.msra.mxu0 %v3383
        %7265 = vmatpush.msra.mxu0 %v3382
        %7266 = vmatpush.msra.mxu0 %v3381
        %7267 = vmatpush.msra.mxu0 %v3380
        %7268 = vmatpush.msra.mxu0 %v3379
        %7269 = vmatpush.msra.mxu0 %v3378
        %7270 = vmatpush.msra.mxu0 %v3377
        %7271 = vmatpush.msra.mxu0 %v3376
        %7272 = vmatmul.f32.gmra.mxu0 %v405
        %v7273 = vpop.f32.mrf.mxu0
        %v7274 = vadd.f32 %v7254, %v7273
        %7275 = vdwg.mxu0
        %7276 = vmatpush.msra.mxu0 %v3407
        %7277 = vmatpush.msra.mxu0 %v3406
        %7278 = vmatpush.msra.mxu0 %v3405
        %7279 = vmatpush.msra.mxu0 %v3404
        %7280 = vmatpush.msra.mxu0 %v3403
        %7281 = vmatpush.msra.mxu0 %v3402
        %7282 = vmatpush.msra.mxu0 %v3401
        %7283 = vmatpush.msra.mxu0 %v3400
        %7284 = vmatpush.msra.mxu0 %v3399
        %7285 = vmatpush.msra.mxu0 %v3398
        %7286 = vmatpush.msra.mxu0 %v3397
        %7287 = vmatpush.msra.mxu0 %v3396
        %7288 = vmatpush.msra.mxu0 %v3395
        %7289 = vmatpush.msra.mxu0 %v3394
        %7290 = vmatpush.msra.mxu0 %v3393
        %7291 = vmatpush.msra.mxu0 %v3392
        %7292 = vmatmul.f32.gmra.mxu0 %v406
        %v7293 = vpop.f32.mrf.mxu0
        %v7294 = vadd.f32 %v7274, %v7293
        %7295 = vdwg.mxu0
        %7296 = vmatpush.msra.mxu0 %v3423
        %7297 = vmatpush.msra.mxu0 %v3422
        %7298 = vmatpush.msra.mxu0 %v3421
        %7299 = vmatpush.msra.mxu0 %v3420
        %7300 = vmatpush.msra.mxu0 %v3419
        %7301 = vmatpush.msra.mxu0 %v3418
        %7302 = vmatpush.msra.mxu0 %v3417
        %7303 = vmatpush.msra.mxu0 %v3416
        %7304 = vmatpush.msra.mxu0 %v3415
        %7305 = vmatpush.msra.mxu0 %v3414
        %7306 = vmatpush.msra.mxu0 %v3413
        %7307 = vmatpush.msra.mxu0 %v3412
        %7308 = vmatpush.msra.mxu0 %v3411
        %7309 = vmatpush.msra.mxu0 %v3410
        %7310 = vmatpush.msra.mxu0 %v3409
        %7311 = vmatpush.msra.mxu0 %v3408
        %7312 = vmatmul.f32.gmra.mxu0 %v407
        %v7313 = vpop.f32.mrf.mxu0
        %v7314 = vadd.f32 %v7294, %v7313
        %7315 = vdwg.mxu0
        %7316 = vmatpush.msra.mxu0 %v3439
        %7317 = vmatpush.msra.mxu0 %v3438
        %7318 = vmatpush.msra.mxu0 %v3437
        %7319 = vmatpush.msra.mxu0 %v3436
        %7320 = vmatpush.msra.mxu0 %v3435
        %7321 = vmatpush.msra.mxu0 %v3434
        %7322 = vmatpush.msra.mxu0 %v3433
        %7323 = vmatpush.msra.mxu0 %v3432
        %7324 = vmatpush.msra.mxu0 %v3431
        %7325 = vmatpush.msra.mxu0 %v3430
        %7326 = vmatpush.msra.mxu0 %v3429
        %7327 = vmatpush.msra.mxu0 %v3428
        %7328 = vmatpush.msra.mxu0 %v3427
        %7329 = vmatpush.msra.mxu0 %v3426
        %7330 = vmatpush.msra.mxu0 %v3425
        %7331 = vmatpush.msra.mxu0 %v3424
        %7332 = vmatmul.f32.gmra.mxu0 %v408
        %v7333 = vpop.f32.mrf.mxu0
        %v7334 = vadd.f32 %v7314, %v7333
        %7335 = vdwg.mxu0
        %7336 = vmatpush.msra.mxu0 %v3455
        %7337 = vmatpush.msra.mxu0 %v3454
        %7338 = vmatpush.msra.mxu0 %v3453
        %7339 = vmatpush.msra.mxu0 %v3452
        %7340 = vmatpush.msra.mxu0 %v3451
        %7341 = vmatpush.msra.mxu0 %v3450
        %7342 = vmatpush.msra.mxu0 %v3449
        %7343 = vmatpush.msra.mxu0 %v3448
        %7344 = vmatpush.msra.mxu0 %v3447
        %7345 = vmatpush.msra.mxu0 %v3446
        %7346 = vmatpush.msra.mxu0 %v3445
        %7347 = vmatpush.msra.mxu0 %v3444
        %7348 = vmatpush.msra.mxu0 %v3443
        %7349 = vmatpush.msra.mxu0 %v3442
        %7350 = vmatpush.msra.mxu0 %v3441
        %7351 = vmatpush.msra.mxu0 %v3440
        %7352 = vmatmul.f32.gmra.mxu0 %v409
        %v7353 = vpop.f32.mrf.mxu0
        %v7354 = vadd.f32 %v7334, %v7353
        %7355 = vdwg.mxu0
        %7356 = vmatpush.msra.mxu0 %v3471
        %7357 = vmatpush.msra.mxu0 %v3470
        %7358 = vmatpush.msra.mxu0 %v3469
        %7359 = vmatpush.msra.mxu0 %v3468
        %7360 = vmatpush.msra.mxu0 %v3467
        %7361 = vmatpush.msra.mxu0 %v3466
        %7362 = vmatpush.msra.mxu0 %v3465
        %7363 = vmatpush.msra.mxu0 %v3464
        %7364 = vmatpush.msra.mxu0 %v3463
        %7365 = vmatpush.msra.mxu0 %v3462
        %7366 = vmatpush.msra.mxu0 %v3461
        %7367 = vmatpush.msra.mxu0 %v3460
        %7368 = vmatpush.msra.mxu0 %v3459
        %7369 = vmatpush.msra.mxu0 %v3458
        %7370 = vmatpush.msra.mxu0 %v3457
        %7371 = vmatpush.msra.mxu0 %v3456
        %7372 = vmatmul.f32.gmra.mxu0 %v410
        %v7373 = vpop.f32.mrf.mxu0
        %v7374 = vadd.f32 %v7354, %v7373
        %7375 = vdwg.mxu0
        %7376 = vmatpush.msra.mxu0 %v3487
        %7377 = vmatpush.msra.mxu0 %v3486
        %7378 = vmatpush.msra.mxu0 %v3485
        %7379 = vmatpush.msra.mxu0 %v3484
        %7380 = vmatpush.msra.mxu0 %v3483
        %7381 = vmatpush.msra.mxu0 %v3482
        %7382 = vmatpush.msra.mxu0 %v3481
        %7383 = vmatpush.msra.mxu0 %v3480
        %7384 = vmatpush.msra.mxu0 %v3479
        %7385 = vmatpush.msra.mxu0 %v3478
        %7386 = vmatpush.msra.mxu0 %v3477
        %7387 = vmatpush.msra.mxu0 %v3476
        %7388 = vmatpush.msra.mxu0 %v3475
        %7389 = vmatpush.msra.mxu0 %v3474
        %7390 = vmatpush.msra.mxu0 %v3473
        %7391 = vmatpush.msra.mxu0 %v3472
        %7392 = vmatmul.f32.gmra.mxu0 %v411
        %v7393 = vpop.f32.mrf.mxu0
        %v7394 = vadd.f32 %v7374, %v7393
        %7395 = vdwg.mxu0
        %7396 = vmatpush.msra.mxu0 %v3503
        %7397 = vmatpush.msra.mxu0 %v3502
        %7398 = vmatpush.msra.mxu0 %v3501
        %7399 = vmatpush.msra.mxu0 %v3500
        %7400 = vmatpush.msra.mxu0 %v3499
        %7401 = vmatpush.msra.mxu0 %v3498
        %7402 = vmatpush.msra.mxu0 %v3497
        %7403 = vmatpush.msra.mxu0 %v3496
        %7404 = vmatpush.msra.mxu0 %v3495
        %7405 = vmatpush.msra.mxu0 %v3494
        %7406 = vmatpush.msra.mxu0 %v3493
        %7407 = vmatpush.msra.mxu0 %v3492
        %7408 = vmatpush.msra.mxu0 %v3491
        %7409 = vmatpush.msra.mxu0 %v3490
        %7410 = vmatpush.msra.mxu0 %v3489
        %7411 = vmatpush.msra.mxu0 %v3488
        %7412 = vmatmul.f32.gmra.mxu0 %v412
        %v7413 = vpop.f32.mrf.mxu0
        %v7414 = vadd.f32 %v7394, %v7413
        %7415 = vdwg.mxu0
        %7416 = vmatpush.msra.mxu0 %v3519
        %7417 = vmatpush.msra.mxu0 %v3518
        %7418 = vmatpush.msra.mxu0 %v3517
        %7419 = vmatpush.msra.mxu0 %v3516
        %7420 = vmatpush.msra.mxu0 %v3515
        %7421 = vmatpush.msra.mxu0 %v3514
        %7422 = vmatpush.msra.mxu0 %v3513
        %7423 = vmatpush.msra.mxu0 %v3512
        %7424 = vmatpush.msra.mxu0 %v3511
        %7425 = vmatpush.msra.mxu0 %v3510
        %7426 = vmatpush.msra.mxu0 %v3509
        %7427 = vmatpush.msra.mxu0 %v3508
        %7428 = vmatpush.msra.mxu0 %v3507
        %7429 = vmatpush.msra.mxu0 %v3506
        %7430 = vmatpush.msra.mxu0 %v3505
        %7431 = vmatpush.msra.mxu0 %v3504
        %7432 = vmatmul.f32.gmra.mxu0 %v413
        %v7433 = vpop.f32.mrf.mxu0
        %v7434 = vadd.f32 %v7414, %v7433
        %7435 = vdwg.mxu0
        %7436 = vmatpush.msra.mxu0 %v3535
        %7437 = vmatpush.msra.mxu0 %v3534
        %7438 = vmatpush.msra.mxu0 %v3533
        %7439 = vmatpush.msra.mxu0 %v3532
        %7440 = vmatpush.msra.mxu0 %v3531
        %7441 = vmatpush.msra.mxu0 %v3530
        %7442 = vmatpush.msra.mxu0 %v3529
        %7443 = vmatpush.msra.mxu0 %v3528
        %7444 = vmatpush.msra.mxu0 %v3527
        %7445 = vmatpush.msra.mxu0 %v3526
        %7446 = vmatpush.msra.mxu0 %v3525
        %7447 = vmatpush.msra.mxu0 %v3524
        %7448 = vmatpush.msra.mxu0 %v3523
        %7449 = vmatpush.msra.mxu0 %v3522
        %7450 = vmatpush.msra.mxu0 %v3521
        %7451 = vmatpush.msra.mxu0 %v3520
        %7452 = vmatmul.f32.gmra.mxu0 %v414
        %v7453 = vpop.f32.mrf.mxu0
        %v7454 = vadd.f32 %v7434, %v7453
        %7455 = vdwg.mxu0
        %7456 = vmatpush.msra.mxu0 %v3551
        %7457 = vmatpush.msra.mxu0 %v3550
        %7458 = vmatpush.msra.mxu0 %v3549
        %7459 = vmatpush.msra.mxu0 %v3548
        %7460 = vmatpush.msra.mxu0 %v3547
        %7461 = vmatpush.msra.mxu0 %v3546
        %7462 = vmatpush.msra.mxu0 %v3545
        %7463 = vmatpush.msra.mxu0 %v3544
        %7464 = vmatpush.msra.mxu0 %v3543
        %7465 = vmatpush.msra.mxu0 %v3542
        %7466 = vmatpush.msra.mxu0 %v3541
        %7467 = vmatpush.msra.mxu0 %v3540
        %7468 = vmatpush.msra.mxu0 %v3539
        %7469 = vmatpush.msra.mxu0 %v3538
        %7470 = vmatpush.msra.mxu0 %v3537
        %7471 = vmatpush.msra.mxu0 %v3536
        %7472 = vmatmul.f32.gmra.mxu0 %v415
        %v7473 = vpop.f32.mrf.mxu0
        %v7474 = vadd.f32 %v7454, %v7473
        %7475 = vdwg.mxu0
        %7476 = vst [vmem:[%s219] sm:$0xff] %v7474
        %s7477 = sand.u32 %s97, 1
        %s7478 = scalar_lea.sflag [#allocation4], %s7477
        %s7479 = sand.u32 %s97, 1
        %s7480 = smul.addr %s7479, 8
        %s7481 = scalar_lea.vmem [#allocation8], %s7480
        // Predicated region
        $region45: #{tpu_custom_call.1} parent=31 // pred_check
          %p7482 = pneg %p107
        $region46: #{tpu_custom_call.1} parent=31 // pred_check_branch
          %7484 = sbr.rel (%p7482) target = $region48
        $region47: #{tpu_custom_call.1} parent=31 // pred_region
          %7486 = vsyncadd %s7478, 0
          %s7487 = smul.addr %s21, 8
          %s7488 = scalar_lea.hbm %s3, %s7487
          %s7490 = sshll.u32 %s7481, 4
          %s7491 = int_to_ptr.vmem [resolvable:$true] %s7490
          %s7492 = sshll.u32 %s7488, 4
          %s7493 = int_to_ptr.hbm [resolvable:$true] %s7492
          %7495 = dma.vmem_to_hbm [thread:$0]  %s7491, 128, %s7493, %s7478
        $region48: #{tpu_custom_call.1} parent=31 // pred_fallthru
          _
      $region32: #{tpu_custom_call.1} parent=5 // pred_fallthru
        _
      %p7496 = scmp.le.s32.totalorder 2, %s16
      // Predicated region
      $region49: #{tpu_custom_call.1} parent=5 // pred_check
        %p7497 = pneg %p7496
      $region50: #{tpu_custom_call.1} parent=5 // pred_check_branch
        %7499 = sbr.rel (%p7497) target = $region52
      $region51: #{tpu_custom_call.1} parent=5 // pred_region
        %s7500 = ssub.s32 %s16, 2
        // Predicated region
        $region53: #{tpu_custom_call.1} parent=51 // pred_check
          %p7501 = pneg %p113
        $region54: #{tpu_custom_call.1} parent=51 // pred_check_branch
          %7503 = sbr.rel (%p7501) target = $region56
        $region55: #{tpu_custom_call.1} parent=51 // pred_region
          %s7504 = sand.u32 %s98, 1
          %s7505 = scalar_lea.sflag [#allocation4], %s7504
          %s7506 = sand.u32 %s98, 1
          %s7507 = smul.addr %s7506, 8
          %s7508 = scalar_lea.vmem [#allocation8], %s7507
          %7510 = dma.done %s7505, 128
        $region56: #{tpu_custom_call.1} parent=51 // pred_fallthru
          _
      $region52: #{tpu_custom_call.1} parent=5 // pred_fallthru
        _
    $region6: #{tpu_custom_call.1} parent=1 // loop_footer
      %s20 = sadd.s32 1, %s16
    $region7: #{tpu_custom_call.1} parent=1 // loop_footer_branch
      %15 = sbr.rel target = $region3
    $region8: #{tpu_custom_call.1} parent=1 // loop_exit
      _
    %7511 = vsyncpa [#allocation3], 1
    %s7512 = scalar_lea.sflag [#allocation3], 1
    %7513 = vsyncpa %s7512, 1
    %7514 = vsyncpa [#allocation6], 1
    %7515 = vsyncpa [#allocation4], 1
    %s7516 = scalar_lea.sflag [#allocation4], 1
    %7517 = vsyncpa %s7516, 1

</llo_original>
